<compile_context>
chip_gen: v6e
topology: v6e:2x2x1
jax: 0.10.0
libtpu: 0.0.40
codegen_flags: <defaults>
</compile_context>

<pallas_src>
import jax
import jax.numpy as jnp
from jax import lax
from jax.experimental import pallas as pl
from jax.experimental.pallas import tpu as pltpu

KH = KW = 5
STRIDE = 2
PAD = 2
LANE = 128


def _dwconv_kernel(xp_ref, w_ref, o_ref, xf_ref, wf_ref):
    # xp_ref: (2, 2, hq, wq, cb)  parity-split zero-padded input (bf16)
    # w_ref : (KH, KW, cb)        depthwise filters (bf16)
    # o_ref : (oh, ow, cb)        output tile (bf16; f32 accumulation in-reg)
    # xf_ref: (2, 2, hq, wq, cb)  f32 scratch (one-shot upcast of the input)
    # wf_ref: (KH, KW, cb)        f32 scratch (one-shot upcast of the weights)
    oh, ow, cb = o_ref.shape
    hq = xp_ref.shape[2]

    # One-shot bf16 -> f32 upcast: converts the per-tap casts (which sat in
    # the binding VALU slot, ~25x per element) into one streaming cast plus
    # vld/vst traffic where there is slack.  Chunked per (parity plane,
    # 128-lane group) so each statement stays ~10 live vregs.
    for ph in range(2):
        for pw in range(2):
            for c0 in range(0, cb, LANE):
                csl = slice(c0, c0 + LANE)
                xf_ref[ph, pw, :, :, csl] = (
                    xp_ref[ph, pw, :, :, csl].astype(jnp.float32))
    wf_ref[...] = w_ref[...].astype(jnp.float32)

    # 128-lane chunks: acc + patch stay ~15-20 live vregs (no spills) despite
    # the 640-wide block; per-chunk store bounds the accumulator live range.
    for c0 in range(0, cb, LANE):
        csl = slice(c0, c0 + LANE)
        acc = jnp.zeros((oh, ow, LANE), jnp.float32)
        for kh in range(KH):
            ph, qh = kh % 2, kh // 2
            for kw in range(KW):
                pw, qw = kw % 2, kw // 2
                wv = wf_ref[kh, kw, csl]                        # (LANE,) f32
                # stride-2 tap (kh, kw) == contiguous static slice of a parity plane
                patch = xf_ref[ph, pw, qh:qh + oh, qw:qw + ow, csl]
                acc = acc + patch * wv
        o_ref[:, :, csl] = acc.astype(o_ref.dtype)


@jax.jit
def depthwise_conv5x5_s2(x_nchw, w_ckhkw):
    """x_nchw: (1, C, H, W) float32; w_ckhkw: (C, KH, KW) depthwise filters."""
    n, c, h, w = x_nchw.shape
    assert n == 1, "kernel written for batch 1 (matches the module's input)"
    oh = (h + 2 * PAD - KH) // STRIDE + 1
    ow = (w + 2 * PAD - KW) // STRIDE + 1
    # parity-plane sizes (zero-pad a little extra on the bottom/right)
    hq = max(-(-(h + 2 * PAD) // 2), (KH - 1) // 2 + oh)
    wq = max(-(-(w + 2 * PAD) // 2), (KW - 1) // 2 + ow)

    # channels -> two even, 128-aligned halves (leading axis, indexed by grid)
    cp = -(-c // 256) * 256          # 1200 -> 1280
    cb = cp // 2                     # 640
    grid = (cp // cb,)               # (2,)

    # --- input plumbing: pad + free dim-split + ONE transpose (bf16 cast
    # fused into the same fusion).
    #   xps[a, ph, pw, i, j, b] = xpad[a*cb + b, 2*i + ph, 2*j + pw]
    xpad = jnp.pad(x_nchw[0], ((0, cp - c),
                               (PAD, 2 * hq - h - PAD),
                               (PAD, 2 * wq - w - PAD)))           # (Cp, 2hq, 2wq)
    xps = jnp.transpose(xpad.reshape(2, cb, hq, 2, wq, 2),
                        (0, 3, 5, 2, 4, 1)).astype(jnp.bfloat16)   # (2,2,2,hq,wq,cb)

    wps = jnp.transpose(
        jnp.pad(w_ckhkw, ((0, cp - c), (0, 0), (0, 0))).reshape(2, cb, KH, KW),
        (0, 2, 3, 1)).astype(jnp.bfloat16)                          # (2, KH, KW, cb)

    cost = pl.CostEstimate(
        flops=2 * cp * oh * ow * KH * KW,
        transcendentals=0,
        bytes_accessed=(4 * hq * wq * cp * 2      # bf16 input
                        + KH * KW * cp * 2        # bf16 weights
                        + oh * ow * cp * 2),      # bf16 output
    )

    out = pl.pallas_call(
        _dwconv_kernel,
        out_shape=jax.ShapeDtypeStruct((2, oh, ow, cb), jnp.bfloat16),
        grid_spec=pltpu.PrefetchScalarGridSpec(
            num_scalar_prefetch=0,
            grid=grid,
            in_specs=[
                # leading channel-half axis indexed by the grid -> one
                # contiguous DMA descriptor per block
                pl.BlockSpec((None, 2, 2, hq, wq, cb),
                             lambda ci: (ci, 0, 0, 0, 0, 0)),
                pl.BlockSpec((None, KH, KW, cb), lambda ci: (ci, 0, 0, 0)),
            ],
            out_specs=pl.BlockSpec((None, oh, ow, cb),
                                   lambda ci: (ci, 0, 0, 0)),
            scratch_shapes=[pltpu.VMEM((2, 2, hq, wq, cb), jnp.float32),
                            pltpu.VMEM((KH, KW, cb), jnp.float32)],
        ),
        compiler_params=pltpu.CompilerParams(
            dimension_semantics=("parallel",)),
        cost_estimate=cost,
    )(xps, wps)                                                     # (2, oh, ow, cb)

    # --- output plumbing: ONE transpose fusion (channel slice + f32 cast fused)
    out = jnp.transpose(out, (0, 3, 1, 2)).reshape(cp, oh, ow)[:c]  # (C, OH, OW)
    return out[None].astype(x_nchw.dtype)                           # (1, C, OH, OW)


if __name__ == "__main__":
    # Real module shape: N=1, C=1200, 14x14 spatial (still < 1 MB of input).
    C, H, W = 1200, 14, 14
    key = jax.random.PRNGKey(0)
    kx, kwt = jax.random.split(key)
    x = jax.random.normal(kx, (1, C, H, W), dtype=jnp.float32)
    wgt = jax.random.normal(kwt, (C, KH, KW), dtype=jnp.float32) * 0.1

    out = jax.block_until_ready(depthwise_conv5x5_s2(x, wgt))

    OH = (H + 2 * PAD - KH) // STRIDE + 1
    OW = (W + 2 * PAD - KW) // STRIDE + 1
    assert out.shape == (1, C, OH, OW)

    # Reference with the same bf16-quantized operands (kernel accumulates in
    # f32 and rounds the result once to bf16).
    xq = x.astype(jnp.bfloat16).astype(jnp.float32)
    wq = wgt.astype(jnp.bfloat16).astype(jnp.float32)
    ref = lax.conv_general_dilated(
        xq, wq.reshape(C, 1, KH, KW),
        window_strides=(STRIDE, STRIDE),
        padding=((PAD, PAD), (PAD, PAD)),
        feature_group_count=C,
        dimension_numbers=("NCHW", "OIHW", "NCHW"),
    )
    assert jnp.allclose(out, ref, atol=3e-2, rtol=2e-2), \
        float(jnp.max(jnp.abs(out - ref)))

    # Sanity vs. full-f32 math (bf16 HBM traffic => small quantization error).
    ref32 = lax.conv_general_dilated(
        x, wgt.reshape(C, 1, KH, KW),
        window_strides=(STRIDE, STRIDE),
        padding=((PAD, PAD), (PAD, PAD)),
        feature_group_count=C,
        dimension_numbers=("NCHW", "OIHW", "NCHW"),
    )
    assert jnp.allclose(out, ref32, atol=1e-1, rtol=5e-2)

    print("KERNEL_OK")
</pallas_src>

<mosaic_0001>
module attributes {stable_mosaic.version = 11 : i64} {
  func.func @_dwconv_kernel(%arg0: i32, %arg1: memref<1x2x2x9x9x640xbf16, #tpu.memory_space<vmem>>, %arg2: memref<1x5x5x640xbf16, #tpu.memory_space<vmem>>, %arg3: memref<1x7x7x640xbf16, #tpu.memory_space<vmem>>, %arg4: memref<2x2x9x9x640xf32, #tpu.memory_space<vmem>>, %arg5: memref<5x5x640xf32, #tpu.memory_space<vmem>>) attributes {dimension_semantics = [#tpu.dimension_semantics<parallel>], iteration_bounds = array<i64: 2>, scalar_prefetch = 0 : i64, scratch_operands = 2 : i64, tpu.core_type = #tpu.core_type<tc>, window_params = [{transform_indices = @transform_0, window_bounds = array<i64: 1, 2, 2, 9, 9, 640>}, {transform_indices = @transform_1, window_bounds = array<i64: 1, 5, 5, 640>}, {transform_indices = @transform_2, window_bounds = array<i64: 1, 7, 7, 640>}]} {
    %c0 = arith.constant 0 : index
    %c0_0 = arith.constant 0 : index
    %c0_1 = arith.constant 0 : index
    %c0_2 = arith.constant 0 : index
    %c0_3 = arith.constant 0 : index
    %c0_4 = arith.constant 0 : index
    %0 = vector.load %arg1[%c0, %c0_0, %c0_1, %c0_2, %c0_3, %c0_4] : memref<1x2x2x9x9x640xbf16, #tpu.memory_space<vmem>>, vector<1x1x1x9x9x128xbf16>
    %1 = vector.shape_cast %0 : vector<1x1x1x9x9x128xbf16> to vector<9x9x128xbf16>
    %2 = arith.extf %1 : vector<9x9x128xbf16> to vector<9x9x128xf32>
    %c0_5 = arith.constant 0 : index
    %c0_6 = arith.constant 0 : index
    %c0_7 = arith.constant 0 : index
    %c0_8 = arith.constant 0 : index
    %c0_9 = arith.constant 0 : index
    %3 = vector.load %arg4[%c0_5, %c0_6, %c0_7, %c0_8, %c0_9] : memref<2x2x9x9x640xf32, #tpu.memory_space<vmem>>, vector<1x1x9x9x128xf32>
    %4 = vector.shape_cast %3 : vector<1x1x9x9x128xf32> to vector<9x9x128xf32>
    %5 = vector.shape_cast %2 : vector<9x9x128xf32> to vector<1x1x9x9x128xf32>
    tpu.vector_store %arg4[%c0_5, %c0_6, %c0_7, %c0_8, %c0_9], %5 {strides = array<i32>} : memref<2x2x9x9x640xf32, #tpu.memory_space<vmem>>, vector<1x1x9x9x128xf32>,
    %c0_10 = arith.constant 0 : index
    %c0_11 = arith.constant 0 : index
    %c0_12 = arith.constant 0 : index
    %c0_13 = arith.constant 0 : index
    %c0_14 = arith.constant 0 : index
    %c128 = arith.constant 128 : index
    %6 = vector.load %arg1[%c0_10, %c0_11, %c0_12, %c0_13, %c0_14, %c128] : memref<1x2x2x9x9x640xbf16, #tpu.memory_space<vmem>>, vector<1x1x1x9x9x128xbf16>
    %7 = vector.shape_cast %6 : vector<1x1x1x9x9x128xbf16> to vector<9x9x128xbf16>
    %8 = arith.extf %7 : vector<9x9x128xbf16> to vector<9x9x128xf32>
    %c0_15 = arith.constant 0 : index
    %c0_16 = arith.constant 0 : index
    %c0_17 = arith.constant 0 : index
    %c0_18 = arith.constant 0 : index
    %c128_19 = arith.constant 128 : index
    %9 = vector.load %arg4[%c0_15, %c0_16, %c0_17, %c0_18, %c128_19] : memref<2x2x9x9x640xf32, #tpu.memory_space<vmem>>, vector<1x1x9x9x128xf32>
    %10 = vector.shape_cast %9 : vector<1x1x9x9x128xf32> to vector<9x9x128xf32>
    %11 = vector.shape_cast %8 : vector<9x9x128xf32> to vector<1x1x9x9x128xf32>
    tpu.vector_store %arg4[%c0_15, %c0_16, %c0_17, %c0_18, %c128_19], %11 {strides = array<i32>} : memref<2x2x9x9x640xf32, #tpu.memory_space<vmem>>, vector<1x1x9x9x128xf32>,
    %c0_20 = arith.constant 0 : index
    %c0_21 = arith.constant 0 : index
    %c0_22 = arith.constant 0 : index
    %c0_23 = arith.constant 0 : index
    %c0_24 = arith.constant 0 : index
    %c256 = arith.constant 256 : index
    %12 = vector.load %arg1[%c0_20, %c0_21, %c0_22, %c0_23, %c0_24, %c256] : memref<1x2x2x9x9x640xbf16, #tpu.memory_space<vmem>>, vector<1x1x1x9x9x128xbf16>
    %13 = vector.shape_cast %12 : vector<1x1x1x9x9x128xbf16> to vector<9x9x128xbf16>
    %14 = arith.extf %13 : vector<9x9x128xbf16> to vector<9x9x128xf32>
    %c0_25 = arith.constant 0 : index
    %c0_26 = arith.constant 0 : index
    %c0_27 = arith.constant 0 : index
    %c0_28 = arith.constant 0 : index
    %c256_29 = arith.constant 256 : index
    %15 = vector.load %arg4[%c0_25, %c0_26, %c0_27, %c0_28, %c256_29] : memref<2x2x9x9x640xf32, #tpu.memory_space<vmem>>, vector<1x1x9x9x128xf32>
    %16 = vector.shape_cast %15 : vector<1x1x9x9x128xf32> to vector<9x9x128xf32>
    %17 = vector.shape_cast %14 : vector<9x9x128xf32> to vector<1x1x9x9x128xf32>
    tpu.vector_store %arg4[%c0_25, %c0_26, %c0_27, %c0_28, %c256_29], %17 {strides = array<i32>} : memref<2x2x9x9x640xf32, #tpu.memory_space<vmem>>, vector<1x1x9x9x128xf32>,
    %c0_30 = arith.constant 0 : index
    %c0_31 = arith.constant 0 : index
    %c0_32 = arith.constant 0 : index
    %c0_33 = arith.constant 0 : index
    %c0_34 = arith.constant 0 : index
    %c384 = arith.constant 384 : index
    %18 = vector.load %arg1[%c0_30, %c0_31, %c0_32, %c0_33, %c0_34, %c384] : memref<1x2x2x9x9x640xbf16, #tpu.memory_space<vmem>>, vector<1x1x1x9x9x128xbf16>
    %19 = vector.shape_cast %18 : vector<1x1x1x9x9x128xbf16> to vector<9x9x128xbf16>
    %20 = arith.extf %19 : vector<9x9x128xbf16> to vector<9x9x128xf32>
    %c0_35 = arith.constant 0 : index
    %c0_36 = arith.constant 0 : index
    %c0_37 = arith.constant 0 : index
    %c0_38 = arith.constant 0 : index
    %c384_39 = arith.constant 384 : index
    %21 = vector.load %arg4[%c0_35, %c0_36, %c0_37, %c0_38, %c384_39] : memref<2x2x9x9x640xf32, #tpu.memory_space<vmem>>, vector<1x1x9x9x128xf32>
    %22 = vector.shape_cast %21 : vector<1x1x9x9x128xf32> to vector<9x9x128xf32>
    %23 = vector.shape_cast %20 : vector<9x9x128xf32> to vector<1x1x9x9x128xf32>
    tpu.vector_store %arg4[%c0_35, %c0_36, %c0_37, %c0_38, %c384_39], %23 {strides = array<i32>} : memref<2x2x9x9x640xf32, #tpu.memory_space<vmem>>, vector<1x1x9x9x128xf32>,
    %c0_40 = arith.constant 0 : index
    %c0_41 = arith.constant 0 : index
    %c0_42 = arith.constant 0 : index
    %c0_43 = arith.constant 0 : index
    %c0_44 = arith.constant 0 : index
    %c512 = arith.constant 512 : index
    %24 = vector.load %arg1[%c0_40, %c0_41, %c0_42, %c0_43, %c0_44, %c512] : memref<1x2x2x9x9x640xbf16, #tpu.memory_space<vmem>>, vector<1x1x1x9x9x128xbf16>
    %25 = vector.shape_cast %24 : vector<1x1x1x9x9x128xbf16> to vector<9x9x128xbf16>
    %26 = arith.extf %25 : vector<9x9x128xbf16> to vector<9x9x128xf32>
    %c0_45 = arith.constant 0 : index
    %c0_46 = arith.constant 0 : index
    %c0_47 = arith.constant 0 : index
    %c0_48 = arith.constant 0 : index
    %c512_49 = arith.constant 512 : index
    %27 = vector.load %arg4[%c0_45, %c0_46, %c0_47, %c0_48, %c512_49] : memref<2x2x9x9x640xf32, #tpu.memory_space<vmem>>, vector<1x1x9x9x128xf32>
    %28 = vector.shape_cast %27 : vector<1x1x9x9x128xf32> to vector<9x9x128xf32>
    %29 = vector.shape_cast %26 : vector<9x9x128xf32> to vector<1x1x9x9x128xf32>
    tpu.vector_store %arg4[%c0_45, %c0_46, %c0_47, %c0_48, %c512_49], %29 {strides = array<i32>} : memref<2x2x9x9x640xf32, #tpu.memory_space<vmem>>, vector<1x1x9x9x128xf32>,
    %c0_50 = arith.constant 0 : index
    %c0_51 = arith.constant 0 : index
    %c1 = arith.constant 1 : index
    %c0_52 = arith.constant 0 : index
    %c0_53 = arith.constant 0 : index
    %c0_54 = arith.constant 0 : index
    %30 = vector.load %arg1[%c0_50, %c0_51, %c1, %c0_52, %c0_53, %c0_54] : memref<1x2x2x9x9x640xbf16, #tpu.memory_space<vmem>>, vector<1x1x1x9x9x128xbf16>
    %31 = vector.shape_cast %30 : vector<1x1x1x9x9x128xbf16> to vector<9x9x128xbf16>
    %32 = arith.extf %31 : vector<9x9x128xbf16> to vector<9x9x128xf32>
    %c0_55 = arith.constant 0 : index
    %c1_56 = arith.constant 1 : index
    %c0_57 = arith.constant 0 : index
    %c0_58 = arith.constant 0 : index
    %c0_59 = arith.constant 0 : index
    %33 = vector.load %arg4[%c0_55, %c1_56, %c0_57, %c0_58, %c0_59] : memref<2x2x9x9x640xf32, #tpu.memory_space<vmem>>, vector<1x1x9x9x128xf32>
    %34 = vector.shape_cast %33 : vector<1x1x9x9x128xf32> to vector<9x9x128xf32>
    %35 = vector.shape_cast %32 : vector<9x9x128xf32> to vector<1x1x9x9x128xf32>
    tpu.vector_store %arg4[%c0_55, %c1_56, %c0_57, %c0_58, %c0_59], %35 {strides = array<i32>} : memref<2x2x9x9x640xf32, #tpu.memory_space<vmem>>, vector<1x1x9x9x128xf32>,
    %c0_60 = arith.constant 0 : index
    %c0_61 = arith.constant 0 : index
    %c1_62 = arith.constant 1 : index
    %c0_63 = arith.constant 0 : index
    %c0_64 = arith.constant 0 : index
    %c128_65 = arith.constant 128 : index
    %36 = vector.load %arg1[%c0_60, %c0_61, %c1_62, %c0_63, %c0_64, %c128_65] : memref<1x2x2x9x9x640xbf16, #tpu.memory_space<vmem>>, vector<1x1x1x9x9x128xbf16>
    %37 = vector.shape_cast %36 : vector<1x1x1x9x9x128xbf16> to vector<9x9x128xbf16>
    %38 = arith.extf %37 : vector<9x9x128xbf16> to vector<9x9x128xf32>
    %c0_66 = arith.constant 0 : index
    %c1_67 = arith.constant 1 : index
    %c0_68 = arith.constant 0 : index
    %c0_69 = arith.constant 0 : index
    %c128_70 = arith.constant 128 : index
    %39 = vector.load %arg4[%c0_66, %c1_67, %c0_68, %c0_69, %c128_70] : memref<2x2x9x9x640xf32, #tpu.memory_space<vmem>>, vector<1x1x9x9x128xf32>
    %40 = vector.shape_cast %39 : vector<1x1x9x9x128xf32> to vector<9x9x128xf32>
    %41 = vector.shape_cast %38 : vector<9x9x128xf32> to vector<1x1x9x9x128xf32>
    tpu.vector_store %arg4[%c0_66, %c1_67, %c0_68, %c0_69, %c128_70], %41 {strides = array<i32>} : memref<2x2x9x9x640xf32, #tpu.memory_space<vmem>>, vector<1x1x9x9x128xf32>,
    %c0_71 = arith.constant 0 : index
    %c0_72 = arith.constant 0 : index
    %c1_73 = arith.constant 1 : index
    %c0_74 = arith.constant 0 : index
    %c0_75 = arith.constant 0 : index
    %c256_76 = arith.constant 256 : index
    %42 = vector.load %arg1[%c0_71, %c0_72, %c1_73, %c0_74, %c0_75, %c256_76] : memref<1x2x2x9x9x640xbf16, #tpu.memory_space<vmem>>, vector<1x1x1x9x9x128xbf16>
    %43 = vector.shape_cast %42 : vector<1x1x1x9x9x128xbf16> to vector<9x9x128xbf16>
    %44 = arith.extf %43 : vector<9x9x128xbf16> to vector<9x9x128xf32>
    %c0_77 = arith.constant 0 : index
    %c1_78 = arith.constant 1 : index
    %c0_79 = arith.constant 0 : index
    %c0_80 = arith.constant 0 : index
    %c256_81 = arith.constant 256 : index
    %45 = vector.load %arg4[%c0_77, %c1_78, %c0_79, %c0_80, %c256_81] : memref<2x2x9x9x640xf32, #tpu.memory_space<vmem>>, vector<1x1x9x9x128xf32>
    %46 = vector.shape_cast %45 : vector<1x1x9x9x128xf32> to vector<9x9x128xf32>
    %47 = vector.shape_cast %44 : vector<9x9x128xf32> to vector<1x1x9x9x128xf32>
    tpu.vector_store %arg4[%c0_77, %c1_78, %c0_79, %c0_80, %c256_81], %47 {strides = array<i32>} : memref<2x2x9x9x640xf32, #tpu.memory_space<vmem>>, vector<1x1x9x9x128xf32>,
    %c0_82 = arith.constant 0 : index
    %c0_83 = arith.constant 0 : index
    %c1_84 = arith.constant 1 : index
    %c0_85 = arith.constant 0 : index
    %c0_86 = arith.constant 0 : index
    %c384_87 = arith.constant 384 : index
    %48 = vector.load %arg1[%c0_82, %c0_83, %c1_84, %c0_85, %c0_86, %c384_87] : memref<1x2x2x9x9x640xbf16, #tpu.memory_space<vmem>>, vector<1x1x1x9x9x128xbf16>
    %49 = vector.shape_cast %48 : vector<1x1x1x9x9x128xbf16> to vector<9x9x128xbf16>
    %50 = arith.extf %49 : vector<9x9x128xbf16> to vector<9x9x128xf32>
    %c0_88 = arith.constant 0 : index
    %c1_89 = arith.constant 1 : index
    %c0_90 = arith.constant 0 : index
    %c0_91 = arith.constant 0 : index
    %c384_92 = arith.constant 384 : index
    %51 = vector.load %arg4[%c0_88, %c1_89, %c0_90, %c0_91, %c384_92] : memref<2x2x9x9x640xf32, #tpu.memory_space<vmem>>, vector<1x1x9x9x128xf32>
    %52 = vector.shape_cast %51 : vector<1x1x9x9x128xf32> to vector<9x9x128xf32>
    %53 = vector.shape_cast %50 : vector<9x9x128xf32> to vector<1x1x9x9x128xf32>
    tpu.vector_store %arg4[%c0_88, %c1_89, %c0_90, %c0_91, %c384_92], %53 {strides = array<i32>} : memref<2x2x9x9x640xf32, #tpu.memory_space<vmem>>, vector<1x1x9x9x128xf32>,
    %c0_93 = arith.constant 0 : index
    %c0_94 = arith.constant 0 : index
    %c1_95 = arith.constant 1 : index
    %c0_96 = arith.constant 0 : index
    %c0_97 = arith.constant 0 : index
    %c512_98 = arith.constant 512 : index
    %54 = vector.load %arg1[%c0_93, %c0_94, %c1_95, %c0_96, %c0_97, %c512_98] : memref<1x2x2x9x9x640xbf16, #tpu.memory_space<vmem>>, vector<1x1x1x9x9x128xbf16>
    %55 = vector.shape_cast %54 : vector<1x1x1x9x9x128xbf16> to vector<9x9x128xbf16>
    %56 = arith.extf %55 : vector<9x9x128xbf16> to vector<9x9x128xf32>
    %c0_99 = arith.constant 0 : index
    %c1_100 = arith.constant 1 : index
    %c0_101 = arith.constant 0 : index
    %c0_102 = arith.constant 0 : index
    %c512_103 = arith.constant 512 : index
    %57 = vector.load %arg4[%c0_99, %c1_100, %c0_101, %c0_102, %c512_103] : memref<2x2x9x9x640xf32, #tpu.memory_space<vmem>>, vector<1x1x9x9x128xf32>
    %58 = vector.shape_cast %57 : vector<1x1x9x9x128xf32> to vector<9x9x128xf32>
    %59 = vector.shape_cast %56 : vector<9x9x128xf32> to vector<1x1x9x9x128xf32>
    tpu.vector_store %arg4[%c0_99, %c1_100, %c0_101, %c0_102, %c512_103], %59 {strides = array<i32>} : memref<2x2x9x9x640xf32, #tpu.memory_space<vmem>>, vector<1x1x9x9x128xf32>,
    %c0_104 = arith.constant 0 : index
    %c1_105 = arith.constant 1 : index
    %c0_106 = arith.constant 0 : index
    %c0_107 = arith.constant 0 : index
    %c0_108 = arith.constant 0 : index
    %c0_109 = arith.constant 0 : index
    %60 = vector.load %arg1[%c0_104, %c1_105, %c0_106, %c0_107, %c0_108, %c0_109] : memref<1x2x2x9x9x640xbf16, #tpu.memory_space<vmem>>, vector<1x1x1x9x9x128xbf16>
    %61 = vector.shape_cast %60 : vector<1x1x1x9x9x128xbf16> to vector<9x9x128xbf16>
    %62 = arith.extf %61 : vector<9x9x128xbf16> to vector<9x9x128xf32>
    %c1_110 = arith.constant 1 : index
    %c0_111 = arith.constant 0 : index
    %c0_112 = arith.constant 0 : index
    %c0_113 = arith.constant 0 : index
    %c0_114 = arith.constant 0 : index
    %63 = vector.load %arg4[%c1_110, %c0_111, %c0_112, %c0_113, %c0_114] : memref<2x2x9x9x640xf32, #tpu.memory_space<vmem>>, vector<1x1x9x9x128xf32>
    %64 = vector.shape_cast %63 : vector<1x1x9x9x128xf32> to vector<9x9x128xf32>
    %65 = vector.shape_cast %62 : vector<9x9x128xf32> to vector<1x1x9x9x128xf32>
    tpu.vector_store %arg4[%c1_110, %c0_111, %c0_112, %c0_113, %c0_114], %65 {strides = array<i32>} : memref<2x2x9x9x640xf32, #tpu.memory_space<vmem>>, vector<1x1x9x9x128xf32>,
    %c0_115 = arith.constant 0 : index
    %c1_116 = arith.constant 1 : index
    %c0_117 = arith.constant 0 : index
    %c0_118 = arith.constant 0 : index
    %c0_119 = arith.constant 0 : index
    %c128_120 = arith.constant 128 : index
    %66 = vector.load %arg1[%c0_115, %c1_116, %c0_117, %c0_118, %c0_119, %c128_120] : memref<1x2x2x9x9x640xbf16, #tpu.memory_space<vmem>>, vector<1x1x1x9x9x128xbf16>
    %67 = vector.shape_cast %66 : vector<1x1x1x9x9x128xbf16> to vector<9x9x128xbf16>
    %68 = arith.extf %67 : vector<9x9x128xbf16> to vector<9x9x128xf32>
    %c1_121 = arith.constant 1 : index
    %c0_122 = arith.constant 0 : index
    %c0_123 = arith.constant 0 : index
    %c0_124 = arith.constant 0 : index
    %c128_125 = arith.constant 128 : index
    %69 = vector.load %arg4[%c1_121, %c0_122, %c0_123, %c0_124, %c128_125] : memref<2x2x9x9x640xf32, #tpu.memory_space<vmem>>, vector<1x1x9x9x128xf32>
    %70 = vector.shape_cast %69 : vector<1x1x9x9x128xf32> to vector<9x9x128xf32>
    %71 = vector.shape_cast %68 : vector<9x9x128xf32> to vector<1x1x9x9x128xf32>
    tpu.vector_store %arg4[%c1_121, %c0_122, %c0_123, %c0_124, %c128_125], %71 {strides = array<i32>} : memref<2x2x9x9x640xf32, #tpu.memory_space<vmem>>, vector<1x1x9x9x128xf32>,
    %c0_126 = arith.constant 0 : index
    %c1_127 = arith.constant 1 : index
    %c0_128 = arith.constant 0 : index
    %c0_129 = arith.constant 0 : index
    %c0_130 = arith.constant 0 : index
    %c256_131 = arith.constant 256 : index
    %72 = vector.load %arg1[%c0_126, %c1_127, %c0_128, %c0_129, %c0_130, %c256_131] : memref<1x2x2x9x9x640xbf16, #tpu.memory_space<vmem>>, vector<1x1x1x9x9x128xbf16>
    %73 = vector.shape_cast %72 : vector<1x1x1x9x9x128xbf16> to vector<9x9x128xbf16>
    %74 = arith.extf %73 : vector<9x9x128xbf16> to vector<9x9x128xf32>
    %c1_132 = arith.constant 1 : index
    %c0_133 = arith.constant 0 : index
    %c0_134 = arith.constant 0 : index
    %c0_135 = arith.constant 0 : index
    %c256_136 = arith.constant 256 : index
    %75 = vector.load %arg4[%c1_132, %c0_133, %c0_134, %c0_135, %c256_136] : memref<2x2x9x9x640xf32, #tpu.memory_space<vmem>>, vector<1x1x9x9x128xf32>
    %76 = vector.shape_cast %75 : vector<1x1x9x9x128xf32> to vector<9x9x128xf32>
    %77 = vector.shape_cast %74 : vector<9x9x128xf32> to vector<1x1x9x9x128xf32>
    tpu.vector_store %arg4[%c1_132, %c0_133, %c0_134, %c0_135, %c256_136], %77 {strides = array<i32>} : memref<2x2x9x9x640xf32, #tpu.memory_space<vmem>>, vector<1x1x9x9x128xf32>,
    %c0_137 = arith.constant 0 : index
    %c1_138 = arith.constant 1 : index
    %c0_139 = arith.constant 0 : index
    %c0_140 = arith.constant 0 : index
    %c0_141 = arith.constant 0 : index
    %c384_142 = arith.constant 384 : index
    %78 = vector.load %arg1[%c0_137, %c1_138, %c0_139, %c0_140, %c0_141, %c384_142] : memref<1x2x2x9x9x640xbf16, #tpu.memory_space<vmem>>, vector<1x1x1x9x9x128xbf16>
    %79 = vector.shape_cast %78 : vector<1x1x1x9x9x128xbf16> to vector<9x9x128xbf16>
    %80 = arith.extf %79 : vector<9x9x128xbf16> to vector<9x9x128xf32>
    %c1_143 = arith.constant 1 : index
    %c0_144 = arith.constant 0 : index
    %c0_145 = arith.constant 0 : index
    %c0_146 = arith.constant 0 : index
    %c384_147 = arith.constant 384 : index
    %81 = vector.load %arg4[%c1_143, %c0_144, %c0_145, %c0_146, %c384_147] : memref<2x2x9x9x640xf32, #tpu.memory_space<vmem>>, vector<1x1x9x9x128xf32>
    %82 = vector.shape_cast %81 : vector<1x1x9x9x128xf32> to vector<9x9x128xf32>
    %83 = vector.shape_cast %80 : vector<9x9x128xf32> to vector<1x1x9x9x128xf32>
    tpu.vector_store %arg4[%c1_143, %c0_144, %c0_145, %c0_146, %c384_147], %83 {strides = array<i32>} : memref<2x2x9x9x640xf32, #tpu.memory_space<vmem>>, vector<1x1x9x9x128xf32>,
    %c0_148 = arith.constant 0 : index
    %c1_149 = arith.constant 1 : index
    %c0_150 = arith.constant 0 : index
    %c0_151 = arith.constant 0 : index
    %c0_152 = arith.constant 0 : index
    %c512_153 = arith.constant 512 : index
    %84 = vector.load %arg1[%c0_148, %c1_149, %c0_150, %c0_151, %c0_152, %c512_153] : memref<1x2x2x9x9x640xbf16, #tpu.memory_space<vmem>>, vector<1x1x1x9x9x128xbf16>
    %85 = vector.shape_cast %84 : vector<1x1x1x9x9x128xbf16> to vector<9x9x128xbf16>
    %86 = arith.extf %85 : vector<9x9x128xbf16> to vector<9x9x128xf32>
    %c1_154 = arith.constant 1 : index
    %c0_155 = arith.constant 0 : index
    %c0_156 = arith.constant 0 : index
    %c0_157 = arith.constant 0 : index
    %c512_158 = arith.constant 512 : index
    %87 = vector.load %arg4[%c1_154, %c0_155, %c0_156, %c0_157, %c512_158] : memref<2x2x9x9x640xf32, #tpu.memory_space<vmem>>, vector<1x1x9x9x128xf32>
    %88 = vector.shape_cast %87 : vector<1x1x9x9x128xf32> to vector<9x9x128xf32>
    %89 = vector.shape_cast %86 : vector<9x9x128xf32> to vector<1x1x9x9x128xf32>
    tpu.vector_store %arg4[%c1_154, %c0_155, %c0_156, %c0_157, %c512_158], %89 {strides = array<i32>} : memref<2x2x9x9x640xf32, #tpu.memory_space<vmem>>, vector<1x1x9x9x128xf32>,
    %c0_159 = arith.constant 0 : index
    %c1_160 = arith.constant 1 : index
    %c1_161 = arith.constant 1 : index
    %c0_162 = arith.constant 0 : index
    %c0_163 = arith.constant 0 : index
    %c0_164 = arith.constant 0 : index
    %90 = vector.load %arg1[%c0_159, %c1_160, %c1_161, %c0_162, %c0_163, %c0_164] : memref<1x2x2x9x9x640xbf16, #tpu.memory_space<vmem>>, vector<1x1x1x9x9x128xbf16>
    %91 = vector.shape_cast %90 : vector<1x1x1x9x9x128xbf16> to vector<9x9x128xbf16>
    %92 = arith.extf %91 : vector<9x9x128xbf16> to vector<9x9x128xf32>
    %c1_165 = arith.constant 1 : index
    %c1_166 = arith.constant 1 : index
    %c0_167 = arith.constant 0 : index
    %c0_168 = arith.constant 0 : index
    %c0_169 = arith.constant 0 : index
    %93 = vector.load %arg4[%c1_165, %c1_166, %c0_167, %c0_168, %c0_169] : memref<2x2x9x9x640xf32, #tpu.memory_space<vmem>>, vector<1x1x9x9x128xf32>
    %94 = vector.shape_cast %93 : vector<1x1x9x9x128xf32> to vector<9x9x128xf32>
    %95 = vector.shape_cast %92 : vector<9x9x128xf32> to vector<1x1x9x9x128xf32>
    tpu.vector_store %arg4[%c1_165, %c1_166, %c0_167, %c0_168, %c0_169], %95 {strides = array<i32>} : memref<2x2x9x9x640xf32, #tpu.memory_space<vmem>>, vector<1x1x9x9x128xf32>,
    %c0_170 = arith.constant 0 : index
    %c1_171 = arith.constant 1 : index
    %c1_172 = arith.constant 1 : index
    %c0_173 = arith.constant 0 : index
    %c0_174 = arith.constant 0 : index
    %c128_175 = arith.constant 128 : index
    %96 = vector.load %arg1[%c0_170, %c1_171, %c1_172, %c0_173, %c0_174, %c128_175] : memref<1x2x2x9x9x640xbf16, #tpu.memory_space<vmem>>, vector<1x1x1x9x9x128xbf16>
    %97 = vector.shape_cast %96 : vector<1x1x1x9x9x128xbf16> to vector<9x9x128xbf16>
    %98 = arith.extf %97 : vector<9x9x128xbf16> to vector<9x9x128xf32>
    %c1_176 = arith.constant 1 : index
    %c1_177 = arith.constant 1 : index
    %c0_178 = arith.constant 0 : index
    %c0_179 = arith.constant 0 : index
    %c128_180 = arith.constant 128 : index
    %99 = vector.load %arg4[%c1_176, %c1_177, %c0_178, %c0_179, %c128_180] : memref<2x2x9x9x640xf32, #tpu.memory_space<vmem>>, vector<1x1x9x9x128xf32>
    %100 = vector.shape_cast %99 : vector<1x1x9x9x128xf32> to vector<9x9x128xf32>
    %101 = vector.shape_cast %98 : vector<9x9x128xf32> to vector<1x1x9x9x128xf32>
    tpu.vector_store %arg4[%c1_176, %c1_177, %c0_178, %c0_179, %c128_180], %101 {strides = array<i32>} : memref<2x2x9x9x640xf32, #tpu.memory_space<vmem>>, vector<1x1x9x9x128xf32>,
    %c0_181 = arith.constant 0 : index
    %c1_182 = arith.constant 1 : index
    %c1_183 = arith.constant 1 : index
    %c0_184 = arith.constant 0 : index
    %c0_185 = arith.constant 0 : index
    %c256_186 = arith.constant 256 : index
    %102 = vector.load %arg1[%c0_181, %c1_182, %c1_183, %c0_184, %c0_185, %c256_186] : memref<1x2x2x9x9x640xbf16, #tpu.memory_space<vmem>>, vector<1x1x1x9x9x128xbf16>
    %103 = vector.shape_cast %102 : vector<1x1x1x9x9x128xbf16> to vector<9x9x128xbf16>
    %104 = arith.extf %103 : vector<9x9x128xbf16> to vector<9x9x128xf32>
    %c1_187 = arith.constant 1 : index
    %c1_188 = arith.constant 1 : index
    %c0_189 = arith.constant 0 : index
    %c0_190 = arith.constant 0 : index
    %c256_191 = arith.constant 256 : index
    %105 = vector.load %arg4[%c1_187, %c1_188, %c0_189, %c0_190, %c256_191] : memref<2x2x9x9x640xf32, #tpu.memory_space<vmem>>, vector<1x1x9x9x128xf32>
    %106 = vector.shape_cast %105 : vector<1x1x9x9x128xf32> to vector<9x9x128xf32>
    %107 = vector.shape_cast %104 : vector<9x9x128xf32> to vector<1x1x9x9x128xf32>
    tpu.vector_store %arg4[%c1_187, %c1_188, %c0_189, %c0_190, %c256_191], %107 {strides = array<i32>} : memref<2x2x9x9x640xf32, #tpu.memory_space<vmem>>, vector<1x1x9x9x128xf32>,
    %c0_192 = arith.constant 0 : index
    %c1_193 = arith.constant 1 : index
    %c1_194 = arith.constant 1 : index
    %c0_195 = arith.constant 0 : index
    %c0_196 = arith.constant 0 : index
    %c384_197 = arith.constant 384 : index
    %108 = vector.load %arg1[%c0_192, %c1_193, %c1_194, %c0_195, %c0_196, %c384_197] : memref<1x2x2x9x9x640xbf16, #tpu.memory_space<vmem>>, vector<1x1x1x9x9x128xbf16>
    %109 = vector.shape_cast %108 : vector<1x1x1x9x9x128xbf16> to vector<9x9x128xbf16>
    %110 = arith.extf %109 : vector<9x9x128xbf16> to vector<9x9x128xf32>
    %c1_198 = arith.constant 1 : index
    %c1_199 = arith.constant 1 : index
    %c0_200 = arith.constant 0 : index
    %c0_201 = arith.constant 0 : index
    %c384_202 = arith.constant 384 : index
    %111 = vector.load %arg4[%c1_198, %c1_199, %c0_200, %c0_201, %c384_202] : memref<2x2x9x9x640xf32, #tpu.memory_space<vmem>>, vector<1x1x9x9x128xf32>
    %112 = vector.shape_cast %111 : vector<1x1x9x9x128xf32> to vector<9x9x128xf32>
    %113 = vector.shape_cast %110 : vector<9x9x128xf32> to vector<1x1x9x9x128xf32>
    tpu.vector_store %arg4[%c1_198, %c1_199, %c0_200, %c0_201, %c384_202], %113 {strides = array<i32>} : memref<2x2x9x9x640xf32, #tpu.memory_space<vmem>>, vector<1x1x9x9x128xf32>,
    %c0_203 = arith.constant 0 : index
    %c1_204 = arith.constant 1 : index
    %c1_205 = arith.constant 1 : index
    %c0_206 = arith.constant 0 : index
    %c0_207 = arith.constant 0 : index
    %c512_208 = arith.constant 512 : index
    %114 = vector.load %arg1[%c0_203, %c1_204, %c1_205, %c0_206, %c0_207, %c512_208] : memref<1x2x2x9x9x640xbf16, #tpu.memory_space<vmem>>, vector<1x1x1x9x9x128xbf16>
    %115 = vector.shape_cast %114 : vector<1x1x1x9x9x128xbf16> to vector<9x9x128xbf16>
    %116 = arith.extf %115 : vector<9x9x128xbf16> to vector<9x9x128xf32>
    %c1_209 = arith.constant 1 : index
    %c1_210 = arith.constant 1 : index
    %c0_211 = arith.constant 0 : index
    %c0_212 = arith.constant 0 : index
    %c512_213 = arith.constant 512 : index
    %117 = vector.load %arg4[%c1_209, %c1_210, %c0_211, %c0_212, %c512_213] : memref<2x2x9x9x640xf32, #tpu.memory_space<vmem>>, vector<1x1x9x9x128xf32>
    %118 = vector.shape_cast %117 : vector<1x1x9x9x128xf32> to vector<9x9x128xf32>
    %119 = vector.shape_cast %116 : vector<9x9x128xf32> to vector<1x1x9x9x128xf32>
    tpu.vector_store %arg4[%c1_209, %c1_210, %c0_211, %c0_212, %c512_213], %119 {strides = array<i32>} : memref<2x2x9x9x640xf32, #tpu.memory_space<vmem>>, vector<1x1x9x9x128xf32>,
    %c0_214 = arith.constant 0 : index
    %c0_215 = arith.constant 0 : index
    %c0_216 = arith.constant 0 : index
    %c0_217 = arith.constant 0 : index
    %120 = vector.load %arg2[%c0_214, %c0_215, %c0_216, %c0_217] : memref<1x5x5x640xbf16, #tpu.memory_space<vmem>>, vector<1x5x5x640xbf16>
    %121 = vector.shape_cast %120 : vector<1x5x5x640xbf16> to vector<5x5x640xbf16>
    %122 = arith.extf %121 : vector<5x5x640xbf16> to vector<5x5x640xf32>
    %c0_218 = arith.constant 0 : index
    %c0_219 = arith.constant 0 : index
    %c0_220 = arith.constant 0 : index
    %123 = vector.load %arg5[%c0_218, %c0_219, %c0_220] : memref<5x5x640xf32, #tpu.memory_space<vmem>>, vector<5x5x640xf32>
    tpu.vector_store %arg5[%c0_218, %c0_219, %c0_220], %122 {strides = array<i32>} : memref<5x5x640xf32, #tpu.memory_space<vmem>>, vector<5x5x640xf32>,
    %cst = arith.constant 0.000000e+00 : f32
    %124 = vector.broadcast %cst : f32 to vector<7x7x128xf32>
    %c0_221 = arith.constant 0 : index
    %c0_222 = arith.constant 0 : index
    %c0_223 = arith.constant 0 : index
    %125 = vector.load %arg5[%c0_221, %c0_222, %c0_223] : memref<5x5x640xf32, #tpu.memory_space<vmem>>, vector<1x1x128xf32>
    %126 = vector.shape_cast %125 : vector<1x1x128xf32> to vector<128xf32>
    %c0_224 = arith.constant 0 : index
    %c0_225 = arith.constant 0 : index
    %c0_226 = arith.constant 0 : index
    %c0_227 = arith.constant 0 : index
    %c0_228 = arith.constant 0 : index
    %127 = vector.load %arg4[%c0_224, %c0_225, %c0_226, %c0_227, %c0_228] : memref<2x2x9x9x640xf32, #tpu.memory_space<vmem>>, vector<1x1x7x7x128xf32>
    %128 = vector.shape_cast %127 : vector<1x1x7x7x128xf32> to vector<7x7x128xf32>
    %129 = vector.shape_cast %126 : vector<128xf32> to vector<1x1x128xf32>
    %130 = vector.broadcast %129 : vector<1x1x128xf32> to vector<7x7x128xf32>
    %131 = arith.mulf %128, %130 : vector<7x7x128xf32>
    %132 = arith.addf %124, %131 : vector<7x7x128xf32>
    %c0_229 = arith.constant 0 : index
    %c1_230 = arith.constant 1 : index
    %c0_231 = arith.constant 0 : index
    %133 = vector.load %arg5[%c0_229, %c1_230, %c0_231] : memref<5x5x640xf32, #tpu.memory_space<vmem>>, vector<1x1x128xf32>
    %134 = vector.shape_cast %133 : vector<1x1x128xf32> to vector<128xf32>
    %c0_232 = arith.constant 0 : index
    %c1_233 = arith.constant 1 : index
    %c0_234 = arith.constant 0 : index
    %c0_235 = arith.constant 0 : index
    %c0_236 = arith.constant 0 : index
    %135 = vector.load %arg4[%c0_232, %c1_233, %c0_234, %c0_235, %c0_236] : memref<2x2x9x9x640xf32, #tpu.memory_space<vmem>>, vector<1x1x7x7x128xf32>
    %136 = vector.shape_cast %135 : vector<1x1x7x7x128xf32> to vector<7x7x128xf32>
    %137 = vector.shape_cast %134 : vector<128xf32> to vector<1x1x128xf32>
    %138 = vector.broadcast %137 : vector<1x1x128xf32> to vector<7x7x128xf32>
    %139 = arith.mulf %136, %138 : vector<7x7x128xf32>
    %140 = arith.addf %132, %139 : vector<7x7x128xf32>
    %c0_237 = arith.constant 0 : index
    %c2 = arith.constant 2 : index
    %c0_238 = arith.constant 0 : index
    %141 = vector.load %arg5[%c0_237, %c2, %c0_238] : memref<5x5x640xf32, #tpu.memory_space<vmem>>, vector<1x1x128xf32>
    %142 = vector.shape_cast %141 : vector<1x1x128xf32> to vector<128xf32>
    %c0_239 = arith.constant 0 : index
    %c0_240 = arith.constant 0 : index
    %c0_241 = arith.constant 0 : index
    %c1_242 = arith.constant 1 : index
    %c0_243 = arith.constant 0 : index
    %143 = vector.load %arg4[%c0_239, %c0_240, %c0_241, %c1_242, %c0_243] : memref<2x2x9x9x640xf32, #tpu.memory_space<vmem>>, vector<1x1x7x7x128xf32>
    %144 = vector.shape_cast %143 : vector<1x1x7x7x128xf32> to vector<7x7x128xf32>
    %145 = vector.shape_cast %142 : vector<128xf32> to vector<1x1x128xf32>
    %146 = vector.broadcast %145 : vector<1x1x128xf32> to vector<7x7x128xf32>
    %147 = arith.mulf %144, %146 : vector<7x7x128xf32>
    %148 = arith.addf %140, %147 : vector<7x7x128xf32>
    %c0_244 = arith.constant 0 : index
    %c3 = arith.constant 3 : index
    %c0_245 = arith.constant 0 : index
    %149 = vector.load %arg5[%c0_244, %c3, %c0_245] : memref<5x5x640xf32, #tpu.memory_space<vmem>>, vector<1x1x128xf32>
    %150 = vector.shape_cast %149 : vector<1x1x128xf32> to vector<128xf32>
    %c0_246 = arith.constant 0 : index
    %c1_247 = arith.constant 1 : index
    %c0_248 = arith.constant 0 : index
    %c1_249 = arith.constant 1 : index
    %c0_250 = arith.constant 0 : index
    %151 = vector.load %arg4[%c0_246, %c1_247, %c0_248, %c1_249, %c0_250] : memref<2x2x9x9x640xf32, #tpu.memory_space<vmem>>, vector<1x1x7x7x128xf32>
    %152 = vector.shape_cast %151 : vector<1x1x7x7x128xf32> to vector<7x7x128xf32>
    %153 = vector.shape_cast %150 : vector<128xf32> to vector<1x1x128xf32>
    %154 = vector.broadcast %153 : vector<1x1x128xf32> to vector<7x7x128xf32>
    %155 = arith.mulf %152, %154 : vector<7x7x128xf32>
    %156 = arith.addf %148, %155 : vector<7x7x128xf32>
    %c0_251 = arith.constant 0 : index
    %c4 = arith.constant 4 : index
    %c0_252 = arith.constant 0 : index
    %157 = vector.load %arg5[%c0_251, %c4, %c0_252] : memref<5x5x640xf32, #tpu.memory_space<vmem>>, vector<1x1x128xf32>
    %158 = vector.shape_cast %157 : vector<1x1x128xf32> to vector<128xf32>
    %c0_253 = arith.constant 0 : index
    %c0_254 = arith.constant 0 : index
    %c0_255 = arith.constant 0 : index
    %c2_256 = arith.constant 2 : index
    %c0_257 = arith.constant 0 : index
    %159 = vector.load %arg4[%c0_253, %c0_254, %c0_255, %c2_256, %c0_257] : memref<2x2x9x9x640xf32, #tpu.memory_space<vmem>>, vector<1x1x7x7x128xf32>
    %160 = vector.shape_cast %159 : vector<1x1x7x7x128xf32> to vector<7x7x128xf32>
    %161 = vector.shape_cast %158 : vector<128xf32> to vector<1x1x128xf32>
    %162 = vector.broadcast %161 : vector<1x1x128xf32> to vector<7x7x128xf32>
    %163 = arith.mulf %160, %162 : vector<7x7x128xf32>
    %164 = arith.addf %156, %163 : vector<7x7x128xf32>
    %c1_258 = arith.constant 1 : index
    %c0_259 = arith.constant 0 : index
    %c0_260 = arith.constant 0 : index
    %165 = vector.load %arg5[%c1_258, %c0_259, %c0_260] : memref<5x5x640xf32, #tpu.memory_space<vmem>>, vector<1x1x128xf32>
    %166 = vector.shape_cast %165 : vector<1x1x128xf32> to vector<128xf32>
    %c1_261 = arith.constant 1 : index
    %c0_262 = arith.constant 0 : index
    %c0_263 = arith.constant 0 : index
    %c0_264 = arith.constant 0 : index
    %c0_265 = arith.constant 0 : index
    %167 = vector.load %arg4[%c1_261, %c0_262, %c0_263, %c0_264, %c0_265] : memref<2x2x9x9x640xf32, #tpu.memory_space<vmem>>, vector<1x1x7x7x128xf32>
    %168 = vector.shape_cast %167 : vector<1x1x7x7x128xf32> to vector<7x7x128xf32>
    %169 = vector.shape_cast %166 : vector<128xf32> to vector<1x1x128xf32>
    %170 = vector.broadcast %169 : vector<1x1x128xf32> to vector<7x7x128xf32>
    %171 = arith.mulf %168, %170 : vector<7x7x128xf32>
    %172 = arith.addf %164, %171 : vector<7x7x128xf32>
    %c1_266 = arith.constant 1 : index
    %c1_267 = arith.constant 1 : index
    %c0_268 = arith.constant 0 : index
    %173 = vector.load %arg5[%c1_266, %c1_267, %c0_268] : memref<5x5x640xf32, #tpu.memory_space<vmem>>, vector<1x1x128xf32>
    %174 = vector.shape_cast %173 : vector<1x1x128xf32> to vector<128xf32>
    %c1_269 = arith.constant 1 : index
    %c1_270 = arith.constant 1 : index
    %c0_271 = arith.constant 0 : index
    %c0_272 = arith.constant 0 : index
    %c0_273 = arith.constant 0 : index
    %175 = vector.load %arg4[%c1_269, %c1_270, %c0_271, %c0_272, %c0_273] : memref<2x2x9x9x640xf32, #tpu.memory_space<vmem>>, vector<1x1x7x7x128xf32>
    %176 = vector.shape_cast %175 : vector<1x1x7x7x128xf32> to vector<7x7x128xf32>
    %177 = vector.shape_cast %174 : vector<128xf32> to vector<1x1x128xf32>
    %178 = vector.broadcast %177 : vector<1x1x128xf32> to vector<7x7x128xf32>
    %179 = arith.mulf %176, %178 : vector<7x7x128xf32>
    %180 = arith.addf %172, %179 : vector<7x7x128xf32>
    %c1_274 = arith.constant 1 : index
    %c2_275 = arith.constant 2 : index
    %c0_276 = arith.constant 0 : index
    %181 = vector.load %arg5[%c1_274, %c2_275, %c0_276] : memref<5x5x640xf32, #tpu.memory_space<vmem>>, vector<1x1x128xf32>
    %182 = vector.shape_cast %181 : vector<1x1x128xf32> to vector<128xf32>
    %c1_277 = arith.constant 1 : index
    %c0_278 = arith.constant 0 : index
    %c0_279 = arith.constant 0 : index
    %c1_280 = arith.constant 1 : index
    %c0_281 = arith.constant 0 : index
    %183 = vector.load %arg4[%c1_277, %c0_278, %c0_279, %c1_280, %c0_281] : memref<2x2x9x9x640xf32, #tpu.memory_space<vmem>>, vector<1x1x7x7x128xf32>
    %184 = vector.shape_cast %183 : vector<1x1x7x7x128xf32> to vector<7x7x128xf32>
    %185 = vector.shape_cast %182 : vector<128xf32> to vector<1x1x128xf32>
    %186 = vector.broadcast %185 : vector<1x1x128xf32> to vector<7x7x128xf32>
    %187 = arith.mulf %184, %186 : vector<7x7x128xf32>
    %188 = arith.addf %180, %187 : vector<7x7x128xf32>
    %c1_282 = arith.constant 1 : index
    %c3_283 = arith.constant 3 : index
    %c0_284 = arith.constant 0 : index
    %189 = vector.load %arg5[%c1_282, %c3_283, %c0_284] : memref<5x5x640xf32, #tpu.memory_space<vmem>>, vector<1x1x128xf32>
    %190 = vector.shape_cast %189 : vector<1x1x128xf32> to vector<128xf32>
    %c1_285 = arith.constant 1 : index
    %c1_286 = arith.constant 1 : index
    %c0_287 = arith.constant 0 : index
    %c1_288 = arith.constant 1 : index
    %c0_289 = arith.constant 0 : index
    %191 = vector.load %arg4[%c1_285, %c1_286, %c0_287, %c1_288, %c0_289] : memref<2x2x9x9x640xf32, #tpu.memory_space<vmem>>, vector<1x1x7x7x128xf32>
    %192 = vector.shape_cast %191 : vector<1x1x7x7x128xf32> to vector<7x7x128xf32>
    %193 = vector.shape_cast %190 : vector<128xf32> to vector<1x1x128xf32>
    %194 = vector.broadcast %193 : vector<1x1x128xf32> to vector<7x7x128xf32>
    %195 = arith.mulf %192, %194 : vector<7x7x128xf32>
    %196 = arith.addf %188, %195 : vector<7x7x128xf32>
    %c1_290 = arith.constant 1 : index
    %c4_291 = arith.constant 4 : index
    %c0_292 = arith.constant 0 : index
    %197 = vector.load %arg5[%c1_290, %c4_291, %c0_292] : memref<5x5x640xf32, #tpu.memory_space<vmem>>, vector<1x1x128xf32>
    %198 = vector.shape_cast %197 : vector<1x1x128xf32> to vector<128xf32>
    %c1_293 = arith.constant 1 : index
    %c0_294 = arith.constant 0 : index
    %c0_295 = arith.constant 0 : index
    %c2_296 = arith.constant 2 : index
    %c0_297 = arith.constant 0 : index
    %199 = vector.load %arg4[%c1_293, %c0_294, %c0_295, %c2_296, %c0_297] : memref<2x2x9x9x640xf32, #tpu.memory_space<vmem>>, vector<1x1x7x7x128xf32>
    %200 = vector.shape_cast %199 : vector<1x1x7x7x128xf32> to vector<7x7x128xf32>
    %201 = vector.shape_cast %198 : vector<128xf32> to vector<1x1x128xf32>
    %202 = vector.broadcast %201 : vector<1x1x128xf32> to vector<7x7x128xf32>
    %203 = arith.mulf %200, %202 : vector<7x7x128xf32>
    %204 = arith.addf %196, %203 : vector<7x7x128xf32>
    %c2_298 = arith.constant 2 : index
    %c0_299 = arith.constant 0 : index
    %c0_300 = arith.constant 0 : index
    %205 = vector.load %arg5[%c2_298, %c0_299, %c0_300] : memref<5x5x640xf32, #tpu.memory_space<vmem>>, vector<1x1x128xf32>
    %206 = vector.shape_cast %205 : vector<1x1x128xf32> to vector<128xf32>
    %c0_301 = arith.constant 0 : index
    %c0_302 = arith.constant 0 : index
    %c1_303 = arith.constant 1 : index
    %c0_304 = arith.constant 0 : index
    %c0_305 = arith.constant 0 : index
    %207 = vector.load %arg4[%c0_301, %c0_302, %c1_303, %c0_304, %c0_305] : memref<2x2x9x9x640xf32, #tpu.memory_space<vmem>>, vector<1x1x7x7x128xf32>
    %208 = vector.shape_cast %207 : vector<1x1x7x7x128xf32> to vector<7x7x128xf32>
    %209 = vector.shape_cast %206 : vector<128xf32> to vector<1x1x128xf32>
    %210 = vector.broadcast %209 : vector<1x1x128xf32> to vector<7x7x128xf32>
    %211 = arith.mulf %208, %210 : vector<7x7x128xf32>
    %212 = arith.addf %204, %211 : vector<7x7x128xf32>
    %c2_306 = arith.constant 2 : index
    %c1_307 = arith.constant 1 : index
    %c0_308 = arith.constant 0 : index
    %213 = vector.load %arg5[%c2_306, %c1_307, %c0_308] : memref<5x5x640xf32, #tpu.memory_space<vmem>>, vector<1x1x128xf32>
    %214 = vector.shape_cast %213 : vector<1x1x128xf32> to vector<128xf32>
    %c0_309 = arith.constant 0 : index
    %c1_310 = arith.constant 1 : index
    %c1_311 = arith.constant 1 : index
    %c0_312 = arith.constant 0 : index
    %c0_313 = arith.constant 0 : index
    %215 = vector.load %arg4[%c0_309, %c1_310, %c1_311, %c0_312, %c0_313] : memref<2x2x9x9x640xf32, #tpu.memory_space<vmem>>, vector<1x1x7x7x128xf32>
    %216 = vector.shape_cast %215 : vector<1x1x7x7x128xf32> to vector<7x7x128xf32>
    %217 = vector.shape_cast %214 : vector<128xf32> to vector<1x1x128xf32>
    %218 = vector.broadcast %217 : vector<1x1x128xf32> to vector<7x7x128xf32>
    %219 = arith.mulf %216, %218 : vector<7x7x128xf32>
    %220 = arith.addf %212, %219 : vector<7x7x128xf32>
    %c2_314 = arith.constant 2 : index
    %c2_315 = arith.constant 2 : index
    %c0_316 = arith.constant 0 : index
    %221 = vector.load %arg5[%c2_314, %c2_315, %c0_316] : memref<5x5x640xf32, #tpu.memory_space<vmem>>, vector<1x1x128xf32>
    %222 = vector.shape_cast %221 : vector<1x1x128xf32> to vector<128xf32>
    %c0_317 = arith.constant 0 : index
    %c0_318 = arith.constant 0 : index
    %c1_319 = arith.constant 1 : index
    %c1_320 = arith.constant 1 : index
    %c0_321 = arith.constant 0 : index
    %223 = vector.load %arg4[%c0_317, %c0_318, %c1_319, %c1_320, %c0_321] : memref<2x2x9x9x640xf32, #tpu.memory_space<vmem>>, vector<1x1x7x7x128xf32>
    %224 = vector.shape_cast %223 : vector<1x1x7x7x128xf32> to vector<7x7x128xf32>
    %225 = vector.shape_cast %222 : vector<128xf32> to vector<1x1x128xf32>
    %226 = vector.broadcast %225 : vector<1x1x128xf32> to vector<7x7x128xf32>
    %227 = arith.mulf %224, %226 : vector<7x7x128xf32>
    %228 = arith.addf %220, %227 : vector<7x7x128xf32>
    %c2_322 = arith.constant 2 : index
    %c3_323 = arith.constant 3 : index
    %c0_324 = arith.constant 0 : index
    %229 = vector.load %arg5[%c2_322, %c3_323, %c0_324] : memref<5x5x640xf32, #tpu.memory_space<vmem>>, vector<1x1x128xf32>
    %230 = vector.shape_cast %229 : vector<1x1x128xf32> to vector<128xf32>
    %c0_325 = arith.constant 0 : index
    %c1_326 = arith.constant 1 : index
    %c1_327 = arith.constant 1 : index
    %c1_328 = arith.constant 1 : index
    %c0_329 = arith.constant 0 : index
    %231 = vector.load %arg4[%c0_325, %c1_326, %c1_327, %c1_328, %c0_329] : memref<2x2x9x9x640xf32, #tpu.memory_space<vmem>>, vector<1x1x7x7x128xf32>
    %232 = vector.shape_cast %231 : vector<1x1x7x7x128xf32> to vector<7x7x128xf32>
    %233 = vector.shape_cast %230 : vector<128xf32> to vector<1x1x128xf32>
    %234 = vector.broadcast %233 : vector<1x1x128xf32> to vector<7x7x128xf32>
    %235 = arith.mulf %232, %234 : vector<7x7x128xf32>
    %236 = arith.addf %228, %235 : vector<7x7x128xf32>
    %c2_330 = arith.constant 2 : index
    %c4_331 = arith.constant 4 : index
    %c0_332 = arith.constant 0 : index
    %237 = vector.load %arg5[%c2_330, %c4_331, %c0_332] : memref<5x5x640xf32, #tpu.memory_space<vmem>>, vector<1x1x128xf32>
    %238 = vector.shape_cast %237 : vector<1x1x128xf32> to vector<128xf32>
    %c0_333 = arith.constant 0 : index
    %c0_334 = arith.constant 0 : index
    %c1_335 = arith.constant 1 : index
    %c2_336 = arith.constant 2 : index
    %c0_337 = arith.constant 0 : index
    %239 = vector.load %arg4[%c0_333, %c0_334, %c1_335, %c2_336, %c0_337] : memref<2x2x9x9x640xf32, #tpu.memory_space<vmem>>, vector<1x1x7x7x128xf32>
    %240 = vector.shape_cast %239 : vector<1x1x7x7x128xf32> to vector<7x7x128xf32>
    %241 = vector.shape_cast %238 : vector<128xf32> to vector<1x1x128xf32>
    %242 = vector.broadcast %241 : vector<1x1x128xf32> to vector<7x7x128xf32>
    %243 = arith.mulf %240, %242 : vector<7x7x128xf32>
    %244 = arith.addf %236, %243 : vector<7x7x128xf32>
    %c3_338 = arith.constant 3 : index
    %c0_339 = arith.constant 0 : index
    %c0_340 = arith.constant 0 : index
    %245 = vector.load %arg5[%c3_338, %c0_339, %c0_340] : memref<5x5x640xf32, #tpu.memory_space<vmem>>, vector<1x1x128xf32>
    %246 = vector.shape_cast %245 : vector<1x1x128xf32> to vector<128xf32>
    %c1_341 = arith.constant 1 : index
    %c0_342 = arith.constant 0 : index
    %c1_343 = arith.constant 1 : index
    %c0_344 = arith.constant 0 : index
    %c0_345 = arith.constant 0 : index
    %247 = vector.load %arg4[%c1_341, %c0_342, %c1_343, %c0_344, %c0_345] : memref<2x2x9x9x640xf32, #tpu.memory_space<vmem>>, vector<1x1x7x7x128xf32>
    %248 = vector.shape_cast %247 : vector<1x1x7x7x128xf32> to vector<7x7x128xf32>
    %249 = vector.shape_cast %246 : vector<128xf32> to vector<1x1x128xf32>
    %250 = vector.broadcast %249 : vector<1x1x128xf32> to vector<7x7x128xf32>
    %251 = arith.mulf %248, %250 : vector<7x7x128xf32>
    %252 = arith.addf %244, %251 : vector<7x7x128xf32>
    %c3_346 = arith.constant 3 : index
    %c1_347 = arith.constant 1 : index
    %c0_348 = arith.constant 0 : index
    %253 = vector.load %arg5[%c3_346, %c1_347, %c0_348] : memref<5x5x640xf32, #tpu.memory_space<vmem>>, vector<1x1x128xf32>
    %254 = vector.shape_cast %253 : vector<1x1x128xf32> to vector<128xf32>
    %c1_349 = arith.constant 1 : index
    %c1_350 = arith.constant 1 : index
    %c1_351 = arith.constant 1 : index
    %c0_352 = arith.constant 0 : index
    %c0_353 = arith.constant 0 : index
    %255 = vector.load %arg4[%c1_349, %c1_350, %c1_351, %c0_352, %c0_353] : memref<2x2x9x9x640xf32, #tpu.memory_space<vmem>>, vector<1x1x7x7x128xf32>
    %256 = vector.shape_cast %255 : vector<1x1x7x7x128xf32> to vector<7x7x128xf32>
    %257 = vector.shape_cast %254 : vector<128xf32> to vector<1x1x128xf32>
    %258 = vector.broadcast %257 : vector<1x1x128xf32> to vector<7x7x128xf32>
    %259 = arith.mulf %256, %258 : vector<7x7x128xf32>
    %260 = arith.addf %252, %259 : vector<7x7x128xf32>
    %c3_354 = arith.constant 3 : index
    %c2_355 = arith.constant 2 : index
    %c0_356 = arith.constant 0 : index
    %261 = vector.load %arg5[%c3_354, %c2_355, %c0_356] : memref<5x5x640xf32, #tpu.memory_space<vmem>>, vector<1x1x128xf32>
    %262 = vector.shape_cast %261 : vector<1x1x128xf32> to vector<128xf32>
    %c1_357 = arith.constant 1 : index
    %c0_358 = arith.constant 0 : index
    %c1_359 = arith.constant 1 : index
    %c1_360 = arith.constant 1 : index
    %c0_361 = arith.constant 0 : index
    %263 = vector.load %arg4[%c1_357, %c0_358, %c1_359, %c1_360, %c0_361] : memref<2x2x9x9x640xf32, #tpu.memory_space<vmem>>, vector<1x1x7x7x128xf32>
    %264 = vector.shape_cast %263 : vector<1x1x7x7x128xf32> to vector<7x7x128xf32>
    %265 = vector.shape_cast %262 : vector<128xf32> to vector<1x1x128xf32>
    %266 = vector.broadcast %265 : vector<1x1x128xf32> to vector<7x7x128xf32>
    %267 = arith.mulf %264, %266 : vector<7x7x128xf32>
    %268 = arith.addf %260, %267 : vector<7x7x128xf32>
    %c3_362 = arith.constant 3 : index
    %c3_363 = arith.constant 3 : index
    %c0_364 = arith.constant 0 : index
    %269 = vector.load %arg5[%c3_362, %c3_363, %c0_364] : memref<5x5x640xf32, #tpu.memory_space<vmem>>, vector<1x1x128xf32>
    %270 = vector.shape_cast %269 : vector<1x1x128xf32> to vector<128xf32>
    %c1_365 = arith.constant 1 : index
    %c1_366 = arith.constant 1 : index
    %c1_367 = arith.constant 1 : index
    %c1_368 = arith.constant 1 : index
    %c0_369 = arith.constant 0 : index
    %271 = vector.load %arg4[%c1_365, %c1_366, %c1_367, %c1_368, %c0_369] : memref<2x2x9x9x640xf32, #tpu.memory_space<vmem>>, vector<1x1x7x7x128xf32>
    %272 = vector.shape_cast %271 : vector<1x1x7x7x128xf32> to vector<7x7x128xf32>
    %273 = vector.shape_cast %270 : vector<128xf32> to vector<1x1x128xf32>
    %274 = vector.broadcast %273 : vector<1x1x128xf32> to vector<7x7x128xf32>
    %275 = arith.mulf %272, %274 : vector<7x7x128xf32>
    %276 = arith.addf %268, %275 : vector<7x7x128xf32>
    %c3_370 = arith.constant 3 : index
    %c4_371 = arith.constant 4 : index
    %c0_372 = arith.constant 0 : index
    %277 = vector.load %arg5[%c3_370, %c4_371, %c0_372] : memref<5x5x640xf32, #tpu.memory_space<vmem>>, vector<1x1x128xf32>
    %278 = vector.shape_cast %277 : vector<1x1x128xf32> to vector<128xf32>
    %c1_373 = arith.constant 1 : index
    %c0_374 = arith.constant 0 : index
    %c1_375 = arith.constant 1 : index
    %c2_376 = arith.constant 2 : index
    %c0_377 = arith.constant 0 : index
    %279 = vector.load %arg4[%c1_373, %c0_374, %c1_375, %c2_376, %c0_377] : memref<2x2x9x9x640xf32, #tpu.memory_space<vmem>>, vector<1x1x7x7x128xf32>
    %280 = vector.shape_cast %279 : vector<1x1x7x7x128xf32> to vector<7x7x128xf32>
    %281 = vector.shape_cast %278 : vector<128xf32> to vector<1x1x128xf32>
    %282 = vector.broadcast %281 : vector<1x1x128xf32> to vector<7x7x128xf32>
    %283 = arith.mulf %280, %282 : vector<7x7x128xf32>
    %284 = arith.addf %276, %283 : vector<7x7x128xf32>
    %c4_378 = arith.constant 4 : index
    %c0_379 = arith.constant 0 : index
    %c0_380 = arith.constant 0 : index
    %285 = vector.load %arg5[%c4_378, %c0_379, %c0_380] : memref<5x5x640xf32, #tpu.memory_space<vmem>>, vector<1x1x128xf32>
    %286 = vector.shape_cast %285 : vector<1x1x128xf32> to vector<128xf32>
    %c0_381 = arith.constant 0 : index
    %c0_382 = arith.constant 0 : index
    %c2_383 = arith.constant 2 : index
    %c0_384 = arith.constant 0 : index
    %c0_385 = arith.constant 0 : index
    %287 = vector.load %arg4[%c0_381, %c0_382, %c2_383, %c0_384, %c0_385] : memref<2x2x9x9x640xf32, #tpu.memory_space<vmem>>, vector<1x1x7x7x128xf32>
    %288 = vector.shape_cast %287 : vector<1x1x7x7x128xf32> to vector<7x7x128xf32>
    %289 = vector.shape_cast %286 : vector<128xf32> to vector<1x1x128xf32>
    %290 = vector.broadcast %289 : vector<1x1x128xf32> to vector<7x7x128xf32>
    %291 = arith.mulf %288, %290 : vector<7x7x128xf32>
    %292 = arith.addf %284, %291 : vector<7x7x128xf32>
    %c4_386 = arith.constant 4 : index
    %c1_387 = arith.constant 1 : index
    %c0_388 = arith.constant 0 : index
    %293 = vector.load %arg5[%c4_386, %c1_387, %c0_388] : memref<5x5x640xf32, #tpu.memory_space<vmem>>, vector<1x1x128xf32>
    %294 = vector.shape_cast %293 : vector<1x1x128xf32> to vector<128xf32>
    %c0_389 = arith.constant 0 : index
    %c1_390 = arith.constant 1 : index
    %c2_391 = arith.constant 2 : index
    %c0_392 = arith.constant 0 : index
    %c0_393 = arith.constant 0 : index
    %295 = vector.load %arg4[%c0_389, %c1_390, %c2_391, %c0_392, %c0_393] : memref<2x2x9x9x640xf32, #tpu.memory_space<vmem>>, vector<1x1x7x7x128xf32>
    %296 = vector.shape_cast %295 : vector<1x1x7x7x128xf32> to vector<7x7x128xf32>
    %297 = vector.shape_cast %294 : vector<128xf32> to vector<1x1x128xf32>
    %298 = vector.broadcast %297 : vector<1x1x128xf32> to vector<7x7x128xf32>
    %299 = arith.mulf %296, %298 : vector<7x7x128xf32>
    %300 = arith.addf %292, %299 : vector<7x7x128xf32>
    %c4_394 = arith.constant 4 : index
    %c2_395 = arith.constant 2 : index
    %c0_396 = arith.constant 0 : index
    %301 = vector.load %arg5[%c4_394, %c2_395, %c0_396] : memref<5x5x640xf32, #tpu.memory_space<vmem>>, vector<1x1x128xf32>
    %302 = vector.shape_cast %301 : vector<1x1x128xf32> to vector<128xf32>
    %c0_397 = arith.constant 0 : index
    %c0_398 = arith.constant 0 : index
    %c2_399 = arith.constant 2 : index
    %c1_400 = arith.constant 1 : index
    %c0_401 = arith.constant 0 : index
    %303 = vector.load %arg4[%c0_397, %c0_398, %c2_399, %c1_400, %c0_401] : memref<2x2x9x9x640xf32, #tpu.memory_space<vmem>>, vector<1x1x7x7x128xf32>
    %304 = vector.shape_cast %303 : vector<1x1x7x7x128xf32> to vector<7x7x128xf32>
    %305 = vector.shape_cast %302 : vector<128xf32> to vector<1x1x128xf32>
    %306 = vector.broadcast %305 : vector<1x1x128xf32> to vector<7x7x128xf32>
    %307 = arith.mulf %304, %306 : vector<7x7x128xf32>
    %308 = arith.addf %300, %307 : vector<7x7x128xf32>
    %c4_402 = arith.constant 4 : index
    %c3_403 = arith.constant 3 : index
    %c0_404 = arith.constant 0 : index
    %309 = vector.load %arg5[%c4_402, %c3_403, %c0_404] : memref<5x5x640xf32, #tpu.memory_space<vmem>>, vector<1x1x128xf32>
    %310 = vector.shape_cast %309 : vector<1x1x128xf32> to vector<128xf32>
    %c0_405 = arith.constant 0 : index
    %c1_406 = arith.constant 1 : index
    %c2_407 = arith.constant 2 : index
    %c1_408 = arith.constant 1 : index
    %c0_409 = arith.constant 0 : index
    %311 = vector.load %arg4[%c0_405, %c1_406, %c2_407, %c1_408, %c0_409] : memref<2x2x9x9x640xf32, #tpu.memory_space<vmem>>, vector<1x1x7x7x128xf32>
    %312 = vector.shape_cast %311 : vector<1x1x7x7x128xf32> to vector<7x7x128xf32>
    %313 = vector.shape_cast %310 : vector<128xf32> to vector<1x1x128xf32>
    %314 = vector.broadcast %313 : vector<1x1x128xf32> to vector<7x7x128xf32>
    %315 = arith.mulf %312, %314 : vector<7x7x128xf32>
    %316 = arith.addf %308, %315 : vector<7x7x128xf32>
    %c4_410 = arith.constant 4 : index
    %c4_411 = arith.constant 4 : index
    %c0_412 = arith.constant 0 : index
    %317 = vector.load %arg5[%c4_410, %c4_411, %c0_412] : memref<5x5x640xf32, #tpu.memory_space<vmem>>, vector<1x1x128xf32>
    %318 = vector.shape_cast %317 : vector<1x1x128xf32> to vector<128xf32>
    %c0_413 = arith.constant 0 : index
    %c0_414 = arith.constant 0 : index
    %c2_415 = arith.constant 2 : index
    %c2_416 = arith.constant 2 : index
    %c0_417 = arith.constant 0 : index
    %319 = vector.load %arg4[%c0_413, %c0_414, %c2_415, %c2_416, %c0_417] : memref<2x2x9x9x640xf32, #tpu.memory_space<vmem>>, vector<1x1x7x7x128xf32>
    %320 = vector.shape_cast %319 : vector<1x1x7x7x128xf32> to vector<7x7x128xf32>
    %321 = vector.shape_cast %318 : vector<128xf32> to vector<1x1x128xf32>
    %322 = vector.broadcast %321 : vector<1x1x128xf32> to vector<7x7x128xf32>
    %323 = arith.mulf %320, %322 : vector<7x7x128xf32>
    %324 = arith.addf %316, %323 : vector<7x7x128xf32>
    %325 = arith.truncf %324 : vector<7x7x128xf32> to vector<7x7x128xbf16>
    %c0_418 = arith.constant 0 : index
    %c0_419 = arith.constant 0 : index
    %c0_420 = arith.constant 0 : index
    %c0_421 = arith.constant 0 : index
    %326 = vector.load %arg3[%c0_418, %c0_419, %c0_420, %c0_421] : memref<1x7x7x640xbf16, #tpu.memory_space<vmem>>, vector<1x7x7x128xbf16>
    %327 = vector.shape_cast %326 : vector<1x7x7x128xbf16> to vector<7x7x128xbf16>
    %328 = vector.shape_cast %325 : vector<7x7x128xbf16> to vector<1x7x7x128xbf16>
    tpu.vector_store %arg3[%c0_418, %c0_419, %c0_420, %c0_421], %328 {strides = array<i32>} : memref<1x7x7x640xbf16, #tpu.memory_space<vmem>>, vector<1x7x7x128xbf16>,
    %cst_422 = arith.constant 0.000000e+00 : f32
    %329 = vector.broadcast %cst_422 : f32 to vector<7x7x128xf32>
    %c0_423 = arith.constant 0 : index
    %c0_424 = arith.constant 0 : index
    %c128_425 = arith.constant 128 : index
    %330 = vector.load %arg5[%c0_423, %c0_424, %c128_425] : memref<5x5x640xf32, #tpu.memory_space<vmem>>, vector<1x1x128xf32>
    %331 = vector.shape_cast %330 : vector<1x1x128xf32> to vector<128xf32>
    %c0_426 = arith.constant 0 : index
    %c0_427 = arith.constant 0 : index
    %c0_428 = arith.constant 0 : index
    %c0_429 = arith.constant 0 : index
    %c128_430 = arith.constant 128 : index
    %332 = vector.load %arg4[%c0_426, %c0_427, %c0_428, %c0_429, %c128_430] : memref<2x2x9x9x640xf32, #tpu.memory_space<vmem>>, vector<1x1x7x7x128xf32>
    %333 = vector.shape_cast %332 : vector<1x1x7x7x128xf32> to vector<7x7x128xf32>
    %334 = vector.shape_cast %331 : vector<128xf32> to vector<1x1x128xf32>
    %335 = vector.broadcast %334 : vector<1x1x128xf32> to vector<7x7x128xf32>
    %336 = arith.mulf %333, %335 : vector<7x7x128xf32>
    %337 = arith.addf %329, %336 : vector<7x7x128xf32>
    %c0_431 = arith.constant 0 : index
    %c1_432 = arith.constant 1 : index
    %c128_433 = arith.constant 128 : index
    %338 = vector.load %arg5[%c0_431, %c1_432, %c128_433] : memref<5x5x640xf32, #tpu.memory_space<vmem>>, vector<1x1x128xf32>
    %339 = vector.shape_cast %338 : vector<1x1x128xf32> to vector<128xf32>
    %c0_434 = arith.constant 0 : index
    %c1_435 = arith.constant 1 : index
    %c0_436 = arith.constant 0 : index
    %c0_437 = arith.constant 0 : index
    %c128_438 = arith.constant 128 : index
    %340 = vector.load %arg4[%c0_434, %c1_435, %c0_436, %c0_437, %c128_438] : memref<2x2x9x9x640xf32, #tpu.memory_space<vmem>>, vector<1x1x7x7x128xf32>
    %341 = vector.shape_cast %340 : vector<1x1x7x7x128xf32> to vector<7x7x128xf32>
    %342 = vector.shape_cast %339 : vector<128xf32> to vector<1x1x128xf32>
    %343 = vector.broadcast %342 : vector<1x1x128xf32> to vector<7x7x128xf32>
    %344 = arith.mulf %341, %343 : vector<7x7x128xf32>
    %345 = arith.addf %337, %344 : vector<7x7x128xf32>
    %c0_439 = arith.constant 0 : index
    %c2_440 = arith.constant 2 : index
    %c128_441 = arith.constant 128 : index
    %346 = vector.load %arg5[%c0_439, %c2_440, %c128_441] : memref<5x5x640xf32, #tpu.memory_space<vmem>>, vector<1x1x128xf32>
    %347 = vector.shape_cast %346 : vector<1x1x128xf32> to vector<128xf32>
    %c0_442 = arith.constant 0 : index
    %c0_443 = arith.constant 0 : index
    %c0_444 = arith.constant 0 : index
    %c1_445 = arith.constant 1 : index
    %c128_446 = arith.constant 128 : index
    %348 = vector.load %arg4[%c0_442, %c0_443, %c0_444, %c1_445, %c128_446] : memref<2x2x9x9x640xf32, #tpu.memory_space<vmem>>, vector<1x1x7x7x128xf32>
    %349 = vector.shape_cast %348 : vector<1x1x7x7x128xf32> to vector<7x7x128xf32>
    %350 = vector.shape_cast %347 : vector<128xf32> to vector<1x1x128xf32>
    %351 = vector.broadcast %350 : vector<1x1x128xf32> to vector<7x7x128xf32>
    %352 = arith.mulf %349, %351 : vector<7x7x128xf32>
    %353 = arith.addf %345, %352 : vector<7x7x128xf32>
    %c0_447 = arith.constant 0 : index
    %c3_448 = arith.constant 3 : index
    %c128_449 = arith.constant 128 : index
    %354 = vector.load %arg5[%c0_447, %c3_448, %c128_449] : memref<5x5x640xf32, #tpu.memory_space<vmem>>, vector<1x1x128xf32>
    %355 = vector.shape_cast %354 : vector<1x1x128xf32> to vector<128xf32>
    %c0_450 = arith.constant 0 : index
    %c1_451 = arith.constant 1 : index
    %c0_452 = arith.constant 0 : index
    %c1_453 = arith.constant 1 : index
    %c128_454 = arith.constant 128 : index
    %356 = vector.load %arg4[%c0_450, %c1_451, %c0_452, %c1_453, %c128_454] : memref<2x2x9x9x640xf32, #tpu.memory_space<vmem>>, vector<1x1x7x7x128xf32>
    %357 = vector.shape_cast %356 : vector<1x1x7x7x128xf32> to vector<7x7x128xf32>
    %358 = vector.shape_cast %355 : vector<128xf32> to vector<1x1x128xf32>
    %359 = vector.broadcast %358 : vector<1x1x128xf32> to vector<7x7x128xf32>
    %360 = arith.mulf %357, %359 : vector<7x7x128xf32>
    %361 = arith.addf %353, %360 : vector<7x7x128xf32>
    %c0_455 = arith.constant 0 : index
    %c4_456 = arith.constant 4 : index
    %c128_457 = arith.constant 128 : index
    %362 = vector.load %arg5[%c0_455, %c4_456, %c128_457] : memref<5x5x640xf32, #tpu.memory_space<vmem>>, vector<1x1x128xf32>
    %363 = vector.shape_cast %362 : vector<1x1x128xf32> to vector<128xf32>
    %c0_458 = arith.constant 0 : index
    %c0_459 = arith.constant 0 : index
    %c0_460 = arith.constant 0 : index
    %c2_461 = arith.constant 2 : index
    %c128_462 = arith.constant 128 : index
    %364 = vector.load %arg4[%c0_458, %c0_459, %c0_460, %c2_461, %c128_462] : memref<2x2x9x9x640xf32, #tpu.memory_space<vmem>>, vector<1x1x7x7x128xf32>
    %365 = vector.shape_cast %364 : vector<1x1x7x7x128xf32> to vector<7x7x128xf32>
    %366 = vector.shape_cast %363 : vector<128xf32> to vector<1x1x128xf32>
    %367 = vector.broadcast %366 : vector<1x1x128xf32> to vector<7x7x128xf32>
    %368 = arith.mulf %365, %367 : vector<7x7x128xf32>
    %369 = arith.addf %361, %368 : vector<7x7x128xf32>
    %c1_463 = arith.constant 1 : index
    %c0_464 = arith.constant 0 : index
    %c128_465 = arith.constant 128 : index
    %370 = vector.load %arg5[%c1_463, %c0_464, %c128_465] : memref<5x5x640xf32, #tpu.memory_space<vmem>>, vector<1x1x128xf32>
    %371 = vector.shape_cast %370 : vector<1x1x128xf32> to vector<128xf32>
    %c1_466 = arith.constant 1 : index
    %c0_467 = arith.constant 0 : index
    %c0_468 = arith.constant 0 : index
    %c0_469 = arith.constant 0 : index
    %c128_470 = arith.constant 128 : index
    %372 = vector.load %arg4[%c1_466, %c0_467, %c0_468, %c0_469, %c128_470] : memref<2x2x9x9x640xf32, #tpu.memory_space<vmem>>, vector<1x1x7x7x128xf32>
    %373 = vector.shape_cast %372 : vector<1x1x7x7x128xf32> to vector<7x7x128xf32>
    %374 = vector.shape_cast %371 : vector<128xf32> to vector<1x1x128xf32>
    %375 = vector.broadcast %374 : vector<1x1x128xf32> to vector<7x7x128xf32>
    %376 = arith.mulf %373, %375 : vector<7x7x128xf32>
    %377 = arith.addf %369, %376 : vector<7x7x128xf32>
    %c1_471 = arith.constant 1 : index
    %c1_472 = arith.constant 1 : index
    %c128_473 = arith.constant 128 : index
    %378 = vector.load %arg5[%c1_471, %c1_472, %c128_473] : memref<5x5x640xf32, #tpu.memory_space<vmem>>, vector<1x1x128xf32>
    %379 = vector.shape_cast %378 : vector<1x1x128xf32> to vector<128xf32>
    %c1_474 = arith.constant 1 : index
    %c1_475 = arith.constant 1 : index
    %c0_476 = arith.constant 0 : index
    %c0_477 = arith.constant 0 : index
    %c128_478 = arith.constant 128 : index
    %380 = vector.load %arg4[%c1_474, %c1_475, %c0_476, %c0_477, %c128_478] : memref<2x2x9x9x640xf32, #tpu.memory_space<vmem>>, vector<1x1x7x7x128xf32>
    %381 = vector.shape_cast %380 : vector<1x1x7x7x128xf32> to vector<7x7x128xf32>
    %382 = vector.shape_cast %379 : vector<128xf32> to vector<1x1x128xf32>
    %383 = vector.broadcast %382 : vector<1x1x128xf32> to vector<7x7x128xf32>
    %384 = arith.mulf %381, %383 : vector<7x7x128xf32>
    %385 = arith.addf %377, %384 : vector<7x7x128xf32>
    %c1_479 = arith.constant 1 : index
    %c2_480 = arith.constant 2 : index
    %c128_481 = arith.constant 128 : index
    %386 = vector.load %arg5[%c1_479, %c2_480, %c128_481] : memref<5x5x640xf32, #tpu.memory_space<vmem>>, vector<1x1x128xf32>
    %387 = vector.shape_cast %386 : vector<1x1x128xf32> to vector<128xf32>
    %c1_482 = arith.constant 1 : index
    %c0_483 = arith.constant 0 : index
    %c0_484 = arith.constant 0 : index
    %c1_485 = arith.constant 1 : index
    %c128_486 = arith.constant 128 : index
    %388 = vector.load %arg4[%c1_482, %c0_483, %c0_484, %c1_485, %c128_486] : memref<2x2x9x9x640xf32, #tpu.memory_space<vmem>>, vector<1x1x7x7x128xf32>
    %389 = vector.shape_cast %388 : vector<1x1x7x7x128xf32> to vector<7x7x128xf32>
    %390 = vector.shape_cast %387 : vector<128xf32> to vector<1x1x128xf32>
    %391 = vector.broadcast %390 : vector<1x1x128xf32> to vector<7x7x128xf32>
    %392 = arith.mulf %389, %391 : vector<7x7x128xf32>
    %393 = arith.addf %385, %392 : vector<7x7x128xf32>
    %c1_487 = arith.constant 1 : index
    %c3_488 = arith.constant 3 : index
    %c128_489 = arith.constant 128 : index
    %394 = vector.load %arg5[%c1_487, %c3_488, %c128_489] : memref<5x5x640xf32, #tpu.memory_space<vmem>>, vector<1x1x128xf32>
    %395 = vector.shape_cast %394 : vector<1x1x128xf32> to vector<128xf32>
    %c1_490 = arith.constant 1 : index
    %c1_491 = arith.constant 1 : index
    %c0_492 = arith.constant 0 : index
    %c1_493 = arith.constant 1 : index
    %c128_494 = arith.constant 128 : index
    %396 = vector.load %arg4[%c1_490, %c1_491, %c0_492, %c1_493, %c128_494] : memref<2x2x9x9x640xf32, #tpu.memory_space<vmem>>, vector<1x1x7x7x128xf32>
    %397 = vector.shape_cast %396 : vector<1x1x7x7x128xf32> to vector<7x7x128xf32>
    %398 = vector.shape_cast %395 : vector<128xf32> to vector<1x1x128xf32>
    %399 = vector.broadcast %398 : vector<1x1x128xf32> to vector<7x7x128xf32>
    %400 = arith.mulf %397, %399 : vector<7x7x128xf32>
    %401 = arith.addf %393, %400 : vector<7x7x128xf32>
    %c1_495 = arith.constant 1 : index
    %c4_496 = arith.constant 4 : index
    %c128_497 = arith.constant 128 : index
    %402 = vector.load %arg5[%c1_495, %c4_496, %c128_497] : memref<5x5x640xf32, #tpu.memory_space<vmem>>, vector<1x1x128xf32>
    %403 = vector.shape_cast %402 : vector<1x1x128xf32> to vector<128xf32>
    %c1_498 = arith.constant 1 : index
    %c0_499 = arith.constant 0 : index
    %c0_500 = arith.constant 0 : index
    %c2_501 = arith.constant 2 : index
    %c128_502 = arith.constant 128 : index
    %404 = vector.load %arg4[%c1_498, %c0_499, %c0_500, %c2_501, %c128_502] : memref<2x2x9x9x640xf32, #tpu.memory_space<vmem>>, vector<1x1x7x7x128xf32>
    %405 = vector.shape_cast %404 : vector<1x1x7x7x128xf32> to vector<7x7x128xf32>
    %406 = vector.shape_cast %403 : vector<128xf32> to vector<1x1x128xf32>
    %407 = vector.broadcast %406 : vector<1x1x128xf32> to vector<7x7x128xf32>
    %408 = arith.mulf %405, %407 : vector<7x7x128xf32>
    %409 = arith.addf %401, %408 : vector<7x7x128xf32>
    %c2_503 = arith.constant 2 : index
    %c0_504 = arith.constant 0 : index
    %c128_505 = arith.constant 128 : index
    %410 = vector.load %arg5[%c2_503, %c0_504, %c128_505] : memref<5x5x640xf32, #tpu.memory_space<vmem>>, vector<1x1x128xf32>
    %411 = vector.shape_cast %410 : vector<1x1x128xf32> to vector<128xf32>
    %c0_506 = arith.constant 0 : index
    %c0_507 = arith.constant 0 : index
    %c1_508 = arith.constant 1 : index
    %c0_509 = arith.constant 0 : index
    %c128_510 = arith.constant 128 : index
    %412 = vector.load %arg4[%c0_506, %c0_507, %c1_508, %c0_509, %c128_510] : memref<2x2x9x9x640xf32, #tpu.memory_space<vmem>>, vector<1x1x7x7x128xf32>
    %413 = vector.shape_cast %412 : vector<1x1x7x7x128xf32> to vector<7x7x128xf32>
    %414 = vector.shape_cast %411 : vector<128xf32> to vector<1x1x128xf32>
    %415 = vector.broadcast %414 : vector<1x1x128xf32> to vector<7x7x128xf32>
    %416 = arith.mulf %413, %415 : vector<7x7x128xf32>
    %417 = arith.addf %409, %416 : vector<7x7x128xf32>
    %c2_511 = arith.constant 2 : index
    %c1_512 = arith.constant 1 : index
    %c128_513 = arith.constant 128 : index
    %418 = vector.load %arg5[%c2_511, %c1_512, %c128_513] : memref<5x5x640xf32, #tpu.memory_space<vmem>>, vector<1x1x128xf32>
    %419 = vector.shape_cast %418 : vector<1x1x128xf32> to vector<128xf32>
    %c0_514 = arith.constant 0 : index
    %c1_515 = arith.constant 1 : index
    %c1_516 = arith.constant 1 : index
    %c0_517 = arith.constant 0 : index
    %c128_518 = arith.constant 128 : index
    %420 = vector.load %arg4[%c0_514, %c1_515, %c1_516, %c0_517, %c128_518] : memref<2x2x9x9x640xf32, #tpu.memory_space<vmem>>, vector<1x1x7x7x128xf32>
    %421 = vector.shape_cast %420 : vector<1x1x7x7x128xf32> to vector<7x7x128xf32>
    %422 = vector.shape_cast %419 : vector<128xf32> to vector<1x1x128xf32>
    %423 = vector.broadcast %422 : vector<1x1x128xf32> to vector<7x7x128xf32>
    %424 = arith.mulf %421, %423 : vector<7x7x128xf32>
    %425 = arith.addf %417, %424 : vector<7x7x128xf32>
    %c2_519 = arith.constant 2 : index
    %c2_520 = arith.constant 2 : index
    %c128_521 = arith.constant 128 : index
    %426 = vector.load %arg5[%c2_519, %c2_520, %c128_521] : memref<5x5x640xf32, #tpu.memory_space<vmem>>, vector<1x1x128xf32>
    %427 = vector.shape_cast %426 : vector<1x1x128xf32> to vector<128xf32>
    %c0_522 = arith.constant 0 : index
    %c0_523 = arith.constant 0 : index
    %c1_524 = arith.constant 1 : index
    %c1_525 = arith.constant 1 : index
    %c128_526 = arith.constant 128 : index
    %428 = vector.load %arg4[%c0_522, %c0_523, %c1_524, %c1_525, %c128_526] : memref<2x2x9x9x640xf32, #tpu.memory_space<vmem>>, vector<1x1x7x7x128xf32>
    %429 = vector.shape_cast %428 : vector<1x1x7x7x128xf32> to vector<7x7x128xf32>
    %430 = vector.shape_cast %427 : vector<128xf32> to vector<1x1x128xf32>
    %431 = vector.broadcast %430 : vector<1x1x128xf32> to vector<7x7x128xf32>
    %432 = arith.mulf %429, %431 : vector<7x7x128xf32>
    %433 = arith.addf %425, %432 : vector<7x7x128xf32>
    %c2_527 = arith.constant 2 : index
    %c3_528 = arith.constant 3 : index
    %c128_529 = arith.constant 128 : index
    %434 = vector.load %arg5[%c2_527, %c3_528, %c128_529] : memref<5x5x640xf32, #tpu.memory_space<vmem>>, vector<1x1x128xf32>
    %435 = vector.shape_cast %434 : vector<1x1x128xf32> to vector<128xf32>
    %c0_530 = arith.constant 0 : index
    %c1_531 = arith.constant 1 : index
    %c1_532 = arith.constant 1 : index
    %c1_533 = arith.constant 1 : index
    %c128_534 = arith.constant 128 : index
    %436 = vector.load %arg4[%c0_530, %c1_531, %c1_532, %c1_533, %c128_534] : memref<2x2x9x9x640xf32, #tpu.memory_space<vmem>>, vector<1x1x7x7x128xf32>
    %437 = vector.shape_cast %436 : vector<1x1x7x7x128xf32> to vector<7x7x128xf32>
    %438 = vector.shape_cast %435 : vector<128xf32> to vector<1x1x128xf32>
    %439 = vector.broadcast %438 : vector<1x1x128xf32> to vector<7x7x128xf32>
    %440 = arith.mulf %437, %439 : vector<7x7x128xf32>
    %441 = arith.addf %433, %440 : vector<7x7x128xf32>
    %c2_535 = arith.constant 2 : index
    %c4_536 = arith.constant 4 : index
    %c128_537 = arith.constant 128 : index
    %442 = vector.load %arg5[%c2_535, %c4_536, %c128_537] : memref<5x5x640xf32, #tpu.memory_space<vmem>>, vector<1x1x128xf32>
    %443 = vector.shape_cast %442 : vector<1x1x128xf32> to vector<128xf32>
    %c0_538 = arith.constant 0 : index
    %c0_539 = arith.constant 0 : index
    %c1_540 = arith.constant 1 : index
    %c2_541 = arith.constant 2 : index
    %c128_542 = arith.constant 128 : index
    %444 = vector.load %arg4[%c0_538, %c0_539, %c1_540, %c2_541, %c128_542] : memref<2x2x9x9x640xf32, #tpu.memory_space<vmem>>, vector<1x1x7x7x128xf32>
    %445 = vector.shape_cast %444 : vector<1x1x7x7x128xf32> to vector<7x7x128xf32>
    %446 = vector.shape_cast %443 : vector<128xf32> to vector<1x1x128xf32>
    %447 = vector.broadcast %446 : vector<1x1x128xf32> to vector<7x7x128xf32>
    %448 = arith.mulf %445, %447 : vector<7x7x128xf32>
    %449 = arith.addf %441, %448 : vector<7x7x128xf32>
    %c3_543 = arith.constant 3 : index
    %c0_544 = arith.constant 0 : index
    %c128_545 = arith.constant 128 : index
    %450 = vector.load %arg5[%c3_543, %c0_544, %c128_545] : memref<5x5x640xf32, #tpu.memory_space<vmem>>, vector<1x1x128xf32>
    %451 = vector.shape_cast %450 : vector<1x1x128xf32> to vector<128xf32>
    %c1_546 = arith.constant 1 : index
    %c0_547 = arith.constant 0 : index
    %c1_548 = arith.constant 1 : index
    %c0_549 = arith.constant 0 : index
    %c128_550 = arith.constant 128 : index
    %452 = vector.load %arg4[%c1_546, %c0_547, %c1_548, %c0_549, %c128_550] : memref<2x2x9x9x640xf32, #tpu.memory_space<vmem>>, vector<1x1x7x7x128xf32>
    %453 = vector.shape_cast %452 : vector<1x1x7x7x128xf32> to vector<7x7x128xf32>
    %454 = vector.shape_cast %451 : vector<128xf32> to vector<1x1x128xf32>
    %455 = vector.broadcast %454 : vector<1x1x128xf32> to vector<7x7x128xf32>
    %456 = arith.mulf %453, %455 : vector<7x7x128xf32>
    %457 = arith.addf %449, %456 : vector<7x7x128xf32>
    %c3_551 = arith.constant 3 : index
    %c1_552 = arith.constant 1 : index
    %c128_553 = arith.constant 128 : index
    %458 = vector.load %arg5[%c3_551, %c1_552, %c128_553] : memref<5x5x640xf32, #tpu.memory_space<vmem>>, vector<1x1x128xf32>
    %459 = vector.shape_cast %458 : vector<1x1x128xf32> to vector<128xf32>
    %c1_554 = arith.constant 1 : index
    %c1_555 = arith.constant 1 : index
    %c1_556 = arith.constant 1 : index
    %c0_557 = arith.constant 0 : index
    %c128_558 = arith.constant 128 : index
    %460 = vector.load %arg4[%c1_554, %c1_555, %c1_556, %c0_557, %c128_558] : memref<2x2x9x9x640xf32, #tpu.memory_space<vmem>>, vector<1x1x7x7x128xf32>
    %461 = vector.shape_cast %460 : vector<1x1x7x7x128xf32> to vector<7x7x128xf32>
    %462 = vector.shape_cast %459 : vector<128xf32> to vector<1x1x128xf32>
    %463 = vector.broadcast %462 : vector<1x1x128xf32> to vector<7x7x128xf32>
    %464 = arith.mulf %461, %463 : vector<7x7x128xf32>
    %465 = arith.addf %457, %464 : vector<7x7x128xf32>
    %c3_559 = arith.constant 3 : index
    %c2_560 = arith.constant 2 : index
    %c128_561 = arith.constant 128 : index
    %466 = vector.load %arg5[%c3_559, %c2_560, %c128_561] : memref<5x5x640xf32, #tpu.memory_space<vmem>>, vector<1x1x128xf32>
    %467 = vector.shape_cast %466 : vector<1x1x128xf32> to vector<128xf32>
    %c1_562 = arith.constant 1 : index
    %c0_563 = arith.constant 0 : index
    %c1_564 = arith.constant 1 : index
    %c1_565 = arith.constant 1 : index
    %c128_566 = arith.constant 128 : index
    %468 = vector.load %arg4[%c1_562, %c0_563, %c1_564, %c1_565, %c128_566] : memref<2x2x9x9x640xf32, #tpu.memory_space<vmem>>, vector<1x1x7x7x128xf32>
    %469 = vector.shape_cast %468 : vector<1x1x7x7x128xf32> to vector<7x7x128xf32>
    %470 = vector.shape_cast %467 : vector<128xf32> to vector<1x1x128xf32>
    %471 = vector.broadcast %470 : vector<1x1x128xf32> to vector<7x7x128xf32>
    %472 = arith.mulf %469, %471 : vector<7x7x128xf32>
    %473 = arith.addf %465, %472 : vector<7x7x128xf32>
    %c3_567 = arith.constant 3 : index
    %c3_568 = arith.constant 3 : index
    %c128_569 = arith.constant 128 : index
    %474 = vector.load %arg5[%c3_567, %c3_568, %c128_569] : memref<5x5x640xf32, #tpu.memory_space<vmem>>, vector<1x1x128xf32>
    %475 = vector.shape_cast %474 : vector<1x1x128xf32> to vector<128xf32>
    %c1_570 = arith.constant 1 : index
    %c1_571 = arith.constant 1 : index
    %c1_572 = arith.constant 1 : index
    %c1_573 = arith.constant 1 : index
    %c128_574 = arith.constant 128 : index
    %476 = vector.load %arg4[%c1_570, %c1_571, %c1_572, %c1_573, %c128_574] : memref<2x2x9x9x640xf32, #tpu.memory_space<vmem>>, vector<1x1x7x7x128xf32>
    %477 = vector.shape_cast %476 : vector<1x1x7x7x128xf32> to vector<7x7x128xf32>
    %478 = vector.shape_cast %475 : vector<128xf32> to vector<1x1x128xf32>
    %479 = vector.broadcast %478 : vector<1x1x128xf32> to vector<7x7x128xf32>
    %480 = arith.mulf %477, %479 : vector<7x7x128xf32>
    %481 = arith.addf %473, %480 : vector<7x7x128xf32>
    %c3_575 = arith.constant 3 : index
    %c4_576 = arith.constant 4 : index
    %c128_577 = arith.constant 128 : index
    %482 = vector.load %arg5[%c3_575, %c4_576, %c128_577] : memref<5x5x640xf32, #tpu.memory_space<vmem>>, vector<1x1x128xf32>
    %483 = vector.shape_cast %482 : vector<1x1x128xf32> to vector<128xf32>
    %c1_578 = arith.constant 1 : index
    %c0_579 = arith.constant 0 : index
    %c1_580 = arith.constant 1 : index
    %c2_581 = arith.constant 2 : index
    %c128_582 = arith.constant 128 : index
    %484 = vector.load %arg4[%c1_578, %c0_579, %c1_580, %c2_581, %c128_582] : memref<2x2x9x9x640xf32, #tpu.memory_space<vmem>>, vector<1x1x7x7x128xf32>
    %485 = vector.shape_cast %484 : vector<1x1x7x7x128xf32> to vector<7x7x128xf32>
    %486 = vector.shape_cast %483 : vector<128xf32> to vector<1x1x128xf32>
    %487 = vector.broadcast %486 : vector<1x1x128xf32> to vector<7x7x128xf32>
    %488 = arith.mulf %485, %487 : vector<7x7x128xf32>
    %489 = arith.addf %481, %488 : vector<7x7x128xf32>
    %c4_583 = arith.constant 4 : index
    %c0_584 = arith.constant 0 : index
    %c128_585 = arith.constant 128 : index
    %490 = vector.load %arg5[%c4_583, %c0_584, %c128_585] : memref<5x5x640xf32, #tpu.memory_space<vmem>>, vector<1x1x128xf32>
    %491 = vector.shape_cast %490 : vector<1x1x128xf32> to vector<128xf32>
    %c0_586 = arith.constant 0 : index
    %c0_587 = arith.constant 0 : index
    %c2_588 = arith.constant 2 : index
    %c0_589 = arith.constant 0 : index
    %c128_590 = arith.constant 128 : index
    %492 = vector.load %arg4[%c0_586, %c0_587, %c2_588, %c0_589, %c128_590] : memref<2x2x9x9x640xf32, #tpu.memory_space<vmem>>, vector<1x1x7x7x128xf32>
    %493 = vector.shape_cast %492 : vector<1x1x7x7x128xf32> to vector<7x7x128xf32>
    %494 = vector.shape_cast %491 : vector<128xf32> to vector<1x1x128xf32>
    %495 = vector.broadcast %494 : vector<1x1x128xf32> to vector<7x7x128xf32>
    %496 = arith.mulf %493, %495 : vector<7x7x128xf32>
    %497 = arith.addf %489, %496 : vector<7x7x128xf32>
    %c4_591 = arith.constant 4 : index
    %c1_592 = arith.constant 1 : index
    %c128_593 = arith.constant 128 : index
    %498 = vector.load %arg5[%c4_591, %c1_592, %c128_593] : memref<5x5x640xf32, #tpu.memory_space<vmem>>, vector<1x1x128xf32>
    %499 = vector.shape_cast %498 : vector<1x1x128xf32> to vector<128xf32>
    %c0_594 = arith.constant 0 : index
    %c1_595 = arith.constant 1 : index
    %c2_596 = arith.constant 2 : index
    %c0_597 = arith.constant 0 : index
    %c128_598 = arith.constant 128 : index
    %500 = vector.load %arg4[%c0_594, %c1_595, %c2_596, %c0_597, %c128_598] : memref<2x2x9x9x640xf32, #tpu.memory_space<vmem>>, vector<1x1x7x7x128xf32>
    %501 = vector.shape_cast %500 : vector<1x1x7x7x128xf32> to vector<7x7x128xf32>
    %502 = vector.shape_cast %499 : vector<128xf32> to vector<1x1x128xf32>
    %503 = vector.broadcast %502 : vector<1x1x128xf32> to vector<7x7x128xf32>
    %504 = arith.mulf %501, %503 : vector<7x7x128xf32>
    %505 = arith.addf %497, %504 : vector<7x7x128xf32>
    %c4_599 = arith.constant 4 : index
    %c2_600 = arith.constant 2 : index
    %c128_601 = arith.constant 128 : index
    %506 = vector.load %arg5[%c4_599, %c2_600, %c128_601] : memref<5x5x640xf32, #tpu.memory_space<vmem>>, vector<1x1x128xf32>
    %507 = vector.shape_cast %506 : vector<1x1x128xf32> to vector<128xf32>
    %c0_602 = arith.constant 0 : index
    %c0_603 = arith.constant 0 : index
    %c2_604 = arith.constant 2 : index
    %c1_605 = arith.constant 1 : index
    %c128_606 = arith.constant 128 : index
    %508 = vector.load %arg4[%c0_602, %c0_603, %c2_604, %c1_605, %c128_606] : memref<2x2x9x9x640xf32, #tpu.memory_space<vmem>>, vector<1x1x7x7x128xf32>
    %509 = vector.shape_cast %508 : vector<1x1x7x7x128xf32> to vector<7x7x128xf32>
    %510 = vector.shape_cast %507 : vector<128xf32> to vector<1x1x128xf32>
    %511 = vector.broadcast %510 : vector<1x1x128xf32> to vector<7x7x128xf32>
    %512 = arith.mulf %509, %511 : vector<7x7x128xf32>
    %513 = arith.addf %505, %512 : vector<7x7x128xf32>
    %c4_607 = arith.constant 4 : index
    %c3_608 = arith.constant 3 : index
    %c128_609 = arith.constant 128 : index
    %514 = vector.load %arg5[%c4_607, %c3_608, %c128_609] : memref<5x5x640xf32, #tpu.memory_space<vmem>>, vector<1x1x128xf32>
    %515 = vector.shape_cast %514 : vector<1x1x128xf32> to vector<128xf32>
    %c0_610 = arith.constant 0 : index
    %c1_611 = arith.constant 1 : index
    %c2_612 = arith.constant 2 : index
    %c1_613 = arith.constant 1 : index
    %c128_614 = arith.constant 128 : index
    %516 = vector.load %arg4[%c0_610, %c1_611, %c2_612, %c1_613, %c128_614] : memref<2x2x9x9x640xf32, #tpu.memory_space<vmem>>, vector<1x1x7x7x128xf32>
    %517 = vector.shape_cast %516 : vector<1x1x7x7x128xf32> to vector<7x7x128xf32>
    %518 = vector.shape_cast %515 : vector<128xf32> to vector<1x1x128xf32>
    %519 = vector.broadcast %518 : vector<1x1x128xf32> to vector<7x7x128xf32>
    %520 = arith.mulf %517, %519 : vector<7x7x128xf32>
    %521 = arith.addf %513, %520 : vector<7x7x128xf32>
    %c4_615 = arith.constant 4 : index
    %c4_616 = arith.constant 4 : index
    %c128_617 = arith.constant 128 : index
    %522 = vector.load %arg5[%c4_615, %c4_616, %c128_617] : memref<5x5x640xf32, #tpu.memory_space<vmem>>, vector<1x1x128xf32>
    %523 = vector.shape_cast %522 : vector<1x1x128xf32> to vector<128xf32>
    %c0_618 = arith.constant 0 : index
    %c0_619 = arith.constant 0 : index
    %c2_620 = arith.constant 2 : index
    %c2_621 = arith.constant 2 : index
    %c128_622 = arith.constant 128 : index
    %524 = vector.load %arg4[%c0_618, %c0_619, %c2_620, %c2_621, %c128_622] : memref<2x2x9x9x640xf32, #tpu.memory_space<vmem>>, vector<1x1x7x7x128xf32>
    %525 = vector.shape_cast %524 : vector<1x1x7x7x128xf32> to vector<7x7x128xf32>
    %526 = vector.shape_cast %523 : vector<128xf32> to vector<1x1x128xf32>
    %527 = vector.broadcast %526 : vector<1x1x128xf32> to vector<7x7x128xf32>
    %528 = arith.mulf %525, %527 : vector<7x7x128xf32>
    %529 = arith.addf %521, %528 : vector<7x7x128xf32>
    %530 = arith.truncf %529 : vector<7x7x128xf32> to vector<7x7x128xbf16>
    %c0_623 = arith.constant 0 : index
    %c0_624 = arith.constant 0 : index
    %c0_625 = arith.constant 0 : index
    %c128_626 = arith.constant 128 : index
    %531 = vector.load %arg3[%c0_623, %c0_624, %c0_625, %c128_626] : memref<1x7x7x640xbf16, #tpu.memory_space<vmem>>, vector<1x7x7x128xbf16>
    %532 = vector.shape_cast %531 : vector<1x7x7x128xbf16> to vector<7x7x128xbf16>
    %533 = vector.shape_cast %530 : vector<7x7x128xbf16> to vector<1x7x7x128xbf16>
    tpu.vector_store %arg3[%c0_623, %c0_624, %c0_625, %c128_626], %533 {strides = array<i32>} : memref<1x7x7x640xbf16, #tpu.memory_space<vmem>>, vector<1x7x7x128xbf16>,
    %cst_627 = arith.constant 0.000000e+00 : f32
    %534 = vector.broadcast %cst_627 : f32 to vector<7x7x128xf32>
    %c0_628 = arith.constant 0 : index
    %c0_629 = arith.constant 0 : index
    %c256_630 = arith.constant 256 : index
    %535 = vector.load %arg5[%c0_628, %c0_629, %c256_630] : memref<5x5x640xf32, #tpu.memory_space<vmem>>, vector<1x1x128xf32>
    %536 = vector.shape_cast %535 : vector<1x1x128xf32> to vector<128xf32>
    %c0_631 = arith.constant 0 : index
    %c0_632 = arith.constant 0 : index
    %c0_633 = arith.constant 0 : index
    %c0_634 = arith.constant 0 : index
    %c256_635 = arith.constant 256 : index
    %537 = vector.load %arg4[%c0_631, %c0_632, %c0_633, %c0_634, %c256_635] : memref<2x2x9x9x640xf32, #tpu.memory_space<vmem>>, vector<1x1x7x7x128xf32>
    %538 = vector.shape_cast %537 : vector<1x1x7x7x128xf32> to vector<7x7x128xf32>
    %539 = vector.shape_cast %536 : vector<128xf32> to vector<1x1x128xf32>
    %540 = vector.broadcast %539 : vector<1x1x128xf32> to vector<7x7x128xf32>
    %541 = arith.mulf %538, %540 : vector<7x7x128xf32>
    %542 = arith.addf %534, %541 : vector<7x7x128xf32>
    %c0_636 = arith.constant 0 : index
    %c1_637 = arith.constant 1 : index
    %c256_638 = arith.constant 256 : index
    %543 = vector.load %arg5[%c0_636, %c1_637, %c256_638] : memref<5x5x640xf32, #tpu.memory_space<vmem>>, vector<1x1x128xf32>
    %544 = vector.shape_cast %543 : vector<1x1x128xf32> to vector<128xf32>
    %c0_639 = arith.constant 0 : index
    %c1_640 = arith.constant 1 : index
    %c0_641 = arith.constant 0 : index
    %c0_642 = arith.constant 0 : index
    %c256_643 = arith.constant 256 : index
    %545 = vector.load %arg4[%c0_639, %c1_640, %c0_641, %c0_642, %c256_643] : memref<2x2x9x9x640xf32, #tpu.memory_space<vmem>>, vector<1x1x7x7x128xf32>
    %546 = vector.shape_cast %545 : vector<1x1x7x7x128xf32> to vector<7x7x128xf32>
    %547 = vector.shape_cast %544 : vector<128xf32> to vector<1x1x128xf32>
    %548 = vector.broadcast %547 : vector<1x1x128xf32> to vector<7x7x128xf32>
    %549 = arith.mulf %546, %548 : vector<7x7x128xf32>
    %550 = arith.addf %542, %549 : vector<7x7x128xf32>
    %c0_644 = arith.constant 0 : index
    %c2_645 = arith.constant 2 : index
    %c256_646 = arith.constant 256 : index
    %551 = vector.load %arg5[%c0_644, %c2_645, %c256_646] : memref<5x5x640xf32, #tpu.memory_space<vmem>>, vector<1x1x128xf32>
    %552 = vector.shape_cast %551 : vector<1x1x128xf32> to vector<128xf32>
    %c0_647 = arith.constant 0 : index
    %c0_648 = arith.constant 0 : index
    %c0_649 = arith.constant 0 : index
    %c1_650 = arith.constant 1 : index
    %c256_651 = arith.constant 256 : index
    %553 = vector.load %arg4[%c0_647, %c0_648, %c0_649, %c1_650, %c256_651] : memref<2x2x9x9x640xf32, #tpu.memory_space<vmem>>, vector<1x1x7x7x128xf32>
    %554 = vector.shape_cast %553 : vector<1x1x7x7x128xf32> to vector<7x7x128xf32>
    %555 = vector.shape_cast %552 : vector<128xf32> to vector<1x1x128xf32>
    %556 = vector.broadcast %555 : vector<1x1x128xf32> to vector<7x7x128xf32>
    %557 = arith.mulf %554, %556 : vector<7x7x128xf32>
    %558 = arith.addf %550, %557 : vector<7x7x128xf32>
    %c0_652 = arith.constant 0 : index
    %c3_653 = arith.constant 3 : index
    %c256_654 = arith.constant 256 : index
    %559 = vector.load %arg5[%c0_652, %c3_653, %c256_654] : memref<5x5x640xf32, #tpu.memory_space<vmem>>, vector<1x1x128xf32>
    %560 = vector.shape_cast %559 : vector<1x1x128xf32> to vector<128xf32>
    %c0_655 = arith.constant 0 : index
    %c1_656 = arith.constant 1 : index
    %c0_657 = arith.constant 0 : index
    %c1_658 = arith.constant 1 : index
    %c256_659 = arith.constant 256 : index
    %561 = vector.load %arg4[%c0_655, %c1_656, %c0_657, %c1_658, %c256_659] : memref<2x2x9x9x640xf32, #tpu.memory_space<vmem>>, vector<1x1x7x7x128xf32>
    %562 = vector.shape_cast %561 : vector<1x1x7x7x128xf32> to vector<7x7x128xf32>
    %563 = vector.shape_cast %560 : vector<128xf32> to vector<1x1x128xf32>
    %564 = vector.broadcast %563 : vector<1x1x128xf32> to vector<7x7x128xf32>
    %565 = arith.mulf %562, %564 : vector<7x7x128xf32>
    %566 = arith.addf %558, %565 : vector<7x7x128xf32>
    %c0_660 = arith.constant 0 : index
    %c4_661 = arith.constant 4 : index
    %c256_662 = arith.constant 256 : index
    %567 = vector.load %arg5[%c0_660, %c4_661, %c256_662] : memref<5x5x640xf32, #tpu.memory_space<vmem>>, vector<1x1x128xf32>
    %568 = vector.shape_cast %567 : vector<1x1x128xf32> to vector<128xf32>
    %c0_663 = arith.constant 0 : index
    %c0_664 = arith.constant 0 : index
    %c0_665 = arith.constant 0 : index
    %c2_666 = arith.constant 2 : index
    %c256_667 = arith.constant 256 : index
    %569 = vector.load %arg4[%c0_663, %c0_664, %c0_665, %c2_666, %c256_667] : memref<2x2x9x9x640xf32, #tpu.memory_space<vmem>>, vector<1x1x7x7x128xf32>
    %570 = vector.shape_cast %569 : vector<1x1x7x7x128xf32> to vector<7x7x128xf32>
    %571 = vector.shape_cast %568 : vector<128xf32> to vector<1x1x128xf32>
    %572 = vector.broadcast %571 : vector<1x1x128xf32> to vector<7x7x128xf32>
    %573 = arith.mulf %570, %572 : vector<7x7x128xf32>
    %574 = arith.addf %566, %573 : vector<7x7x128xf32>
    %c1_668 = arith.constant 1 : index
    %c0_669 = arith.constant 0 : index
    %c256_670 = arith.constant 256 : index
    %575 = vector.load %arg5[%c1_668, %c0_669, %c256_670] : memref<5x5x640xf32, #tpu.memory_space<vmem>>, vector<1x1x128xf32>
    %576 = vector.shape_cast %575 : vector<1x1x128xf32> to vector<128xf32>
    %c1_671 = arith.constant 1 : index
    %c0_672 = arith.constant 0 : index
    %c0_673 = arith.constant 0 : index
    %c0_674 = arith.constant 0 : index
    %c256_675 = arith.constant 256 : index
    %577 = vector.load %arg4[%c1_671, %c0_672, %c0_673, %c0_674, %c256_675] : memref<2x2x9x9x640xf32, #tpu.memory_space<vmem>>, vector<1x1x7x7x128xf32>
    %578 = vector.shape_cast %577 : vector<1x1x7x7x128xf32> to vector<7x7x128xf32>
    %579 = vector.shape_cast %576 : vector<128xf32> to vector<1x1x128xf32>
    %580 = vector.broadcast %579 : vector<1x1x128xf32> to vector<7x7x128xf32>
    %581 = arith.mulf %578, %580 : vector<7x7x128xf32>
    %582 = arith.addf %574, %581 : vector<7x7x128xf32>
    %c1_676 = arith.constant 1 : index
    %c1_677 = arith.constant 1 : index
    %c256_678 = arith.constant 256 : index
    %583 = vector.load %arg5[%c1_676, %c1_677, %c256_678] : memref<5x5x640xf32, #tpu.memory_space<vmem>>, vector<1x1x128xf32>
    %584 = vector.shape_cast %583 : vector<1x1x128xf32> to vector<128xf32>
    %c1_679 = arith.constant 1 : index
    %c1_680 = arith.constant 1 : index
    %c0_681 = arith.constant 0 : index
    %c0_682 = arith.constant 0 : index
    %c256_683 = arith.constant 256 : index
    %585 = vector.load %arg4[%c1_679, %c1_680, %c0_681, %c0_682, %c256_683] : memref<2x2x9x9x640xf32, #tpu.memory_space<vmem>>, vector<1x1x7x7x128xf32>
    %586 = vector.shape_cast %585 : vector<1x1x7x7x128xf32> to vector<7x7x128xf32>
    %587 = vector.shape_cast %584 : vector<128xf32> to vector<1x1x128xf32>
    %588 = vector.broadcast %587 : vector<1x1x128xf32> to vector<7x7x128xf32>
    %589 = arith.mulf %586, %588 : vector<7x7x128xf32>
    %590 = arith.addf %582, %589 : vector<7x7x128xf32>
    %c1_684 = arith.constant 1 : index
    %c2_685 = arith.constant 2 : index
    %c256_686 = arith.constant 256 : index
    %591 = vector.load %arg5[%c1_684, %c2_685, %c256_686] : memref<5x5x640xf32, #tpu.memory_space<vmem>>, vector<1x1x128xf32>
    %592 = vector.shape_cast %591 : vector<1x1x128xf32> to vector<128xf32>
    %c1_687 = arith.constant 1 : index
    %c0_688 = arith.constant 0 : index
    %c0_689 = arith.constant 0 : index
    %c1_690 = arith.constant 1 : index
    %c256_691 = arith.constant 256 : index
    %593 = vector.load %arg4[%c1_687, %c0_688, %c0_689, %c1_690, %c256_691] : memref<2x2x9x9x640xf32, #tpu.memory_space<vmem>>, vector<1x1x7x7x128xf32>
    %594 = vector.shape_cast %593 : vector<1x1x7x7x128xf32> to vector<7x7x128xf32>
    %595 = vector.shape_cast %592 : vector<128xf32> to vector<1x1x128xf32>
    %596 = vector.broadcast %595 : vector<1x1x128xf32> to vector<7x7x128xf32>
    %597 = arith.mulf %594, %596 : vector<7x7x128xf32>
    %598 = arith.addf %590, %597 : vector<7x7x128xf32>
    %c1_692 = arith.constant 1 : index
    %c3_693 = arith.constant 3 : index
    %c256_694 = arith.constant 256 : index
    %599 = vector.load %arg5[%c1_692, %c3_693, %c256_694] : memref<5x5x640xf32, #tpu.memory_space<vmem>>, vector<1x1x128xf32>
    %600 = vector.shape_cast %599 : vector<1x1x128xf32> to vector<128xf32>
    %c1_695 = arith.constant 1 : index
    %c1_696 = arith.constant 1 : index
    %c0_697 = arith.constant 0 : index
    %c1_698 = arith.constant 1 : index
    %c256_699 = arith.constant 256 : index
    %601 = vector.load %arg4[%c1_695, %c1_696, %c0_697, %c1_698, %c256_699] : memref<2x2x9x9x640xf32, #tpu.memory_space<vmem>>, vector<1x1x7x7x128xf32>
    %602 = vector.shape_cast %601 : vector<1x1x7x7x128xf32> to vector<7x7x128xf32>
    %603 = vector.shape_cast %600 : vector<128xf32> to vector<1x1x128xf32>
    %604 = vector.broadcast %603 : vector<1x1x128xf32> to vector<7x7x128xf32>
    %605 = arith.mulf %602, %604 : vector<7x7x128xf32>
    %606 = arith.addf %598, %605 : vector<7x7x128xf32>
    %c1_700 = arith.constant 1 : index
    %c4_701 = arith.constant 4 : index
    %c256_702 = arith.constant 256 : index
    %607 = vector.load %arg5[%c1_700, %c4_701, %c256_702] : memref<5x5x640xf32, #tpu.memory_space<vmem>>, vector<1x1x128xf32>
    %608 = vector.shape_cast %607 : vector<1x1x128xf32> to vector<128xf32>
    %c1_703 = arith.constant 1 : index
    %c0_704 = arith.constant 0 : index
    %c0_705 = arith.constant 0 : index
    %c2_706 = arith.constant 2 : index
    %c256_707 = arith.constant 256 : index
    %609 = vector.load %arg4[%c1_703, %c0_704, %c0_705, %c2_706, %c256_707] : memref<2x2x9x9x640xf32, #tpu.memory_space<vmem>>, vector<1x1x7x7x128xf32>
    %610 = vector.shape_cast %609 : vector<1x1x7x7x128xf32> to vector<7x7x128xf32>
    %611 = vector.shape_cast %608 : vector<128xf32> to vector<1x1x128xf32>
    %612 = vector.broadcast %611 : vector<1x1x128xf32> to vector<7x7x128xf32>
    %613 = arith.mulf %610, %612 : vector<7x7x128xf32>
    %614 = arith.addf %606, %613 : vector<7x7x128xf32>
    %c2_708 = arith.constant 2 : index
    %c0_709 = arith.constant 0 : index
    %c256_710 = arith.constant 256 : index
    %615 = vector.load %arg5[%c2_708, %c0_709, %c256_710] : memref<5x5x640xf32, #tpu.memory_space<vmem>>, vector<1x1x128xf32>
    %616 = vector.shape_cast %615 : vector<1x1x128xf32> to vector<128xf32>
    %c0_711 = arith.constant 0 : index
    %c0_712 = arith.constant 0 : index
    %c1_713 = arith.constant 1 : index
    %c0_714 = arith.constant 0 : index
    %c256_715 = arith.constant 256 : index
    %617 = vector.load %arg4[%c0_711, %c0_712, %c1_713, %c0_714, %c256_715] : memref<2x2x9x9x640xf32, #tpu.memory_space<vmem>>, vector<1x1x7x7x128xf32>
    %618 = vector.shape_cast %617 : vector<1x1x7x7x128xf32> to vector<7x7x128xf32>
    %619 = vector.shape_cast %616 : vector<128xf32> to vector<1x1x128xf32>
    %620 = vector.broadcast %619 : vector<1x1x128xf32> to vector<7x7x128xf32>
    %621 = arith.mulf %618, %620 : vector<7x7x128xf32>
    %622 = arith.addf %614, %621 : vector<7x7x128xf32>
    %c2_716 = arith.constant 2 : index
    %c1_717 = arith.constant 1 : index
    %c256_718 = arith.constant 256 : index
    %623 = vector.load %arg5[%c2_716, %c1_717, %c256_718] : memref<5x5x640xf32, #tpu.memory_space<vmem>>, vector<1x1x128xf32>
    %624 = vector.shape_cast %623 : vector<1x1x128xf32> to vector<128xf32>
    %c0_719 = arith.constant 0 : index
    %c1_720 = arith.constant 1 : index
    %c1_721 = arith.constant 1 : index
    %c0_722 = arith.constant 0 : index
    %c256_723 = arith.constant 256 : index
    %625 = vector.load %arg4[%c0_719, %c1_720, %c1_721, %c0_722, %c256_723] : memref<2x2x9x9x640xf32, #tpu.memory_space<vmem>>, vector<1x1x7x7x128xf32>
    %626 = vector.shape_cast %625 : vector<1x1x7x7x128xf32> to vector<7x7x128xf32>
    %627 = vector.shape_cast %624 : vector<128xf32> to vector<1x1x128xf32>
    %628 = vector.broadcast %627 : vector<1x1x128xf32> to vector<7x7x128xf32>
    %629 = arith.mulf %626, %628 : vector<7x7x128xf32>
    %630 = arith.addf %622, %629 : vector<7x7x128xf32>
    %c2_724 = arith.constant 2 : index
    %c2_725 = arith.constant 2 : index
    %c256_726 = arith.constant 256 : index
    %631 = vector.load %arg5[%c2_724, %c2_725, %c256_726] : memref<5x5x640xf32, #tpu.memory_space<vmem>>, vector<1x1x128xf32>
    %632 = vector.shape_cast %631 : vector<1x1x128xf32> to vector<128xf32>
    %c0_727 = arith.constant 0 : index
    %c0_728 = arith.constant 0 : index
    %c1_729 = arith.constant 1 : index
    %c1_730 = arith.constant 1 : index
    %c256_731 = arith.constant 256 : index
    %633 = vector.load %arg4[%c0_727, %c0_728, %c1_729, %c1_730, %c256_731] : memref<2x2x9x9x640xf32, #tpu.memory_space<vmem>>, vector<1x1x7x7x128xf32>
    %634 = vector.shape_cast %633 : vector<1x1x7x7x128xf32> to vector<7x7x128xf32>
    %635 = vector.shape_cast %632 : vector<128xf32> to vector<1x1x128xf32>
    %636 = vector.broadcast %635 : vector<1x1x128xf32> to vector<7x7x128xf32>
    %637 = arith.mulf %634, %636 : vector<7x7x128xf32>
    %638 = arith.addf %630, %637 : vector<7x7x128xf32>
    %c2_732 = arith.constant 2 : index
    %c3_733 = arith.constant 3 : index
    %c256_734 = arith.constant 256 : index
    %639 = vector.load %arg5[%c2_732, %c3_733, %c256_734] : memref<5x5x640xf32, #tpu.memory_space<vmem>>, vector<1x1x128xf32>
    %640 = vector.shape_cast %639 : vector<1x1x128xf32> to vector<128xf32>
    %c0_735 = arith.constant 0 : index
    %c1_736 = arith.constant 1 : index
    %c1_737 = arith.constant 1 : index
    %c1_738 = arith.constant 1 : index
    %c256_739 = arith.constant 256 : index
    %641 = vector.load %arg4[%c0_735, %c1_736, %c1_737, %c1_738, %c256_739] : memref<2x2x9x9x640xf32, #tpu.memory_space<vmem>>, vector<1x1x7x7x128xf32>
    %642 = vector.shape_cast %641 : vector<1x1x7x7x128xf32> to vector<7x7x128xf32>
    %643 = vector.shape_cast %640 : vector<128xf32> to vector<1x1x128xf32>
    %644 = vector.broadcast %643 : vector<1x1x128xf32> to vector<7x7x128xf32>
    %645 = arith.mulf %642, %644 : vector<7x7x128xf32>
    %646 = arith.addf %638, %645 : vector<7x7x128xf32>
    %c2_740 = arith.constant 2 : index
    %c4_741 = arith.constant 4 : index
    %c256_742 = arith.constant 256 : index
    %647 = vector.load %arg5[%c2_740, %c4_741, %c256_742] : memref<5x5x640xf32, #tpu.memory_space<vmem>>, vector<1x1x128xf32>
    %648 = vector.shape_cast %647 : vector<1x1x128xf32> to vector<128xf32>
    %c0_743 = arith.constant 0 : index
    %c0_744 = arith.constant 0 : index
    %c1_745 = arith.constant 1 : index
    %c2_746 = arith.constant 2 : index
    %c256_747 = arith.constant 256 : index
    %649 = vector.load %arg4[%c0_743, %c0_744, %c1_745, %c2_746, %c256_747] : memref<2x2x9x9x640xf32, #tpu.memory_space<vmem>>, vector<1x1x7x7x128xf32>
    %650 = vector.shape_cast %649 : vector<1x1x7x7x128xf32> to vector<7x7x128xf32>
    %651 = vector.shape_cast %648 : vector<128xf32> to vector<1x1x128xf32>
    %652 = vector.broadcast %651 : vector<1x1x128xf32> to vector<7x7x128xf32>
    %653 = arith.mulf %650, %652 : vector<7x7x128xf32>
    %654 = arith.addf %646, %653 : vector<7x7x128xf32>
    %c3_748 = arith.constant 3 : index
    %c0_749 = arith.constant 0 : index
    %c256_750 = arith.constant 256 : index
    %655 = vector.load %arg5[%c3_748, %c0_749, %c256_750] : memref<5x5x640xf32, #tpu.memory_space<vmem>>, vector<1x1x128xf32>
    %656 = vector.shape_cast %655 : vector<1x1x128xf32> to vector<128xf32>
    %c1_751 = arith.constant 1 : index
    %c0_752 = arith.constant 0 : index
    %c1_753 = arith.constant 1 : index
    %c0_754 = arith.constant 0 : index
    %c256_755 = arith.constant 256 : index
    %657 = vector.load %arg4[%c1_751, %c0_752, %c1_753, %c0_754, %c256_755] : memref<2x2x9x9x640xf32, #tpu.memory_space<vmem>>, vector<1x1x7x7x128xf32>
    %658 = vector.shape_cast %657 : vector<1x1x7x7x128xf32> to vector<7x7x128xf32>
    %659 = vector.shape_cast %656 : vector<128xf32> to vector<1x1x128xf32>
    %660 = vector.broadcast %659 : vector<1x1x128xf32> to vector<7x7x128xf32>
    %661 = arith.mulf %658, %660 : vector<7x7x128xf32>
    %662 = arith.addf %654, %661 : vector<7x7x128xf32>
    %c3_756 = arith.constant 3 : index
    %c1_757 = arith.constant 1 : index
    %c256_758 = arith.constant 256 : index
    %663 = vector.load %arg5[%c3_756, %c1_757, %c256_758] : memref<5x5x640xf32, #tpu.memory_space<vmem>>, vector<1x1x128xf32>
    %664 = vector.shape_cast %663 : vector<1x1x128xf32> to vector<128xf32>
    %c1_759 = arith.constant 1 : index
    %c1_760 = arith.constant 1 : index
    %c1_761 = arith.constant 1 : index
    %c0_762 = arith.constant 0 : index
    %c256_763 = arith.constant 256 : index
    %665 = vector.load %arg4[%c1_759, %c1_760, %c1_761, %c0_762, %c256_763] : memref<2x2x9x9x640xf32, #tpu.memory_space<vmem>>, vector<1x1x7x7x128xf32>
    %666 = vector.shape_cast %665 : vector<1x1x7x7x128xf32> to vector<7x7x128xf32>
    %667 = vector.shape_cast %664 : vector<128xf32> to vector<1x1x128xf32>
    %668 = vector.broadcast %667 : vector<1x1x128xf32> to vector<7x7x128xf32>
    %669 = arith.mulf %666, %668 : vector<7x7x128xf32>
    %670 = arith.addf %662, %669 : vector<7x7x128xf32>
    %c3_764 = arith.constant 3 : index
    %c2_765 = arith.constant 2 : index
    %c256_766 = arith.constant 256 : index
    %671 = vector.load %arg5[%c3_764, %c2_765, %c256_766] : memref<5x5x640xf32, #tpu.memory_space<vmem>>, vector<1x1x128xf32>
    %672 = vector.shape_cast %671 : vector<1x1x128xf32> to vector<128xf32>
    %c1_767 = arith.constant 1 : index
    %c0_768 = arith.constant 0 : index
    %c1_769 = arith.constant 1 : index
    %c1_770 = arith.constant 1 : index
    %c256_771 = arith.constant 256 : index
    %673 = vector.load %arg4[%c1_767, %c0_768, %c1_769, %c1_770, %c256_771] : memref<2x2x9x9x640xf32, #tpu.memory_space<vmem>>, vector<1x1x7x7x128xf32>
    %674 = vector.shape_cast %673 : vector<1x1x7x7x128xf32> to vector<7x7x128xf32>
    %675 = vector.shape_cast %672 : vector<128xf32> to vector<1x1x128xf32>
    %676 = vector.broadcast %675 : vector<1x1x128xf32> to vector<7x7x128xf32>
    %677 = arith.mulf %674, %676 : vector<7x7x128xf32>
    %678 = arith.addf %670, %677 : vector<7x7x128xf32>
    %c3_772 = arith.constant 3 : index
    %c3_773 = arith.constant 3 : index
    %c256_774 = arith.constant 256 : index
    %679 = vector.load %arg5[%c3_772, %c3_773, %c256_774] : memref<5x5x640xf32, #tpu.memory_space<vmem>>, vector<1x1x128xf32>
    %680 = vector.shape_cast %679 : vector<1x1x128xf32> to vector<128xf32>
    %c1_775 = arith.constant 1 : index
    %c1_776 = arith.constant 1 : index
    %c1_777 = arith.constant 1 : index
    %c1_778 = arith.constant 1 : index
    %c256_779 = arith.constant 256 : index
    %681 = vector.load %arg4[%c1_775, %c1_776, %c1_777, %c1_778, %c256_779] : memref<2x2x9x9x640xf32, #tpu.memory_space<vmem>>, vector<1x1x7x7x128xf32>
    %682 = vector.shape_cast %681 : vector<1x1x7x7x128xf32> to vector<7x7x128xf32>
    %683 = vector.shape_cast %680 : vector<128xf32> to vector<1x1x128xf32>
    %684 = vector.broadcast %683 : vector<1x1x128xf32> to vector<7x7x128xf32>
    %685 = arith.mulf %682, %684 : vector<7x7x128xf32>
    %686 = arith.addf %678, %685 : vector<7x7x128xf32>
    %c3_780 = arith.constant 3 : index
    %c4_781 = arith.constant 4 : index
    %c256_782 = arith.constant 256 : index
    %687 = vector.load %arg5[%c3_780, %c4_781, %c256_782] : memref<5x5x640xf32, #tpu.memory_space<vmem>>, vector<1x1x128xf32>
    %688 = vector.shape_cast %687 : vector<1x1x128xf32> to vector<128xf32>
    %c1_783 = arith.constant 1 : index
    %c0_784 = arith.constant 0 : index
    %c1_785 = arith.constant 1 : index
    %c2_786 = arith.constant 2 : index
    %c256_787 = arith.constant 256 : index
    %689 = vector.load %arg4[%c1_783, %c0_784, %c1_785, %c2_786, %c256_787] : memref<2x2x9x9x640xf32, #tpu.memory_space<vmem>>, vector<1x1x7x7x128xf32>
    %690 = vector.shape_cast %689 : vector<1x1x7x7x128xf32> to vector<7x7x128xf32>
    %691 = vector.shape_cast %688 : vector<128xf32> to vector<1x1x128xf32>
    %692 = vector.broadcast %691 : vector<1x1x128xf32> to vector<7x7x128xf32>
    %693 = arith.mulf %690, %692 : vector<7x7x128xf32>
    %694 = arith.addf %686, %693 : vector<7x7x128xf32>
    %c4_788 = arith.constant 4 : index
    %c0_789 = arith.constant 0 : index
    %c256_790 = arith.constant 256 : index
    %695 = vector.load %arg5[%c4_788, %c0_789, %c256_790] : memref<5x5x640xf32, #tpu.memory_space<vmem>>, vector<1x1x128xf32>
    %696 = vector.shape_cast %695 : vector<1x1x128xf32> to vector<128xf32>
    %c0_791 = arith.constant 0 : index
    %c0_792 = arith.constant 0 : index
    %c2_793 = arith.constant 2 : index
    %c0_794 = arith.constant 0 : index
    %c256_795 = arith.constant 256 : index
    %697 = vector.load %arg4[%c0_791, %c0_792, %c2_793, %c0_794, %c256_795] : memref<2x2x9x9x640xf32, #tpu.memory_space<vmem>>, vector<1x1x7x7x128xf32>
    %698 = vector.shape_cast %697 : vector<1x1x7x7x128xf32> to vector<7x7x128xf32>
    %699 = vector.shape_cast %696 : vector<128xf32> to vector<1x1x128xf32>
    %700 = vector.broadcast %699 : vector<1x1x128xf32> to vector<7x7x128xf32>
    %701 = arith.mulf %698, %700 : vector<7x7x128xf32>
    %702 = arith.addf %694, %701 : vector<7x7x128xf32>
    %c4_796 = arith.constant 4 : index
    %c1_797 = arith.constant 1 : index
    %c256_798 = arith.constant 256 : index
    %703 = vector.load %arg5[%c4_796, %c1_797, %c256_798] : memref<5x5x640xf32, #tpu.memory_space<vmem>>, vector<1x1x128xf32>
    %704 = vector.shape_cast %703 : vector<1x1x128xf32> to vector<128xf32>
    %c0_799 = arith.constant 0 : index
    %c1_800 = arith.constant 1 : index
    %c2_801 = arith.constant 2 : index
    %c0_802 = arith.constant 0 : index
    %c256_803 = arith.constant 256 : index
    %705 = vector.load %arg4[%c0_799, %c1_800, %c2_801, %c0_802, %c256_803] : memref<2x2x9x9x640xf32, #tpu.memory_space<vmem>>, vector<1x1x7x7x128xf32>
    %706 = vector.shape_cast %705 : vector<1x1x7x7x128xf32> to vector<7x7x128xf32>
    %707 = vector.shape_cast %704 : vector<128xf32> to vector<1x1x128xf32>
    %708 = vector.broadcast %707 : vector<1x1x128xf32> to vector<7x7x128xf32>
    %709 = arith.mulf %706, %708 : vector<7x7x128xf32>
    %710 = arith.addf %702, %709 : vector<7x7x128xf32>
    %c4_804 = arith.constant 4 : index
    %c2_805 = arith.constant 2 : index
    %c256_806 = arith.constant 256 : index
    %711 = vector.load %arg5[%c4_804, %c2_805, %c256_806] : memref<5x5x640xf32, #tpu.memory_space<vmem>>, vector<1x1x128xf32>
    %712 = vector.shape_cast %711 : vector<1x1x128xf32> to vector<128xf32>
    %c0_807 = arith.constant 0 : index
    %c0_808 = arith.constant 0 : index
    %c2_809 = arith.constant 2 : index
    %c1_810 = arith.constant 1 : index
    %c256_811 = arith.constant 256 : index
    %713 = vector.load %arg4[%c0_807, %c0_808, %c2_809, %c1_810, %c256_811] : memref<2x2x9x9x640xf32, #tpu.memory_space<vmem>>, vector<1x1x7x7x128xf32>
    %714 = vector.shape_cast %713 : vector<1x1x7x7x128xf32> to vector<7x7x128xf32>
    %715 = vector.shape_cast %712 : vector<128xf32> to vector<1x1x128xf32>
    %716 = vector.broadcast %715 : vector<1x1x128xf32> to vector<7x7x128xf32>
    %717 = arith.mulf %714, %716 : vector<7x7x128xf32>
    %718 = arith.addf %710, %717 : vector<7x7x128xf32>
    %c4_812 = arith.constant 4 : index
    %c3_813 = arith.constant 3 : index
    %c256_814 = arith.constant 256 : index
    %719 = vector.load %arg5[%c4_812, %c3_813, %c256_814] : memref<5x5x640xf32, #tpu.memory_space<vmem>>, vector<1x1x128xf32>
    %720 = vector.shape_cast %719 : vector<1x1x128xf32> to vector<128xf32>
    %c0_815 = arith.constant 0 : index
    %c1_816 = arith.constant 1 : index
    %c2_817 = arith.constant 2 : index
    %c1_818 = arith.constant 1 : index
    %c256_819 = arith.constant 256 : index
    %721 = vector.load %arg4[%c0_815, %c1_816, %c2_817, %c1_818, %c256_819] : memref<2x2x9x9x640xf32, #tpu.memory_space<vmem>>, vector<1x1x7x7x128xf32>
    %722 = vector.shape_cast %721 : vector<1x1x7x7x128xf32> to vector<7x7x128xf32>
    %723 = vector.shape_cast %720 : vector<128xf32> to vector<1x1x128xf32>
    %724 = vector.broadcast %723 : vector<1x1x128xf32> to vector<7x7x128xf32>
    %725 = arith.mulf %722, %724 : vector<7x7x128xf32>
    %726 = arith.addf %718, %725 : vector<7x7x128xf32>
    %c4_820 = arith.constant 4 : index
    %c4_821 = arith.constant 4 : index
    %c256_822 = arith.constant 256 : index
    %727 = vector.load %arg5[%c4_820, %c4_821, %c256_822] : memref<5x5x640xf32, #tpu.memory_space<vmem>>, vector<1x1x128xf32>
    %728 = vector.shape_cast %727 : vector<1x1x128xf32> to vector<128xf32>
    %c0_823 = arith.constant 0 : index
    %c0_824 = arith.constant 0 : index
    %c2_825 = arith.constant 2 : index
    %c2_826 = arith.constant 2 : index
    %c256_827 = arith.constant 256 : index
    %729 = vector.load %arg4[%c0_823, %c0_824, %c2_825, %c2_826, %c256_827] : memref<2x2x9x9x640xf32, #tpu.memory_space<vmem>>, vector<1x1x7x7x128xf32>
    %730 = vector.shape_cast %729 : vector<1x1x7x7x128xf32> to vector<7x7x128xf32>
    %731 = vector.shape_cast %728 : vector<128xf32> to vector<1x1x128xf32>
    %732 = vector.broadcast %731 : vector<1x1x128xf32> to vector<7x7x128xf32>
    %733 = arith.mulf %730, %732 : vector<7x7x128xf32>
    %734 = arith.addf %726, %733 : vector<7x7x128xf32>
    %735 = arith.truncf %734 : vector<7x7x128xf32> to vector<7x7x128xbf16>
    %c0_828 = arith.constant 0 : index
    %c0_829 = arith.constant 0 : index
    %c0_830 = arith.constant 0 : index
    %c256_831 = arith.constant 256 : index
    %736 = vector.load %arg3[%c0_828, %c0_829, %c0_830, %c256_831] : memref<1x7x7x640xbf16, #tpu.memory_space<vmem>>, vector<1x7x7x128xbf16>
    %737 = vector.shape_cast %736 : vector<1x7x7x128xbf16> to vector<7x7x128xbf16>
    %738 = vector.shape_cast %735 : vector<7x7x128xbf16> to vector<1x7x7x128xbf16>
    tpu.vector_store %arg3[%c0_828, %c0_829, %c0_830, %c256_831], %738 {strides = array<i32>} : memref<1x7x7x640xbf16, #tpu.memory_space<vmem>>, vector<1x7x7x128xbf16>,
    %cst_832 = arith.constant 0.000000e+00 : f32
    %739 = vector.broadcast %cst_832 : f32 to vector<7x7x128xf32>
    %c0_833 = arith.constant 0 : index
    %c0_834 = arith.constant 0 : index
    %c384_835 = arith.constant 384 : index
    %740 = vector.load %arg5[%c0_833, %c0_834, %c384_835] : memref<5x5x640xf32, #tpu.memory_space<vmem>>, vector<1x1x128xf32>
    %741 = vector.shape_cast %740 : vector<1x1x128xf32> to vector<128xf32>
    %c0_836 = arith.constant 0 : index
    %c0_837 = arith.constant 0 : index
    %c0_838 = arith.constant 0 : index
    %c0_839 = arith.constant 0 : index
    %c384_840 = arith.constant 384 : index
    %742 = vector.load %arg4[%c0_836, %c0_837, %c0_838, %c0_839, %c384_840] : memref<2x2x9x9x640xf32, #tpu.memory_space<vmem>>, vector<1x1x7x7x128xf32>
    %743 = vector.shape_cast %742 : vector<1x1x7x7x128xf32> to vector<7x7x128xf32>
    %744 = vector.shape_cast %741 : vector<128xf32> to vector<1x1x128xf32>
    %745 = vector.broadcast %744 : vector<1x1x128xf32> to vector<7x7x128xf32>
    %746 = arith.mulf %743, %745 : vector<7x7x128xf32>
    %747 = arith.addf %739, %746 : vector<7x7x128xf32>
    %c0_841 = arith.constant 0 : index
    %c1_842 = arith.constant 1 : index
    %c384_843 = arith.constant 384 : index
    %748 = vector.load %arg5[%c0_841, %c1_842, %c384_843] : memref<5x5x640xf32, #tpu.memory_space<vmem>>, vector<1x1x128xf32>
    %749 = vector.shape_cast %748 : vector<1x1x128xf32> to vector<128xf32>
    %c0_844 = arith.constant 0 : index
    %c1_845 = arith.constant 1 : index
    %c0_846 = arith.constant 0 : index
    %c0_847 = arith.constant 0 : index
    %c384_848 = arith.constant 384 : index
    %750 = vector.load %arg4[%c0_844, %c1_845, %c0_846, %c0_847, %c384_848] : memref<2x2x9x9x640xf32, #tpu.memory_space<vmem>>, vector<1x1x7x7x128xf32>
    %751 = vector.shape_cast %750 : vector<1x1x7x7x128xf32> to vector<7x7x128xf32>
    %752 = vector.shape_cast %749 : vector<128xf32> to vector<1x1x128xf32>
    %753 = vector.broadcast %752 : vector<1x1x128xf32> to vector<7x7x128xf32>
    %754 = arith.mulf %751, %753 : vector<7x7x128xf32>
    %755 = arith.addf %747, %754 : vector<7x7x128xf32>
    %c0_849 = arith.constant 0 : index
    %c2_850 = arith.constant 2 : index
    %c384_851 = arith.constant 384 : index
    %756 = vector.load %arg5[%c0_849, %c2_850, %c384_851] : memref<5x5x640xf32, #tpu.memory_space<vmem>>, vector<1x1x128xf32>
    %757 = vector.shape_cast %756 : vector<1x1x128xf32> to vector<128xf32>
    %c0_852 = arith.constant 0 : index
    %c0_853 = arith.constant 0 : index
    %c0_854 = arith.constant 0 : index
    %c1_855 = arith.constant 1 : index
    %c384_856 = arith.constant 384 : index
    %758 = vector.load %arg4[%c0_852, %c0_853, %c0_854, %c1_855, %c384_856] : memref<2x2x9x9x640xf32, #tpu.memory_space<vmem>>, vector<1x1x7x7x128xf32>
    %759 = vector.shape_cast %758 : vector<1x1x7x7x128xf32> to vector<7x7x128xf32>
    %760 = vector.shape_cast %757 : vector<128xf32> to vector<1x1x128xf32>
    %761 = vector.broadcast %760 : vector<1x1x128xf32> to vector<7x7x128xf32>
    %762 = arith.mulf %759, %761 : vector<7x7x128xf32>
    %763 = arith.addf %755, %762 : vector<7x7x128xf32>
    %c0_857 = arith.constant 0 : index
    %c3_858 = arith.constant 3 : index
    %c384_859 = arith.constant 384 : index
    %764 = vector.load %arg5[%c0_857, %c3_858, %c384_859] : memref<5x5x640xf32, #tpu.memory_space<vmem>>, vector<1x1x128xf32>
    %765 = vector.shape_cast %764 : vector<1x1x128xf32> to vector<128xf32>
    %c0_860 = arith.constant 0 : index
    %c1_861 = arith.constant 1 : index
    %c0_862 = arith.constant 0 : index
    %c1_863 = arith.constant 1 : index
    %c384_864 = arith.constant 384 : index
    %766 = vector.load %arg4[%c0_860, %c1_861, %c0_862, %c1_863, %c384_864] : memref<2x2x9x9x640xf32, #tpu.memory_space<vmem>>, vector<1x1x7x7x128xf32>
    %767 = vector.shape_cast %766 : vector<1x1x7x7x128xf32> to vector<7x7x128xf32>
    %768 = vector.shape_cast %765 : vector<128xf32> to vector<1x1x128xf32>
    %769 = vector.broadcast %768 : vector<1x1x128xf32> to vector<7x7x128xf32>
    %770 = arith.mulf %767, %769 : vector<7x7x128xf32>
    %771 = arith.addf %763, %770 : vector<7x7x128xf32>
    %c0_865 = arith.constant 0 : index
    %c4_866 = arith.constant 4 : index
    %c384_867 = arith.constant 384 : index
    %772 = vector.load %arg5[%c0_865, %c4_866, %c384_867] : memref<5x5x640xf32, #tpu.memory_space<vmem>>, vector<1x1x128xf32>
    %773 = vector.shape_cast %772 : vector<1x1x128xf32> to vector<128xf32>
    %c0_868 = arith.constant 0 : index
    %c0_869 = arith.constant 0 : index
    %c0_870 = arith.constant 0 : index
    %c2_871 = arith.constant 2 : index
    %c384_872 = arith.constant 384 : index
    %774 = vector.load %arg4[%c0_868, %c0_869, %c0_870, %c2_871, %c384_872] : memref<2x2x9x9x640xf32, #tpu.memory_space<vmem>>, vector<1x1x7x7x128xf32>
    %775 = vector.shape_cast %774 : vector<1x1x7x7x128xf32> to vector<7x7x128xf32>
    %776 = vector.shape_cast %773 : vector<128xf32> to vector<1x1x128xf32>
    %777 = vector.broadcast %776 : vector<1x1x128xf32> to vector<7x7x128xf32>
    %778 = arith.mulf %775, %777 : vector<7x7x128xf32>
    %779 = arith.addf %771, %778 : vector<7x7x128xf32>
    %c1_873 = arith.constant 1 : index
    %c0_874 = arith.constant 0 : index
    %c384_875 = arith.constant 384 : index
    %780 = vector.load %arg5[%c1_873, %c0_874, %c384_875] : memref<5x5x640xf32, #tpu.memory_space<vmem>>, vector<1x1x128xf32>
    %781 = vector.shape_cast %780 : vector<1x1x128xf32> to vector<128xf32>
    %c1_876 = arith.constant 1 : index
    %c0_877 = arith.constant 0 : index
    %c0_878 = arith.constant 0 : index
    %c0_879 = arith.constant 0 : index
    %c384_880 = arith.constant 384 : index
    %782 = vector.load %arg4[%c1_876, %c0_877, %c0_878, %c0_879, %c384_880] : memref<2x2x9x9x640xf32, #tpu.memory_space<vmem>>, vector<1x1x7x7x128xf32>
    %783 = vector.shape_cast %782 : vector<1x1x7x7x128xf32> to vector<7x7x128xf32>
    %784 = vector.shape_cast %781 : vector<128xf32> to vector<1x1x128xf32>
    %785 = vector.broadcast %784 : vector<1x1x128xf32> to vector<7x7x128xf32>
    %786 = arith.mulf %783, %785 : vector<7x7x128xf32>
    %787 = arith.addf %779, %786 : vector<7x7x128xf32>
    %c1_881 = arith.constant 1 : index
    %c1_882 = arith.constant 1 : index
    %c384_883 = arith.constant 384 : index
    %788 = vector.load %arg5[%c1_881, %c1_882, %c384_883] : memref<5x5x640xf32, #tpu.memory_space<vmem>>, vector<1x1x128xf32>
    %789 = vector.shape_cast %788 : vector<1x1x128xf32> to vector<128xf32>
    %c1_884 = arith.constant 1 : index
    %c1_885 = arith.constant 1 : index
    %c0_886 = arith.constant 0 : index
    %c0_887 = arith.constant 0 : index
    %c384_888 = arith.constant 384 : index
    %790 = vector.load %arg4[%c1_884, %c1_885, %c0_886, %c0_887, %c384_888] : memref<2x2x9x9x640xf32, #tpu.memory_space<vmem>>, vector<1x1x7x7x128xf32>
    %791 = vector.shape_cast %790 : vector<1x1x7x7x128xf32> to vector<7x7x128xf32>
    %792 = vector.shape_cast %789 : vector<128xf32> to vector<1x1x128xf32>
    %793 = vector.broadcast %792 : vector<1x1x128xf32> to vector<7x7x128xf32>
    %794 = arith.mulf %791, %793 : vector<7x7x128xf32>
    %795 = arith.addf %787, %794 : vector<7x7x128xf32>
    %c1_889 = arith.constant 1 : index
    %c2_890 = arith.constant 2 : index
    %c384_891 = arith.constant 384 : index
    %796 = vector.load %arg5[%c1_889, %c2_890, %c384_891] : memref<5x5x640xf32, #tpu.memory_space<vmem>>, vector<1x1x128xf32>
    %797 = vector.shape_cast %796 : vector<1x1x128xf32> to vector<128xf32>
    %c1_892 = arith.constant 1 : index
    %c0_893 = arith.constant 0 : index
    %c0_894 = arith.constant 0 : index
    %c1_895 = arith.constant 1 : index
    %c384_896 = arith.constant 384 : index
    %798 = vector.load %arg4[%c1_892, %c0_893, %c0_894, %c1_895, %c384_896] : memref<2x2x9x9x640xf32, #tpu.memory_space<vmem>>, vector<1x1x7x7x128xf32>
    %799 = vector.shape_cast %798 : vector<1x1x7x7x128xf32> to vector<7x7x128xf32>
    %800 = vector.shape_cast %797 : vector<128xf32> to vector<1x1x128xf32>
    %801 = vector.broadcast %800 : vector<1x1x128xf32> to vector<7x7x128xf32>
    %802 = arith.mulf %799, %801 : vector<7x7x128xf32>
    %803 = arith.addf %795, %802 : vector<7x7x128xf32>
    %c1_897 = arith.constant 1 : index
    %c3_898 = arith.constant 3 : index
    %c384_899 = arith.constant 384 : index
    %804 = vector.load %arg5[%c1_897, %c3_898, %c384_899] : memref<5x5x640xf32, #tpu.memory_space<vmem>>, vector<1x1x128xf32>
    %805 = vector.shape_cast %804 : vector<1x1x128xf32> to vector<128xf32>
    %c1_900 = arith.constant 1 : index
    %c1_901 = arith.constant 1 : index
    %c0_902 = arith.constant 0 : index
    %c1_903 = arith.constant 1 : index
    %c384_904 = arith.constant 384 : index
    %806 = vector.load %arg4[%c1_900, %c1_901, %c0_902, %c1_903, %c384_904] : memref<2x2x9x9x640xf32, #tpu.memory_space<vmem>>, vector<1x1x7x7x128xf32>
    %807 = vector.shape_cast %806 : vector<1x1x7x7x128xf32> to vector<7x7x128xf32>
    %808 = vector.shape_cast %805 : vector<128xf32> to vector<1x1x128xf32>
    %809 = vector.broadcast %808 : vector<1x1x128xf32> to vector<7x7x128xf32>
    %810 = arith.mulf %807, %809 : vector<7x7x128xf32>
    %811 = arith.addf %803, %810 : vector<7x7x128xf32>
    %c1_905 = arith.constant 1 : index
    %c4_906 = arith.constant 4 : index
    %c384_907 = arith.constant 384 : index
    %812 = vector.load %arg5[%c1_905, %c4_906, %c384_907] : memref<5x5x640xf32, #tpu.memory_space<vmem>>, vector<1x1x128xf32>
    %813 = vector.shape_cast %812 : vector<1x1x128xf32> to vector<128xf32>
    %c1_908 = arith.constant 1 : index
    %c0_909 = arith.constant 0 : index
    %c0_910 = arith.constant 0 : index
    %c2_911 = arith.constant 2 : index
    %c384_912 = arith.constant 384 : index
    %814 = vector.load %arg4[%c1_908, %c0_909, %c0_910, %c2_911, %c384_912] : memref<2x2x9x9x640xf32, #tpu.memory_space<vmem>>, vector<1x1x7x7x128xf32>
    %815 = vector.shape_cast %814 : vector<1x1x7x7x128xf32> to vector<7x7x128xf32>
    %816 = vector.shape_cast %813 : vector<128xf32> to vector<1x1x128xf32>
    %817 = vector.broadcast %816 : vector<1x1x128xf32> to vector<7x7x128xf32>
    %818 = arith.mulf %815, %817 : vector<7x7x128xf32>
    %819 = arith.addf %811, %818 : vector<7x7x128xf32>
    %c2_913 = arith.constant 2 : index
    %c0_914 = arith.constant 0 : index
    %c384_915 = arith.constant 384 : index
    %820 = vector.load %arg5[%c2_913, %c0_914, %c384_915] : memref<5x5x640xf32, #tpu.memory_space<vmem>>, vector<1x1x128xf32>
    %821 = vector.shape_cast %820 : vector<1x1x128xf32> to vector<128xf32>
    %c0_916 = arith.constant 0 : index
    %c0_917 = arith.constant 0 : index
    %c1_918 = arith.constant 1 : index
    %c0_919 = arith.constant 0 : index
    %c384_920 = arith.constant 384 : index
    %822 = vector.load %arg4[%c0_916, %c0_917, %c1_918, %c0_919, %c384_920] : memref<2x2x9x9x640xf32, #tpu.memory_space<vmem>>, vector<1x1x7x7x128xf32>
    %823 = vector.shape_cast %822 : vector<1x1x7x7x128xf32> to vector<7x7x128xf32>
    %824 = vector.shape_cast %821 : vector<128xf32> to vector<1x1x128xf32>
    %825 = vector.broadcast %824 : vector<1x1x128xf32> to vector<7x7x128xf32>
    %826 = arith.mulf %823, %825 : vector<7x7x128xf32>
    %827 = arith.addf %819, %826 : vector<7x7x128xf32>
    %c2_921 = arith.constant 2 : index
    %c1_922 = arith.constant 1 : index
    %c384_923 = arith.constant 384 : index
    %828 = vector.load %arg5[%c2_921, %c1_922, %c384_923] : memref<5x5x640xf32, #tpu.memory_space<vmem>>, vector<1x1x128xf32>
    %829 = vector.shape_cast %828 : vector<1x1x128xf32> to vector<128xf32>
    %c0_924 = arith.constant 0 : index
    %c1_925 = arith.constant 1 : index
    %c1_926 = arith.constant 1 : index
    %c0_927 = arith.constant 0 : index
    %c384_928 = arith.constant 384 : index
    %830 = vector.load %arg4[%c0_924, %c1_925, %c1_926, %c0_927, %c384_928] : memref<2x2x9x9x640xf32, #tpu.memory_space<vmem>>, vector<1x1x7x7x128xf32>
    %831 = vector.shape_cast %830 : vector<1x1x7x7x128xf32> to vector<7x7x128xf32>
    %832 = vector.shape_cast %829 : vector<128xf32> to vector<1x1x128xf32>
    %833 = vector.broadcast %832 : vector<1x1x128xf32> to vector<7x7x128xf32>
    %834 = arith.mulf %831, %833 : vector<7x7x128xf32>
    %835 = arith.addf %827, %834 : vector<7x7x128xf32>
    %c2_929 = arith.constant 2 : index
    %c2_930 = arith.constant 2 : index
    %c384_931 = arith.constant 384 : index
    %836 = vector.load %arg5[%c2_929, %c2_930, %c384_931] : memref<5x5x640xf32, #tpu.memory_space<vmem>>, vector<1x1x128xf32>
    %837 = vector.shape_cast %836 : vector<1x1x128xf32> to vector<128xf32>
    %c0_932 = arith.constant 0 : index
    %c0_933 = arith.constant 0 : index
    %c1_934 = arith.constant 1 : index
    %c1_935 = arith.constant 1 : index
    %c384_936 = arith.constant 384 : index
    %838 = vector.load %arg4[%c0_932, %c0_933, %c1_934, %c1_935, %c384_936] : memref<2x2x9x9x640xf32, #tpu.memory_space<vmem>>, vector<1x1x7x7x128xf32>
    %839 = vector.shape_cast %838 : vector<1x1x7x7x128xf32> to vector<7x7x128xf32>
    %840 = vector.shape_cast %837 : vector<128xf32> to vector<1x1x128xf32>
    %841 = vector.broadcast %840 : vector<1x1x128xf32> to vector<7x7x128xf32>
    %842 = arith.mulf %839, %841 : vector<7x7x128xf32>
    %843 = arith.addf %835, %842 : vector<7x7x128xf32>
    %c2_937 = arith.constant 2 : index
    %c3_938 = arith.constant 3 : index
    %c384_939 = arith.constant 384 : index
    %844 = vector.load %arg5[%c2_937, %c3_938, %c384_939] : memref<5x5x640xf32, #tpu.memory_space<vmem>>, vector<1x1x128xf32>
    %845 = vector.shape_cast %844 : vector<1x1x128xf32> to vector<128xf32>
    %c0_940 = arith.constant 0 : index
    %c1_941 = arith.constant 1 : index
    %c1_942 = arith.constant 1 : index
    %c1_943 = arith.constant 1 : index
    %c384_944 = arith.constant 384 : index
    %846 = vector.load %arg4[%c0_940, %c1_941, %c1_942, %c1_943, %c384_944] : memref<2x2x9x9x640xf32, #tpu.memory_space<vmem>>, vector<1x1x7x7x128xf32>
    %847 = vector.shape_cast %846 : vector<1x1x7x7x128xf32> to vector<7x7x128xf32>
    %848 = vector.shape_cast %845 : vector<128xf32> to vector<1x1x128xf32>
    %849 = vector.broadcast %848 : vector<1x1x128xf32> to vector<7x7x128xf32>
    %850 = arith.mulf %847, %849 : vector<7x7x128xf32>
    %851 = arith.addf %843, %850 : vector<7x7x128xf32>
    %c2_945 = arith.constant 2 : index
    %c4_946 = arith.constant 4 : index
    %c384_947 = arith.constant 384 : index
    %852 = vector.load %arg5[%c2_945, %c4_946, %c384_947] : memref<5x5x640xf32, #tpu.memory_space<vmem>>, vector<1x1x128xf32>
    %853 = vector.shape_cast %852 : vector<1x1x128xf32> to vector<128xf32>
    %c0_948 = arith.constant 0 : index
    %c0_949 = arith.constant 0 : index
    %c1_950 = arith.constant 1 : index
    %c2_951 = arith.constant 2 : index
    %c384_952 = arith.constant 384 : index
    %854 = vector.load %arg4[%c0_948, %c0_949, %c1_950, %c2_951, %c384_952] : memref<2x2x9x9x640xf32, #tpu.memory_space<vmem>>, vector<1x1x7x7x128xf32>
    %855 = vector.shape_cast %854 : vector<1x1x7x7x128xf32> to vector<7x7x128xf32>
    %856 = vector.shape_cast %853 : vector<128xf32> to vector<1x1x128xf32>
    %857 = vector.broadcast %856 : vector<1x1x128xf32> to vector<7x7x128xf32>
    %858 = arith.mulf %855, %857 : vector<7x7x128xf32>
    %859 = arith.addf %851, %858 : vector<7x7x128xf32>
    %c3_953 = arith.constant 3 : index
    %c0_954 = arith.constant 0 : index
    %c384_955 = arith.constant 384 : index
    %860 = vector.load %arg5[%c3_953, %c0_954, %c384_955] : memref<5x5x640xf32, #tpu.memory_space<vmem>>, vector<1x1x128xf32>
    %861 = vector.shape_cast %860 : vector<1x1x128xf32> to vector<128xf32>
    %c1_956 = arith.constant 1 : index
    %c0_957 = arith.constant 0 : index
    %c1_958 = arith.constant 1 : index
    %c0_959 = arith.constant 0 : index
    %c384_960 = arith.constant 384 : index
    %862 = vector.load %arg4[%c1_956, %c0_957, %c1_958, %c0_959, %c384_960] : memref<2x2x9x9x640xf32, #tpu.memory_space<vmem>>, vector<1x1x7x7x128xf32>
    %863 = vector.shape_cast %862 : vector<1x1x7x7x128xf32> to vector<7x7x128xf32>
    %864 = vector.shape_cast %861 : vector<128xf32> to vector<1x1x128xf32>
    %865 = vector.broadcast %864 : vector<1x1x128xf32> to vector<7x7x128xf32>
    %866 = arith.mulf %863, %865 : vector<7x7x128xf32>
    %867 = arith.addf %859, %866 : vector<7x7x128xf32>
    %c3_961 = arith.constant 3 : index
    %c1_962 = arith.constant 1 : index
    %c384_963 = arith.constant 384 : index
    %868 = vector.load %arg5[%c3_961, %c1_962, %c384_963] : memref<5x5x640xf32, #tpu.memory_space<vmem>>, vector<1x1x128xf32>
    %869 = vector.shape_cast %868 : vector<1x1x128xf32> to vector<128xf32>
    %c1_964 = arith.constant 1 : index
    %c1_965 = arith.constant 1 : index
    %c1_966 = arith.constant 1 : index
    %c0_967 = arith.constant 0 : index
    %c384_968 = arith.constant 384 : index
    %870 = vector.load %arg4[%c1_964, %c1_965, %c1_966, %c0_967, %c384_968] : memref<2x2x9x9x640xf32, #tpu.memory_space<vmem>>, vector<1x1x7x7x128xf32>
    %871 = vector.shape_cast %870 : vector<1x1x7x7x128xf32> to vector<7x7x128xf32>
    %872 = vector.shape_cast %869 : vector<128xf32> to vector<1x1x128xf32>
    %873 = vector.broadcast %872 : vector<1x1x128xf32> to vector<7x7x128xf32>
    %874 = arith.mulf %871, %873 : vector<7x7x128xf32>
    %875 = arith.addf %867, %874 : vector<7x7x128xf32>
    %c3_969 = arith.constant 3 : index
    %c2_970 = arith.constant 2 : index
    %c384_971 = arith.constant 384 : index
    %876 = vector.load %arg5[%c3_969, %c2_970, %c384_971] : memref<5x5x640xf32, #tpu.memory_space<vmem>>, vector<1x1x128xf32>
    %877 = vector.shape_cast %876 : vector<1x1x128xf32> to vector<128xf32>
    %c1_972 = arith.constant 1 : index
    %c0_973 = arith.constant 0 : index
    %c1_974 = arith.constant 1 : index
    %c1_975 = arith.constant 1 : index
    %c384_976 = arith.constant 384 : index
    %878 = vector.load %arg4[%c1_972, %c0_973, %c1_974, %c1_975, %c384_976] : memref<2x2x9x9x640xf32, #tpu.memory_space<vmem>>, vector<1x1x7x7x128xf32>
    %879 = vector.shape_cast %878 : vector<1x1x7x7x128xf32> to vector<7x7x128xf32>
    %880 = vector.shape_cast %877 : vector<128xf32> to vector<1x1x128xf32>
    %881 = vector.broadcast %880 : vector<1x1x128xf32> to vector<7x7x128xf32>
    %882 = arith.mulf %879, %881 : vector<7x7x128xf32>
    %883 = arith.addf %875, %882 : vector<7x7x128xf32>
    %c3_977 = arith.constant 3 : index
    %c3_978 = arith.constant 3 : index
    %c384_979 = arith.constant 384 : index
    %884 = vector.load %arg5[%c3_977, %c3_978, %c384_979] : memref<5x5x640xf32, #tpu.memory_space<vmem>>, vector<1x1x128xf32>
    %885 = vector.shape_cast %884 : vector<1x1x128xf32> to vector<128xf32>
    %c1_980 = arith.constant 1 : index
    %c1_981 = arith.constant 1 : index
    %c1_982 = arith.constant 1 : index
    %c1_983 = arith.constant 1 : index
    %c384_984 = arith.constant 384 : index
    %886 = vector.load %arg4[%c1_980, %c1_981, %c1_982, %c1_983, %c384_984] : memref<2x2x9x9x640xf32, #tpu.memory_space<vmem>>, vector<1x1x7x7x128xf32>
    %887 = vector.shape_cast %886 : vector<1x1x7x7x128xf32> to vector<7x7x128xf32>
    %888 = vector.shape_cast %885 : vector<128xf32> to vector<1x1x128xf32>
    %889 = vector.broadcast %888 : vector<1x1x128xf32> to vector<7x7x128xf32>
    %890 = arith.mulf %887, %889 : vector<7x7x128xf32>
    %891 = arith.addf %883, %890 : vector<7x7x128xf32>
    %c3_985 = arith.constant 3 : index
    %c4_986 = arith.constant 4 : index
    %c384_987 = arith.constant 384 : index
    %892 = vector.load %arg5[%c3_985, %c4_986, %c384_987] : memref<5x5x640xf32, #tpu.memory_space<vmem>>, vector<1x1x128xf32>
    %893 = vector.shape_cast %892 : vector<1x1x128xf32> to vector<128xf32>
    %c1_988 = arith.constant 1 : index
    %c0_989 = arith.constant 0 : index
    %c1_990 = arith.constant 1 : index
    %c2_991 = arith.constant 2 : index
    %c384_992 = arith.constant 384 : index
    %894 = vector.load %arg4[%c1_988, %c0_989, %c1_990, %c2_991, %c384_992] : memref<2x2x9x9x640xf32, #tpu.memory_space<vmem>>, vector<1x1x7x7x128xf32>
    %895 = vector.shape_cast %894 : vector<1x1x7x7x128xf32> to vector<7x7x128xf32>
    %896 = vector.shape_cast %893 : vector<128xf32> to vector<1x1x128xf32>
    %897 = vector.broadcast %896 : vector<1x1x128xf32> to vector<7x7x128xf32>
    %898 = arith.mulf %895, %897 : vector<7x7x128xf32>
    %899 = arith.addf %891, %898 : vector<7x7x128xf32>
    %c4_993 = arith.constant 4 : index
    %c0_994 = arith.constant 0 : index
    %c384_995 = arith.constant 384 : index
    %900 = vector.load %arg5[%c4_993, %c0_994, %c384_995] : memref<5x5x640xf32, #tpu.memory_space<vmem>>, vector<1x1x128xf32>
    %901 = vector.shape_cast %900 : vector<1x1x128xf32> to vector<128xf32>
    %c0_996 = arith.constant 0 : index
    %c0_997 = arith.constant 0 : index
    %c2_998 = arith.constant 2 : index
    %c0_999 = arith.constant 0 : index
    %c384_1000 = arith.constant 384 : index
    %902 = vector.load %arg4[%c0_996, %c0_997, %c2_998, %c0_999, %c384_1000] : memref<2x2x9x9x640xf32, #tpu.memory_space<vmem>>, vector<1x1x7x7x128xf32>
    %903 = vector.shape_cast %902 : vector<1x1x7x7x128xf32> to vector<7x7x128xf32>
    %904 = vector.shape_cast %901 : vector<128xf32> to vector<1x1x128xf32>
    %905 = vector.broadcast %904 : vector<1x1x128xf32> to vector<7x7x128xf32>
    %906 = arith.mulf %903, %905 : vector<7x7x128xf32>
    %907 = arith.addf %899, %906 : vector<7x7x128xf32>
    %c4_1001 = arith.constant 4 : index
    %c1_1002 = arith.constant 1 : index
    %c384_1003 = arith.constant 384 : index
    %908 = vector.load %arg5[%c4_1001, %c1_1002, %c384_1003] : memref<5x5x640xf32, #tpu.memory_space<vmem>>, vector<1x1x128xf32>
    %909 = vector.shape_cast %908 : vector<1x1x128xf32> to vector<128xf32>
    %c0_1004 = arith.constant 0 : index
    %c1_1005 = arith.constant 1 : index
    %c2_1006 = arith.constant 2 : index
    %c0_1007 = arith.constant 0 : index
    %c384_1008 = arith.constant 384 : index
    %910 = vector.load %arg4[%c0_1004, %c1_1005, %c2_1006, %c0_1007, %c384_1008] : memref<2x2x9x9x640xf32, #tpu.memory_space<vmem>>, vector<1x1x7x7x128xf32>
    %911 = vector.shape_cast %910 : vector<1x1x7x7x128xf32> to vector<7x7x128xf32>
    %912 = vector.shape_cast %909 : vector<128xf32> to vector<1x1x128xf32>
    %913 = vector.broadcast %912 : vector<1x1x128xf32> to vector<7x7x128xf32>
    %914 = arith.mulf %911, %913 : vector<7x7x128xf32>
    %915 = arith.addf %907, %914 : vector<7x7x128xf32>
    %c4_1009 = arith.constant 4 : index
    %c2_1010 = arith.constant 2 : index
    %c384_1011 = arith.constant 384 : index
    %916 = vector.load %arg5[%c4_1009, %c2_1010, %c384_1011] : memref<5x5x640xf32, #tpu.memory_space<vmem>>, vector<1x1x128xf32>
    %917 = vector.shape_cast %916 : vector<1x1x128xf32> to vector<128xf32>
    %c0_1012 = arith.constant 0 : index
    %c0_1013 = arith.constant 0 : index
    %c2_1014 = arith.constant 2 : index
    %c1_1015 = arith.constant 1 : index
    %c384_1016 = arith.constant 384 : index
    %918 = vector.load %arg4[%c0_1012, %c0_1013, %c2_1014, %c1_1015, %c384_1016] : memref<2x2x9x9x640xf32, #tpu.memory_space<vmem>>, vector<1x1x7x7x128xf32>
    %919 = vector.shape_cast %918 : vector<1x1x7x7x128xf32> to vector<7x7x128xf32>
    %920 = vector.shape_cast %917 : vector<128xf32> to vector<1x1x128xf32>
    %921 = vector.broadcast %920 : vector<1x1x128xf32> to vector<7x7x128xf32>
    %922 = arith.mulf %919, %921 : vector<7x7x128xf32>
    %923 = arith.addf %915, %922 : vector<7x7x128xf32>
    %c4_1017 = arith.constant 4 : index
    %c3_1018 = arith.constant 3 : index
    %c384_1019 = arith.constant 384 : index
    %924 = vector.load %arg5[%c4_1017, %c3_1018, %c384_1019] : memref<5x5x640xf32, #tpu.memory_space<vmem>>, vector<1x1x128xf32>
    %925 = vector.shape_cast %924 : vector<1x1x128xf32> to vector<128xf32>
    %c0_1020 = arith.constant 0 : index
    %c1_1021 = arith.constant 1 : index
    %c2_1022 = arith.constant 2 : index
    %c1_1023 = arith.constant 1 : index
    %c384_1024 = arith.constant 384 : index
    %926 = vector.load %arg4[%c0_1020, %c1_1021, %c2_1022, %c1_1023, %c384_1024] : memref<2x2x9x9x640xf32, #tpu.memory_space<vmem>>, vector<1x1x7x7x128xf32>
    %927 = vector.shape_cast %926 : vector<1x1x7x7x128xf32> to vector<7x7x128xf32>
    %928 = vector.shape_cast %925 : vector<128xf32> to vector<1x1x128xf32>
    %929 = vector.broadcast %928 : vector<1x1x128xf32> to vector<7x7x128xf32>
    %930 = arith.mulf %927, %929 : vector<7x7x128xf32>
    %931 = arith.addf %923, %930 : vector<7x7x128xf32>
    %c4_1025 = arith.constant 4 : index
    %c4_1026 = arith.constant 4 : index
    %c384_1027 = arith.constant 384 : index
    %932 = vector.load %arg5[%c4_1025, %c4_1026, %c384_1027] : memref<5x5x640xf32, #tpu.memory_space<vmem>>, vector<1x1x128xf32>
    %933 = vector.shape_cast %932 : vector<1x1x128xf32> to vector<128xf32>
    %c0_1028 = arith.constant 0 : index
    %c0_1029 = arith.constant 0 : index
    %c2_1030 = arith.constant 2 : index
    %c2_1031 = arith.constant 2 : index
    %c384_1032 = arith.constant 384 : index
    %934 = vector.load %arg4[%c0_1028, %c0_1029, %c2_1030, %c2_1031, %c384_1032] : memref<2x2x9x9x640xf32, #tpu.memory_space<vmem>>, vector<1x1x7x7x128xf32>
    %935 = vector.shape_cast %934 : vector<1x1x7x7x128xf32> to vector<7x7x128xf32>
    %936 = vector.shape_cast %933 : vector<128xf32> to vector<1x1x128xf32>
    %937 = vector.broadcast %936 : vector<1x1x128xf32> to vector<7x7x128xf32>
    %938 = arith.mulf %935, %937 : vector<7x7x128xf32>
    %939 = arith.addf %931, %938 : vector<7x7x128xf32>
    %940 = arith.truncf %939 : vector<7x7x128xf32> to vector<7x7x128xbf16>
    %c0_1033 = arith.constant 0 : index
    %c0_1034 = arith.constant 0 : index
    %c0_1035 = arith.constant 0 : index
    %c384_1036 = arith.constant 384 : index
    %941 = vector.load %arg3[%c0_1033, %c0_1034, %c0_1035, %c384_1036] : memref<1x7x7x640xbf16, #tpu.memory_space<vmem>>, vector<1x7x7x128xbf16>
    %942 = vector.shape_cast %941 : vector<1x7x7x128xbf16> to vector<7x7x128xbf16>
    %943 = vector.shape_cast %940 : vector<7x7x128xbf16> to vector<1x7x7x128xbf16>
    tpu.vector_store %arg3[%c0_1033, %c0_1034, %c0_1035, %c384_1036], %943 {strides = array<i32>} : memref<1x7x7x640xbf16, #tpu.memory_space<vmem>>, vector<1x7x7x128xbf16>,
    %cst_1037 = arith.constant 0.000000e+00 : f32
    %944 = vector.broadcast %cst_1037 : f32 to vector<7x7x128xf32>
    %c0_1038 = arith.constant 0 : index
    %c0_1039 = arith.constant 0 : index
    %c512_1040 = arith.constant 512 : index
    %945 = vector.load %arg5[%c0_1038, %c0_1039, %c512_1040] : memref<5x5x640xf32, #tpu.memory_space<vmem>>, vector<1x1x128xf32>
    %946 = vector.shape_cast %945 : vector<1x1x128xf32> to vector<128xf32>
    %c0_1041 = arith.constant 0 : index
    %c0_1042 = arith.constant 0 : index
    %c0_1043 = arith.constant 0 : index
    %c0_1044 = arith.constant 0 : index
    %c512_1045 = arith.constant 512 : index
    %947 = vector.load %arg4[%c0_1041, %c0_1042, %c0_1043, %c0_1044, %c512_1045] : memref<2x2x9x9x640xf32, #tpu.memory_space<vmem>>, vector<1x1x7x7x128xf32>
    %948 = vector.shape_cast %947 : vector<1x1x7x7x128xf32> to vector<7x7x128xf32>
    %949 = vector.shape_cast %946 : vector<128xf32> to vector<1x1x128xf32>
    %950 = vector.broadcast %949 : vector<1x1x128xf32> to vector<7x7x128xf32>
    %951 = arith.mulf %948, %950 : vector<7x7x128xf32>
    %952 = arith.addf %944, %951 : vector<7x7x128xf32>
    %c0_1046 = arith.constant 0 : index
    %c1_1047 = arith.constant 1 : index
    %c512_1048 = arith.constant 512 : index
    %953 = vector.load %arg5[%c0_1046, %c1_1047, %c512_1048] : memref<5x5x640xf32, #tpu.memory_space<vmem>>, vector<1x1x128xf32>
    %954 = vector.shape_cast %953 : vector<1x1x128xf32> to vector<128xf32>
    %c0_1049 = arith.constant 0 : index
    %c1_1050 = arith.constant 1 : index
    %c0_1051 = arith.constant 0 : index
    %c0_1052 = arith.constant 0 : index
    %c512_1053 = arith.constant 512 : index
    %955 = vector.load %arg4[%c0_1049, %c1_1050, %c0_1051, %c0_1052, %c512_1053] : memref<2x2x9x9x640xf32, #tpu.memory_space<vmem>>, vector<1x1x7x7x128xf32>
    %956 = vector.shape_cast %955 : vector<1x1x7x7x128xf32> to vector<7x7x128xf32>
    %957 = vector.shape_cast %954 : vector<128xf32> to vector<1x1x128xf32>
    %958 = vector.broadcast %957 : vector<1x1x128xf32> to vector<7x7x128xf32>
    %959 = arith.mulf %956, %958 : vector<7x7x128xf32>
    %960 = arith.addf %952, %959 : vector<7x7x128xf32>
    %c0_1054 = arith.constant 0 : index
    %c2_1055 = arith.constant 2 : index
    %c512_1056 = arith.constant 512 : index
    %961 = vector.load %arg5[%c0_1054, %c2_1055, %c512_1056] : memref<5x5x640xf32, #tpu.memory_space<vmem>>, vector<1x1x128xf32>
    %962 = vector.shape_cast %961 : vector<1x1x128xf32> to vector<128xf32>
    %c0_1057 = arith.constant 0 : index
    %c0_1058 = arith.constant 0 : index
    %c0_1059 = arith.constant 0 : index
    %c1_1060 = arith.constant 1 : index
    %c512_1061 = arith.constant 512 : index
    %963 = vector.load %arg4[%c0_1057, %c0_1058, %c0_1059, %c1_1060, %c512_1061] : memref<2x2x9x9x640xf32, #tpu.memory_space<vmem>>, vector<1x1x7x7x128xf32>
    %964 = vector.shape_cast %963 : vector<1x1x7x7x128xf32> to vector<7x7x128xf32>
    %965 = vector.shape_cast %962 : vector<128xf32> to vector<1x1x128xf32>
    %966 = vector.broadcast %965 : vector<1x1x128xf32> to vector<7x7x128xf32>
    %967 = arith.mulf %964, %966 : vector<7x7x128xf32>
    %968 = arith.addf %960, %967 : vector<7x7x128xf32>
    %c0_1062 = arith.constant 0 : index
    %c3_1063 = arith.constant 3 : index
    %c512_1064 = arith.constant 512 : index
    %969 = vector.load %arg5[%c0_1062, %c3_1063, %c512_1064] : memref<5x5x640xf32, #tpu.memory_space<vmem>>, vector<1x1x128xf32>
    %970 = vector.shape_cast %969 : vector<1x1x128xf32> to vector<128xf32>
    %c0_1065 = arith.constant 0 : index
    %c1_1066 = arith.constant 1 : index
    %c0_1067 = arith.constant 0 : index
    %c1_1068 = arith.constant 1 : index
    %c512_1069 = arith.constant 512 : index
    %971 = vector.load %arg4[%c0_1065, %c1_1066, %c0_1067, %c1_1068, %c512_1069] : memref<2x2x9x9x640xf32, #tpu.memory_space<vmem>>, vector<1x1x7x7x128xf32>
    %972 = vector.shape_cast %971 : vector<1x1x7x7x128xf32> to vector<7x7x128xf32>
    %973 = vector.shape_cast %970 : vector<128xf32> to vector<1x1x128xf32>
    %974 = vector.broadcast %973 : vector<1x1x128xf32> to vector<7x7x128xf32>
    %975 = arith.mulf %972, %974 : vector<7x7x128xf32>
    %976 = arith.addf %968, %975 : vector<7x7x128xf32>
    %c0_1070 = arith.constant 0 : index
    %c4_1071 = arith.constant 4 : index
    %c512_1072 = arith.constant 512 : index
    %977 = vector.load %arg5[%c0_1070, %c4_1071, %c512_1072] : memref<5x5x640xf32, #tpu.memory_space<vmem>>, vector<1x1x128xf32>
    %978 = vector.shape_cast %977 : vector<1x1x128xf32> to vector<128xf32>
    %c0_1073 = arith.constant 0 : index
    %c0_1074 = arith.constant 0 : index
    %c0_1075 = arith.constant 0 : index
    %c2_1076 = arith.constant 2 : index
    %c512_1077 = arith.constant 512 : index
    %979 = vector.load %arg4[%c0_1073, %c0_1074, %c0_1075, %c2_1076, %c512_1077] : memref<2x2x9x9x640xf32, #tpu.memory_space<vmem>>, vector<1x1x7x7x128xf32>
    %980 = vector.shape_cast %979 : vector<1x1x7x7x128xf32> to vector<7x7x128xf32>
    %981 = vector.shape_cast %978 : vector<128xf32> to vector<1x1x128xf32>
    %982 = vector.broadcast %981 : vector<1x1x128xf32> to vector<7x7x128xf32>
    %983 = arith.mulf %980, %982 : vector<7x7x128xf32>
    %984 = arith.addf %976, %983 : vector<7x7x128xf32>
    %c1_1078 = arith.constant 1 : index
    %c0_1079 = arith.constant 0 : index
    %c512_1080 = arith.constant 512 : index
    %985 = vector.load %arg5[%c1_1078, %c0_1079, %c512_1080] : memref<5x5x640xf32, #tpu.memory_space<vmem>>, vector<1x1x128xf32>
    %986 = vector.shape_cast %985 : vector<1x1x128xf32> to vector<128xf32>
    %c1_1081 = arith.constant 1 : index
    %c0_1082 = arith.constant 0 : index
    %c0_1083 = arith.constant 0 : index
    %c0_1084 = arith.constant 0 : index
    %c512_1085 = arith.constant 512 : index
    %987 = vector.load %arg4[%c1_1081, %c0_1082, %c0_1083, %c0_1084, %c512_1085] : memref<2x2x9x9x640xf32, #tpu.memory_space<vmem>>, vector<1x1x7x7x128xf32>
    %988 = vector.shape_cast %987 : vector<1x1x7x7x128xf32> to vector<7x7x128xf32>
    %989 = vector.shape_cast %986 : vector<128xf32> to vector<1x1x128xf32>
    %990 = vector.broadcast %989 : vector<1x1x128xf32> to vector<7x7x128xf32>
    %991 = arith.mulf %988, %990 : vector<7x7x128xf32>
    %992 = arith.addf %984, %991 : vector<7x7x128xf32>
    %c1_1086 = arith.constant 1 : index
    %c1_1087 = arith.constant 1 : index
    %c512_1088 = arith.constant 512 : index
    %993 = vector.load %arg5[%c1_1086, %c1_1087, %c512_1088] : memref<5x5x640xf32, #tpu.memory_space<vmem>>, vector<1x1x128xf32>
    %994 = vector.shape_cast %993 : vector<1x1x128xf32> to vector<128xf32>
    %c1_1089 = arith.constant 1 : index
    %c1_1090 = arith.constant 1 : index
    %c0_1091 = arith.constant 0 : index
    %c0_1092 = arith.constant 0 : index
    %c512_1093 = arith.constant 512 : index
    %995 = vector.load %arg4[%c1_1089, %c1_1090, %c0_1091, %c0_1092, %c512_1093] : memref<2x2x9x9x640xf32, #tpu.memory_space<vmem>>, vector<1x1x7x7x128xf32>
    %996 = vector.shape_cast %995 : vector<1x1x7x7x128xf32> to vector<7x7x128xf32>
    %997 = vector.shape_cast %994 : vector<128xf32> to vector<1x1x128xf32>
    %998 = vector.broadcast %997 : vector<1x1x128xf32> to vector<7x7x128xf32>
    %999 = arith.mulf %996, %998 : vector<7x7x128xf32>
    %1000 = arith.addf %992, %999 : vector<7x7x128xf32>
    %c1_1094 = arith.constant 1 : index
    %c2_1095 = arith.constant 2 : index
    %c512_1096 = arith.constant 512 : index
    %1001 = vector.load %arg5[%c1_1094, %c2_1095, %c512_1096] : memref<5x5x640xf32, #tpu.memory_space<vmem>>, vector<1x1x128xf32>
    %1002 = vector.shape_cast %1001 : vector<1x1x128xf32> to vector<128xf32>
    %c1_1097 = arith.constant 1 : index
    %c0_1098 = arith.constant 0 : index
    %c0_1099 = arith.constant 0 : index
    %c1_1100 = arith.constant 1 : index
    %c512_1101 = arith.constant 512 : index
    %1003 = vector.load %arg4[%c1_1097, %c0_1098, %c0_1099, %c1_1100, %c512_1101] : memref<2x2x9x9x640xf32, #tpu.memory_space<vmem>>, vector<1x1x7x7x128xf32>
    %1004 = vector.shape_cast %1003 : vector<1x1x7x7x128xf32> to vector<7x7x128xf32>
    %1005 = vector.shape_cast %1002 : vector<128xf32> to vector<1x1x128xf32>
    %1006 = vector.broadcast %1005 : vector<1x1x128xf32> to vector<7x7x128xf32>
    %1007 = arith.mulf %1004, %1006 : vector<7x7x128xf32>
    %1008 = arith.addf %1000, %1007 : vector<7x7x128xf32>
    %c1_1102 = arith.constant 1 : index
    %c3_1103 = arith.constant 3 : index
    %c512_1104 = arith.constant 512 : index
    %1009 = vector.load %arg5[%c1_1102, %c3_1103, %c512_1104] : memref<5x5x640xf32, #tpu.memory_space<vmem>>, vector<1x1x128xf32>
    %1010 = vector.shape_cast %1009 : vector<1x1x128xf32> to vector<128xf32>
    %c1_1105 = arith.constant 1 : index
    %c1_1106 = arith.constant 1 : index
    %c0_1107 = arith.constant 0 : index
    %c1_1108 = arith.constant 1 : index
    %c512_1109 = arith.constant 512 : index
    %1011 = vector.load %arg4[%c1_1105, %c1_1106, %c0_1107, %c1_1108, %c512_1109] : memref<2x2x9x9x640xf32, #tpu.memory_space<vmem>>, vector<1x1x7x7x128xf32>
    %1012 = vector.shape_cast %1011 : vector<1x1x7x7x128xf32> to vector<7x7x128xf32>
    %1013 = vector.shape_cast %1010 : vector<128xf32> to vector<1x1x128xf32>
    %1014 = vector.broadcast %1013 : vector<1x1x128xf32> to vector<7x7x128xf32>
    %1015 = arith.mulf %1012, %1014 : vector<7x7x128xf32>
    %1016 = arith.addf %1008, %1015 : vector<7x7x128xf32>
    %c1_1110 = arith.constant 1 : index
    %c4_1111 = arith.constant 4 : index
    %c512_1112 = arith.constant 512 : index
    %1017 = vector.load %arg5[%c1_1110, %c4_1111, %c512_1112] : memref<5x5x640xf32, #tpu.memory_space<vmem>>, vector<1x1x128xf32>
    %1018 = vector.shape_cast %1017 : vector<1x1x128xf32> to vector<128xf32>
    %c1_1113 = arith.constant 1 : index
    %c0_1114 = arith.constant 0 : index
    %c0_1115 = arith.constant 0 : index
    %c2_1116 = arith.constant 2 : index
    %c512_1117 = arith.constant 512 : index
    %1019 = vector.load %arg4[%c1_1113, %c0_1114, %c0_1115, %c2_1116, %c512_1117] : memref<2x2x9x9x640xf32, #tpu.memory_space<vmem>>, vector<1x1x7x7x128xf32>
    %1020 = vector.shape_cast %1019 : vector<1x1x7x7x128xf32> to vector<7x7x128xf32>
    %1021 = vector.shape_cast %1018 : vector<128xf32> to vector<1x1x128xf32>
    %1022 = vector.broadcast %1021 : vector<1x1x128xf32> to vector<7x7x128xf32>
    %1023 = arith.mulf %1020, %1022 : vector<7x7x128xf32>
    %1024 = arith.addf %1016, %1023 : vector<7x7x128xf32>
    %c2_1118 = arith.constant 2 : index
    %c0_1119 = arith.constant 0 : index
    %c512_1120 = arith.constant 512 : index
    %1025 = vector.load %arg5[%c2_1118, %c0_1119, %c512_1120] : memref<5x5x640xf32, #tpu.memory_space<vmem>>, vector<1x1x128xf32>
    %1026 = vector.shape_cast %1025 : vector<1x1x128xf32> to vector<128xf32>
    %c0_1121 = arith.constant 0 : index
    %c0_1122 = arith.constant 0 : index
    %c1_1123 = arith.constant 1 : index
    %c0_1124 = arith.constant 0 : index
    %c512_1125 = arith.constant 512 : index
    %1027 = vector.load %arg4[%c0_1121, %c0_1122, %c1_1123, %c0_1124, %c512_1125] : memref<2x2x9x9x640xf32, #tpu.memory_space<vmem>>, vector<1x1x7x7x128xf32>
    %1028 = vector.shape_cast %1027 : vector<1x1x7x7x128xf32> to vector<7x7x128xf32>
    %1029 = vector.shape_cast %1026 : vector<128xf32> to vector<1x1x128xf32>
    %1030 = vector.broadcast %1029 : vector<1x1x128xf32> to vector<7x7x128xf32>
    %1031 = arith.mulf %1028, %1030 : vector<7x7x128xf32>
    %1032 = arith.addf %1024, %1031 : vector<7x7x128xf32>
    %c2_1126 = arith.constant 2 : index
    %c1_1127 = arith.constant 1 : index
    %c512_1128 = arith.constant 512 : index
    %1033 = vector.load %arg5[%c2_1126, %c1_1127, %c512_1128] : memref<5x5x640xf32, #tpu.memory_space<vmem>>, vector<1x1x128xf32>
    %1034 = vector.shape_cast %1033 : vector<1x1x128xf32> to vector<128xf32>
    %c0_1129 = arith.constant 0 : index
    %c1_1130 = arith.constant 1 : index
    %c1_1131 = arith.constant 1 : index
    %c0_1132 = arith.constant 0 : index
    %c512_1133 = arith.constant 512 : index
    %1035 = vector.load %arg4[%c0_1129, %c1_1130, %c1_1131, %c0_1132, %c512_1133] : memref<2x2x9x9x640xf32, #tpu.memory_space<vmem>>, vector<1x1x7x7x128xf32>
    %1036 = vector.shape_cast %1035 : vector<1x1x7x7x128xf32> to vector<7x7x128xf32>
    %1037 = vector.shape_cast %1034 : vector<128xf32> to vector<1x1x128xf32>
    %1038 = vector.broadcast %1037 : vector<1x1x128xf32> to vector<7x7x128xf32>
    %1039 = arith.mulf %1036, %1038 : vector<7x7x128xf32>
    %1040 = arith.addf %1032, %1039 : vector<7x7x128xf32>
    %c2_1134 = arith.constant 2 : index
    %c2_1135 = arith.constant 2 : index
    %c512_1136 = arith.constant 512 : index
    %1041 = vector.load %arg5[%c2_1134, %c2_1135, %c512_1136] : memref<5x5x640xf32, #tpu.memory_space<vmem>>, vector<1x1x128xf32>
    %1042 = vector.shape_cast %1041 : vector<1x1x128xf32> to vector<128xf32>
    %c0_1137 = arith.constant 0 : index
    %c0_1138 = arith.constant 0 : index
    %c1_1139 = arith.constant 1 : index
    %c1_1140 = arith.constant 1 : index
    %c512_1141 = arith.constant 512 : index
    %1043 = vector.load %arg4[%c0_1137, %c0_1138, %c1_1139, %c1_1140, %c512_1141] : memref<2x2x9x9x640xf32, #tpu.memory_space<vmem>>, vector<1x1x7x7x128xf32>
    %1044 = vector.shape_cast %1043 : vector<1x1x7x7x128xf32> to vector<7x7x128xf32>
    %1045 = vector.shape_cast %1042 : vector<128xf32> to vector<1x1x128xf32>
    %1046 = vector.broadcast %1045 : vector<1x1x128xf32> to vector<7x7x128xf32>
    %1047 = arith.mulf %1044, %1046 : vector<7x7x128xf32>
    %1048 = arith.addf %1040, %1047 : vector<7x7x128xf32>
    %c2_1142 = arith.constant 2 : index
    %c3_1143 = arith.constant 3 : index
    %c512_1144 = arith.constant 512 : index
    %1049 = vector.load %arg5[%c2_1142, %c3_1143, %c512_1144] : memref<5x5x640xf32, #tpu.memory_space<vmem>>, vector<1x1x128xf32>
    %1050 = vector.shape_cast %1049 : vector<1x1x128xf32> to vector<128xf32>
    %c0_1145 = arith.constant 0 : index
    %c1_1146 = arith.constant 1 : index
    %c1_1147 = arith.constant 1 : index
    %c1_1148 = arith.constant 1 : index
    %c512_1149 = arith.constant 512 : index
    %1051 = vector.load %arg4[%c0_1145, %c1_1146, %c1_1147, %c1_1148, %c512_1149] : memref<2x2x9x9x640xf32, #tpu.memory_space<vmem>>, vector<1x1x7x7x128xf32>
    %1052 = vector.shape_cast %1051 : vector<1x1x7x7x128xf32> to vector<7x7x128xf32>
    %1053 = vector.shape_cast %1050 : vector<128xf32> to vector<1x1x128xf32>
    %1054 = vector.broadcast %1053 : vector<1x1x128xf32> to vector<7x7x128xf32>
    %1055 = arith.mulf %1052, %1054 : vector<7x7x128xf32>
    %1056 = arith.addf %1048, %1055 : vector<7x7x128xf32>
    %c2_1150 = arith.constant 2 : index
    %c4_1151 = arith.constant 4 : index
    %c512_1152 = arith.constant 512 : index
    %1057 = vector.load %arg5[%c2_1150, %c4_1151, %c512_1152] : memref<5x5x640xf32, #tpu.memory_space<vmem>>, vector<1x1x128xf32>
    %1058 = vector.shape_cast %1057 : vector<1x1x128xf32> to vector<128xf32>
    %c0_1153 = arith.constant 0 : index
    %c0_1154 = arith.constant 0 : index
    %c1_1155 = arith.constant 1 : index
    %c2_1156 = arith.constant 2 : index
    %c512_1157 = arith.constant 512 : index
    %1059 = vector.load %arg4[%c0_1153, %c0_1154, %c1_1155, %c2_1156, %c512_1157] : memref<2x2x9x9x640xf32, #tpu.memory_space<vmem>>, vector<1x1x7x7x128xf32>
    %1060 = vector.shape_cast %1059 : vector<1x1x7x7x128xf32> to vector<7x7x128xf32>
    %1061 = vector.shape_cast %1058 : vector<128xf32> to vector<1x1x128xf32>
    %1062 = vector.broadcast %1061 : vector<1x1x128xf32> to vector<7x7x128xf32>
    %1063 = arith.mulf %1060, %1062 : vector<7x7x128xf32>
    %1064 = arith.addf %1056, %1063 : vector<7x7x128xf32>
    %c3_1158 = arith.constant 3 : index
    %c0_1159 = arith.constant 0 : index
    %c512_1160 = arith.constant 512 : index
    %1065 = vector.load %arg5[%c3_1158, %c0_1159, %c512_1160] : memref<5x5x640xf32, #tpu.memory_space<vmem>>, vector<1x1x128xf32>
    %1066 = vector.shape_cast %1065 : vector<1x1x128xf32> to vector<128xf32>
    %c1_1161 = arith.constant 1 : index
    %c0_1162 = arith.constant 0 : index
    %c1_1163 = arith.constant 1 : index
    %c0_1164 = arith.constant 0 : index
    %c512_1165 = arith.constant 512 : index
    %1067 = vector.load %arg4[%c1_1161, %c0_1162, %c1_1163, %c0_1164, %c512_1165] : memref<2x2x9x9x640xf32, #tpu.memory_space<vmem>>, vector<1x1x7x7x128xf32>
    %1068 = vector.shape_cast %1067 : vector<1x1x7x7x128xf32> to vector<7x7x128xf32>
    %1069 = vector.shape_cast %1066 : vector<128xf32> to vector<1x1x128xf32>
    %1070 = vector.broadcast %1069 : vector<1x1x128xf32> to vector<7x7x128xf32>
    %1071 = arith.mulf %1068, %1070 : vector<7x7x128xf32>
    %1072 = arith.addf %1064, %1071 : vector<7x7x128xf32>
    %c3_1166 = arith.constant 3 : index
    %c1_1167 = arith.constant 1 : index
    %c512_1168 = arith.constant 512 : index
    %1073 = vector.load %arg5[%c3_1166, %c1_1167, %c512_1168] : memref<5x5x640xf32, #tpu.memory_space<vmem>>, vector<1x1x128xf32>
    %1074 = vector.shape_cast %1073 : vector<1x1x128xf32> to vector<128xf32>
    %c1_1169 = arith.constant 1 : index
    %c1_1170 = arith.constant 1 : index
    %c1_1171 = arith.constant 1 : index
    %c0_1172 = arith.constant 0 : index
    %c512_1173 = arith.constant 512 : index
    %1075 = vector.load %arg4[%c1_1169, %c1_1170, %c1_1171, %c0_1172, %c512_1173] : memref<2x2x9x9x640xf32, #tpu.memory_space<vmem>>, vector<1x1x7x7x128xf32>
    %1076 = vector.shape_cast %1075 : vector<1x1x7x7x128xf32> to vector<7x7x128xf32>
    %1077 = vector.shape_cast %1074 : vector<128xf32> to vector<1x1x128xf32>
    %1078 = vector.broadcast %1077 : vector<1x1x128xf32> to vector<7x7x128xf32>
    %1079 = arith.mulf %1076, %1078 : vector<7x7x128xf32>
    %1080 = arith.addf %1072, %1079 : vector<7x7x128xf32>
    %c3_1174 = arith.constant 3 : index
    %c2_1175 = arith.constant 2 : index
    %c512_1176 = arith.constant 512 : index
    %1081 = vector.load %arg5[%c3_1174, %c2_1175, %c512_1176] : memref<5x5x640xf32, #tpu.memory_space<vmem>>, vector<1x1x128xf32>
    %1082 = vector.shape_cast %1081 : vector<1x1x128xf32> to vector<128xf32>
    %c1_1177 = arith.constant 1 : index
    %c0_1178 = arith.constant 0 : index
    %c1_1179 = arith.constant 1 : index
    %c1_1180 = arith.constant 1 : index
    %c512_1181 = arith.constant 512 : index
    %1083 = vector.load %arg4[%c1_1177, %c0_1178, %c1_1179, %c1_1180, %c512_1181] : memref<2x2x9x9x640xf32, #tpu.memory_space<vmem>>, vector<1x1x7x7x128xf32>
    %1084 = vector.shape_cast %1083 : vector<1x1x7x7x128xf32> to vector<7x7x128xf32>
    %1085 = vector.shape_cast %1082 : vector<128xf32> to vector<1x1x128xf32>
    %1086 = vector.broadcast %1085 : vector<1x1x128xf32> to vector<7x7x128xf32>
    %1087 = arith.mulf %1084, %1086 : vector<7x7x128xf32>
    %1088 = arith.addf %1080, %1087 : vector<7x7x128xf32>
    %c3_1182 = arith.constant 3 : index
    %c3_1183 = arith.constant 3 : index
    %c512_1184 = arith.constant 512 : index
    %1089 = vector.load %arg5[%c3_1182, %c3_1183, %c512_1184] : memref<5x5x640xf32, #tpu.memory_space<vmem>>, vector<1x1x128xf32>
    %1090 = vector.shape_cast %1089 : vector<1x1x128xf32> to vector<128xf32>
    %c1_1185 = arith.constant 1 : index
    %c1_1186 = arith.constant 1 : index
    %c1_1187 = arith.constant 1 : index
    %c1_1188 = arith.constant 1 : index
    %c512_1189 = arith.constant 512 : index
    %1091 = vector.load %arg4[%c1_1185, %c1_1186, %c1_1187, %c1_1188, %c512_1189] : memref<2x2x9x9x640xf32, #tpu.memory_space<vmem>>, vector<1x1x7x7x128xf32>
    %1092 = vector.shape_cast %1091 : vector<1x1x7x7x128xf32> to vector<7x7x128xf32>
    %1093 = vector.shape_cast %1090 : vector<128xf32> to vector<1x1x128xf32>
    %1094 = vector.broadcast %1093 : vector<1x1x128xf32> to vector<7x7x128xf32>
    %1095 = arith.mulf %1092, %1094 : vector<7x7x128xf32>
    %1096 = arith.addf %1088, %1095 : vector<7x7x128xf32>
    %c3_1190 = arith.constant 3 : index
    %c4_1191 = arith.constant 4 : index
    %c512_1192 = arith.constant 512 : index
    %1097 = vector.load %arg5[%c3_1190, %c4_1191, %c512_1192] : memref<5x5x640xf32, #tpu.memory_space<vmem>>, vector<1x1x128xf32>
    %1098 = vector.shape_cast %1097 : vector<1x1x128xf32> to vector<128xf32>
    %c1_1193 = arith.constant 1 : index
    %c0_1194 = arith.constant 0 : index
    %c1_1195 = arith.constant 1 : index
    %c2_1196 = arith.constant 2 : index
    %c512_1197 = arith.constant 512 : index
    %1099 = vector.load %arg4[%c1_1193, %c0_1194, %c1_1195, %c2_1196, %c512_1197] : memref<2x2x9x9x640xf32, #tpu.memory_space<vmem>>, vector<1x1x7x7x128xf32>
    %1100 = vector.shape_cast %1099 : vector<1x1x7x7x128xf32> to vector<7x7x128xf32>
    %1101 = vector.shape_cast %1098 : vector<128xf32> to vector<1x1x128xf32>
    %1102 = vector.broadcast %1101 : vector<1x1x128xf32> to vector<7x7x128xf32>
    %1103 = arith.mulf %1100, %1102 : vector<7x7x128xf32>
    %1104 = arith.addf %1096, %1103 : vector<7x7x128xf32>
    %c4_1198 = arith.constant 4 : index
    %c0_1199 = arith.constant 0 : index
    %c512_1200 = arith.constant 512 : index
    %1105 = vector.load %arg5[%c4_1198, %c0_1199, %c512_1200] : memref<5x5x640xf32, #tpu.memory_space<vmem>>, vector<1x1x128xf32>
    %1106 = vector.shape_cast %1105 : vector<1x1x128xf32> to vector<128xf32>
    %c0_1201 = arith.constant 0 : index
    %c0_1202 = arith.constant 0 : index
    %c2_1203 = arith.constant 2 : index
    %c0_1204 = arith.constant 0 : index
    %c512_1205 = arith.constant 512 : index
    %1107 = vector.load %arg4[%c0_1201, %c0_1202, %c2_1203, %c0_1204, %c512_1205] : memref<2x2x9x9x640xf32, #tpu.memory_space<vmem>>, vector<1x1x7x7x128xf32>
    %1108 = vector.shape_cast %1107 : vector<1x1x7x7x128xf32> to vector<7x7x128xf32>
    %1109 = vector.shape_cast %1106 : vector<128xf32> to vector<1x1x128xf32>
    %1110 = vector.broadcast %1109 : vector<1x1x128xf32> to vector<7x7x128xf32>
    %1111 = arith.mulf %1108, %1110 : vector<7x7x128xf32>
    %1112 = arith.addf %1104, %1111 : vector<7x7x128xf32>
    %c4_1206 = arith.constant 4 : index
    %c1_1207 = arith.constant 1 : index
    %c512_1208 = arith.constant 512 : index
    %1113 = vector.load %arg5[%c4_1206, %c1_1207, %c512_1208] : memref<5x5x640xf32, #tpu.memory_space<vmem>>, vector<1x1x128xf32>
    %1114 = vector.shape_cast %1113 : vector<1x1x128xf32> to vector<128xf32>
    %c0_1209 = arith.constant 0 : index
    %c1_1210 = arith.constant 1 : index
    %c2_1211 = arith.constant 2 : index
    %c0_1212 = arith.constant 0 : index
    %c512_1213 = arith.constant 512 : index
    %1115 = vector.load %arg4[%c0_1209, %c1_1210, %c2_1211, %c0_1212, %c512_1213] : memref<2x2x9x9x640xf32, #tpu.memory_space<vmem>>, vector<1x1x7x7x128xf32>
    %1116 = vector.shape_cast %1115 : vector<1x1x7x7x128xf32> to vector<7x7x128xf32>
    %1117 = vector.shape_cast %1114 : vector<128xf32> to vector<1x1x128xf32>
    %1118 = vector.broadcast %1117 : vector<1x1x128xf32> to vector<7x7x128xf32>
    %1119 = arith.mulf %1116, %1118 : vector<7x7x128xf32>
    %1120 = arith.addf %1112, %1119 : vector<7x7x128xf32>
    %c4_1214 = arith.constant 4 : index
    %c2_1215 = arith.constant 2 : index
    %c512_1216 = arith.constant 512 : index
    %1121 = vector.load %arg5[%c4_1214, %c2_1215, %c512_1216] : memref<5x5x640xf32, #tpu.memory_space<vmem>>, vector<1x1x128xf32>
    %1122 = vector.shape_cast %1121 : vector<1x1x128xf32> to vector<128xf32>
    %c0_1217 = arith.constant 0 : index
    %c0_1218 = arith.constant 0 : index
    %c2_1219 = arith.constant 2 : index
    %c1_1220 = arith.constant 1 : index
    %c512_1221 = arith.constant 512 : index
    %1123 = vector.load %arg4[%c0_1217, %c0_1218, %c2_1219, %c1_1220, %c512_1221] : memref<2x2x9x9x640xf32, #tpu.memory_space<vmem>>, vector<1x1x7x7x128xf32>
    %1124 = vector.shape_cast %1123 : vector<1x1x7x7x128xf32> to vector<7x7x128xf32>
    %1125 = vector.shape_cast %1122 : vector<128xf32> to vector<1x1x128xf32>
    %1126 = vector.broadcast %1125 : vector<1x1x128xf32> to vector<7x7x128xf32>
    %1127 = arith.mulf %1124, %1126 : vector<7x7x128xf32>
    %1128 = arith.addf %1120, %1127 : vector<7x7x128xf32>
    %c4_1222 = arith.constant 4 : index
    %c3_1223 = arith.constant 3 : index
    %c512_1224 = arith.constant 512 : index
    %1129 = vector.load %arg5[%c4_1222, %c3_1223, %c512_1224] : memref<5x5x640xf32, #tpu.memory_space<vmem>>, vector<1x1x128xf32>
    %1130 = vector.shape_cast %1129 : vector<1x1x128xf32> to vector<128xf32>
    %c0_1225 = arith.constant 0 : index
    %c1_1226 = arith.constant 1 : index
    %c2_1227 = arith.constant 2 : index
    %c1_1228 = arith.constant 1 : index
    %c512_1229 = arith.constant 512 : index
    %1131 = vector.load %arg4[%c0_1225, %c1_1226, %c2_1227, %c1_1228, %c512_1229] : memref<2x2x9x9x640xf32, #tpu.memory_space<vmem>>, vector<1x1x7x7x128xf32>
    %1132 = vector.shape_cast %1131 : vector<1x1x7x7x128xf32> to vector<7x7x128xf32>
    %1133 = vector.shape_cast %1130 : vector<128xf32> to vector<1x1x128xf32>
    %1134 = vector.broadcast %1133 : vector<1x1x128xf32> to vector<7x7x128xf32>
    %1135 = arith.mulf %1132, %1134 : vector<7x7x128xf32>
    %1136 = arith.addf %1128, %1135 : vector<7x7x128xf32>
    %c4_1230 = arith.constant 4 : index
    %c4_1231 = arith.constant 4 : index
    %c512_1232 = arith.constant 512 : index
    %1137 = vector.load %arg5[%c4_1230, %c4_1231, %c512_1232] : memref<5x5x640xf32, #tpu.memory_space<vmem>>, vector<1x1x128xf32>
    %1138 = vector.shape_cast %1137 : vector<1x1x128xf32> to vector<128xf32>
    %c0_1233 = arith.constant 0 : index
    %c0_1234 = arith.constant 0 : index
    %c2_1235 = arith.constant 2 : index
    %c2_1236 = arith.constant 2 : index
    %c512_1237 = arith.constant 512 : index
    %1139 = vector.load %arg4[%c0_1233, %c0_1234, %c2_1235, %c2_1236, %c512_1237] : memref<2x2x9x9x640xf32, #tpu.memory_space<vmem>>, vector<1x1x7x7x128xf32>
    %1140 = vector.shape_cast %1139 : vector<1x1x7x7x128xf32> to vector<7x7x128xf32>
    %1141 = vector.shape_cast %1138 : vector<128xf32> to vector<1x1x128xf32>
    %1142 = vector.broadcast %1141 : vector<1x1x128xf32> to vector<7x7x128xf32>
    %1143 = arith.mulf %1140, %1142 : vector<7x7x128xf32>
    %1144 = arith.addf %1136, %1143 : vector<7x7x128xf32>
    %1145 = arith.truncf %1144 : vector<7x7x128xf32> to vector<7x7x128xbf16>
    %c0_1238 = arith.constant 0 : index
    %c0_1239 = arith.constant 0 : index
    %c0_1240 = arith.constant 0 : index
    %c512_1241 = arith.constant 512 : index
    %1146 = vector.load %arg3[%c0_1238, %c0_1239, %c0_1240, %c512_1241] : memref<1x7x7x640xbf16, #tpu.memory_space<vmem>>, vector<1x7x7x128xbf16>
    %1147 = vector.shape_cast %1146 : vector<1x7x7x128xbf16> to vector<7x7x128xbf16>
    %1148 = vector.shape_cast %1145 : vector<7x7x128xbf16> to vector<1x7x7x128xbf16>
    tpu.vector_store %arg3[%c0_1238, %c0_1239, %c0_1240, %c512_1241], %1148 {strides = array<i32>} : memref<1x7x7x640xbf16, #tpu.memory_space<vmem>>, vector<1x7x7x128xbf16>,
    return
  }
  func.func @transform_0(%arg0: i32) -> (i32, i32, i32, i32, i32, i32) {
    %c0_i32 = arith.constant 0 : i32
    %c0_i32_0 = arith.constant 0 : i32
    %c0_i32_1 = arith.constant 0 : i32
    %c0_i32_2 = arith.constant 0 : i32
    %c0_i32_3 = arith.constant 0 : i32
    %c0_i32_4 = arith.constant 0 : i32
    return %arg0, %c0_i32, %c0_i32_0, %c0_i32_1, %c0_i32_2, %c0_i32_3 : i32, i32, i32, i32, i32, i32
  }
  func.func @transform_1(%arg0: i32) -> (i32, i32, i32, i32) {
    %c0_i32 = arith.constant 0 : i32
    %c0_i32_0 = arith.constant 0 : i32
    %c0_i32_1 = arith.constant 0 : i32
    %c0_i32_2 = arith.constant 0 : i32
    return %arg0, %c0_i32, %c0_i32_0, %c0_i32_1 : i32, i32, i32, i32
  }
  func.func @transform_2(%arg0: i32) -> (i32, i32, i32, i32) {
    %c0_i32 = arith.constant 0 : i32
    %c0_i32_0 = arith.constant 0 : i32
    %c0_i32_1 = arith.constant 0 : i32
    %c0_i32_2 = arith.constant 0 : i32
    return %arg0, %c0_i32, %c0_i32_0, %c0_i32_1 : i32, i32, i32, i32
  }
}

</mosaic_0001>

<llo_original>
// kernel: depthwise_conv5x5_s2.1
$region0: #{depthwise_conv5x5_s2.1}
  #allocation0 [shape = 'u32[]', space=smem, size = 0x4, offset = 0x4, fixed_abs, tag = 'smem constant byte address 0x4 - core index']
  #allocation1 [shape = 'u32[144,128]{1,0:T(1,128)}', space=vmem, size = 0x12000, scoped, tag = 'internal scratch']
  #allocation2 [shape = 'f32[2,2,9,9,640]{4,3,2,1,0:T(8,128)}', space=vmem, size = 0x168000, scoped, tag = 'scratch operand']
  #allocation3 [shape = 'f32[5,5,640]{2,1,0:T(8,128)}', space=vmem, size = 0x19000, scoped, tag = 'scratch operand']
  %s0 = inlined_call_operand.vmem [shape: bf16[2,2,2,9,9,640], index: 0, kind: input, shape index: {}]
  %s1 = inlined_call_operand.vmem [shape: bf16[2,5,5,640], index: 1, kind: input, shape index: {}]
  %s2 = inlined_call_operand.vmem [shape: bf16[2,7,7,640], index: 2, kind: output, shape index: {}]
  %s3 = sld [smem:[#allocation0]]
  $region41: #{depthwise_conv5x5_s2.1} parent=0
    _
  %s5 = ssub.s32 1, %s3
  %s6 = scalar_select 0, %s5, %s3
  loop: start=0, step=1, limit=4
  $region2: #{depthwise_conv5x5_s2.1} parent=0 // loop_pre_header
    _
  $region3: #{depthwise_conv5x5_s2.1} parent=0 // loop_header
    %s8 = sphi 0, %s12
    %p9 = scmp.ge.s32.totalorder %s8, 4
    %s18 = sphi 0, %s20
    %s21 = sphi 0, %s18
    %s22 = sphi 0, %s21
    %s38 = sphi 0, %s22
    %s44 = sphi 0, %s46
    %s47 = sphi 0, %s44
    %s48 = sphi 0, %s47
    %s64 = sphi 0, %s48
    %s70 = sphi 0, %s72
    %s73 = sphi 0, %s70
    %s74 = sphi 0, %s73
    %s90 = sphi 0, %s74
  $region4: #{depthwise_conv5x5_s2.1} parent=0 // loop_header_branch
    %11 = sbr.rel (%p9) target = $region8
  $region5: #{depthwise_conv5x5_s2.1} parent=0 // loop_body
    %s13 = ssub.s32 %s8, 1
    %s14 = ssub.s32 %s8, 2
    %s15 = sadd.s32 %s8, 1
    %s16 = ssub.s32 %s8, %s15
    %p17 = scmp.eq.s32.totalorder %s16, 0
    %s19 = sadd.s32 %s18, 1
    %s20 = scalar_select %p17, %s18, %s19
    %p23 = pneg %p17
    %p24 = scmp.eq.s32.totalorder %s8, 1
    %p25 = por %p23, %p24
    %p26 = scmp.ne.s32.totalorder %s18, %s21
    %p27 = scmp.eq.s32.totalorder %s8, 0
    %p28 = por %p26, %p27
    %p29 = scmp.ne.s32.totalorder %s18, %s21
    %p30 = scmp.eq.s32.totalorder %s13, 1
    %p31 = por %p29, %p30
    %p32 = scmp.ne.s32.totalorder %s21, %s22
    %p33 = scmp.eq.s32.totalorder %s13, 0
    %p34 = por %p32, %p33
    %p35 = scmp.ne.s32.totalorder %s21, %s22
    %p36 = scmp.eq.s32.totalorder %s14, 1
    %p37 = por %p35, %p36
    %p39 = scmp.ne.s32.totalorder %s22, %s38
    %p40 = scmp.eq.s32.totalorder %s14, 0
    %p41 = por %p39, %p40
    %s42 = ssub.s32 %s8, %s15
    %p43 = scmp.eq.s32.totalorder %s42, 0
    %s45 = sadd.s32 %s44, 1
    %s46 = scalar_select %p43, %s44, %s45
    %p49 = pneg %p43
    %p50 = scmp.eq.s32.totalorder %s8, 1
    %p51 = por %p49, %p50
    %p52 = scmp.ne.s32.totalorder %s44, %s47
    %p53 = scmp.eq.s32.totalorder %s8, 0
    %p54 = por %p52, %p53
    %p55 = scmp.ne.s32.totalorder %s44, %s47
    %p56 = scmp.eq.s32.totalorder %s13, 1
    %p57 = por %p55, %p56
    %p58 = scmp.ne.s32.totalorder %s47, %s48
    %p59 = scmp.eq.s32.totalorder %s13, 0
    %p60 = por %p58, %p59
    %p61 = scmp.ne.s32.totalorder %s47, %s48
    %p62 = scmp.eq.s32.totalorder %s14, 1
    %p63 = por %p61, %p62
    %p65 = scmp.ne.s32.totalorder %s48, %s64
    %p66 = scmp.eq.s32.totalorder %s14, 0
    %p67 = por %p65, %p66
    %s68 = ssub.s32 %s8, %s15
    %p69 = scmp.eq.s32.totalorder %s68, 0
    %s71 = sadd.s32 %s70, 1
    %s72 = scalar_select %p69, %s70, %s71
    %p75 = pneg %p69
    %p76 = scmp.eq.s32.totalorder %s8, 1
    %p77 = por %p75, %p76
    %p78 = scmp.ne.s32.totalorder %s70, %s73
    %p79 = scmp.eq.s32.totalorder %s8, 0
    %p80 = por %p78, %p79
    %p81 = scmp.ne.s32.totalorder %s70, %s73
    %p82 = scmp.eq.s32.totalorder %s13, 1
    %p83 = por %p81, %p82
    %p84 = scmp.ne.s32.totalorder %s73, %s74
    %p85 = scmp.eq.s32.totalorder %s13, 0
    %p86 = por %p84, %p85
    %p87 = scmp.ne.s32.totalorder %s73, %s74
    %p88 = scmp.eq.s32.totalorder %s14, 1
    %p89 = por %p87, %p88
    %p91 = scmp.ne.s32.totalorder %s74, %s90
    %p92 = scmp.eq.s32.totalorder %s14, 0
    %p93 = por %p91, %p92
    %p94 = scmp.le.s32.totalorder 1, %s8
    %p95 = scmp.lt.s32.totalorder %s8, 3
    %p96 = pnand %p94, %p95
    %p97 = pneg %p96
    // Predicated region
    $region9: #{depthwise_conv5x5_s2.1} parent=5 // pred_check
      _
    $region10: #{depthwise_conv5x5_s2.1} parent=5 // pred_check_branch
      %99 = sbr.rel (%p96) target = $region12
    $region11: #{depthwise_conv5x5_s2.1} parent=5 // pred_region
      %s100 = ssub.s32 %s8, 1
    $region12: #{depthwise_conv5x5_s2.1} parent=5 // pred_fallthru
      _
    %p101 = scmp.lt.s32.totalorder %s8, 2
    // Predicated region
    $region13: #{depthwise_conv5x5_s2.1} parent=5 // pred_check
      %p102 = pneg %p101
    $region14: #{depthwise_conv5x5_s2.1} parent=5 // pred_check_branch
      %104 = sbr.rel (%p102) target = $region16
    $region15: #{depthwise_conv5x5_s2.1} parent=5 // pred_region
      // Predicated region
      $region17: #{depthwise_conv5x5_s2.1} parent=15 // pred_check
        %p105 = pneg %p28
      $region18: #{depthwise_conv5x5_s2.1} parent=15 // pred_check_branch
        %107 = sbr.rel (%p105) target = $region20
      $region19: #{depthwise_conv5x5_s2.1} parent=15 // pred_region
        %p108 = scmp.lt.s32.totalorder %s8, 1
        %s109 = scalar_select %p108, %s8, 1
        %s110 = smul.addr %s109, 360
        %s111 = smul.addr %s110, 4
        %s112 = scalar_lea.vmem %s0, %s111
      $region20: #{depthwise_conv5x5_s2.1} parent=15 // pred_fallthru
        _
      // Predicated region
      $region21: #{depthwise_conv5x5_s2.1} parent=15 // pred_check
        %p113 = pneg %p54
      $region22: #{depthwise_conv5x5_s2.1} parent=15 // pred_check_branch
        %115 = sbr.rel (%p113) target = $region24
      $region23: #{depthwise_conv5x5_s2.1} parent=15 // pred_region
        %p116 = scmp.lt.s32.totalorder %s8, 1
        %s117 = scalar_select %p116, %s8, 1
        %s118 = smul.addr %s117, 25
        %s119 = smul.addr %s118, 4
        %s120 = scalar_lea.vmem %s1, %s119
      $region24: #{depthwise_conv5x5_s2.1} parent=15 // pred_fallthru
        _
    $region16: #{depthwise_conv5x5_s2.1} parent=5 // pred_fallthru
      _
    %p121 = scmp.le.s32.totalorder 1, %s8
    %p122 = scmp.lt.s32.totalorder %s8, 3
    %p123 = pnand %p121, %p122
    %p124 = pneg %p123
    // Predicated region
    $region25: #{depthwise_conv5x5_s2.1} parent=5 // pred_check
      _
    $region26: #{depthwise_conv5x5_s2.1} parent=5 // pred_check_branch
      %126 = sbr.rel (%p123) target = $region28
    $region27: #{depthwise_conv5x5_s2.1} parent=5 // pred_region
      %s127 = ssub.s32 %s8, 1
      %p128 = scmp.lt.s32.totalorder %s13, 1
      %s129 = scalar_select %p128, %s13, 1
      %s130 = smul.addr %s129, 360
      %s131 = smul.addr %s130, 4
      %s132 = scalar_lea.vmem %s0, %s131
      %p133 = pneg %p34
      %p134 = pneg %p31
      %p135 = scmp.lt.s32.totalorder %s13, 1
      %s136 = scalar_select %p135, %s13, 1
      %s137 = smul.addr %s136, 25
      %s138 = smul.addr %s137, 4
      %s139 = scalar_lea.vmem %s1, %s138
      %p140 = pneg %p60
      %p141 = pneg %p57
      %p142 = pneg %p86
      %p143 = pneg %p83
      %p144 = scmp.lt.s32.totalorder %s13, 1
      %s145 = scalar_select %p144, %s13, 1
      %s146 = smul.addr %s145, 35
      %s147 = smul.addr %s146, 4
      %s148 = scalar_lea.vmem %s2, %s147
      %p149 = scmp.lt.s32.totalorder %s13, 1
      %s150 = scalar_select %p149, %s13, 1
      %s151 = smul.addr %s150, 360
      %s152 = smul.addr %s151, 4
      %s153 = scalar_lea.vmem %s0, %s152
      %p154 = scmp.lt.s32.totalorder %s13, 1
      %s155 = scalar_select %p154, %s13, 1
      %s156 = smul.addr %s155, 25
      %s157 = smul.addr %s156, 4
      %s158 = scalar_lea.vmem %s1, %s157
      %p159 = scmp.lt.s32.totalorder %s13, 1
      %s160 = scalar_select %p159, %s13, 1
      %s161 = smul.addr %s160, 35
      %s162 = smul.addr %s161, 4
      %s163 = scalar_lea.vmem %s2, %s162
      %v164 = vld [vmem:[%s153] sm:$0xf]
      %v165 = vld [vmem:[%s153 + $0x14] sm:$0x1]
      %v166 = vld [vmem:[%s153 + $0x28] sm:$0xf]
      %v167 = vld [vmem:[%s153 + $0x3c] sm:$0x1]
      %v168 = vld [vmem:[%s153 + $0x50] sm:$0xf]
      %v169 = vld [vmem:[%s153 + $0x64] sm:$0x1]
      %v170 = vld [vmem:[%s153 + $0x78] sm:$0xf]
      %v171 = vld [vmem:[%s153 + $0x8c] sm:$0x1]
      %v172 = vld [vmem:[%s153 + $0xa0] sm:$0xf]
      %v173 = vld [vmem:[%s153 + $0xb4] sm:$0x1]
      %v174 = vld [vmem:[%s153 + $0xc8] sm:$0xf]
      %v175 = vld [vmem:[%s153 + $0xdc] sm:$0x1]
      %v176 = vld [vmem:[%s153 + $0xf0] sm:$0xf]
      %v177 = vld [vmem:[%s153 + $0x104] sm:$0x1]
      %v178 = vld [vmem:[%s153 + $0x118] sm:$0xf]
      %v179 = vld [vmem:[%s153 + $0x12c] sm:$0x1]
      %v180 = vld [vmem:[%s153 + $0x140] sm:$0xf]
      %v181 = vld [vmem:[%s153 + $0x154] sm:$0x1]
      %v182 = vunpack.c.l.bf16 %v164
      %v183 = vunpack.c.l.bf16 %v165
      %v184 = vunpack.c.l.bf16 %v166
      %v185 = vunpack.c.l.bf16 %v167
      %v186 = vunpack.c.l.bf16 %v168
      %v187 = vunpack.c.l.bf16 %v169
      %v188 = vunpack.c.l.bf16 %v170
      %v189 = vunpack.c.l.bf16 %v171
      %v190 = vunpack.c.l.bf16 %v172
      %v191 = vunpack.c.l.bf16 %v173
      %v192 = vunpack.c.l.bf16 %v174
      %v193 = vunpack.c.l.bf16 %v175
      %v194 = vunpack.c.l.bf16 %v176
      %v195 = vunpack.c.l.bf16 %v177
      %v196 = vunpack.c.l.bf16 %v178
      %v197 = vunpack.c.l.bf16 %v179
      %v198 = vunpack.c.l.bf16 %v180
      %v199 = vunpack.c.l.bf16 %v181
      %200 = vst [vmem:[#allocation2] sm:$0xff] %v182
      %201 = vst [vmem:[#allocation2 + $0x28] sm:$0x1] %v183
      %202 = vst [vmem:[#allocation2 + $0x50] sm:$0xff] %v184
      %203 = vst [vmem:[#allocation2 + $0x78] sm:$0x1] %v185
      %204 = vst [vmem:[#allocation2 + $0xa0] sm:$0xff] %v186
      %205 = vst [vmem:[#allocation2 + $0xc8] sm:$0x1] %v187
      %206 = vst [vmem:[#allocation2 + $0xf0] sm:$0xff] %v188
      %207 = vst [vmem:[#allocation2 + $0x118] sm:$0x1] %v189
      %208 = vst [vmem:[#allocation2 + $0x140] sm:$0xff] %v190
      %209 = vst [vmem:[#allocation2 + $0x168] sm:$0x1] %v191
      %210 = vst [vmem:[#allocation2 + $0x190] sm:$0xff] %v192
      %211 = vst [vmem:[#allocation2 + $0x1b8] sm:$0x1] %v193
      %212 = vst [vmem:[#allocation2 + $0x1e0] sm:$0xff] %v194
      %213 = vst [vmem:[#allocation2 + $0x208] sm:$0x1] %v195
      %214 = vst [vmem:[#allocation2 + $0x230] sm:$0xff] %v196
      %215 = vst [vmem:[#allocation2 + $0x258] sm:$0x1] %v197
      %216 = vst [vmem:[#allocation2 + $0x280] sm:$0xff] %v198
      %217 = vst [vmem:[#allocation2 + $0x2a8] sm:$0x1] %v199
      %v218 = vld [vmem:[%s153 + $0x4] sm:$0xf]
      %v219 = vld [vmem:[%s153 + $0x18] sm:$0x1]
      %v220 = vld [vmem:[%s153 + $0x2c] sm:$0xf]
      %v221 = vld [vmem:[%s153 + $0x40] sm:$0x1]
      %v222 = vld [vmem:[%s153 + $0x54] sm:$0xf]
      %v223 = vld [vmem:[%s153 + $0x68] sm:$0x1]
      %v224 = vld [vmem:[%s153 + $0x7c] sm:$0xf]
      %v225 = vld [vmem:[%s153 + $0x90] sm:$0x1]
      %v226 = vld [vmem:[%s153 + $0xa4] sm:$0xf]
      %v227 = vld [vmem:[%s153 + $0xb8] sm:$0x1]
      %v228 = vld [vmem:[%s153 + $0xcc] sm:$0xf]
      %v229 = vld [vmem:[%s153 + $0xe0] sm:$0x1]
      %v230 = vld [vmem:[%s153 + $0xf4] sm:$0xf]
      %v231 = vld [vmem:[%s153 + $0x108] sm:$0x1]
      %v232 = vld [vmem:[%s153 + $0x11c] sm:$0xf]
      %v233 = vld [vmem:[%s153 + $0x130] sm:$0x1]
      %v234 = vld [vmem:[%s153 + $0x144] sm:$0xf]
      %v235 = vld [vmem:[%s153 + $0x158] sm:$0x1]
      %v236 = vunpack.c.l.bf16 %v218
      %v237 = vunpack.c.l.bf16 %v219
      %v238 = vunpack.c.l.bf16 %v220
      %v239 = vunpack.c.l.bf16 %v221
      %v240 = vunpack.c.l.bf16 %v222
      %v241 = vunpack.c.l.bf16 %v223
      %v242 = vunpack.c.l.bf16 %v224
      %v243 = vunpack.c.l.bf16 %v225
      %v244 = vunpack.c.l.bf16 %v226
      %v245 = vunpack.c.l.bf16 %v227
      %v246 = vunpack.c.l.bf16 %v228
      %v247 = vunpack.c.l.bf16 %v229
      %v248 = vunpack.c.l.bf16 %v230
      %v249 = vunpack.c.l.bf16 %v231
      %v250 = vunpack.c.l.bf16 %v232
      %v251 = vunpack.c.l.bf16 %v233
      %v252 = vunpack.c.l.bf16 %v234
      %v253 = vunpack.c.l.bf16 %v235
      %254 = vst [vmem:[#allocation2 + $0x8] sm:$0xff] %v236
      %255 = vst [vmem:[#allocation2 + $0x30] sm:$0x1] %v237
      %256 = vst [vmem:[#allocation2 + $0x58] sm:$0xff] %v238
      %257 = vst [vmem:[#allocation2 + $0x80] sm:$0x1] %v239
      %258 = vst [vmem:[#allocation2 + $0xa8] sm:$0xff] %v240
      %259 = vst [vmem:[#allocation2 + $0xd0] sm:$0x1] %v241
      %260 = vst [vmem:[#allocation2 + $0xf8] sm:$0xff] %v242
      %261 = vst [vmem:[#allocation2 + $0x120] sm:$0x1] %v243
      %262 = vst [vmem:[#allocation2 + $0x148] sm:$0xff] %v244
      %263 = vst [vmem:[#allocation2 + $0x170] sm:$0x1] %v245
      %264 = vst [vmem:[#allocation2 + $0x198] sm:$0xff] %v246
      %265 = vst [vmem:[#allocation2 + $0x1c0] sm:$0x1] %v247
      %266 = vst [vmem:[#allocation2 + $0x1e8] sm:$0xff] %v248
      %267 = vst [vmem:[#allocation2 + $0x210] sm:$0x1] %v249
      %268 = vst [vmem:[#allocation2 + $0x238] sm:$0xff] %v250
      %269 = vst [vmem:[#allocation2 + $0x260] sm:$0x1] %v251
      %270 = vst [vmem:[#allocation2 + $0x288] sm:$0xff] %v252
      %271 = vst [vmem:[#allocation2 + $0x2b0] sm:$0x1] %v253
      %v272 = vld [vmem:[%s153 + $0x8] sm:$0xf]
      %v273 = vld [vmem:[%s153 + $0x1c] sm:$0x1]
      %v274 = vld [vmem:[%s153 + $0x30] sm:$0xf]
      %v275 = vld [vmem:[%s153 + $0x44] sm:$0x1]
      %v276 = vld [vmem:[%s153 + $0x58] sm:$0xf]
      %v277 = vld [vmem:[%s153 + $0x6c] sm:$0x1]
      %v278 = vld [vmem:[%s153 + $0x80] sm:$0xf]
      %v279 = vld [vmem:[%s153 + $0x94] sm:$0x1]
      %v280 = vld [vmem:[%s153 + $0xa8] sm:$0xf]
      %v281 = vld [vmem:[%s153 + $0xbc] sm:$0x1]
      %v282 = vld [vmem:[%s153 + $0xd0] sm:$0xf]
      %v283 = vld [vmem:[%s153 + $0xe4] sm:$0x1]
      %v284 = vld [vmem:[%s153 + $0xf8] sm:$0xf]
      %v285 = vld [vmem:[%s153 + $0x10c] sm:$0x1]
      %v286 = vld [vmem:[%s153 + $0x120] sm:$0xf]
      %v287 = vld [vmem:[%s153 + $0x134] sm:$0x1]
      %v288 = vld [vmem:[%s153 + $0x148] sm:$0xf]
      %v289 = vld [vmem:[%s153 + $0x15c] sm:$0x1]
      %v290 = vunpack.c.l.bf16 %v272
      %v291 = vunpack.c.l.bf16 %v273
      %v292 = vunpack.c.l.bf16 %v274
      %v293 = vunpack.c.l.bf16 %v275
      %v294 = vunpack.c.l.bf16 %v276
      %v295 = vunpack.c.l.bf16 %v277
      %v296 = vunpack.c.l.bf16 %v278
      %v297 = vunpack.c.l.bf16 %v279
      %v298 = vunpack.c.l.bf16 %v280
      %v299 = vunpack.c.l.bf16 %v281
      %v300 = vunpack.c.l.bf16 %v282
      %v301 = vunpack.c.l.bf16 %v283
      %v302 = vunpack.c.l.bf16 %v284
      %v303 = vunpack.c.l.bf16 %v285
      %v304 = vunpack.c.l.bf16 %v286
      %v305 = vunpack.c.l.bf16 %v287
      %v306 = vunpack.c.l.bf16 %v288
      %v307 = vunpack.c.l.bf16 %v289
      %308 = vst [vmem:[#allocation2 + $0x10] sm:$0xff] %v290
      %309 = vst [vmem:[#allocation2 + $0x38] sm:$0x1] %v291
      %310 = vst [vmem:[#allocation2 + $0x60] sm:$0xff] %v292
      %311 = vst [vmem:[#allocation2 + $0x88] sm:$0x1] %v293
      %312 = vst [vmem:[#allocation2 + $0xb0] sm:$0xff] %v294
      %313 = vst [vmem:[#allocation2 + $0xd8] sm:$0x1] %v295
      %314 = vst [vmem:[#allocation2 + $0x100] sm:$0xff] %v296
      %315 = vst [vmem:[#allocation2 + $0x128] sm:$0x1] %v297
      %316 = vst [vmem:[#allocation2 + $0x150] sm:$0xff] %v298
      %317 = vst [vmem:[#allocation2 + $0x178] sm:$0x1] %v299
      %318 = vst [vmem:[#allocation2 + $0x1a0] sm:$0xff] %v300
      %319 = vst [vmem:[#allocation2 + $0x1c8] sm:$0x1] %v301
      %320 = vst [vmem:[#allocation2 + $0x1f0] sm:$0xff] %v302
      %321 = vst [vmem:[#allocation2 + $0x218] sm:$0x1] %v303
      %322 = vst [vmem:[#allocation2 + $0x240] sm:$0xff] %v304
      %323 = vst [vmem:[#allocation2 + $0x268] sm:$0x1] %v305
      %324 = vst [vmem:[#allocation2 + $0x290] sm:$0xff] %v306
      %325 = vst [vmem:[#allocation2 + $0x2b8] sm:$0x1] %v307
      %v326 = vld [vmem:[%s153 + $0xc] sm:$0xf]
      %v327 = vld [vmem:[%s153 + $0x20] sm:$0x1]
      %v328 = vld [vmem:[%s153 + $0x34] sm:$0xf]
      %v329 = vld [vmem:[%s153 + $0x48] sm:$0x1]
      %v330 = vld [vmem:[%s153 + $0x5c] sm:$0xf]
      %v331 = vld [vmem:[%s153 + $0x70] sm:$0x1]
      %v332 = vld [vmem:[%s153 + $0x84] sm:$0xf]
      %v333 = vld [vmem:[%s153 + $0x98] sm:$0x1]
      %v334 = vld [vmem:[%s153 + $0xac] sm:$0xf]
      %v335 = vld [vmem:[%s153 + $0xc0] sm:$0x1]
      %v336 = vld [vmem:[%s153 + $0xd4] sm:$0xf]
      %v337 = vld [vmem:[%s153 + $0xe8] sm:$0x1]
      %v338 = vld [vmem:[%s153 + $0xfc] sm:$0xf]
      %v339 = vld [vmem:[%s153 + $0x110] sm:$0x1]
      %v340 = vld [vmem:[%s153 + $0x124] sm:$0xf]
      %v341 = vld [vmem:[%s153 + $0x138] sm:$0x1]
      %v342 = vld [vmem:[%s153 + $0x14c] sm:$0xf]
      %v343 = vld [vmem:[%s153 + $0x160] sm:$0x1]
      %v344 = vunpack.c.l.bf16 %v326
      %v345 = vunpack.c.l.bf16 %v327
      %v346 = vunpack.c.l.bf16 %v328
      %v347 = vunpack.c.l.bf16 %v329
      %v348 = vunpack.c.l.bf16 %v330
      %v349 = vunpack.c.l.bf16 %v331
      %v350 = vunpack.c.l.bf16 %v332
      %v351 = vunpack.c.l.bf16 %v333
      %v352 = vunpack.c.l.bf16 %v334
      %v353 = vunpack.c.l.bf16 %v335
      %v354 = vunpack.c.l.bf16 %v336
      %v355 = vunpack.c.l.bf16 %v337
      %v356 = vunpack.c.l.bf16 %v338
      %v357 = vunpack.c.l.bf16 %v339
      %v358 = vunpack.c.l.bf16 %v340
      %v359 = vunpack.c.l.bf16 %v341
      %v360 = vunpack.c.l.bf16 %v342
      %v361 = vunpack.c.l.bf16 %v343
      %362 = vst [vmem:[#allocation2 + $0x18] sm:$0xff] %v344
      %363 = vst [vmem:[#allocation2 + $0x40] sm:$0x1] %v345
      %364 = vst [vmem:[#allocation2 + $0x68] sm:$0xff] %v346
      %365 = vst [vmem:[#allocation2 + $0x90] sm:$0x1] %v347
      %366 = vst [vmem:[#allocation2 + $0xb8] sm:$0xff] %v348
      %367 = vst [vmem:[#allocation2 + $0xe0] sm:$0x1] %v349
      %368 = vst [vmem:[#allocation2 + $0x108] sm:$0xff] %v350
      %369 = vst [vmem:[#allocation2 + $0x130] sm:$0x1] %v351
      %370 = vst [vmem:[#allocation2 + $0x158] sm:$0xff] %v352
      %371 = vst [vmem:[#allocation2 + $0x180] sm:$0x1] %v353
      %372 = vst [vmem:[#allocation2 + $0x1a8] sm:$0xff] %v354
      %373 = vst [vmem:[#allocation2 + $0x1d0] sm:$0x1] %v355
      %374 = vst [vmem:[#allocation2 + $0x1f8] sm:$0xff] %v356
      %375 = vst [vmem:[#allocation2 + $0x220] sm:$0x1] %v357
      %376 = vst [vmem:[#allocation2 + $0x248] sm:$0xff] %v358
      %377 = vst [vmem:[#allocation2 + $0x270] sm:$0x1] %v359
      %378 = vst [vmem:[#allocation2 + $0x298] sm:$0xff] %v360
      %379 = vst [vmem:[#allocation2 + $0x2c0] sm:$0x1] %v361
      %v380 = vld [vmem:[%s153 + $0x10] sm:$0xf]
      %v381 = vld [vmem:[%s153 + $0x24] sm:$0x1]
      %v382 = vld [vmem:[%s153 + $0x38] sm:$0xf]
      %v383 = vld [vmem:[%s153 + $0x4c] sm:$0x1]
      %v384 = vld [vmem:[%s153 + $0x60] sm:$0xf]
      %v385 = vld [vmem:[%s153 + $0x74] sm:$0x1]
      %v386 = vld [vmem:[%s153 + $0x88] sm:$0xf]
      %v387 = vld [vmem:[%s153 + $0x9c] sm:$0x1]
      %v388 = vld [vmem:[%s153 + $0xb0] sm:$0xf]
      %v389 = vld [vmem:[%s153 + $0xc4] sm:$0x1]
      %v390 = vld [vmem:[%s153 + $0xd8] sm:$0xf]
      %v391 = vld [vmem:[%s153 + $0xec] sm:$0x1]
      %v392 = vld [vmem:[%s153 + $0x100] sm:$0xf]
      %v393 = vld [vmem:[%s153 + $0x114] sm:$0x1]
      %v394 = vld [vmem:[%s153 + $0x128] sm:$0xf]
      %v395 = vld [vmem:[%s153 + $0x13c] sm:$0x1]
      %v396 = vld [vmem:[%s153 + $0x150] sm:$0xf]
      %v397 = vld [vmem:[%s153 + $0x164] sm:$0x1]
      %v398 = vunpack.c.l.bf16 %v380
      %v399 = vunpack.c.l.bf16 %v381
      %v400 = vunpack.c.l.bf16 %v382
      %v401 = vunpack.c.l.bf16 %v383
      %v402 = vunpack.c.l.bf16 %v384
      %v403 = vunpack.c.l.bf16 %v385
      %v404 = vunpack.c.l.bf16 %v386
      %v405 = vunpack.c.l.bf16 %v387
      %v406 = vunpack.c.l.bf16 %v388
      %v407 = vunpack.c.l.bf16 %v389
      %v408 = vunpack.c.l.bf16 %v390
      %v409 = vunpack.c.l.bf16 %v391
      %v410 = vunpack.c.l.bf16 %v392
      %v411 = vunpack.c.l.bf16 %v393
      %v412 = vunpack.c.l.bf16 %v394
      %v413 = vunpack.c.l.bf16 %v395
      %v414 = vunpack.c.l.bf16 %v396
      %v415 = vunpack.c.l.bf16 %v397
      %416 = vst [vmem:[#allocation2 + $0x20] sm:$0xff] %v398
      %417 = vst [vmem:[#allocation2 + $0x48] sm:$0x1] %v399
      %418 = vst [vmem:[#allocation2 + $0x70] sm:$0xff] %v400
      %419 = vst [vmem:[#allocation2 + $0x98] sm:$0x1] %v401
      %420 = vst [vmem:[#allocation2 + $0xc0] sm:$0xff] %v402
      %421 = vst [vmem:[#allocation2 + $0xe8] sm:$0x1] %v403
      %422 = vst [vmem:[#allocation2 + $0x110] sm:$0xff] %v404
      %423 = vst [vmem:[#allocation2 + $0x138] sm:$0x1] %v405
      %424 = vst [vmem:[#allocation2 + $0x160] sm:$0xff] %v406
      %425 = vst [vmem:[#allocation2 + $0x188] sm:$0x1] %v407
      %426 = vst [vmem:[#allocation2 + $0x1b0] sm:$0xff] %v408
      %427 = vst [vmem:[#allocation2 + $0x1d8] sm:$0x1] %v409
      %428 = vst [vmem:[#allocation2 + $0x200] sm:$0xff] %v410
      %429 = vst [vmem:[#allocation2 + $0x228] sm:$0x1] %v411
      %430 = vst [vmem:[#allocation2 + $0x250] sm:$0xff] %v412
      %431 = vst [vmem:[#allocation2 + $0x278] sm:$0x1] %v413
      %432 = vst [vmem:[#allocation2 + $0x2a0] sm:$0xff] %v414
      %433 = vst [vmem:[#allocation2 + $0x2c8] sm:$0x1] %v415
      %s434 = scalar_lea.vmem %s153, 360
      %v435 = vld [vmem:[%s434] sm:$0xf]
      %v436 = vld [vmem:[%s434 + $0x14] sm:$0x1]
      %v437 = vld [vmem:[%s434 + $0x28] sm:$0xf]
      %v438 = vld [vmem:[%s434 + $0x3c] sm:$0x1]
      %v439 = vld [vmem:[%s434 + $0x50] sm:$0xf]
      %v440 = vld [vmem:[%s434 + $0x64] sm:$0x1]
      %v441 = vld [vmem:[%s434 + $0x78] sm:$0xf]
      %v442 = vld [vmem:[%s434 + $0x8c] sm:$0x1]
      %v443 = vld [vmem:[%s434 + $0xa0] sm:$0xf]
      %v444 = vld [vmem:[%s434 + $0xb4] sm:$0x1]
      %v445 = vld [vmem:[%s434 + $0xc8] sm:$0xf]
      %v446 = vld [vmem:[%s434 + $0xdc] sm:$0x1]
      %v447 = vld [vmem:[%s434 + $0xf0] sm:$0xf]
      %v448 = vld [vmem:[%s434 + $0x104] sm:$0x1]
      %v449 = vld [vmem:[%s434 + $0x118] sm:$0xf]
      %v450 = vld [vmem:[%s434 + $0x12c] sm:$0x1]
      %v451 = vld [vmem:[%s434 + $0x140] sm:$0xf]
      %v452 = vld [vmem:[%s434 + $0x154] sm:$0x1]
      %v453 = vunpack.c.l.bf16 %v435
      %v454 = vunpack.c.l.bf16 %v436
      %v455 = vunpack.c.l.bf16 %v437
      %v456 = vunpack.c.l.bf16 %v438
      %v457 = vunpack.c.l.bf16 %v439
      %v458 = vunpack.c.l.bf16 %v440
      %v459 = vunpack.c.l.bf16 %v441
      %v460 = vunpack.c.l.bf16 %v442
      %v461 = vunpack.c.l.bf16 %v443
      %v462 = vunpack.c.l.bf16 %v444
      %v463 = vunpack.c.l.bf16 %v445
      %v464 = vunpack.c.l.bf16 %v446
      %v465 = vunpack.c.l.bf16 %v447
      %v466 = vunpack.c.l.bf16 %v448
      %v467 = vunpack.c.l.bf16 %v449
      %v468 = vunpack.c.l.bf16 %v450
      %v469 = vunpack.c.l.bf16 %v451
      %v470 = vunpack.c.l.bf16 %v452
      %s471 = scalar_lea.vmem [#allocation2], 720
      %472 = vst [vmem:[%s471] sm:$0xff] %v453
      %473 = vst [vmem:[%s471 + $0x28] sm:$0x1] %v454
      %474 = vst [vmem:[%s471 + $0x50] sm:$0xff] %v455
      %475 = vst [vmem:[%s471 + $0x78] sm:$0x1] %v456
      %476 = vst [vmem:[%s471 + $0xa0] sm:$0xff] %v457
      %477 = vst [vmem:[%s471 + $0xc8] sm:$0x1] %v458
      %478 = vst [vmem:[%s471 + $0xf0] sm:$0xff] %v459
      %479 = vst [vmem:[%s471 + $0x118] sm:$0x1] %v460
      %480 = vst [vmem:[%s471 + $0x140] sm:$0xff] %v461
      %481 = vst [vmem:[%s471 + $0x168] sm:$0x1] %v462
      %482 = vst [vmem:[%s471 + $0x190] sm:$0xff] %v463
      %483 = vst [vmem:[%s471 + $0x1b8] sm:$0x1] %v464
      %484 = vst [vmem:[%s471 + $0x1e0] sm:$0xff] %v465
      %485 = vst [vmem:[%s471 + $0x208] sm:$0x1] %v466
      %486 = vst [vmem:[%s471 + $0x230] sm:$0xff] %v467
      %487 = vst [vmem:[%s471 + $0x258] sm:$0x1] %v468
      %488 = vst [vmem:[%s471 + $0x280] sm:$0xff] %v469
      %489 = vst [vmem:[%s471 + $0x2a8] sm:$0x1] %v470
      %v490 = vld [vmem:[%s434 + $0x4] sm:$0xf]
      %v491 = vld [vmem:[%s434 + $0x18] sm:$0x1]
      %v492 = vld [vmem:[%s434 + $0x2c] sm:$0xf]
      %v493 = vld [vmem:[%s434 + $0x40] sm:$0x1]
      %v494 = vld [vmem:[%s434 + $0x54] sm:$0xf]
      %v495 = vld [vmem:[%s434 + $0x68] sm:$0x1]
      %v496 = vld [vmem:[%s434 + $0x7c] sm:$0xf]
      %v497 = vld [vmem:[%s434 + $0x90] sm:$0x1]
      %v498 = vld [vmem:[%s434 + $0xa4] sm:$0xf]
      %v499 = vld [vmem:[%s434 + $0xb8] sm:$0x1]
      %v500 = vld [vmem:[%s434 + $0xcc] sm:$0xf]
      %v501 = vld [vmem:[%s434 + $0xe0] sm:$0x1]
      %v502 = vld [vmem:[%s434 + $0xf4] sm:$0xf]
      %v503 = vld [vmem:[%s434 + $0x108] sm:$0x1]
      %v504 = vld [vmem:[%s434 + $0x11c] sm:$0xf]
      %v505 = vld [vmem:[%s434 + $0x130] sm:$0x1]
      %v506 = vld [vmem:[%s434 + $0x144] sm:$0xf]
      %v507 = vld [vmem:[%s434 + $0x158] sm:$0x1]
      %v508 = vunpack.c.l.bf16 %v490
      %v509 = vunpack.c.l.bf16 %v491
      %v510 = vunpack.c.l.bf16 %v492
      %v511 = vunpack.c.l.bf16 %v493
      %v512 = vunpack.c.l.bf16 %v494
      %v513 = vunpack.c.l.bf16 %v495
      %v514 = vunpack.c.l.bf16 %v496
      %v515 = vunpack.c.l.bf16 %v497
      %v516 = vunpack.c.l.bf16 %v498
      %v517 = vunpack.c.l.bf16 %v499
      %v518 = vunpack.c.l.bf16 %v500
      %v519 = vunpack.c.l.bf16 %v501
      %v520 = vunpack.c.l.bf16 %v502
      %v521 = vunpack.c.l.bf16 %v503
      %v522 = vunpack.c.l.bf16 %v504
      %v523 = vunpack.c.l.bf16 %v505
      %v524 = vunpack.c.l.bf16 %v506
      %v525 = vunpack.c.l.bf16 %v507
      %526 = vst [vmem:[%s471 + $0x8] sm:$0xff] %v508
      %527 = vst [vmem:[%s471 + $0x30] sm:$0x1] %v509
      %528 = vst [vmem:[%s471 + $0x58] sm:$0xff] %v510
      %529 = vst [vmem:[%s471 + $0x80] sm:$0x1] %v511
      %530 = vst [vmem:[%s471 + $0xa8] sm:$0xff] %v512
      %531 = vst [vmem:[%s471 + $0xd0] sm:$0x1] %v513
      %532 = vst [vmem:[%s471 + $0xf8] sm:$0xff] %v514
      %533 = vst [vmem:[%s471 + $0x120] sm:$0x1] %v515
      %534 = vst [vmem:[%s471 + $0x148] sm:$0xff] %v516
      %535 = vst [vmem:[%s471 + $0x170] sm:$0x1] %v517
      %536 = vst [vmem:[%s471 + $0x198] sm:$0xff] %v518
      %537 = vst [vmem:[%s471 + $0x1c0] sm:$0x1] %v519
      %538 = vst [vmem:[%s471 + $0x1e8] sm:$0xff] %v520
      %539 = vst [vmem:[%s471 + $0x210] sm:$0x1] %v521
      %540 = vst [vmem:[%s471 + $0x238] sm:$0xff] %v522
      %541 = vst [vmem:[%s471 + $0x260] sm:$0x1] %v523
      %542 = vst [vmem:[%s471 + $0x288] sm:$0xff] %v524
      %543 = vst [vmem:[%s471 + $0x2b0] sm:$0x1] %v525
      %v544 = vld [vmem:[%s434 + $0x8] sm:$0xf]
      %v545 = vld [vmem:[%s434 + $0x1c] sm:$0x1]
      %v546 = vld [vmem:[%s434 + $0x30] sm:$0xf]
      %v547 = vld [vmem:[%s434 + $0x44] sm:$0x1]
      %v548 = vld [vmem:[%s434 + $0x58] sm:$0xf]
      %v549 = vld [vmem:[%s434 + $0x6c] sm:$0x1]
      %v550 = vld [vmem:[%s434 + $0x80] sm:$0xf]
      %v551 = vld [vmem:[%s434 + $0x94] sm:$0x1]
      %v552 = vld [vmem:[%s434 + $0xa8] sm:$0xf]
      %v553 = vld [vmem:[%s434 + $0xbc] sm:$0x1]
      %v554 = vld [vmem:[%s434 + $0xd0] sm:$0xf]
      %v555 = vld [vmem:[%s434 + $0xe4] sm:$0x1]
      %v556 = vld [vmem:[%s434 + $0xf8] sm:$0xf]
      %v557 = vld [vmem:[%s434 + $0x10c] sm:$0x1]
      %v558 = vld [vmem:[%s434 + $0x120] sm:$0xf]
      %v559 = vld [vmem:[%s434 + $0x134] sm:$0x1]
      %v560 = vld [vmem:[%s434 + $0x148] sm:$0xf]
      %v561 = vld [vmem:[%s434 + $0x15c] sm:$0x1]
      %v562 = vunpack.c.l.bf16 %v544
      %v563 = vunpack.c.l.bf16 %v545
      %v564 = vunpack.c.l.bf16 %v546
      %v565 = vunpack.c.l.bf16 %v547
      %v566 = vunpack.c.l.bf16 %v548
      %v567 = vunpack.c.l.bf16 %v549
      %v568 = vunpack.c.l.bf16 %v550
      %v569 = vunpack.c.l.bf16 %v551
      %v570 = vunpack.c.l.bf16 %v552
      %v571 = vunpack.c.l.bf16 %v553
      %v572 = vunpack.c.l.bf16 %v554
      %v573 = vunpack.c.l.bf16 %v555
      %v574 = vunpack.c.l.bf16 %v556
      %v575 = vunpack.c.l.bf16 %v557
      %v576 = vunpack.c.l.bf16 %v558
      %v577 = vunpack.c.l.bf16 %v559
      %v578 = vunpack.c.l.bf16 %v560
      %v579 = vunpack.c.l.bf16 %v561
      %580 = vst [vmem:[%s471 + $0x10] sm:$0xff] %v562
      %581 = vst [vmem:[%s471 + $0x38] sm:$0x1] %v563
      %582 = vst [vmem:[%s471 + $0x60] sm:$0xff] %v564
      %583 = vst [vmem:[%s471 + $0x88] sm:$0x1] %v565
      %584 = vst [vmem:[%s471 + $0xb0] sm:$0xff] %v566
      %585 = vst [vmem:[%s471 + $0xd8] sm:$0x1] %v567
      %586 = vst [vmem:[%s471 + $0x100] sm:$0xff] %v568
      %587 = vst [vmem:[%s471 + $0x128] sm:$0x1] %v569
      %588 = vst [vmem:[%s471 + $0x150] sm:$0xff] %v570
      %589 = vst [vmem:[%s471 + $0x178] sm:$0x1] %v571
      %590 = vst [vmem:[%s471 + $0x1a0] sm:$0xff] %v572
      %591 = vst [vmem:[%s471 + $0x1c8] sm:$0x1] %v573
      %592 = vst [vmem:[%s471 + $0x1f0] sm:$0xff] %v574
      %593 = vst [vmem:[%s471 + $0x218] sm:$0x1] %v575
      %594 = vst [vmem:[%s471 + $0x240] sm:$0xff] %v576
      %595 = vst [vmem:[%s471 + $0x268] sm:$0x1] %v577
      %596 = vst [vmem:[%s471 + $0x290] sm:$0xff] %v578
      %597 = vst [vmem:[%s471 + $0x2b8] sm:$0x1] %v579
      %v598 = vld [vmem:[%s434 + $0xc] sm:$0xf]
      %v599 = vld [vmem:[%s434 + $0x20] sm:$0x1]
      %v600 = vld [vmem:[%s434 + $0x34] sm:$0xf]
      %v601 = vld [vmem:[%s434 + $0x48] sm:$0x1]
      %v602 = vld [vmem:[%s434 + $0x5c] sm:$0xf]
      %v603 = vld [vmem:[%s434 + $0x70] sm:$0x1]
      %v604 = vld [vmem:[%s434 + $0x84] sm:$0xf]
      %v605 = vld [vmem:[%s434 + $0x98] sm:$0x1]
      %v606 = vld [vmem:[%s434 + $0xac] sm:$0xf]
      %v607 = vld [vmem:[%s434 + $0xc0] sm:$0x1]
      %v608 = vld [vmem:[%s434 + $0xd4] sm:$0xf]
      %v609 = vld [vmem:[%s434 + $0xe8] sm:$0x1]
      %v610 = vld [vmem:[%s434 + $0xfc] sm:$0xf]
      %v611 = vld [vmem:[%s434 + $0x110] sm:$0x1]
      %v612 = vld [vmem:[%s434 + $0x124] sm:$0xf]
      %v613 = vld [vmem:[%s434 + $0x138] sm:$0x1]
      %v614 = vld [vmem:[%s434 + $0x14c] sm:$0xf]
      %v615 = vld [vmem:[%s434 + $0x160] sm:$0x1]
      %v616 = vunpack.c.l.bf16 %v598
      %v617 = vunpack.c.l.bf16 %v599
      %v618 = vunpack.c.l.bf16 %v600
      %v619 = vunpack.c.l.bf16 %v601
      %v620 = vunpack.c.l.bf16 %v602
      %v621 = vunpack.c.l.bf16 %v603
      %v622 = vunpack.c.l.bf16 %v604
      %v623 = vunpack.c.l.bf16 %v605
      %v624 = vunpack.c.l.bf16 %v606
      %v625 = vunpack.c.l.bf16 %v607
      %v626 = vunpack.c.l.bf16 %v608
      %v627 = vunpack.c.l.bf16 %v609
      %v628 = vunpack.c.l.bf16 %v610
      %v629 = vunpack.c.l.bf16 %v611
      %v630 = vunpack.c.l.bf16 %v612
      %v631 = vunpack.c.l.bf16 %v613
      %v632 = vunpack.c.l.bf16 %v614
      %v633 = vunpack.c.l.bf16 %v615
      %634 = vst [vmem:[%s471 + $0x18] sm:$0xff] %v616
      %635 = vst [vmem:[%s471 + $0x40] sm:$0x1] %v617
      %636 = vst [vmem:[%s471 + $0x68] sm:$0xff] %v618
      %637 = vst [vmem:[%s471 + $0x90] sm:$0x1] %v619
      %638 = vst [vmem:[%s471 + $0xb8] sm:$0xff] %v620
      %639 = vst [vmem:[%s471 + $0xe0] sm:$0x1] %v621
      %640 = vst [vmem:[%s471 + $0x108] sm:$0xff] %v622
      %641 = vst [vmem:[%s471 + $0x130] sm:$0x1] %v623
      %642 = vst [vmem:[%s471 + $0x158] sm:$0xff] %v624
      %643 = vst [vmem:[%s471 + $0x180] sm:$0x1] %v625
      %644 = vst [vmem:[%s471 + $0x1a8] sm:$0xff] %v626
      %645 = vst [vmem:[%s471 + $0x1d0] sm:$0x1] %v627
      %646 = vst [vmem:[%s471 + $0x1f8] sm:$0xff] %v628
      %647 = vst [vmem:[%s471 + $0x220] sm:$0x1] %v629
      %648 = vst [vmem:[%s471 + $0x248] sm:$0xff] %v630
      %649 = vst [vmem:[%s471 + $0x270] sm:$0x1] %v631
      %650 = vst [vmem:[%s471 + $0x298] sm:$0xff] %v632
      %651 = vst [vmem:[%s471 + $0x2c0] sm:$0x1] %v633
      %v652 = vld [vmem:[%s434 + $0x10] sm:$0xf]
      %v653 = vld [vmem:[%s434 + $0x24] sm:$0x1]
      %v654 = vld [vmem:[%s434 + $0x38] sm:$0xf]
      %v655 = vld [vmem:[%s434 + $0x4c] sm:$0x1]
      %v656 = vld [vmem:[%s434 + $0x60] sm:$0xf]
      %v657 = vld [vmem:[%s434 + $0x74] sm:$0x1]
      %v658 = vld [vmem:[%s434 + $0x88] sm:$0xf]
      %v659 = vld [vmem:[%s434 + $0x9c] sm:$0x1]
      %v660 = vld [vmem:[%s434 + $0xb0] sm:$0xf]
      %v661 = vld [vmem:[%s434 + $0xc4] sm:$0x1]
      %v662 = vld [vmem:[%s434 + $0xd8] sm:$0xf]
      %v663 = vld [vmem:[%s434 + $0xec] sm:$0x1]
      %v664 = vld [vmem:[%s434 + $0x100] sm:$0xf]
      %v665 = vld [vmem:[%s434 + $0x114] sm:$0x1]
      %v666 = vld [vmem:[%s434 + $0x128] sm:$0xf]
      %v667 = vld [vmem:[%s434 + $0x13c] sm:$0x1]
      %v668 = vld [vmem:[%s434 + $0x150] sm:$0xf]
      %v669 = vld [vmem:[%s434 + $0x164] sm:$0x1]
      %v670 = vunpack.c.l.bf16 %v652
      %v671 = vunpack.c.l.bf16 %v653
      %v672 = vunpack.c.l.bf16 %v654
      %v673 = vunpack.c.l.bf16 %v655
      %v674 = vunpack.c.l.bf16 %v656
      %v675 = vunpack.c.l.bf16 %v657
      %v676 = vunpack.c.l.bf16 %v658
      %v677 = vunpack.c.l.bf16 %v659
      %v678 = vunpack.c.l.bf16 %v660
      %v679 = vunpack.c.l.bf16 %v661
      %v680 = vunpack.c.l.bf16 %v662
      %v681 = vunpack.c.l.bf16 %v663
      %v682 = vunpack.c.l.bf16 %v664
      %v683 = vunpack.c.l.bf16 %v665
      %v684 = vunpack.c.l.bf16 %v666
      %v685 = vunpack.c.l.bf16 %v667
      %v686 = vunpack.c.l.bf16 %v668
      %v687 = vunpack.c.l.bf16 %v669
      %688 = vst [vmem:[%s471 + $0x20] sm:$0xff] %v670
      %689 = vst [vmem:[%s471 + $0x48] sm:$0x1] %v671
      %690 = vst [vmem:[%s471 + $0x70] sm:$0xff] %v672
      %691 = vst [vmem:[%s471 + $0x98] sm:$0x1] %v673
      %692 = vst [vmem:[%s471 + $0xc0] sm:$0xff] %v674
      %693 = vst [vmem:[%s471 + $0xe8] sm:$0x1] %v675
      %694 = vst [vmem:[%s471 + $0x110] sm:$0xff] %v676
      %695 = vst [vmem:[%s471 + $0x138] sm:$0x1] %v677
      %696 = vst [vmem:[%s471 + $0x160] sm:$0xff] %v678
      %697 = vst [vmem:[%s471 + $0x188] sm:$0x1] %v679
      %698 = vst [vmem:[%s471 + $0x1b0] sm:$0xff] %v680
      %699 = vst [vmem:[%s471 + $0x1d8] sm:$0x1] %v681
      %700 = vst [vmem:[%s471 + $0x200] sm:$0xff] %v682
      %701 = vst [vmem:[%s471 + $0x228] sm:$0x1] %v683
      %702 = vst [vmem:[%s471 + $0x250] sm:$0xff] %v684
      %703 = vst [vmem:[%s471 + $0x278] sm:$0x1] %v685
      %704 = vst [vmem:[%s471 + $0x2a0] sm:$0xff] %v686
      %705 = vst [vmem:[%s471 + $0x2c8] sm:$0x1] %v687
      %s706 = scalar_lea.vmem %s153, 720
      %v707 = vld [vmem:[%s706] sm:$0xf]
      %v708 = vld [vmem:[%s706 + $0x14] sm:$0x1]
      %v709 = vld [vmem:[%s706 + $0x28] sm:$0xf]
      %v710 = vld [vmem:[%s706 + $0x3c] sm:$0x1]
      %v711 = vld [vmem:[%s706 + $0x50] sm:$0xf]
      %v712 = vld [vmem:[%s706 + $0x64] sm:$0x1]
      %v713 = vld [vmem:[%s706 + $0x78] sm:$0xf]
      %v714 = vld [vmem:[%s706 + $0x8c] sm:$0x1]
      %v715 = vld [vmem:[%s706 + $0xa0] sm:$0xf]
      %v716 = vld [vmem:[%s706 + $0xb4] sm:$0x1]
      %v717 = vld [vmem:[%s706 + $0xc8] sm:$0xf]
      %v718 = vld [vmem:[%s706 + $0xdc] sm:$0x1]
      %v719 = vld [vmem:[%s706 + $0xf0] sm:$0xf]
      %v720 = vld [vmem:[%s706 + $0x104] sm:$0x1]
      %v721 = vld [vmem:[%s706 + $0x118] sm:$0xf]
      %v722 = vld [vmem:[%s706 + $0x12c] sm:$0x1]
      %v723 = vld [vmem:[%s706 + $0x140] sm:$0xf]
      %v724 = vld [vmem:[%s706 + $0x154] sm:$0x1]
      %v725 = vunpack.c.l.bf16 %v707
      %v726 = vunpack.c.l.bf16 %v708
      %v727 = vunpack.c.l.bf16 %v709
      %v728 = vunpack.c.l.bf16 %v710
      %v729 = vunpack.c.l.bf16 %v711
      %v730 = vunpack.c.l.bf16 %v712
      %v731 = vunpack.c.l.bf16 %v713
      %v732 = vunpack.c.l.bf16 %v714
      %v733 = vunpack.c.l.bf16 %v715
      %v734 = vunpack.c.l.bf16 %v716
      %v735 = vunpack.c.l.bf16 %v717
      %v736 = vunpack.c.l.bf16 %v718
      %v737 = vunpack.c.l.bf16 %v719
      %v738 = vunpack.c.l.bf16 %v720
      %v739 = vunpack.c.l.bf16 %v721
      %v740 = vunpack.c.l.bf16 %v722
      %v741 = vunpack.c.l.bf16 %v723
      %v742 = vunpack.c.l.bf16 %v724
      %s743 = scalar_lea.vmem [#allocation2], 1440
      %744 = vst [vmem:[%s743] sm:$0xff] %v725
      %745 = vst [vmem:[%s743 + $0x28] sm:$0x1] %v726
      %746 = vst [vmem:[%s743 + $0x50] sm:$0xff] %v727
      %747 = vst [vmem:[%s743 + $0x78] sm:$0x1] %v728
      %748 = vst [vmem:[%s743 + $0xa0] sm:$0xff] %v729
      %749 = vst [vmem:[%s743 + $0xc8] sm:$0x1] %v730
      %750 = vst [vmem:[%s743 + $0xf0] sm:$0xff] %v731
      %751 = vst [vmem:[%s743 + $0x118] sm:$0x1] %v732
      %752 = vst [vmem:[%s743 + $0x140] sm:$0xff] %v733
      %753 = vst [vmem:[%s743 + $0x168] sm:$0x1] %v734
      %754 = vst [vmem:[%s743 + $0x190] sm:$0xff] %v735
      %755 = vst [vmem:[%s743 + $0x1b8] sm:$0x1] %v736
      %756 = vst [vmem:[%s743 + $0x1e0] sm:$0xff] %v737
      %757 = vst [vmem:[%s743 + $0x208] sm:$0x1] %v738
      %758 = vst [vmem:[%s743 + $0x230] sm:$0xff] %v739
      %759 = vst [vmem:[%s743 + $0x258] sm:$0x1] %v740
      %760 = vst [vmem:[%s743 + $0x280] sm:$0xff] %v741
      %761 = vst [vmem:[%s743 + $0x2a8] sm:$0x1] %v742
      %v762 = vld [vmem:[%s706 + $0x4] sm:$0xf]
      %v763 = vld [vmem:[%s706 + $0x18] sm:$0x1]
      %v764 = vld [vmem:[%s706 + $0x2c] sm:$0xf]
      %v765 = vld [vmem:[%s706 + $0x40] sm:$0x1]
      %v766 = vld [vmem:[%s706 + $0x54] sm:$0xf]
      %v767 = vld [vmem:[%s706 + $0x68] sm:$0x1]
      %v768 = vld [vmem:[%s706 + $0x7c] sm:$0xf]
      %v769 = vld [vmem:[%s706 + $0x90] sm:$0x1]
      %v770 = vld [vmem:[%s706 + $0xa4] sm:$0xf]
      %v771 = vld [vmem:[%s706 + $0xb8] sm:$0x1]
      %v772 = vld [vmem:[%s706 + $0xcc] sm:$0xf]
      %v773 = vld [vmem:[%s706 + $0xe0] sm:$0x1]
      %v774 = vld [vmem:[%s706 + $0xf4] sm:$0xf]
      %v775 = vld [vmem:[%s706 + $0x108] sm:$0x1]
      %v776 = vld [vmem:[%s706 + $0x11c] sm:$0xf]
      %v777 = vld [vmem:[%s706 + $0x130] sm:$0x1]
      %v778 = vld [vmem:[%s706 + $0x144] sm:$0xf]
      %v779 = vld [vmem:[%s706 + $0x158] sm:$0x1]
      %v780 = vunpack.c.l.bf16 %v762
      %v781 = vunpack.c.l.bf16 %v763
      %v782 = vunpack.c.l.bf16 %v764
      %v783 = vunpack.c.l.bf16 %v765
      %v784 = vunpack.c.l.bf16 %v766
      %v785 = vunpack.c.l.bf16 %v767
      %v786 = vunpack.c.l.bf16 %v768
      %v787 = vunpack.c.l.bf16 %v769
      %v788 = vunpack.c.l.bf16 %v770
      %v789 = vunpack.c.l.bf16 %v771
      %v790 = vunpack.c.l.bf16 %v772
      %v791 = vunpack.c.l.bf16 %v773
      %v792 = vunpack.c.l.bf16 %v774
      %v793 = vunpack.c.l.bf16 %v775
      %v794 = vunpack.c.l.bf16 %v776
      %v795 = vunpack.c.l.bf16 %v777
      %v796 = vunpack.c.l.bf16 %v778
      %v797 = vunpack.c.l.bf16 %v779
      %798 = vst [vmem:[%s743 + $0x8] sm:$0xff] %v780
      %799 = vst [vmem:[%s743 + $0x30] sm:$0x1] %v781
      %800 = vst [vmem:[%s743 + $0x58] sm:$0xff] %v782
      %801 = vst [vmem:[%s743 + $0x80] sm:$0x1] %v783
      %802 = vst [vmem:[%s743 + $0xa8] sm:$0xff] %v784
      %803 = vst [vmem:[%s743 + $0xd0] sm:$0x1] %v785
      %804 = vst [vmem:[%s743 + $0xf8] sm:$0xff] %v786
      %805 = vst [vmem:[%s743 + $0x120] sm:$0x1] %v787
      %806 = vst [vmem:[%s743 + $0x148] sm:$0xff] %v788
      %807 = vst [vmem:[%s743 + $0x170] sm:$0x1] %v789
      %808 = vst [vmem:[%s743 + $0x198] sm:$0xff] %v790
      %809 = vst [vmem:[%s743 + $0x1c0] sm:$0x1] %v791
      %810 = vst [vmem:[%s743 + $0x1e8] sm:$0xff] %v792
      %811 = vst [vmem:[%s743 + $0x210] sm:$0x1] %v793
      %812 = vst [vmem:[%s743 + $0x238] sm:$0xff] %v794
      %813 = vst [vmem:[%s743 + $0x260] sm:$0x1] %v795
      %814 = vst [vmem:[%s743 + $0x288] sm:$0xff] %v796
      %815 = vst [vmem:[%s743 + $0x2b0] sm:$0x1] %v797
      %v816 = vld [vmem:[%s706 + $0x8] sm:$0xf]
      %v817 = vld [vmem:[%s706 + $0x1c] sm:$0x1]
      %v818 = vld [vmem:[%s706 + $0x30] sm:$0xf]
      %v819 = vld [vmem:[%s706 + $0x44] sm:$0x1]
      %v820 = vld [vmem:[%s706 + $0x58] sm:$0xf]
      %v821 = vld [vmem:[%s706 + $0x6c] sm:$0x1]
      %v822 = vld [vmem:[%s706 + $0x80] sm:$0xf]
      %v823 = vld [vmem:[%s706 + $0x94] sm:$0x1]
      %v824 = vld [vmem:[%s706 + $0xa8] sm:$0xf]
      %v825 = vld [vmem:[%s706 + $0xbc] sm:$0x1]
      %v826 = vld [vmem:[%s706 + $0xd0] sm:$0xf]
      %v827 = vld [vmem:[%s706 + $0xe4] sm:$0x1]
      %v828 = vld [vmem:[%s706 + $0xf8] sm:$0xf]
      %v829 = vld [vmem:[%s706 + $0x10c] sm:$0x1]
      %v830 = vld [vmem:[%s706 + $0x120] sm:$0xf]
      %v831 = vld [vmem:[%s706 + $0x134] sm:$0x1]
      %v832 = vld [vmem:[%s706 + $0x148] sm:$0xf]
      %v833 = vld [vmem:[%s706 + $0x15c] sm:$0x1]
      %v834 = vunpack.c.l.bf16 %v816
      %v835 = vunpack.c.l.bf16 %v817
      %v836 = vunpack.c.l.bf16 %v818
      %v837 = vunpack.c.l.bf16 %v819
      %v838 = vunpack.c.l.bf16 %v820
      %v839 = vunpack.c.l.bf16 %v821
      %v840 = vunpack.c.l.bf16 %v822
      %v841 = vunpack.c.l.bf16 %v823
      %v842 = vunpack.c.l.bf16 %v824
      %v843 = vunpack.c.l.bf16 %v825
      %v844 = vunpack.c.l.bf16 %v826
      %v845 = vunpack.c.l.bf16 %v827
      %v846 = vunpack.c.l.bf16 %v828
      %v847 = vunpack.c.l.bf16 %v829
      %v848 = vunpack.c.l.bf16 %v830
      %v849 = vunpack.c.l.bf16 %v831
      %v850 = vunpack.c.l.bf16 %v832
      %v851 = vunpack.c.l.bf16 %v833
      %852 = vst [vmem:[%s743 + $0x10] sm:$0xff] %v834
      %853 = vst [vmem:[%s743 + $0x38] sm:$0x1] %v835
      %854 = vst [vmem:[%s743 + $0x60] sm:$0xff] %v836
      %855 = vst [vmem:[%s743 + $0x88] sm:$0x1] %v837
      %856 = vst [vmem:[%s743 + $0xb0] sm:$0xff] %v838
      %857 = vst [vmem:[%s743 + $0xd8] sm:$0x1] %v839
      %858 = vst [vmem:[%s743 + $0x100] sm:$0xff] %v840
      %859 = vst [vmem:[%s743 + $0x128] sm:$0x1] %v841
      %860 = vst [vmem:[%s743 + $0x150] sm:$0xff] %v842
      %861 = vst [vmem:[%s743 + $0x178] sm:$0x1] %v843
      %862 = vst [vmem:[%s743 + $0x1a0] sm:$0xff] %v844
      %863 = vst [vmem:[%s743 + $0x1c8] sm:$0x1] %v845
      %864 = vst [vmem:[%s743 + $0x1f0] sm:$0xff] %v846
      %865 = vst [vmem:[%s743 + $0x218] sm:$0x1] %v847
      %866 = vst [vmem:[%s743 + $0x240] sm:$0xff] %v848
      %867 = vst [vmem:[%s743 + $0x268] sm:$0x1] %v849
      %868 = vst [vmem:[%s743 + $0x290] sm:$0xff] %v850
      %869 = vst [vmem:[%s743 + $0x2b8] sm:$0x1] %v851
      %v870 = vld [vmem:[%s706 + $0xc] sm:$0xf]
      %v871 = vld [vmem:[%s706 + $0x20] sm:$0x1]
      %v872 = vld [vmem:[%s706 + $0x34] sm:$0xf]
      %v873 = vld [vmem:[%s706 + $0x48] sm:$0x1]
      %v874 = vld [vmem:[%s706 + $0x5c] sm:$0xf]
      %v875 = vld [vmem:[%s706 + $0x70] sm:$0x1]
      %v876 = vld [vmem:[%s706 + $0x84] sm:$0xf]
      %v877 = vld [vmem:[%s706 + $0x98] sm:$0x1]
      %v878 = vld [vmem:[%s706 + $0xac] sm:$0xf]
      %v879 = vld [vmem:[%s706 + $0xc0] sm:$0x1]
      %v880 = vld [vmem:[%s706 + $0xd4] sm:$0xf]
      %v881 = vld [vmem:[%s706 + $0xe8] sm:$0x1]
      %v882 = vld [vmem:[%s706 + $0xfc] sm:$0xf]
      %v883 = vld [vmem:[%s706 + $0x110] sm:$0x1]
      %v884 = vld [vmem:[%s706 + $0x124] sm:$0xf]
      %v885 = vld [vmem:[%s706 + $0x138] sm:$0x1]
      %v886 = vld [vmem:[%s706 + $0x14c] sm:$0xf]
      %v887 = vld [vmem:[%s706 + $0x160] sm:$0x1]
      %v888 = vunpack.c.l.bf16 %v870
      %v889 = vunpack.c.l.bf16 %v871
      %v890 = vunpack.c.l.bf16 %v872
      %v891 = vunpack.c.l.bf16 %v873
      %v892 = vunpack.c.l.bf16 %v874
      %v893 = vunpack.c.l.bf16 %v875
      %v894 = vunpack.c.l.bf16 %v876
      %v895 = vunpack.c.l.bf16 %v877
      %v896 = vunpack.c.l.bf16 %v878
      %v897 = vunpack.c.l.bf16 %v879
      %v898 = vunpack.c.l.bf16 %v880
      %v899 = vunpack.c.l.bf16 %v881
      %v900 = vunpack.c.l.bf16 %v882
      %v901 = vunpack.c.l.bf16 %v883
      %v902 = vunpack.c.l.bf16 %v884
      %v903 = vunpack.c.l.bf16 %v885
      %v904 = vunpack.c.l.bf16 %v886
      %v905 = vunpack.c.l.bf16 %v887
      %906 = vst [vmem:[%s743 + $0x18] sm:$0xff] %v888
      %907 = vst [vmem:[%s743 + $0x40] sm:$0x1] %v889
      %908 = vst [vmem:[%s743 + $0x68] sm:$0xff] %v890
      %909 = vst [vmem:[%s743 + $0x90] sm:$0x1] %v891
      %910 = vst [vmem:[%s743 + $0xb8] sm:$0xff] %v892
      %911 = vst [vmem:[%s743 + $0xe0] sm:$0x1] %v893
      %912 = vst [vmem:[%s743 + $0x108] sm:$0xff] %v894
      %913 = vst [vmem:[%s743 + $0x130] sm:$0x1] %v895
      %914 = vst [vmem:[%s743 + $0x158] sm:$0xff] %v896
      %915 = vst [vmem:[%s743 + $0x180] sm:$0x1] %v897
      %916 = vst [vmem:[%s743 + $0x1a8] sm:$0xff] %v898
      %917 = vst [vmem:[%s743 + $0x1d0] sm:$0x1] %v899
      %918 = vst [vmem:[%s743 + $0x1f8] sm:$0xff] %v900
      %919 = vst [vmem:[%s743 + $0x220] sm:$0x1] %v901
      %920 = vst [vmem:[%s743 + $0x248] sm:$0xff] %v902
      %921 = vst [vmem:[%s743 + $0x270] sm:$0x1] %v903
      %922 = vst [vmem:[%s743 + $0x298] sm:$0xff] %v904
      %923 = vst [vmem:[%s743 + $0x2c0] sm:$0x1] %v905
      %v924 = vld [vmem:[%s706 + $0x10] sm:$0xf]
      %v925 = vld [vmem:[%s706 + $0x24] sm:$0x1]
      %v926 = vld [vmem:[%s706 + $0x38] sm:$0xf]
      %v927 = vld [vmem:[%s706 + $0x4c] sm:$0x1]
      %v928 = vld [vmem:[%s706 + $0x60] sm:$0xf]
      %v929 = vld [vmem:[%s706 + $0x74] sm:$0x1]
      %v930 = vld [vmem:[%s706 + $0x88] sm:$0xf]
      %v931 = vld [vmem:[%s706 + $0x9c] sm:$0x1]
      %v932 = vld [vmem:[%s706 + $0xb0] sm:$0xf]
      %v933 = vld [vmem:[%s706 + $0xc4] sm:$0x1]
      %v934 = vld [vmem:[%s706 + $0xd8] sm:$0xf]
      %v935 = vld [vmem:[%s706 + $0xec] sm:$0x1]
      %v936 = vld [vmem:[%s706 + $0x100] sm:$0xf]
      %v937 = vld [vmem:[%s706 + $0x114] sm:$0x1]
      %v938 = vld [vmem:[%s706 + $0x128] sm:$0xf]
      %v939 = vld [vmem:[%s706 + $0x13c] sm:$0x1]
      %v940 = vld [vmem:[%s706 + $0x150] sm:$0xf]
      %v941 = vld [vmem:[%s706 + $0x164] sm:$0x1]
      %v942 = vunpack.c.l.bf16 %v924
      %v943 = vunpack.c.l.bf16 %v925
      %v944 = vunpack.c.l.bf16 %v926
      %v945 = vunpack.c.l.bf16 %v927
      %v946 = vunpack.c.l.bf16 %v928
      %v947 = vunpack.c.l.bf16 %v929
      %v948 = vunpack.c.l.bf16 %v930
      %v949 = vunpack.c.l.bf16 %v931
      %v950 = vunpack.c.l.bf16 %v932
      %v951 = vunpack.c.l.bf16 %v933
      %v952 = vunpack.c.l.bf16 %v934
      %v953 = vunpack.c.l.bf16 %v935
      %v954 = vunpack.c.l.bf16 %v936
      %v955 = vunpack.c.l.bf16 %v937
      %v956 = vunpack.c.l.bf16 %v938
      %v957 = vunpack.c.l.bf16 %v939
      %v958 = vunpack.c.l.bf16 %v940
      %v959 = vunpack.c.l.bf16 %v941
      %960 = vst [vmem:[%s743 + $0x20] sm:$0xff] %v942
      %961 = vst [vmem:[%s743 + $0x48] sm:$0x1] %v943
      %962 = vst [vmem:[%s743 + $0x70] sm:$0xff] %v944
      %963 = vst [vmem:[%s743 + $0x98] sm:$0x1] %v945
      %964 = vst [vmem:[%s743 + $0xc0] sm:$0xff] %v946
      %965 = vst [vmem:[%s743 + $0xe8] sm:$0x1] %v947
      %966 = vst [vmem:[%s743 + $0x110] sm:$0xff] %v948
      %967 = vst [vmem:[%s743 + $0x138] sm:$0x1] %v949
      %968 = vst [vmem:[%s743 + $0x160] sm:$0xff] %v950
      %969 = vst [vmem:[%s743 + $0x188] sm:$0x1] %v951
      %970 = vst [vmem:[%s743 + $0x1b0] sm:$0xff] %v952
      %971 = vst [vmem:[%s743 + $0x1d8] sm:$0x1] %v953
      %972 = vst [vmem:[%s743 + $0x200] sm:$0xff] %v954
      %973 = vst [vmem:[%s743 + $0x228] sm:$0x1] %v955
      %974 = vst [vmem:[%s743 + $0x250] sm:$0xff] %v956
      %975 = vst [vmem:[%s743 + $0x278] sm:$0x1] %v957
      %976 = vst [vmem:[%s743 + $0x2a0] sm:$0xff] %v958
      %977 = vst [vmem:[%s743 + $0x2c8] sm:$0x1] %v959
      %s978 = scalar_lea.vmem %s153, 1080
      %v979 = vld [vmem:[%s978] sm:$0xf]
      %v980 = vld [vmem:[%s978 + $0x14] sm:$0x1]
      %v981 = vld [vmem:[%s978 + $0x28] sm:$0xf]
      %v982 = vld [vmem:[%s978 + $0x3c] sm:$0x1]
      %v983 = vld [vmem:[%s978 + $0x50] sm:$0xf]
      %v984 = vld [vmem:[%s978 + $0x64] sm:$0x1]
      %v985 = vld [vmem:[%s978 + $0x78] sm:$0xf]
      %v986 = vld [vmem:[%s978 + $0x8c] sm:$0x1]
      %v987 = vld [vmem:[%s978 + $0xa0] sm:$0xf]
      %v988 = vld [vmem:[%s978 + $0xb4] sm:$0x1]
      %v989 = vld [vmem:[%s978 + $0xc8] sm:$0xf]
      %v990 = vld [vmem:[%s978 + $0xdc] sm:$0x1]
      %v991 = vld [vmem:[%s978 + $0xf0] sm:$0xf]
      %v992 = vld [vmem:[%s978 + $0x104] sm:$0x1]
      %v993 = vld [vmem:[%s978 + $0x118] sm:$0xf]
      %v994 = vld [vmem:[%s978 + $0x12c] sm:$0x1]
      %v995 = vld [vmem:[%s978 + $0x140] sm:$0xf]
      %v996 = vld [vmem:[%s978 + $0x154] sm:$0x1]
      %v997 = vunpack.c.l.bf16 %v979
      %v998 = vunpack.c.l.bf16 %v980
      %v999 = vunpack.c.l.bf16 %v981
      %v1000 = vunpack.c.l.bf16 %v982
      %v1001 = vunpack.c.l.bf16 %v983
      %v1002 = vunpack.c.l.bf16 %v984
      %v1003 = vunpack.c.l.bf16 %v985
      %v1004 = vunpack.c.l.bf16 %v986
      %v1005 = vunpack.c.l.bf16 %v987
      %v1006 = vunpack.c.l.bf16 %v988
      %v1007 = vunpack.c.l.bf16 %v989
      %v1008 = vunpack.c.l.bf16 %v990
      %v1009 = vunpack.c.l.bf16 %v991
      %v1010 = vunpack.c.l.bf16 %v992
      %v1011 = vunpack.c.l.bf16 %v993
      %v1012 = vunpack.c.l.bf16 %v994
      %v1013 = vunpack.c.l.bf16 %v995
      %v1014 = vunpack.c.l.bf16 %v996
      %s1015 = scalar_lea.vmem [#allocation2], 2160
      %1016 = vst [vmem:[%s1015] sm:$0xff] %v997
      %1017 = vst [vmem:[%s1015 + $0x28] sm:$0x1] %v998
      %1018 = vst [vmem:[%s1015 + $0x50] sm:$0xff] %v999
      %1019 = vst [vmem:[%s1015 + $0x78] sm:$0x1] %v1000
      %1020 = vst [vmem:[%s1015 + $0xa0] sm:$0xff] %v1001
      %1021 = vst [vmem:[%s1015 + $0xc8] sm:$0x1] %v1002
      %1022 = vst [vmem:[%s1015 + $0xf0] sm:$0xff] %v1003
      %1023 = vst [vmem:[%s1015 + $0x118] sm:$0x1] %v1004
      %1024 = vst [vmem:[%s1015 + $0x140] sm:$0xff] %v1005
      %1025 = vst [vmem:[%s1015 + $0x168] sm:$0x1] %v1006
      %1026 = vst [vmem:[%s1015 + $0x190] sm:$0xff] %v1007
      %1027 = vst [vmem:[%s1015 + $0x1b8] sm:$0x1] %v1008
      %1028 = vst [vmem:[%s1015 + $0x1e0] sm:$0xff] %v1009
      %1029 = vst [vmem:[%s1015 + $0x208] sm:$0x1] %v1010
      %1030 = vst [vmem:[%s1015 + $0x230] sm:$0xff] %v1011
      %1031 = vst [vmem:[%s1015 + $0x258] sm:$0x1] %v1012
      %1032 = vst [vmem:[%s1015 + $0x280] sm:$0xff] %v1013
      %1033 = vst [vmem:[%s1015 + $0x2a8] sm:$0x1] %v1014
      %v1034 = vld [vmem:[%s978 + $0x4] sm:$0xf]
      %v1035 = vld [vmem:[%s978 + $0x18] sm:$0x1]
      %v1036 = vld [vmem:[%s978 + $0x2c] sm:$0xf]
      %v1037 = vld [vmem:[%s978 + $0x40] sm:$0x1]
      %v1038 = vld [vmem:[%s978 + $0x54] sm:$0xf]
      %v1039 = vld [vmem:[%s978 + $0x68] sm:$0x1]
      %v1040 = vld [vmem:[%s978 + $0x7c] sm:$0xf]
      %v1041 = vld [vmem:[%s978 + $0x90] sm:$0x1]
      %v1042 = vld [vmem:[%s978 + $0xa4] sm:$0xf]
      %v1043 = vld [vmem:[%s978 + $0xb8] sm:$0x1]
      %v1044 = vld [vmem:[%s978 + $0xcc] sm:$0xf]
      %v1045 = vld [vmem:[%s978 + $0xe0] sm:$0x1]
      %v1046 = vld [vmem:[%s978 + $0xf4] sm:$0xf]
      %v1047 = vld [vmem:[%s978 + $0x108] sm:$0x1]
      %v1048 = vld [vmem:[%s978 + $0x11c] sm:$0xf]
      %v1049 = vld [vmem:[%s978 + $0x130] sm:$0x1]
      %v1050 = vld [vmem:[%s978 + $0x144] sm:$0xf]
      %v1051 = vld [vmem:[%s978 + $0x158] sm:$0x1]
      %v1052 = vunpack.c.l.bf16 %v1034
      %v1053 = vunpack.c.l.bf16 %v1035
      %v1054 = vunpack.c.l.bf16 %v1036
      %v1055 = vunpack.c.l.bf16 %v1037
      %v1056 = vunpack.c.l.bf16 %v1038
      %v1057 = vunpack.c.l.bf16 %v1039
      %v1058 = vunpack.c.l.bf16 %v1040
      %v1059 = vunpack.c.l.bf16 %v1041
      %v1060 = vunpack.c.l.bf16 %v1042
      %v1061 = vunpack.c.l.bf16 %v1043
      %v1062 = vunpack.c.l.bf16 %v1044
      %v1063 = vunpack.c.l.bf16 %v1045
      %v1064 = vunpack.c.l.bf16 %v1046
      %v1065 = vunpack.c.l.bf16 %v1047
      %v1066 = vunpack.c.l.bf16 %v1048
      %v1067 = vunpack.c.l.bf16 %v1049
      %v1068 = vunpack.c.l.bf16 %v1050
      %v1069 = vunpack.c.l.bf16 %v1051
      %1070 = vst [vmem:[%s1015 + $0x8] sm:$0xff] %v1052
      %1071 = vst [vmem:[%s1015 + $0x30] sm:$0x1] %v1053
      %1072 = vst [vmem:[%s1015 + $0x58] sm:$0xff] %v1054
      %1073 = vst [vmem:[%s1015 + $0x80] sm:$0x1] %v1055
      %1074 = vst [vmem:[%s1015 + $0xa8] sm:$0xff] %v1056
      %1075 = vst [vmem:[%s1015 + $0xd0] sm:$0x1] %v1057
      %1076 = vst [vmem:[%s1015 + $0xf8] sm:$0xff] %v1058
      %1077 = vst [vmem:[%s1015 + $0x120] sm:$0x1] %v1059
      %1078 = vst [vmem:[%s1015 + $0x148] sm:$0xff] %v1060
      %1079 = vst [vmem:[%s1015 + $0x170] sm:$0x1] %v1061
      %1080 = vst [vmem:[%s1015 + $0x198] sm:$0xff] %v1062
      %1081 = vst [vmem:[%s1015 + $0x1c0] sm:$0x1] %v1063
      %1082 = vst [vmem:[%s1015 + $0x1e8] sm:$0xff] %v1064
      %1083 = vst [vmem:[%s1015 + $0x210] sm:$0x1] %v1065
      %1084 = vst [vmem:[%s1015 + $0x238] sm:$0xff] %v1066
      %1085 = vst [vmem:[%s1015 + $0x260] sm:$0x1] %v1067
      %1086 = vst [vmem:[%s1015 + $0x288] sm:$0xff] %v1068
      %1087 = vst [vmem:[%s1015 + $0x2b0] sm:$0x1] %v1069
      %v1088 = vld [vmem:[%s978 + $0x8] sm:$0xf]
      %v1089 = vld [vmem:[%s978 + $0x1c] sm:$0x1]
      %v1090 = vld [vmem:[%s978 + $0x30] sm:$0xf]
      %v1091 = vld [vmem:[%s978 + $0x44] sm:$0x1]
      %v1092 = vld [vmem:[%s978 + $0x58] sm:$0xf]
      %v1093 = vld [vmem:[%s978 + $0x6c] sm:$0x1]
      %v1094 = vld [vmem:[%s978 + $0x80] sm:$0xf]
      %v1095 = vld [vmem:[%s978 + $0x94] sm:$0x1]
      %v1096 = vld [vmem:[%s978 + $0xa8] sm:$0xf]
      %v1097 = vld [vmem:[%s978 + $0xbc] sm:$0x1]
      %v1098 = vld [vmem:[%s978 + $0xd0] sm:$0xf]
      %v1099 = vld [vmem:[%s978 + $0xe4] sm:$0x1]
      %v1100 = vld [vmem:[%s978 + $0xf8] sm:$0xf]
      %v1101 = vld [vmem:[%s978 + $0x10c] sm:$0x1]
      %v1102 = vld [vmem:[%s978 + $0x120] sm:$0xf]
      %v1103 = vld [vmem:[%s978 + $0x134] sm:$0x1]
      %v1104 = vld [vmem:[%s978 + $0x148] sm:$0xf]
      %v1105 = vld [vmem:[%s978 + $0x15c] sm:$0x1]
      %v1106 = vunpack.c.l.bf16 %v1088
      %v1107 = vunpack.c.l.bf16 %v1089
      %v1108 = vunpack.c.l.bf16 %v1090
      %v1109 = vunpack.c.l.bf16 %v1091
      %v1110 = vunpack.c.l.bf16 %v1092
      %v1111 = vunpack.c.l.bf16 %v1093
      %v1112 = vunpack.c.l.bf16 %v1094
      %v1113 = vunpack.c.l.bf16 %v1095
      %v1114 = vunpack.c.l.bf16 %v1096
      %v1115 = vunpack.c.l.bf16 %v1097
      %v1116 = vunpack.c.l.bf16 %v1098
      %v1117 = vunpack.c.l.bf16 %v1099
      %v1118 = vunpack.c.l.bf16 %v1100
      %v1119 = vunpack.c.l.bf16 %v1101
      %v1120 = vunpack.c.l.bf16 %v1102
      %v1121 = vunpack.c.l.bf16 %v1103
      %v1122 = vunpack.c.l.bf16 %v1104
      %v1123 = vunpack.c.l.bf16 %v1105
      %1124 = vst [vmem:[%s1015 + $0x10] sm:$0xff] %v1106
      %1125 = vst [vmem:[%s1015 + $0x38] sm:$0x1] %v1107
      %1126 = vst [vmem:[%s1015 + $0x60] sm:$0xff] %v1108
      %1127 = vst [vmem:[%s1015 + $0x88] sm:$0x1] %v1109
      %1128 = vst [vmem:[%s1015 + $0xb0] sm:$0xff] %v1110
      %1129 = vst [vmem:[%s1015 + $0xd8] sm:$0x1] %v1111
      %1130 = vst [vmem:[%s1015 + $0x100] sm:$0xff] %v1112
      %1131 = vst [vmem:[%s1015 + $0x128] sm:$0x1] %v1113
      %1132 = vst [vmem:[%s1015 + $0x150] sm:$0xff] %v1114
      %1133 = vst [vmem:[%s1015 + $0x178] sm:$0x1] %v1115
      %1134 = vst [vmem:[%s1015 + $0x1a0] sm:$0xff] %v1116
      %1135 = vst [vmem:[%s1015 + $0x1c8] sm:$0x1] %v1117
      %1136 = vst [vmem:[%s1015 + $0x1f0] sm:$0xff] %v1118
      %1137 = vst [vmem:[%s1015 + $0x218] sm:$0x1] %v1119
      %1138 = vst [vmem:[%s1015 + $0x240] sm:$0xff] %v1120
      %1139 = vst [vmem:[%s1015 + $0x268] sm:$0x1] %v1121
      %1140 = vst [vmem:[%s1015 + $0x290] sm:$0xff] %v1122
      %1141 = vst [vmem:[%s1015 + $0x2b8] sm:$0x1] %v1123
      %v1142 = vld [vmem:[%s978 + $0xc] sm:$0xf]
      %v1143 = vld [vmem:[%s978 + $0x20] sm:$0x1]
      %v1144 = vld [vmem:[%s978 + $0x34] sm:$0xf]
      %v1145 = vld [vmem:[%s978 + $0x48] sm:$0x1]
      %v1146 = vld [vmem:[%s978 + $0x5c] sm:$0xf]
      %v1147 = vld [vmem:[%s978 + $0x70] sm:$0x1]
      %v1148 = vld [vmem:[%s978 + $0x84] sm:$0xf]
      %v1149 = vld [vmem:[%s978 + $0x98] sm:$0x1]
      %v1150 = vld [vmem:[%s978 + $0xac] sm:$0xf]
      %v1151 = vld [vmem:[%s978 + $0xc0] sm:$0x1]
      %v1152 = vld [vmem:[%s978 + $0xd4] sm:$0xf]
      %v1153 = vld [vmem:[%s978 + $0xe8] sm:$0x1]
      %v1154 = vld [vmem:[%s978 + $0xfc] sm:$0xf]
      %v1155 = vld [vmem:[%s978 + $0x110] sm:$0x1]
      %v1156 = vld [vmem:[%s978 + $0x124] sm:$0xf]
      %v1157 = vld [vmem:[%s978 + $0x138] sm:$0x1]
      %v1158 = vld [vmem:[%s978 + $0x14c] sm:$0xf]
      %v1159 = vld [vmem:[%s978 + $0x160] sm:$0x1]
      %v1160 = vunpack.c.l.bf16 %v1142
      %v1161 = vunpack.c.l.bf16 %v1143
      %v1162 = vunpack.c.l.bf16 %v1144
      %v1163 = vunpack.c.l.bf16 %v1145
      %v1164 = vunpack.c.l.bf16 %v1146
      %v1165 = vunpack.c.l.bf16 %v1147
      %v1166 = vunpack.c.l.bf16 %v1148
      %v1167 = vunpack.c.l.bf16 %v1149
      %v1168 = vunpack.c.l.bf16 %v1150
      %v1169 = vunpack.c.l.bf16 %v1151
      %v1170 = vunpack.c.l.bf16 %v1152
      %v1171 = vunpack.c.l.bf16 %v1153
      %v1172 = vunpack.c.l.bf16 %v1154
      %v1173 = vunpack.c.l.bf16 %v1155
      %v1174 = vunpack.c.l.bf16 %v1156
      %v1175 = vunpack.c.l.bf16 %v1157
      %v1176 = vunpack.c.l.bf16 %v1158
      %v1177 = vunpack.c.l.bf16 %v1159
      %1178 = vst [vmem:[%s1015 + $0x18] sm:$0xff] %v1160
      %1179 = vst [vmem:[%s1015 + $0x40] sm:$0x1] %v1161
      %1180 = vst [vmem:[%s1015 + $0x68] sm:$0xff] %v1162
      %1181 = vst [vmem:[%s1015 + $0x90] sm:$0x1] %v1163
      %1182 = vst [vmem:[%s1015 + $0xb8] sm:$0xff] %v1164
      %1183 = vst [vmem:[%s1015 + $0xe0] sm:$0x1] %v1165
      %1184 = vst [vmem:[%s1015 + $0x108] sm:$0xff] %v1166
      %1185 = vst [vmem:[%s1015 + $0x130] sm:$0x1] %v1167
      %1186 = vst [vmem:[%s1015 + $0x158] sm:$0xff] %v1168
      %1187 = vst [vmem:[%s1015 + $0x180] sm:$0x1] %v1169
      %1188 = vst [vmem:[%s1015 + $0x1a8] sm:$0xff] %v1170
      %1189 = vst [vmem:[%s1015 + $0x1d0] sm:$0x1] %v1171
      %1190 = vst [vmem:[%s1015 + $0x1f8] sm:$0xff] %v1172
      %1191 = vst [vmem:[%s1015 + $0x220] sm:$0x1] %v1173
      %1192 = vst [vmem:[%s1015 + $0x248] sm:$0xff] %v1174
      %1193 = vst [vmem:[%s1015 + $0x270] sm:$0x1] %v1175
      %1194 = vst [vmem:[%s1015 + $0x298] sm:$0xff] %v1176
      %1195 = vst [vmem:[%s1015 + $0x2c0] sm:$0x1] %v1177
      %v1196 = vld [vmem:[%s978 + $0x10] sm:$0xf]
      %v1197 = vld [vmem:[%s978 + $0x24] sm:$0x1]
      %v1198 = vld [vmem:[%s978 + $0x38] sm:$0xf]
      %v1199 = vld [vmem:[%s978 + $0x4c] sm:$0x1]
      %v1200 = vld [vmem:[%s978 + $0x60] sm:$0xf]
      %v1201 = vld [vmem:[%s978 + $0x74] sm:$0x1]
      %v1202 = vld [vmem:[%s978 + $0x88] sm:$0xf]
      %v1203 = vld [vmem:[%s978 + $0x9c] sm:$0x1]
      %v1204 = vld [vmem:[%s978 + $0xb0] sm:$0xf]
      %v1205 = vld [vmem:[%s978 + $0xc4] sm:$0x1]
      %v1206 = vld [vmem:[%s978 + $0xd8] sm:$0xf]
      %v1207 = vld [vmem:[%s978 + $0xec] sm:$0x1]
      %v1208 = vld [vmem:[%s978 + $0x100] sm:$0xf]
      %v1209 = vld [vmem:[%s978 + $0x114] sm:$0x1]
      %v1210 = vld [vmem:[%s978 + $0x128] sm:$0xf]
      %v1211 = vld [vmem:[%s978 + $0x13c] sm:$0x1]
      %v1212 = vld [vmem:[%s978 + $0x150] sm:$0xf]
      %v1213 = vld [vmem:[%s978 + $0x164] sm:$0x1]
      %v1214 = vunpack.c.l.bf16 %v1196
      %v1215 = vunpack.c.l.bf16 %v1197
      %v1216 = vunpack.c.l.bf16 %v1198
      %v1217 = vunpack.c.l.bf16 %v1199
      %v1218 = vunpack.c.l.bf16 %v1200
      %v1219 = vunpack.c.l.bf16 %v1201
      %v1220 = vunpack.c.l.bf16 %v1202
      %v1221 = vunpack.c.l.bf16 %v1203
      %v1222 = vunpack.c.l.bf16 %v1204
      %v1223 = vunpack.c.l.bf16 %v1205
      %v1224 = vunpack.c.l.bf16 %v1206
      %v1225 = vunpack.c.l.bf16 %v1207
      %v1226 = vunpack.c.l.bf16 %v1208
      %v1227 = vunpack.c.l.bf16 %v1209
      %v1228 = vunpack.c.l.bf16 %v1210
      %v1229 = vunpack.c.l.bf16 %v1211
      %v1230 = vunpack.c.l.bf16 %v1212
      %v1231 = vunpack.c.l.bf16 %v1213
      %1232 = vst [vmem:[%s1015 + $0x20] sm:$0xff] %v1214
      %1233 = vst [vmem:[%s1015 + $0x48] sm:$0x1] %v1215
      %1234 = vst [vmem:[%s1015 + $0x70] sm:$0xff] %v1216
      %1235 = vst [vmem:[%s1015 + $0x98] sm:$0x1] %v1217
      %1236 = vst [vmem:[%s1015 + $0xc0] sm:$0xff] %v1218
      %1237 = vst [vmem:[%s1015 + $0xe8] sm:$0x1] %v1219
      %1238 = vst [vmem:[%s1015 + $0x110] sm:$0xff] %v1220
      %1239 = vst [vmem:[%s1015 + $0x138] sm:$0x1] %v1221
      %1240 = vst [vmem:[%s1015 + $0x160] sm:$0xff] %v1222
      %1241 = vst [vmem:[%s1015 + $0x188] sm:$0x1] %v1223
      %1242 = vst [vmem:[%s1015 + $0x1b0] sm:$0xff] %v1224
      %1243 = vst [vmem:[%s1015 + $0x1d8] sm:$0x1] %v1225
      %1244 = vst [vmem:[%s1015 + $0x200] sm:$0xff] %v1226
      %1245 = vst [vmem:[%s1015 + $0x228] sm:$0x1] %v1227
      %1246 = vst [vmem:[%s1015 + $0x250] sm:$0xff] %v1228
      %1247 = vst [vmem:[%s1015 + $0x278] sm:$0x1] %v1229
      %1248 = vst [vmem:[%s1015 + $0x2a0] sm:$0xff] %v1230
      %1249 = vst [vmem:[%s1015 + $0x2c8] sm:$0x1] %v1231
      %v1250 = vld [vmem:[%s158] sm:$0x77]
      %v1251 = vld [vmem:[%s158 + $0x8] sm:$0x77]
      %v1252 = vld [vmem:[%s158 + $0x10] sm:$0x7]
      %v1253 = vld [vmem:[%s158 + $0x14] sm:$0x77]
      %v1254 = vld [vmem:[%s158 + $0x1c] sm:$0x77]
      %v1255 = vld [vmem:[%s158 + $0x24] sm:$0x7]
      %v1256 = vld [vmem:[%s158 + $0x28] sm:$0x77]
      %v1257 = vld [vmem:[%s158 + $0x30] sm:$0x77]
      %v1258 = vld [vmem:[%s158 + $0x38] sm:$0x7]
      %v1259 = vld [vmem:[%s158 + $0x3c] sm:$0x77]
      %v1260 = vld [vmem:[%s158 + $0x44] sm:$0x77]
      %v1261 = vld [vmem:[%s158 + $0x4c] sm:$0x7]
      %v1262 = vld [vmem:[%s158 + $0x50] sm:$0x77]
      %v1263 = vld [vmem:[%s158 + $0x58] sm:$0x77]
      %v1264 = vld [vmem:[%s158 + $0x60] sm:$0x7]
      %v1265 = vunpack.c.l.bf16 %v1250
      %v1266 = vunpack.c.h.bf16 %v1250
      %v1267 = vunpack.c.l.bf16 %v1251
      %v1268 = vunpack.c.h.bf16 %v1251
      %v1269 = vunpack.c.l.bf16 %v1252
      %v1270 = vunpack.c.l.bf16 %v1253
      %v1271 = vunpack.c.h.bf16 %v1253
      %v1272 = vunpack.c.l.bf16 %v1254
      %v1273 = vunpack.c.h.bf16 %v1254
      %v1274 = vunpack.c.l.bf16 %v1255
      %v1275 = vunpack.c.l.bf16 %v1256
      %v1276 = vunpack.c.h.bf16 %v1256
      %v1277 = vunpack.c.l.bf16 %v1257
      %v1278 = vunpack.c.h.bf16 %v1257
      %v1279 = vunpack.c.l.bf16 %v1258
      %v1280 = vunpack.c.l.bf16 %v1259
      %v1281 = vunpack.c.h.bf16 %v1259
      %v1282 = vunpack.c.l.bf16 %v1260
      %v1283 = vunpack.c.h.bf16 %v1260
      %v1284 = vunpack.c.l.bf16 %v1261
      %v1285 = vunpack.c.l.bf16 %v1262
      %v1286 = vunpack.c.h.bf16 %v1262
      %v1287 = vunpack.c.l.bf16 %v1263
      %v1288 = vunpack.c.h.bf16 %v1263
      %v1289 = vunpack.c.l.bf16 %v1264
      %1290 = vst [vmem:[#allocation3] sm:$0x1f] %v1265
      %1291 = vst [vmem:[#allocation3 + $0x8] sm:$0x1f] %v1266
      %1292 = vst [vmem:[#allocation3 + $0x10] sm:$0x1f] %v1267
      %1293 = vst [vmem:[#allocation3 + $0x18] sm:$0x1f] %v1268
      %1294 = vst [vmem:[#allocation3 + $0x20] sm:$0x1f] %v1269
      %1295 = vst [vmem:[#allocation3 + $0x28] sm:$0x1f] %v1270
      %1296 = vst [vmem:[#allocation3 + $0x30] sm:$0x1f] %v1271
      %1297 = vst [vmem:[#allocation3 + $0x38] sm:$0x1f] %v1272
      %1298 = vst [vmem:[#allocation3 + $0x40] sm:$0x1f] %v1273
      %1299 = vst [vmem:[#allocation3 + $0x48] sm:$0x1f] %v1274
      %1300 = vst [vmem:[#allocation3 + $0x50] sm:$0x1f] %v1275
      %1301 = vst [vmem:[#allocation3 + $0x58] sm:$0x1f] %v1276
      %1302 = vst [vmem:[#allocation3 + $0x60] sm:$0x1f] %v1277
      %1303 = vst [vmem:[#allocation3 + $0x68] sm:$0x1f] %v1278
      %1304 = vst [vmem:[#allocation3 + $0x70] sm:$0x1f] %v1279
      %1305 = vst [vmem:[#allocation3 + $0x78] sm:$0x1f] %v1280
      %1306 = vst [vmem:[#allocation3 + $0x80] sm:$0x1f] %v1281
      %1307 = vst [vmem:[#allocation3 + $0x88] sm:$0x1f] %v1282
      %1308 = vst [vmem:[#allocation3 + $0x90] sm:$0x1f] %v1283
      %1309 = vst [vmem:[#allocation3 + $0x98] sm:$0x1f] %v1284
      %1310 = vst [vmem:[#allocation3 + $0xa0] sm:$0x1f] %v1285
      %1311 = vst [vmem:[#allocation3 + $0xa8] sm:$0x1f] %v1286
      %1312 = vst [vmem:[#allocation3 + $0xb0] sm:$0x1f] %v1287
      %1313 = vst [vmem:[#allocation3 + $0xb8] sm:$0x1f] %v1288
      %1314 = vst [vmem:[#allocation3 + $0xc0] sm:$0x1f] %v1289
      %v1315 = vld [vmem:[#allocation3] ss:$0 sm:$0xff]
      %v1316 = vld [vmem:[#allocation2] sm:$0x7f]
      %v1317 = vld [vmem:[#allocation2 + $0x50] sm:$0x7f]
      %v1318 = vld [vmem:[#allocation2 + $0xa0] sm:$0x7f]
      %v1319 = vld [vmem:[#allocation2 + $0xf0] sm:$0x7f]
      %v1320 = vld [vmem:[#allocation2 + $0x140] sm:$0x7f]
      %v1321 = vld [vmem:[#allocation2 + $0x190] sm:$0x7f]
      %v1322 = vld [vmem:[#allocation2 + $0x1e0] sm:$0x7f]
      %v1323 = vmul.f32 %v1316, %v1315
      %v1324 = vmul.f32 %v1317, %v1315
      %v1325 = vmul.f32 %v1318, %v1315
      %v1326 = vmul.f32 %v1319, %v1315
      %v1327 = vmul.f32 %v1320, %v1315
      %v1328 = vmul.f32 %v1321, %v1315
      %v1329 = vmul.f32 %v1322, %v1315
      %v1330 = vadd.f32 %v1323, 0.0
      %v1331 = vadd.f32 %v1324, 0.0
      %v1332 = vadd.f32 %v1325, 0.0
      %v1333 = vadd.f32 %v1326, 0.0
      %v1334 = vadd.f32 %v1327, 0.0
      %v1335 = vadd.f32 %v1328, 0.0
      %v1336 = vadd.f32 %v1329, 0.0
      %v1337 = vld [vmem:[#allocation3 + $0x1] ss:$0 sm:$0xff]
      %v1338 = vld [vmem:[%s471] sm:$0x7f]
      %v1339 = vld [vmem:[%s471 + $0x50] sm:$0x7f]
      %v1340 = vld [vmem:[%s471 + $0xa0] sm:$0x7f]
      %v1341 = vld [vmem:[%s471 + $0xf0] sm:$0x7f]
      %v1342 = vld [vmem:[%s471 + $0x140] sm:$0x7f]
      %v1343 = vld [vmem:[%s471 + $0x190] sm:$0x7f]
      %v1344 = vld [vmem:[%s471 + $0x1e0] sm:$0x7f]
      %v1345 = vmul.f32 %v1338, %v1337
      %v1346 = vmul.f32 %v1339, %v1337
      %v1347 = vmul.f32 %v1340, %v1337
      %v1348 = vmul.f32 %v1341, %v1337
      %v1349 = vmul.f32 %v1342, %v1337
      %v1350 = vmul.f32 %v1343, %v1337
      %v1351 = vmul.f32 %v1344, %v1337
      %v1352 = vadd.f32 %v1330, %v1345
      %v1353 = vadd.f32 %v1331, %v1346
      %v1354 = vadd.f32 %v1332, %v1347
      %v1355 = vadd.f32 %v1333, %v1348
      %v1356 = vadd.f32 %v1334, %v1349
      %v1357 = vadd.f32 %v1335, %v1350
      %v1358 = vadd.f32 %v1336, %v1351
      %v1359 = vld [vmem:[#allocation3 + $0x2] ss:$0 sm:$0xff]
      %v1360 = vld [vmem:[#allocation2] sm:$0xfe]
      %v1361 = vld [vmem:[#allocation2 + $0x50] sm:$0xfe]
      %v1362 = vld [vmem:[#allocation2 + $0xa0] sm:$0xfe]
      %v1363 = vld [vmem:[#allocation2 + $0xf0] sm:$0xfe]
      %v1364 = vld [vmem:[#allocation2 + $0x140] sm:$0xfe]
      %v1365 = vld [vmem:[#allocation2 + $0x190] sm:$0xfe]
      %v1366 = vld [vmem:[#allocation2 + $0x1e0] sm:$0xfe]
      %v1367 = vmul.f32 %v1360, %v1359
      %v1368 = vmul.f32 %v1361, %v1359
      %v1369 = vmul.f32 %v1362, %v1359
      %v1370 = vmul.f32 %v1363, %v1359
      %v1371 = vmul.f32 %v1364, %v1359
      %v1372 = vmul.f32 %v1365, %v1359
      %v1373 = vmul.f32 %v1366, %v1359
      %v1381 = vrot.slane %v1367, 1
      %v1382 = vrot.slane %v1368, 1
      %v1383 = vrot.slane %v1369, 1
      %v1384 = vrot.slane %v1370, 1
      %v1385 = vrot.slane %v1371, 1
      %v1386 = vrot.slane %v1372, 1
      %v1387 = vrot.slane %v1373, 1
      %v1395 = vadd.f32 %v1352, %v1381
      %v1396 = vadd.f32 %v1353, %v1382
      %v1397 = vadd.f32 %v1354, %v1383
      %v1398 = vadd.f32 %v1355, %v1384
      %v1399 = vadd.f32 %v1356, %v1385
      %v1400 = vadd.f32 %v1357, %v1386
      %v1401 = vadd.f32 %v1358, %v1387
      %v1402 = vld [vmem:[#allocation3 + $0x3] ss:$0 sm:$0xff]
      %v1403 = vld [vmem:[%s471] sm:$0xfe]
      %v1404 = vld [vmem:[%s471 + $0x50] sm:$0xfe]
      %v1405 = vld [vmem:[%s471 + $0xa0] sm:$0xfe]
      %v1406 = vld [vmem:[%s471 + $0xf0] sm:$0xfe]
      %v1407 = vld [vmem:[%s471 + $0x140] sm:$0xfe]
      %v1408 = vld [vmem:[%s471 + $0x190] sm:$0xfe]
      %v1409 = vld [vmem:[%s471 + $0x1e0] sm:$0xfe]
      %v1410 = vmul.f32 %v1403, %v1402
      %v1411 = vmul.f32 %v1404, %v1402
      %v1412 = vmul.f32 %v1405, %v1402
      %v1413 = vmul.f32 %v1406, %v1402
      %v1414 = vmul.f32 %v1407, %v1402
      %v1415 = vmul.f32 %v1408, %v1402
      %v1416 = vmul.f32 %v1409, %v1402
      %v1424 = vrot.slane %v1410, 1
      %v1425 = vrot.slane %v1411, 1
      %v1426 = vrot.slane %v1412, 1
      %v1427 = vrot.slane %v1413, 1
      %v1428 = vrot.slane %v1414, 1
      %v1429 = vrot.slane %v1415, 1
      %v1430 = vrot.slane %v1416, 1
      %v1438 = vadd.f32 %v1395, %v1424
      %v1439 = vadd.f32 %v1396, %v1425
      %v1440 = vadd.f32 %v1397, %v1426
      %v1441 = vadd.f32 %v1398, %v1427
      %v1442 = vadd.f32 %v1399, %v1428
      %v1443 = vadd.f32 %v1400, %v1429
      %v1444 = vadd.f32 %v1401, %v1430
      %v1445 = vld [vmem:[#allocation3 + $0x4] ss:$0 sm:$0xff]
      %v1446 = vld [vmem:[#allocation2] sm:$0xfc]
      %v1447 = vld [vmem:[#allocation2 + $0x28] sm:$0x1]
      %v1448 = vld [vmem:[#allocation2 + $0x50] sm:$0xfc]
      %v1449 = vld [vmem:[#allocation2 + $0x78] sm:$0x1]
      %v1450 = vld [vmem:[#allocation2 + $0xa0] sm:$0xfc]
      %v1451 = vld [vmem:[#allocation2 + $0xc8] sm:$0x1]
      %v1452 = vld [vmem:[#allocation2 + $0xf0] sm:$0xfc]
      %v1453 = vld [vmem:[#allocation2 + $0x118] sm:$0x1]
      %v1454 = vld [vmem:[#allocation2 + $0x140] sm:$0xfc]
      %v1455 = vld [vmem:[#allocation2 + $0x168] sm:$0x1]
      %v1456 = vld [vmem:[#allocation2 + $0x190] sm:$0xfc]
      %v1457 = vld [vmem:[#allocation2 + $0x1b8] sm:$0x1]
      %v1458 = vld [vmem:[#allocation2 + $0x1e0] sm:$0xfc]
      %v1459 = vld [vmem:[#allocation2 + $0x208] sm:$0x1]
      %v1460 = vmul.f32 %v1446, %v1445
      %v1461 = vmul.f32 %v1447, %v1445
      %v1462 = vmul.f32 %v1448, %v1445
      %v1463 = vmul.f32 %v1449, %v1445
      %v1464 = vmul.f32 %v1450, %v1445
      %v1465 = vmul.f32 %v1451, %v1445
      %v1466 = vmul.f32 %v1452, %v1445
      %v1467 = vmul.f32 %v1453, %v1445
      %v1468 = vmul.f32 %v1454, %v1445
      %v1469 = vmul.f32 %v1455, %v1445
      %v1470 = vmul.f32 %v1456, %v1445
      %v1471 = vmul.f32 %v1457, %v1445
      %v1472 = vmul.f32 %v1458, %v1445
      %v1473 = vmul.f32 %v1459, %v1445
      %vm1488 = vcmask 1045504
      %v1489 = vrot.slane %v1460, 2
      %v1490 = vrot.slane %v1461, 2
      %v1491 = vsel %vm1488, %v1489, %v1490
      %v1492 = vrot.slane %v1462, 2
      %v1493 = vrot.slane %v1463, 2
      %v1494 = vsel %vm1488, %v1492, %v1493
      %v1495 = vrot.slane %v1464, 2
      %v1496 = vrot.slane %v1465, 2
      %v1497 = vsel %vm1488, %v1495, %v1496
      %v1498 = vrot.slane %v1466, 2
      %v1499 = vrot.slane %v1467, 2
      %v1500 = vsel %vm1488, %v1498, %v1499
      %v1501 = vrot.slane %v1468, 2
      %v1502 = vrot.slane %v1469, 2
      %v1503 = vsel %vm1488, %v1501, %v1502
      %v1504 = vrot.slane %v1470, 2
      %v1505 = vrot.slane %v1471, 2
      %v1506 = vsel %vm1488, %v1504, %v1505
      %v1507 = vrot.slane %v1472, 2
      %v1508 = vrot.slane %v1473, 2
      %v1509 = vsel %vm1488, %v1507, %v1508
      %v1517 = vadd.f32 %v1438, %v1491
      %v1518 = vadd.f32 %v1439, %v1494
      %v1519 = vadd.f32 %v1440, %v1497
      %v1520 = vadd.f32 %v1441, %v1500
      %v1521 = vadd.f32 %v1442, %v1503
      %v1522 = vadd.f32 %v1443, %v1506
      %v1523 = vadd.f32 %v1444, %v1509
      %s1524 = scalar_lea.vmem [#allocation3], 40
      %v1525 = vld [vmem:[%s1524] ss:$0 sm:$0xff]
      %v1526 = vld [vmem:[%s743] sm:$0x7f]
      %v1527 = vld [vmem:[%s743 + $0x50] sm:$0x7f]
      %v1528 = vld [vmem:[%s743 + $0xa0] sm:$0x7f]
      %v1529 = vld [vmem:[%s743 + $0xf0] sm:$0x7f]
      %v1530 = vld [vmem:[%s743 + $0x140] sm:$0x7f]
      %v1531 = vld [vmem:[%s743 + $0x190] sm:$0x7f]
      %v1532 = vld [vmem:[%s743 + $0x1e0] sm:$0x7f]
      %v1533 = vmul.f32 %v1526, %v1525
      %v1534 = vmul.f32 %v1527, %v1525
      %v1535 = vmul.f32 %v1528, %v1525
      %v1536 = vmul.f32 %v1529, %v1525
      %v1537 = vmul.f32 %v1530, %v1525
      %v1538 = vmul.f32 %v1531, %v1525
      %v1539 = vmul.f32 %v1532, %v1525
      %v1540 = vadd.f32 %v1517, %v1533
      %v1541 = vadd.f32 %v1518, %v1534
      %v1542 = vadd.f32 %v1519, %v1535
      %v1543 = vadd.f32 %v1520, %v1536
      %v1544 = vadd.f32 %v1521, %v1537
      %v1545 = vadd.f32 %v1522, %v1538
      %v1546 = vadd.f32 %v1523, %v1539
      %v1547 = vld [vmem:[%s1524 + $0x1] ss:$0 sm:$0xff]
      %v1548 = vld [vmem:[%s1015] sm:$0x7f]
      %v1549 = vld [vmem:[%s1015 + $0x50] sm:$0x7f]
      %v1550 = vld [vmem:[%s1015 + $0xa0] sm:$0x7f]
      %v1551 = vld [vmem:[%s1015 + $0xf0] sm:$0x7f]
      %v1552 = vld [vmem:[%s1015 + $0x140] sm:$0x7f]
      %v1553 = vld [vmem:[%s1015 + $0x190] sm:$0x7f]
      %v1554 = vld [vmem:[%s1015 + $0x1e0] sm:$0x7f]
      %v1555 = vmul.f32 %v1548, %v1547
      %v1556 = vmul.f32 %v1549, %v1547
      %v1557 = vmul.f32 %v1550, %v1547
      %v1558 = vmul.f32 %v1551, %v1547
      %v1559 = vmul.f32 %v1552, %v1547
      %v1560 = vmul.f32 %v1553, %v1547
      %v1561 = vmul.f32 %v1554, %v1547
      %v1562 = vadd.f32 %v1540, %v1555
      %v1563 = vadd.f32 %v1541, %v1556
      %v1564 = vadd.f32 %v1542, %v1557
      %v1565 = vadd.f32 %v1543, %v1558
      %v1566 = vadd.f32 %v1544, %v1559
      %v1567 = vadd.f32 %v1545, %v1560
      %v1568 = vadd.f32 %v1546, %v1561
      %v1569 = vld [vmem:[%s1524 + $0x2] ss:$0 sm:$0xff]
      %v1570 = vld [vmem:[%s743] sm:$0xfe]
      %v1571 = vld [vmem:[%s743 + $0x50] sm:$0xfe]
      %v1572 = vld [vmem:[%s743 + $0xa0] sm:$0xfe]
      %v1573 = vld [vmem:[%s743 + $0xf0] sm:$0xfe]
      %v1574 = vld [vmem:[%s743 + $0x140] sm:$0xfe]
      %v1575 = vld [vmem:[%s743 + $0x190] sm:$0xfe]
      %v1576 = vld [vmem:[%s743 + $0x1e0] sm:$0xfe]
      %v1577 = vmul.f32 %v1570, %v1569
      %v1578 = vmul.f32 %v1571, %v1569
      %v1579 = vmul.f32 %v1572, %v1569
      %v1580 = vmul.f32 %v1573, %v1569
      %v1581 = vmul.f32 %v1574, %v1569
      %v1582 = vmul.f32 %v1575, %v1569
      %v1583 = vmul.f32 %v1576, %v1569
      %v1591 = vrot.slane %v1577, 1
      %v1592 = vrot.slane %v1578, 1
      %v1593 = vrot.slane %v1579, 1
      %v1594 = vrot.slane %v1580, 1
      %v1595 = vrot.slane %v1581, 1
      %v1596 = vrot.slane %v1582, 1
      %v1597 = vrot.slane %v1583, 1
      %v1605 = vadd.f32 %v1562, %v1591
      %v1606 = vadd.f32 %v1563, %v1592
      %v1607 = vadd.f32 %v1564, %v1593
      %v1608 = vadd.f32 %v1565, %v1594
      %v1609 = vadd.f32 %v1566, %v1595
      %v1610 = vadd.f32 %v1567, %v1596
      %v1611 = vadd.f32 %v1568, %v1597
      %v1612 = vld [vmem:[%s1524 + $0x3] ss:$0 sm:$0xff]
      %v1613 = vld [vmem:[%s1015] sm:$0xfe]
      %v1614 = vld [vmem:[%s1015 + $0x50] sm:$0xfe]
      %v1615 = vld [vmem:[%s1015 + $0xa0] sm:$0xfe]
      %v1616 = vld [vmem:[%s1015 + $0xf0] sm:$0xfe]
      %v1617 = vld [vmem:[%s1015 + $0x140] sm:$0xfe]
      %v1618 = vld [vmem:[%s1015 + $0x190] sm:$0xfe]
      %v1619 = vld [vmem:[%s1015 + $0x1e0] sm:$0xfe]
      %v1620 = vmul.f32 %v1613, %v1612
      %v1621 = vmul.f32 %v1614, %v1612
      %v1622 = vmul.f32 %v1615, %v1612
      %v1623 = vmul.f32 %v1616, %v1612
      %v1624 = vmul.f32 %v1617, %v1612
      %v1625 = vmul.f32 %v1618, %v1612
      %v1626 = vmul.f32 %v1619, %v1612
      %v1634 = vrot.slane %v1620, 1
      %v1635 = vrot.slane %v1621, 1
      %v1636 = vrot.slane %v1622, 1
      %v1637 = vrot.slane %v1623, 1
      %v1638 = vrot.slane %v1624, 1
      %v1639 = vrot.slane %v1625, 1
      %v1640 = vrot.slane %v1626, 1
      %v1648 = vadd.f32 %v1605, %v1634
      %v1649 = vadd.f32 %v1606, %v1635
      %v1650 = vadd.f32 %v1607, %v1636
      %v1651 = vadd.f32 %v1608, %v1637
      %v1652 = vadd.f32 %v1609, %v1638
      %v1653 = vadd.f32 %v1610, %v1639
      %v1654 = vadd.f32 %v1611, %v1640
      %v1655 = vld [vmem:[%s1524 + $0x4] ss:$0 sm:$0xff]
      %v1656 = vld [vmem:[%s743] sm:$0xfc]
      %v1657 = vld [vmem:[%s743 + $0x28] sm:$0x1]
      %v1658 = vld [vmem:[%s743 + $0x50] sm:$0xfc]
      %v1659 = vld [vmem:[%s743 + $0x78] sm:$0x1]
      %v1660 = vld [vmem:[%s743 + $0xa0] sm:$0xfc]
      %v1661 = vld [vmem:[%s743 + $0xc8] sm:$0x1]
      %v1662 = vld [vmem:[%s743 + $0xf0] sm:$0xfc]
      %v1663 = vld [vmem:[%s743 + $0x118] sm:$0x1]
      %v1664 = vld [vmem:[%s743 + $0x140] sm:$0xfc]
      %v1665 = vld [vmem:[%s743 + $0x168] sm:$0x1]
      %v1666 = vld [vmem:[%s743 + $0x190] sm:$0xfc]
      %v1667 = vld [vmem:[%s743 + $0x1b8] sm:$0x1]
      %v1668 = vld [vmem:[%s743 + $0x1e0] sm:$0xfc]
      %v1669 = vld [vmem:[%s743 + $0x208] sm:$0x1]
      %v1670 = vmul.f32 %v1656, %v1655
      %v1671 = vmul.f32 %v1657, %v1655
      %v1672 = vmul.f32 %v1658, %v1655
      %v1673 = vmul.f32 %v1659, %v1655
      %v1674 = vmul.f32 %v1660, %v1655
      %v1675 = vmul.f32 %v1661, %v1655
      %v1676 = vmul.f32 %v1662, %v1655
      %v1677 = vmul.f32 %v1663, %v1655
      %v1678 = vmul.f32 %v1664, %v1655
      %v1679 = vmul.f32 %v1665, %v1655
      %v1680 = vmul.f32 %v1666, %v1655
      %v1681 = vmul.f32 %v1667, %v1655
      %v1682 = vmul.f32 %v1668, %v1655
      %v1683 = vmul.f32 %v1669, %v1655
      %v1698 = vrot.slane %v1670, 2
      %v1699 = vrot.slane %v1671, 2
      %v1700 = vsel %vm1488, %v1698, %v1699
      %v1701 = vrot.slane %v1672, 2
      %v1702 = vrot.slane %v1673, 2
      %v1703 = vsel %vm1488, %v1701, %v1702
      %v1704 = vrot.slane %v1674, 2
      %v1705 = vrot.slane %v1675, 2
      %v1706 = vsel %vm1488, %v1704, %v1705
      %v1707 = vrot.slane %v1676, 2
      %v1708 = vrot.slane %v1677, 2
      %v1709 = vsel %vm1488, %v1707, %v1708
      %v1710 = vrot.slane %v1678, 2
      %v1711 = vrot.slane %v1679, 2
      %v1712 = vsel %vm1488, %v1710, %v1711
      %v1713 = vrot.slane %v1680, 2
      %v1714 = vrot.slane %v1681, 2
      %v1715 = vsel %vm1488, %v1713, %v1714
      %v1716 = vrot.slane %v1682, 2
      %v1717 = vrot.slane %v1683, 2
      %v1718 = vsel %vm1488, %v1716, %v1717
      %v1726 = vadd.f32 %v1648, %v1700
      %v1727 = vadd.f32 %v1649, %v1703
      %v1728 = vadd.f32 %v1650, %v1706
      %v1729 = vadd.f32 %v1651, %v1709
      %v1730 = vadd.f32 %v1652, %v1712
      %v1731 = vadd.f32 %v1653, %v1715
      %v1732 = vadd.f32 %v1654, %v1718
      %s1733 = scalar_lea.vmem [#allocation3], 80
      %v1734 = vld [vmem:[%s1733] ss:$0 sm:$0xff]
      %s1735 = scalar_lea.vmem [#allocation2], 80
      %v1736 = vld [vmem:[%s1735] sm:$0x7f]
      %v1737 = vld [vmem:[%s1735 + $0x50] sm:$0x7f]
      %v1738 = vld [vmem:[%s1735 + $0xa0] sm:$0x7f]
      %v1739 = vld [vmem:[%s1735 + $0xf0] sm:$0x7f]
      %v1740 = vld [vmem:[%s1735 + $0x140] sm:$0x7f]
      %v1741 = vld [vmem:[%s1735 + $0x190] sm:$0x7f]
      %v1742 = vld [vmem:[%s1735 + $0x1e0] sm:$0x7f]
      %v1743 = vmul.f32 %v1736, %v1734
      %v1744 = vmul.f32 %v1737, %v1734
      %v1745 = vmul.f32 %v1738, %v1734
      %v1746 = vmul.f32 %v1739, %v1734
      %v1747 = vmul.f32 %v1740, %v1734
      %v1748 = vmul.f32 %v1741, %v1734
      %v1749 = vmul.f32 %v1742, %v1734
      %v1750 = vadd.f32 %v1726, %v1743
      %v1751 = vadd.f32 %v1727, %v1744
      %v1752 = vadd.f32 %v1728, %v1745
      %v1753 = vadd.f32 %v1729, %v1746
      %v1754 = vadd.f32 %v1730, %v1747
      %v1755 = vadd.f32 %v1731, %v1748
      %v1756 = vadd.f32 %v1732, %v1749
      %v1757 = vld [vmem:[%s1733 + $0x1] ss:$0 sm:$0xff]
      %s1758 = scalar_lea.vmem [#allocation2], 800
      %v1759 = vld [vmem:[%s1758] sm:$0x7f]
      %v1760 = vld [vmem:[%s1758 + $0x50] sm:$0x7f]
      %v1761 = vld [vmem:[%s1758 + $0xa0] sm:$0x7f]
      %v1762 = vld [vmem:[%s1758 + $0xf0] sm:$0x7f]
      %v1763 = vld [vmem:[%s1758 + $0x140] sm:$0x7f]
      %v1764 = vld [vmem:[%s1758 + $0x190] sm:$0x7f]
      %v1765 = vld [vmem:[%s1758 + $0x1e0] sm:$0x7f]
      %v1766 = vmul.f32 %v1759, %v1757
      %v1767 = vmul.f32 %v1760, %v1757
      %v1768 = vmul.f32 %v1761, %v1757
      %v1769 = vmul.f32 %v1762, %v1757
      %v1770 = vmul.f32 %v1763, %v1757
      %v1771 = vmul.f32 %v1764, %v1757
      %v1772 = vmul.f32 %v1765, %v1757
      %v1773 = vadd.f32 %v1750, %v1766
      %v1774 = vadd.f32 %v1751, %v1767
      %v1775 = vadd.f32 %v1752, %v1768
      %v1776 = vadd.f32 %v1753, %v1769
      %v1777 = vadd.f32 %v1754, %v1770
      %v1778 = vadd.f32 %v1755, %v1771
      %v1779 = vadd.f32 %v1756, %v1772
      %v1780 = vld [vmem:[%s1733 + $0x2] ss:$0 sm:$0xff]
      %v1781 = vld [vmem:[%s1735] sm:$0xfe]
      %v1782 = vld [vmem:[%s1735 + $0x50] sm:$0xfe]
      %v1783 = vld [vmem:[%s1735 + $0xa0] sm:$0xfe]
      %v1784 = vld [vmem:[%s1735 + $0xf0] sm:$0xfe]
      %v1785 = vld [vmem:[%s1735 + $0x140] sm:$0xfe]
      %v1786 = vld [vmem:[%s1735 + $0x190] sm:$0xfe]
      %v1787 = vld [vmem:[%s1735 + $0x1e0] sm:$0xfe]
      %v1788 = vmul.f32 %v1781, %v1780
      %v1789 = vmul.f32 %v1782, %v1780
      %v1790 = vmul.f32 %v1783, %v1780
      %v1791 = vmul.f32 %v1784, %v1780
      %v1792 = vmul.f32 %v1785, %v1780
      %v1793 = vmul.f32 %v1786, %v1780
      %v1794 = vmul.f32 %v1787, %v1780
      %v1802 = vrot.slane %v1788, 1
      %v1803 = vrot.slane %v1789, 1
      %v1804 = vrot.slane %v1790, 1
      %v1805 = vrot.slane %v1791, 1
      %v1806 = vrot.slane %v1792, 1
      %v1807 = vrot.slane %v1793, 1
      %v1808 = vrot.slane %v1794, 1
      %v1816 = vadd.f32 %v1773, %v1802
      %v1817 = vadd.f32 %v1774, %v1803
      %v1818 = vadd.f32 %v1775, %v1804
      %v1819 = vadd.f32 %v1776, %v1805
      %v1820 = vadd.f32 %v1777, %v1806
      %v1821 = vadd.f32 %v1778, %v1807
      %v1822 = vadd.f32 %v1779, %v1808
      %v1823 = vld [vmem:[%s1733 + $0x3] ss:$0 sm:$0xff]
      %v1824 = vld [vmem:[%s1758] sm:$0xfe]
      %v1825 = vld [vmem:[%s1758 + $0x50] sm:$0xfe]
      %v1826 = vld [vmem:[%s1758 + $0xa0] sm:$0xfe]
      %v1827 = vld [vmem:[%s1758 + $0xf0] sm:$0xfe]
      %v1828 = vld [vmem:[%s1758 + $0x140] sm:$0xfe]
      %v1829 = vld [vmem:[%s1758 + $0x190] sm:$0xfe]
      %v1830 = vld [vmem:[%s1758 + $0x1e0] sm:$0xfe]
      %v1831 = vmul.f32 %v1824, %v1823
      %v1832 = vmul.f32 %v1825, %v1823
      %v1833 = vmul.f32 %v1826, %v1823
      %v1834 = vmul.f32 %v1827, %v1823
      %v1835 = vmul.f32 %v1828, %v1823
      %v1836 = vmul.f32 %v1829, %v1823
      %v1837 = vmul.f32 %v1830, %v1823
      %v1845 = vrot.slane %v1831, 1
      %v1846 = vrot.slane %v1832, 1
      %v1847 = vrot.slane %v1833, 1
      %v1848 = vrot.slane %v1834, 1
      %v1849 = vrot.slane %v1835, 1
      %v1850 = vrot.slane %v1836, 1
      %v1851 = vrot.slane %v1837, 1
      %v1859 = vadd.f32 %v1816, %v1845
      %v1860 = vadd.f32 %v1817, %v1846
      %v1861 = vadd.f32 %v1818, %v1847
      %v1862 = vadd.f32 %v1819, %v1848
      %v1863 = vadd.f32 %v1820, %v1849
      %v1864 = vadd.f32 %v1821, %v1850
      %v1865 = vadd.f32 %v1822, %v1851
      %v1866 = vld [vmem:[%s1733 + $0x4] ss:$0 sm:$0xff]
      %v1867 = vld [vmem:[%s1735] sm:$0xfc]
      %v1868 = vld [vmem:[%s1735 + $0x28] sm:$0x1]
      %v1869 = vld [vmem:[%s1735 + $0x50] sm:$0xfc]
      %v1870 = vld [vmem:[%s1735 + $0x78] sm:$0x1]
      %v1871 = vld [vmem:[%s1735 + $0xa0] sm:$0xfc]
      %v1872 = vld [vmem:[%s1735 + $0xc8] sm:$0x1]
      %v1873 = vld [vmem:[%s1735 + $0xf0] sm:$0xfc]
      %v1874 = vld [vmem:[%s1735 + $0x118] sm:$0x1]
      %v1875 = vld [vmem:[%s1735 + $0x140] sm:$0xfc]
      %v1876 = vld [vmem:[%s1735 + $0x168] sm:$0x1]
      %v1877 = vld [vmem:[%s1735 + $0x190] sm:$0xfc]
      %v1878 = vld [vmem:[%s1735 + $0x1b8] sm:$0x1]
      %v1879 = vld [vmem:[%s1735 + $0x1e0] sm:$0xfc]
      %v1880 = vld [vmem:[%s1735 + $0x208] sm:$0x1]
      %v1881 = vmul.f32 %v1867, %v1866
      %v1882 = vmul.f32 %v1868, %v1866
      %v1883 = vmul.f32 %v1869, %v1866
      %v1884 = vmul.f32 %v1870, %v1866
      %v1885 = vmul.f32 %v1871, %v1866
      %v1886 = vmul.f32 %v1872, %v1866
      %v1887 = vmul.f32 %v1873, %v1866
      %v1888 = vmul.f32 %v1874, %v1866
      %v1889 = vmul.f32 %v1875, %v1866
      %v1890 = vmul.f32 %v1876, %v1866
      %v1891 = vmul.f32 %v1877, %v1866
      %v1892 = vmul.f32 %v1878, %v1866
      %v1893 = vmul.f32 %v1879, %v1866
      %v1894 = vmul.f32 %v1880, %v1866
      %v1909 = vrot.slane %v1881, 2
      %v1910 = vrot.slane %v1882, 2
      %v1911 = vsel %vm1488, %v1909, %v1910
      %v1912 = vrot.slane %v1883, 2
      %v1913 = vrot.slane %v1884, 2
      %v1914 = vsel %vm1488, %v1912, %v1913
      %v1915 = vrot.slane %v1885, 2
      %v1916 = vrot.slane %v1886, 2
      %v1917 = vsel %vm1488, %v1915, %v1916
      %v1918 = vrot.slane %v1887, 2
      %v1919 = vrot.slane %v1888, 2
      %v1920 = vsel %vm1488, %v1918, %v1919
      %v1921 = vrot.slane %v1889, 2
      %v1922 = vrot.slane %v1890, 2
      %v1923 = vsel %vm1488, %v1921, %v1922
      %v1924 = vrot.slane %v1891, 2
      %v1925 = vrot.slane %v1892, 2
      %v1926 = vsel %vm1488, %v1924, %v1925
      %v1927 = vrot.slane %v1893, 2
      %v1928 = vrot.slane %v1894, 2
      %v1929 = vsel %vm1488, %v1927, %v1928
      %v1937 = vadd.f32 %v1859, %v1911
      %v1938 = vadd.f32 %v1860, %v1914
      %v1939 = vadd.f32 %v1861, %v1917
      %v1940 = vadd.f32 %v1862, %v1920
      %v1941 = vadd.f32 %v1863, %v1923
      %v1942 = vadd.f32 %v1864, %v1926
      %v1943 = vadd.f32 %v1865, %v1929
      %s1944 = scalar_lea.vmem [#allocation3], 120
      %v1945 = vld [vmem:[%s1944] ss:$0 sm:$0xff]
      %s1946 = scalar_lea.vmem [#allocation2], 1520
      %v1947 = vld [vmem:[%s1946] sm:$0x7f]
      %v1948 = vld [vmem:[%s1946 + $0x50] sm:$0x7f]
      %v1949 = vld [vmem:[%s1946 + $0xa0] sm:$0x7f]
      %v1950 = vld [vmem:[%s1946 + $0xf0] sm:$0x7f]
      %v1951 = vld [vmem:[%s1946 + $0x140] sm:$0x7f]
      %v1952 = vld [vmem:[%s1946 + $0x190] sm:$0x7f]
      %v1953 = vld [vmem:[%s1946 + $0x1e0] sm:$0x7f]
      %v1954 = vmul.f32 %v1947, %v1945
      %v1955 = vmul.f32 %v1948, %v1945
      %v1956 = vmul.f32 %v1949, %v1945
      %v1957 = vmul.f32 %v1950, %v1945
      %v1958 = vmul.f32 %v1951, %v1945
      %v1959 = vmul.f32 %v1952, %v1945
      %v1960 = vmul.f32 %v1953, %v1945
      %v1961 = vadd.f32 %v1937, %v1954
      %v1962 = vadd.f32 %v1938, %v1955
      %v1963 = vadd.f32 %v1939, %v1956
      %v1964 = vadd.f32 %v1940, %v1957
      %v1965 = vadd.f32 %v1941, %v1958
      %v1966 = vadd.f32 %v1942, %v1959
      %v1967 = vadd.f32 %v1943, %v1960
      %v1968 = vld [vmem:[%s1944 + $0x1] ss:$0 sm:$0xff]
      %s1969 = scalar_lea.vmem [#allocation2], 2240
      %v1970 = vld [vmem:[%s1969] sm:$0x7f]
      %v1971 = vld [vmem:[%s1969 + $0x50] sm:$0x7f]
      %v1972 = vld [vmem:[%s1969 + $0xa0] sm:$0x7f]
      %v1973 = vld [vmem:[%s1969 + $0xf0] sm:$0x7f]
      %v1974 = vld [vmem:[%s1969 + $0x140] sm:$0x7f]
      %v1975 = vld [vmem:[%s1969 + $0x190] sm:$0x7f]
      %v1976 = vld [vmem:[%s1969 + $0x1e0] sm:$0x7f]
      %v1977 = vmul.f32 %v1970, %v1968
      %v1978 = vmul.f32 %v1971, %v1968
      %v1979 = vmul.f32 %v1972, %v1968
      %v1980 = vmul.f32 %v1973, %v1968
      %v1981 = vmul.f32 %v1974, %v1968
      %v1982 = vmul.f32 %v1975, %v1968
      %v1983 = vmul.f32 %v1976, %v1968
      %v1984 = vadd.f32 %v1961, %v1977
      %v1985 = vadd.f32 %v1962, %v1978
      %v1986 = vadd.f32 %v1963, %v1979
      %v1987 = vadd.f32 %v1964, %v1980
      %v1988 = vadd.f32 %v1965, %v1981
      %v1989 = vadd.f32 %v1966, %v1982
      %v1990 = vadd.f32 %v1967, %v1983
      %v1991 = vld [vmem:[%s1944 + $0x2] ss:$0 sm:$0xff]
      %v1992 = vld [vmem:[%s1946] sm:$0xfe]
      %v1993 = vld [vmem:[%s1946 + $0x50] sm:$0xfe]
      %v1994 = vld [vmem:[%s1946 + $0xa0] sm:$0xfe]
      %v1995 = vld [vmem:[%s1946 + $0xf0] sm:$0xfe]
      %v1996 = vld [vmem:[%s1946 + $0x140] sm:$0xfe]
      %v1997 = vld [vmem:[%s1946 + $0x190] sm:$0xfe]
      %v1998 = vld [vmem:[%s1946 + $0x1e0] sm:$0xfe]
      %v1999 = vmul.f32 %v1992, %v1991
      %v2000 = vmul.f32 %v1993, %v1991
      %v2001 = vmul.f32 %v1994, %v1991
      %v2002 = vmul.f32 %v1995, %v1991
      %v2003 = vmul.f32 %v1996, %v1991
      %v2004 = vmul.f32 %v1997, %v1991
      %v2005 = vmul.f32 %v1998, %v1991
      %v2013 = vrot.slane %v1999, 1
      %v2014 = vrot.slane %v2000, 1
      %v2015 = vrot.slane %v2001, 1
      %v2016 = vrot.slane %v2002, 1
      %v2017 = vrot.slane %v2003, 1
      %v2018 = vrot.slane %v2004, 1
      %v2019 = vrot.slane %v2005, 1
      %v2027 = vadd.f32 %v1984, %v2013
      %v2028 = vadd.f32 %v1985, %v2014
      %v2029 = vadd.f32 %v1986, %v2015
      %v2030 = vadd.f32 %v1987, %v2016
      %v2031 = vadd.f32 %v1988, %v2017
      %v2032 = vadd.f32 %v1989, %v2018
      %v2033 = vadd.f32 %v1990, %v2019
      %v2034 = vld [vmem:[%s1944 + $0x3] ss:$0 sm:$0xff]
      %v2035 = vld [vmem:[%s1969] sm:$0xfe]
      %v2036 = vld [vmem:[%s1969 + $0x50] sm:$0xfe]
      %v2037 = vld [vmem:[%s1969 + $0xa0] sm:$0xfe]
      %v2038 = vld [vmem:[%s1969 + $0xf0] sm:$0xfe]
      %v2039 = vld [vmem:[%s1969 + $0x140] sm:$0xfe]
      %v2040 = vld [vmem:[%s1969 + $0x190] sm:$0xfe]
      %v2041 = vld [vmem:[%s1969 + $0x1e0] sm:$0xfe]
      %v2042 = vmul.f32 %v2035, %v2034
      %v2043 = vmul.f32 %v2036, %v2034
      %v2044 = vmul.f32 %v2037, %v2034
      %v2045 = vmul.f32 %v2038, %v2034
      %v2046 = vmul.f32 %v2039, %v2034
      %v2047 = vmul.f32 %v2040, %v2034
      %v2048 = vmul.f32 %v2041, %v2034
      %v2056 = vrot.slane %v2042, 1
      %v2057 = vrot.slane %v2043, 1
      %v2058 = vrot.slane %v2044, 1
      %v2059 = vrot.slane %v2045, 1
      %v2060 = vrot.slane %v2046, 1
      %v2061 = vrot.slane %v2047, 1
      %v2062 = vrot.slane %v2048, 1
      %v2070 = vadd.f32 %v2027, %v2056
      %v2071 = vadd.f32 %v2028, %v2057
      %v2072 = vadd.f32 %v2029, %v2058
      %v2073 = vadd.f32 %v2030, %v2059
      %v2074 = vadd.f32 %v2031, %v2060
      %v2075 = vadd.f32 %v2032, %v2061
      %v2076 = vadd.f32 %v2033, %v2062
      %v2077 = vld [vmem:[%s1944 + $0x4] ss:$0 sm:$0xff]
      %v2078 = vld [vmem:[%s1946] sm:$0xfc]
      %v2079 = vld [vmem:[%s1946 + $0x28] sm:$0x1]
      %v2080 = vld [vmem:[%s1946 + $0x50] sm:$0xfc]
      %v2081 = vld [vmem:[%s1946 + $0x78] sm:$0x1]
      %v2082 = vld [vmem:[%s1946 + $0xa0] sm:$0xfc]
      %v2083 = vld [vmem:[%s1946 + $0xc8] sm:$0x1]
      %v2084 = vld [vmem:[%s1946 + $0xf0] sm:$0xfc]
      %v2085 = vld [vmem:[%s1946 + $0x118] sm:$0x1]
      %v2086 = vld [vmem:[%s1946 + $0x140] sm:$0xfc]
      %v2087 = vld [vmem:[%s1946 + $0x168] sm:$0x1]
      %v2088 = vld [vmem:[%s1946 + $0x190] sm:$0xfc]
      %v2089 = vld [vmem:[%s1946 + $0x1b8] sm:$0x1]
      %v2090 = vld [vmem:[%s1946 + $0x1e0] sm:$0xfc]
      %v2091 = vld [vmem:[%s1946 + $0x208] sm:$0x1]
      %v2092 = vmul.f32 %v2078, %v2077
      %v2093 = vmul.f32 %v2079, %v2077
      %v2094 = vmul.f32 %v2080, %v2077
      %v2095 = vmul.f32 %v2081, %v2077
      %v2096 = vmul.f32 %v2082, %v2077
      %v2097 = vmul.f32 %v2083, %v2077
      %v2098 = vmul.f32 %v2084, %v2077
      %v2099 = vmul.f32 %v2085, %v2077
      %v2100 = vmul.f32 %v2086, %v2077
      %v2101 = vmul.f32 %v2087, %v2077
      %v2102 = vmul.f32 %v2088, %v2077
      %v2103 = vmul.f32 %v2089, %v2077
      %v2104 = vmul.f32 %v2090, %v2077
      %v2105 = vmul.f32 %v2091, %v2077
      %v2120 = vrot.slane %v2092, 2
      %v2121 = vrot.slane %v2093, 2
      %v2122 = vsel %vm1488, %v2120, %v2121
      %v2123 = vrot.slane %v2094, 2
      %v2124 = vrot.slane %v2095, 2
      %v2125 = vsel %vm1488, %v2123, %v2124
      %v2126 = vrot.slane %v2096, 2
      %v2127 = vrot.slane %v2097, 2
      %v2128 = vsel %vm1488, %v2126, %v2127
      %v2129 = vrot.slane %v2098, 2
      %v2130 = vrot.slane %v2099, 2
      %v2131 = vsel %vm1488, %v2129, %v2130
      %v2132 = vrot.slane %v2100, 2
      %v2133 = vrot.slane %v2101, 2
      %v2134 = vsel %vm1488, %v2132, %v2133
      %v2135 = vrot.slane %v2102, 2
      %v2136 = vrot.slane %v2103, 2
      %v2137 = vsel %vm1488, %v2135, %v2136
      %v2138 = vrot.slane %v2104, 2
      %v2139 = vrot.slane %v2105, 2
      %v2140 = vsel %vm1488, %v2138, %v2139
      %v2148 = vadd.f32 %v2070, %v2122
      %v2149 = vadd.f32 %v2071, %v2125
      %v2150 = vadd.f32 %v2072, %v2128
      %v2151 = vadd.f32 %v2073, %v2131
      %v2152 = vadd.f32 %v2074, %v2134
      %v2153 = vadd.f32 %v2075, %v2137
      %v2154 = vadd.f32 %v2076, %v2140
      %s2155 = scalar_lea.vmem [#allocation3], 160
      %v2156 = vld [vmem:[%s2155] ss:$0 sm:$0xff]
      %s2157 = scalar_lea.vmem [#allocation2], 160
      %v2158 = vld [vmem:[%s2157] sm:$0x7f]
      %v2159 = vld [vmem:[%s2157 + $0x50] sm:$0x7f]
      %v2160 = vld [vmem:[%s2157 + $0xa0] sm:$0x7f]
      %v2161 = vld [vmem:[%s2157 + $0xf0] sm:$0x7f]
      %v2162 = vld [vmem:[%s2157 + $0x140] sm:$0x7f]
      %v2163 = vld [vmem:[%s2157 + $0x190] sm:$0x7f]
      %v2164 = vld [vmem:[%s2157 + $0x1e0] sm:$0x7f]
      %v2165 = vmul.f32 %v2158, %v2156
      %v2166 = vmul.f32 %v2159, %v2156
      %v2167 = vmul.f32 %v2160, %v2156
      %v2168 = vmul.f32 %v2161, %v2156
      %v2169 = vmul.f32 %v2162, %v2156
      %v2170 = vmul.f32 %v2163, %v2156
      %v2171 = vmul.f32 %v2164, %v2156
      %v2172 = vadd.f32 %v2148, %v2165
      %v2173 = vadd.f32 %v2149, %v2166
      %v2174 = vadd.f32 %v2150, %v2167
      %v2175 = vadd.f32 %v2151, %v2168
      %v2176 = vadd.f32 %v2152, %v2169
      %v2177 = vadd.f32 %v2153, %v2170
      %v2178 = vadd.f32 %v2154, %v2171
      %v2179 = vld [vmem:[%s2155 + $0x1] ss:$0 sm:$0xff]
      %s2180 = scalar_lea.vmem [#allocation2], 880
      %v2181 = vld [vmem:[%s2180] sm:$0x7f]
      %v2182 = vld [vmem:[%s2180 + $0x50] sm:$0x7f]
      %v2183 = vld [vmem:[%s2180 + $0xa0] sm:$0x7f]
      %v2184 = vld [vmem:[%s2180 + $0xf0] sm:$0x7f]
      %v2185 = vld [vmem:[%s2180 + $0x140] sm:$0x7f]
      %v2186 = vld [vmem:[%s2180 + $0x190] sm:$0x7f]
      %v2187 = vld [vmem:[%s2180 + $0x1e0] sm:$0x7f]
      %v2188 = vmul.f32 %v2181, %v2179
      %v2189 = vmul.f32 %v2182, %v2179
      %v2190 = vmul.f32 %v2183, %v2179
      %v2191 = vmul.f32 %v2184, %v2179
      %v2192 = vmul.f32 %v2185, %v2179
      %v2193 = vmul.f32 %v2186, %v2179
      %v2194 = vmul.f32 %v2187, %v2179
      %v2195 = vadd.f32 %v2172, %v2188
      %v2196 = vadd.f32 %v2173, %v2189
      %v2197 = vadd.f32 %v2174, %v2190
      %v2198 = vadd.f32 %v2175, %v2191
      %v2199 = vadd.f32 %v2176, %v2192
      %v2200 = vadd.f32 %v2177, %v2193
      %v2201 = vadd.f32 %v2178, %v2194
      %v2202 = vld [vmem:[%s2155 + $0x2] ss:$0 sm:$0xff]
      %v2203 = vld [vmem:[%s2157] sm:$0xfe]
      %v2204 = vld [vmem:[%s2157 + $0x50] sm:$0xfe]
      %v2205 = vld [vmem:[%s2157 + $0xa0] sm:$0xfe]
      %v2206 = vld [vmem:[%s2157 + $0xf0] sm:$0xfe]
      %v2207 = vld [vmem:[%s2157 + $0x140] sm:$0xfe]
      %v2208 = vld [vmem:[%s2157 + $0x190] sm:$0xfe]
      %v2209 = vld [vmem:[%s2157 + $0x1e0] sm:$0xfe]
      %v2210 = vmul.f32 %v2203, %v2202
      %v2211 = vmul.f32 %v2204, %v2202
      %v2212 = vmul.f32 %v2205, %v2202
      %v2213 = vmul.f32 %v2206, %v2202
      %v2214 = vmul.f32 %v2207, %v2202
      %v2215 = vmul.f32 %v2208, %v2202
      %v2216 = vmul.f32 %v2209, %v2202
      %v2224 = vrot.slane %v2210, 1
      %v2225 = vrot.slane %v2211, 1
      %v2226 = vrot.slane %v2212, 1
      %v2227 = vrot.slane %v2213, 1
      %v2228 = vrot.slane %v2214, 1
      %v2229 = vrot.slane %v2215, 1
      %v2230 = vrot.slane %v2216, 1
      %v2238 = vadd.f32 %v2195, %v2224
      %v2239 = vadd.f32 %v2196, %v2225
      %v2240 = vadd.f32 %v2197, %v2226
      %v2241 = vadd.f32 %v2198, %v2227
      %v2242 = vadd.f32 %v2199, %v2228
      %v2243 = vadd.f32 %v2200, %v2229
      %v2244 = vadd.f32 %v2201, %v2230
      %v2245 = vld [vmem:[%s2155 + $0x3] ss:$0 sm:$0xff]
      %v2246 = vld [vmem:[%s2180] sm:$0xfe]
      %v2247 = vld [vmem:[%s2180 + $0x50] sm:$0xfe]
      %v2248 = vld [vmem:[%s2180 + $0xa0] sm:$0xfe]
      %v2249 = vld [vmem:[%s2180 + $0xf0] sm:$0xfe]
      %v2250 = vld [vmem:[%s2180 + $0x140] sm:$0xfe]
      %v2251 = vld [vmem:[%s2180 + $0x190] sm:$0xfe]
      %v2252 = vld [vmem:[%s2180 + $0x1e0] sm:$0xfe]
      %v2253 = vmul.f32 %v2246, %v2245
      %v2254 = vmul.f32 %v2247, %v2245
      %v2255 = vmul.f32 %v2248, %v2245
      %v2256 = vmul.f32 %v2249, %v2245
      %v2257 = vmul.f32 %v2250, %v2245
      %v2258 = vmul.f32 %v2251, %v2245
      %v2259 = vmul.f32 %v2252, %v2245
      %v2267 = vrot.slane %v2253, 1
      %v2268 = vrot.slane %v2254, 1
      %v2269 = vrot.slane %v2255, 1
      %v2270 = vrot.slane %v2256, 1
      %v2271 = vrot.slane %v2257, 1
      %v2272 = vrot.slane %v2258, 1
      %v2273 = vrot.slane %v2259, 1
      %v2281 = vadd.f32 %v2238, %v2267
      %v2282 = vadd.f32 %v2239, %v2268
      %v2283 = vadd.f32 %v2240, %v2269
      %v2284 = vadd.f32 %v2241, %v2270
      %v2285 = vadd.f32 %v2242, %v2271
      %v2286 = vadd.f32 %v2243, %v2272
      %v2287 = vadd.f32 %v2244, %v2273
      %v2288 = vld [vmem:[%s2155 + $0x4] ss:$0 sm:$0xff]
      %v2289 = vld [vmem:[%s2157] sm:$0xfc]
      %v2290 = vld [vmem:[%s2157 + $0x28] sm:$0x1]
      %v2291 = vld [vmem:[%s2157 + $0x50] sm:$0xfc]
      %v2292 = vld [vmem:[%s2157 + $0x78] sm:$0x1]
      %v2293 = vld [vmem:[%s2157 + $0xa0] sm:$0xfc]
      %v2294 = vld [vmem:[%s2157 + $0xc8] sm:$0x1]
      %v2295 = vld [vmem:[%s2157 + $0xf0] sm:$0xfc]
      %v2296 = vld [vmem:[%s2157 + $0x118] sm:$0x1]
      %v2297 = vld [vmem:[%s2157 + $0x140] sm:$0xfc]
      %v2298 = vld [vmem:[%s2157 + $0x168] sm:$0x1]
      %v2299 = vld [vmem:[%s2157 + $0x190] sm:$0xfc]
      %v2300 = vld [vmem:[%s2157 + $0x1b8] sm:$0x1]
      %v2301 = vld [vmem:[%s2157 + $0x1e0] sm:$0xfc]
      %v2302 = vld [vmem:[%s2157 + $0x208] sm:$0x1]
      %v2303 = vmul.f32 %v2289, %v2288
      %v2304 = vmul.f32 %v2290, %v2288
      %v2305 = vmul.f32 %v2291, %v2288
      %v2306 = vmul.f32 %v2292, %v2288
      %v2307 = vmul.f32 %v2293, %v2288
      %v2308 = vmul.f32 %v2294, %v2288
      %v2309 = vmul.f32 %v2295, %v2288
      %v2310 = vmul.f32 %v2296, %v2288
      %v2311 = vmul.f32 %v2297, %v2288
      %v2312 = vmul.f32 %v2298, %v2288
      %v2313 = vmul.f32 %v2299, %v2288
      %v2314 = vmul.f32 %v2300, %v2288
      %v2315 = vmul.f32 %v2301, %v2288
      %v2316 = vmul.f32 %v2302, %v2288
      %v2331 = vrot.slane %v2303, 2
      %v2332 = vrot.slane %v2304, 2
      %v2333 = vsel %vm1488, %v2331, %v2332
      %v2334 = vrot.slane %v2305, 2
      %v2335 = vrot.slane %v2306, 2
      %v2336 = vsel %vm1488, %v2334, %v2335
      %v2337 = vrot.slane %v2307, 2
      %v2338 = vrot.slane %v2308, 2
      %v2339 = vsel %vm1488, %v2337, %v2338
      %v2340 = vrot.slane %v2309, 2
      %v2341 = vrot.slane %v2310, 2
      %v2342 = vsel %vm1488, %v2340, %v2341
      %v2343 = vrot.slane %v2311, 2
      %v2344 = vrot.slane %v2312, 2
      %v2345 = vsel %vm1488, %v2343, %v2344
      %v2346 = vrot.slane %v2313, 2
      %v2347 = vrot.slane %v2314, 2
      %v2348 = vsel %vm1488, %v2346, %v2347
      %v2349 = vrot.slane %v2315, 2
      %v2350 = vrot.slane %v2316, 2
      %v2351 = vsel %vm1488, %v2349, %v2350
      %v2359 = vadd.f32 %v2281, %v2333
      %v2360 = vadd.f32 %v2282, %v2336
      %v2361 = vadd.f32 %v2283, %v2339
      %v2362 = vadd.f32 %v2284, %v2342
      %v2363 = vadd.f32 %v2285, %v2345
      %v2364 = vadd.f32 %v2286, %v2348
      %v2365 = vadd.f32 %v2287, %v2351
      %v2366 = vpack.c.bf16 %v2359, %v2359
      %v2367 = vpack.c.bf16 %v2360, %v2360
      %v2368 = vpack.c.bf16 %v2361, %v2361
      %v2369 = vpack.c.bf16 %v2362, %v2362
      %v2370 = vpack.c.bf16 %v2363, %v2363
      %v2371 = vpack.c.bf16 %v2364, %v2364
      %v2372 = vpack.c.bf16 %v2365, %v2365
      %vm2373 = vcmask 1043456
      %vm2374 = vsmask.f32 3328
      %vm2375 = vmand %vm2373, %vm2374
      %v2376 = vld [vmem:[%s163] sm:$0xf]
      %v2377 = vsel %vm2375, %v2366, %v2376
      %2378 = vst [vmem:[%s163] sm:$0xf] %v2377
      %v2379 = vld [vmem:[%s163 + $0x14] sm:$0xf]
      %v2380 = vsel %vm2375, %v2367, %v2379
      %2381 = vst [vmem:[%s163 + $0x14] sm:$0xf] %v2380
      %v2382 = vld [vmem:[%s163 + $0x28] sm:$0xf]
      %v2383 = vsel %vm2375, %v2368, %v2382
      %2384 = vst [vmem:[%s163 + $0x28] sm:$0xf] %v2383
      %v2385 = vld [vmem:[%s163 + $0x3c] sm:$0xf]
      %v2386 = vsel %vm2375, %v2369, %v2385
      %2387 = vst [vmem:[%s163 + $0x3c] sm:$0xf] %v2386
      %v2388 = vld [vmem:[%s163 + $0x50] sm:$0xf]
      %v2389 = vsel %vm2375, %v2370, %v2388
      %2390 = vst [vmem:[%s163 + $0x50] sm:$0xf] %v2389
      %v2391 = vld [vmem:[%s163 + $0x64] sm:$0xf]
      %v2392 = vsel %vm2375, %v2371, %v2391
      %2393 = vst [vmem:[%s163 + $0x64] sm:$0xf] %v2392
      %v2394 = vld [vmem:[%s163 + $0x78] sm:$0xf]
      %v2395 = vsel %vm2375, %v2372, %v2394
      %2396 = vst [vmem:[%s163 + $0x78] sm:$0xf] %v2395
      %v2397 = vld [vmem:[#allocation3 + $0x8] ss:$0 sm:$0xff]
      %v2398 = vld [vmem:[#allocation2 + $0x8] sm:$0x7f]
      %v2399 = vld [vmem:[#allocation2 + $0x58] sm:$0x7f]
      %v2400 = vld [vmem:[#allocation2 + $0xa8] sm:$0x7f]
      %v2401 = vld [vmem:[#allocation2 + $0xf8] sm:$0x7f]
      %v2402 = vld [vmem:[#allocation2 + $0x148] sm:$0x7f]
      %v2403 = vld [vmem:[#allocation2 + $0x198] sm:$0x7f]
      %v2404 = vld [vmem:[#allocation2 + $0x1e8] sm:$0x7f]
      %v2405 = vmul.f32 %v2398, %v2397
      %v2406 = vmul.f32 %v2399, %v2397
      %v2407 = vmul.f32 %v2400, %v2397
      %v2408 = vmul.f32 %v2401, %v2397
      %v2409 = vmul.f32 %v2402, %v2397
      %v2410 = vmul.f32 %v2403, %v2397
      %v2411 = vmul.f32 %v2404, %v2397
      %v2412 = vadd.f32 %v2405, 0.0
      %v2413 = vadd.f32 %v2406, 0.0
      %v2414 = vadd.f32 %v2407, 0.0
      %v2415 = vadd.f32 %v2408, 0.0
      %v2416 = vadd.f32 %v2409, 0.0
      %v2417 = vadd.f32 %v2410, 0.0
      %v2418 = vadd.f32 %v2411, 0.0
      %v2419 = vld [vmem:[#allocation3 + $0x9] ss:$0 sm:$0xff]
      %v2420 = vld [vmem:[%s471 + $0x8] sm:$0x7f]
      %v2421 = vld [vmem:[%s471 + $0x58] sm:$0x7f]
      %v2422 = vld [vmem:[%s471 + $0xa8] sm:$0x7f]
      %v2423 = vld [vmem:[%s471 + $0xf8] sm:$0x7f]
      %v2424 = vld [vmem:[%s471 + $0x148] sm:$0x7f]
      %v2425 = vld [vmem:[%s471 + $0x198] sm:$0x7f]
      %v2426 = vld [vmem:[%s471 + $0x1e8] sm:$0x7f]
      %v2427 = vmul.f32 %v2420, %v2419
      %v2428 = vmul.f32 %v2421, %v2419
      %v2429 = vmul.f32 %v2422, %v2419
      %v2430 = vmul.f32 %v2423, %v2419
      %v2431 = vmul.f32 %v2424, %v2419
      %v2432 = vmul.f32 %v2425, %v2419
      %v2433 = vmul.f32 %v2426, %v2419
      %v2434 = vadd.f32 %v2412, %v2427
      %v2435 = vadd.f32 %v2413, %v2428
      %v2436 = vadd.f32 %v2414, %v2429
      %v2437 = vadd.f32 %v2415, %v2430
      %v2438 = vadd.f32 %v2416, %v2431
      %v2439 = vadd.f32 %v2417, %v2432
      %v2440 = vadd.f32 %v2418, %v2433
      %v2441 = vld [vmem:[#allocation3 + $0xa] ss:$0 sm:$0xff]
      %v2442 = vld [vmem:[#allocation2 + $0x8] sm:$0xfe]
      %v2443 = vld [vmem:[#allocation2 + $0x58] sm:$0xfe]
      %v2444 = vld [vmem:[#allocation2 + $0xa8] sm:$0xfe]
      %v2445 = vld [vmem:[#allocation2 + $0xf8] sm:$0xfe]
      %v2446 = vld [vmem:[#allocation2 + $0x148] sm:$0xfe]
      %v2447 = vld [vmem:[#allocation2 + $0x198] sm:$0xfe]
      %v2448 = vld [vmem:[#allocation2 + $0x1e8] sm:$0xfe]
      %v2449 = vmul.f32 %v2442, %v2441
      %v2450 = vmul.f32 %v2443, %v2441
      %v2451 = vmul.f32 %v2444, %v2441
      %v2452 = vmul.f32 %v2445, %v2441
      %v2453 = vmul.f32 %v2446, %v2441
      %v2454 = vmul.f32 %v2447, %v2441
      %v2455 = vmul.f32 %v2448, %v2441
      %v2463 = vrot.slane %v2449, 1
      %v2464 = vrot.slane %v2450, 1
      %v2465 = vrot.slane %v2451, 1
      %v2466 = vrot.slane %v2452, 1
      %v2467 = vrot.slane %v2453, 1
      %v2468 = vrot.slane %v2454, 1
      %v2469 = vrot.slane %v2455, 1
      %v2477 = vadd.f32 %v2434, %v2463
      %v2478 = vadd.f32 %v2435, %v2464
      %v2479 = vadd.f32 %v2436, %v2465
      %v2480 = vadd.f32 %v2437, %v2466
      %v2481 = vadd.f32 %v2438, %v2467
      %v2482 = vadd.f32 %v2439, %v2468
      %v2483 = vadd.f32 %v2440, %v2469
      %v2484 = vld [vmem:[#allocation3 + $0xb] ss:$0 sm:$0xff]
      %v2485 = vld [vmem:[%s471 + $0x8] sm:$0xfe]
      %v2486 = vld [vmem:[%s471 + $0x58] sm:$0xfe]
      %v2487 = vld [vmem:[%s471 + $0xa8] sm:$0xfe]
      %v2488 = vld [vmem:[%s471 + $0xf8] sm:$0xfe]
      %v2489 = vld [vmem:[%s471 + $0x148] sm:$0xfe]
      %v2490 = vld [vmem:[%s471 + $0x198] sm:$0xfe]
      %v2491 = vld [vmem:[%s471 + $0x1e8] sm:$0xfe]
      %v2492 = vmul.f32 %v2485, %v2484
      %v2493 = vmul.f32 %v2486, %v2484
      %v2494 = vmul.f32 %v2487, %v2484
      %v2495 = vmul.f32 %v2488, %v2484
      %v2496 = vmul.f32 %v2489, %v2484
      %v2497 = vmul.f32 %v2490, %v2484
      %v2498 = vmul.f32 %v2491, %v2484
      %v2506 = vrot.slane %v2492, 1
      %v2507 = vrot.slane %v2493, 1
      %v2508 = vrot.slane %v2494, 1
      %v2509 = vrot.slane %v2495, 1
      %v2510 = vrot.slane %v2496, 1
      %v2511 = vrot.slane %v2497, 1
      %v2512 = vrot.slane %v2498, 1
      %v2520 = vadd.f32 %v2477, %v2506
      %v2521 = vadd.f32 %v2478, %v2507
      %v2522 = vadd.f32 %v2479, %v2508
      %v2523 = vadd.f32 %v2480, %v2509
      %v2524 = vadd.f32 %v2481, %v2510
      %v2525 = vadd.f32 %v2482, %v2511
      %v2526 = vadd.f32 %v2483, %v2512
      %v2527 = vld [vmem:[#allocation3 + $0xc] ss:$0 sm:$0xff]
      %v2528 = vld [vmem:[#allocation2 + $0x8] sm:$0xfc]
      %v2529 = vld [vmem:[#allocation2 + $0x30] sm:$0x1]
      %v2530 = vld [vmem:[#allocation2 + $0x58] sm:$0xfc]
      %v2531 = vld [vmem:[#allocation2 + $0x80] sm:$0x1]
      %v2532 = vld [vmem:[#allocation2 + $0xa8] sm:$0xfc]
      %v2533 = vld [vmem:[#allocation2 + $0xd0] sm:$0x1]
      %v2534 = vld [vmem:[#allocation2 + $0xf8] sm:$0xfc]
      %v2535 = vld [vmem:[#allocation2 + $0x120] sm:$0x1]
      %v2536 = vld [vmem:[#allocation2 + $0x148] sm:$0xfc]
      %v2537 = vld [vmem:[#allocation2 + $0x170] sm:$0x1]
      %v2538 = vld [vmem:[#allocation2 + $0x198] sm:$0xfc]
      %v2539 = vld [vmem:[#allocation2 + $0x1c0] sm:$0x1]
      %v2540 = vld [vmem:[#allocation2 + $0x1e8] sm:$0xfc]
      %v2541 = vld [vmem:[#allocation2 + $0x210] sm:$0x1]
      %v2542 = vmul.f32 %v2528, %v2527
      %v2543 = vmul.f32 %v2529, %v2527
      %v2544 = vmul.f32 %v2530, %v2527
      %v2545 = vmul.f32 %v2531, %v2527
      %v2546 = vmul.f32 %v2532, %v2527
      %v2547 = vmul.f32 %v2533, %v2527
      %v2548 = vmul.f32 %v2534, %v2527
      %v2549 = vmul.f32 %v2535, %v2527
      %v2550 = vmul.f32 %v2536, %v2527
      %v2551 = vmul.f32 %v2537, %v2527
      %v2552 = vmul.f32 %v2538, %v2527
      %v2553 = vmul.f32 %v2539, %v2527
      %v2554 = vmul.f32 %v2540, %v2527
      %v2555 = vmul.f32 %v2541, %v2527
      %v2570 = vrot.slane %v2542, 2
      %v2571 = vrot.slane %v2543, 2
      %v2572 = vsel %vm1488, %v2570, %v2571
      %v2573 = vrot.slane %v2544, 2
      %v2574 = vrot.slane %v2545, 2
      %v2575 = vsel %vm1488, %v2573, %v2574
      %v2576 = vrot.slane %v2546, 2
      %v2577 = vrot.slane %v2547, 2
      %v2578 = vsel %vm1488, %v2576, %v2577
      %v2579 = vrot.slane %v2548, 2
      %v2580 = vrot.slane %v2549, 2
      %v2581 = vsel %vm1488, %v2579, %v2580
      %v2582 = vrot.slane %v2550, 2
      %v2583 = vrot.slane %v2551, 2
      %v2584 = vsel %vm1488, %v2582, %v2583
      %v2585 = vrot.slane %v2552, 2
      %v2586 = vrot.slane %v2553, 2
      %v2587 = vsel %vm1488, %v2585, %v2586
      %v2588 = vrot.slane %v2554, 2
      %v2589 = vrot.slane %v2555, 2
      %v2590 = vsel %vm1488, %v2588, %v2589
      %v2598 = vadd.f32 %v2520, %v2572
      %v2599 = vadd.f32 %v2521, %v2575
      %v2600 = vadd.f32 %v2522, %v2578
      %v2601 = vadd.f32 %v2523, %v2581
      %v2602 = vadd.f32 %v2524, %v2584
      %v2603 = vadd.f32 %v2525, %v2587
      %v2604 = vadd.f32 %v2526, %v2590
      %v2605 = vld [vmem:[%s1524 + $0x8] ss:$0 sm:$0xff]
      %v2606 = vld [vmem:[%s743 + $0x8] sm:$0x7f]
      %v2607 = vld [vmem:[%s743 + $0x58] sm:$0x7f]
      %v2608 = vld [vmem:[%s743 + $0xa8] sm:$0x7f]
      %v2609 = vld [vmem:[%s743 + $0xf8] sm:$0x7f]
      %v2610 = vld [vmem:[%s743 + $0x148] sm:$0x7f]
      %v2611 = vld [vmem:[%s743 + $0x198] sm:$0x7f]
      %v2612 = vld [vmem:[%s743 + $0x1e8] sm:$0x7f]
      %v2613 = vmul.f32 %v2606, %v2605
      %v2614 = vmul.f32 %v2607, %v2605
      %v2615 = vmul.f32 %v2608, %v2605
      %v2616 = vmul.f32 %v2609, %v2605
      %v2617 = vmul.f32 %v2610, %v2605
      %v2618 = vmul.f32 %v2611, %v2605
      %v2619 = vmul.f32 %v2612, %v2605
      %v2620 = vadd.f32 %v2598, %v2613
      %v2621 = vadd.f32 %v2599, %v2614
      %v2622 = vadd.f32 %v2600, %v2615
      %v2623 = vadd.f32 %v2601, %v2616
      %v2624 = vadd.f32 %v2602, %v2617
      %v2625 = vadd.f32 %v2603, %v2618
      %v2626 = vadd.f32 %v2604, %v2619
      %v2627 = vld [vmem:[%s1524 + $0x9] ss:$0 sm:$0xff]
      %v2628 = vld [vmem:[%s1015 + $0x8] sm:$0x7f]
      %v2629 = vld [vmem:[%s1015 + $0x58] sm:$0x7f]
      %v2630 = vld [vmem:[%s1015 + $0xa8] sm:$0x7f]
      %v2631 = vld [vmem:[%s1015 + $0xf8] sm:$0x7f]
      %v2632 = vld [vmem:[%s1015 + $0x148] sm:$0x7f]
      %v2633 = vld [vmem:[%s1015 + $0x198] sm:$0x7f]
      %v2634 = vld [vmem:[%s1015 + $0x1e8] sm:$0x7f]
      %v2635 = vmul.f32 %v2628, %v2627
      %v2636 = vmul.f32 %v2629, %v2627
      %v2637 = vmul.f32 %v2630, %v2627
      %v2638 = vmul.f32 %v2631, %v2627
      %v2639 = vmul.f32 %v2632, %v2627
      %v2640 = vmul.f32 %v2633, %v2627
      %v2641 = vmul.f32 %v2634, %v2627
      %v2642 = vadd.f32 %v2620, %v2635
      %v2643 = vadd.f32 %v2621, %v2636
      %v2644 = vadd.f32 %v2622, %v2637
      %v2645 = vadd.f32 %v2623, %v2638
      %v2646 = vadd.f32 %v2624, %v2639
      %v2647 = vadd.f32 %v2625, %v2640
      %v2648 = vadd.f32 %v2626, %v2641
      %v2649 = vld [vmem:[%s1524 + $0xa] ss:$0 sm:$0xff]
      %v2650 = vld [vmem:[%s743 + $0x8] sm:$0xfe]
      %v2651 = vld [vmem:[%s743 + $0x58] sm:$0xfe]
      %v2652 = vld [vmem:[%s743 + $0xa8] sm:$0xfe]
      %v2653 = vld [vmem:[%s743 + $0xf8] sm:$0xfe]
      %v2654 = vld [vmem:[%s743 + $0x148] sm:$0xfe]
      %v2655 = vld [vmem:[%s743 + $0x198] sm:$0xfe]
      %v2656 = vld [vmem:[%s743 + $0x1e8] sm:$0xfe]
      %v2657 = vmul.f32 %v2650, %v2649
      %v2658 = vmul.f32 %v2651, %v2649
      %v2659 = vmul.f32 %v2652, %v2649
      %v2660 = vmul.f32 %v2653, %v2649
      %v2661 = vmul.f32 %v2654, %v2649
      %v2662 = vmul.f32 %v2655, %v2649
      %v2663 = vmul.f32 %v2656, %v2649
      %v2671 = vrot.slane %v2657, 1
      %v2672 = vrot.slane %v2658, 1
      %v2673 = vrot.slane %v2659, 1
      %v2674 = vrot.slane %v2660, 1
      %v2675 = vrot.slane %v2661, 1
      %v2676 = vrot.slane %v2662, 1
      %v2677 = vrot.slane %v2663, 1
      %v2685 = vadd.f32 %v2642, %v2671
      %v2686 = vadd.f32 %v2643, %v2672
      %v2687 = vadd.f32 %v2644, %v2673
      %v2688 = vadd.f32 %v2645, %v2674
      %v2689 = vadd.f32 %v2646, %v2675
      %v2690 = vadd.f32 %v2647, %v2676
      %v2691 = vadd.f32 %v2648, %v2677
      %v2692 = vld [vmem:[%s1524 + $0xb] ss:$0 sm:$0xff]
      %v2693 = vld [vmem:[%s1015 + $0x8] sm:$0xfe]
      %v2694 = vld [vmem:[%s1015 + $0x58] sm:$0xfe]
      %v2695 = vld [vmem:[%s1015 + $0xa8] sm:$0xfe]
      %v2696 = vld [vmem:[%s1015 + $0xf8] sm:$0xfe]
      %v2697 = vld [vmem:[%s1015 + $0x148] sm:$0xfe]
      %v2698 = vld [vmem:[%s1015 + $0x198] sm:$0xfe]
      %v2699 = vld [vmem:[%s1015 + $0x1e8] sm:$0xfe]
      %v2700 = vmul.f32 %v2693, %v2692
      %v2701 = vmul.f32 %v2694, %v2692
      %v2702 = vmul.f32 %v2695, %v2692
      %v2703 = vmul.f32 %v2696, %v2692
      %v2704 = vmul.f32 %v2697, %v2692
      %v2705 = vmul.f32 %v2698, %v2692
      %v2706 = vmul.f32 %v2699, %v2692
      %v2714 = vrot.slane %v2700, 1
      %v2715 = vrot.slane %v2701, 1
      %v2716 = vrot.slane %v2702, 1
      %v2717 = vrot.slane %v2703, 1
      %v2718 = vrot.slane %v2704, 1
      %v2719 = vrot.slane %v2705, 1
      %v2720 = vrot.slane %v2706, 1
      %v2728 = vadd.f32 %v2685, %v2714
      %v2729 = vadd.f32 %v2686, %v2715
      %v2730 = vadd.f32 %v2687, %v2716
      %v2731 = vadd.f32 %v2688, %v2717
      %v2732 = vadd.f32 %v2689, %v2718
      %v2733 = vadd.f32 %v2690, %v2719
      %v2734 = vadd.f32 %v2691, %v2720
      %v2735 = vld [vmem:[%s1524 + $0xc] ss:$0 sm:$0xff]
      %v2736 = vld [vmem:[%s743 + $0x8] sm:$0xfc]
      %v2737 = vld [vmem:[%s743 + $0x30] sm:$0x1]
      %v2738 = vld [vmem:[%s743 + $0x58] sm:$0xfc]
      %v2739 = vld [vmem:[%s743 + $0x80] sm:$0x1]
      %v2740 = vld [vmem:[%s743 + $0xa8] sm:$0xfc]
      %v2741 = vld [vmem:[%s743 + $0xd0] sm:$0x1]
      %v2742 = vld [vmem:[%s743 + $0xf8] sm:$0xfc]
      %v2743 = vld [vmem:[%s743 + $0x120] sm:$0x1]
      %v2744 = vld [vmem:[%s743 + $0x148] sm:$0xfc]
      %v2745 = vld [vmem:[%s743 + $0x170] sm:$0x1]
      %v2746 = vld [vmem:[%s743 + $0x198] sm:$0xfc]
      %v2747 = vld [vmem:[%s743 + $0x1c0] sm:$0x1]
      %v2748 = vld [vmem:[%s743 + $0x1e8] sm:$0xfc]
      %v2749 = vld [vmem:[%s743 + $0x210] sm:$0x1]
      %v2750 = vmul.f32 %v2736, %v2735
      %v2751 = vmul.f32 %v2737, %v2735
      %v2752 = vmul.f32 %v2738, %v2735
      %v2753 = vmul.f32 %v2739, %v2735
      %v2754 = vmul.f32 %v2740, %v2735
      %v2755 = vmul.f32 %v2741, %v2735
      %v2756 = vmul.f32 %v2742, %v2735
      %v2757 = vmul.f32 %v2743, %v2735
      %v2758 = vmul.f32 %v2744, %v2735
      %v2759 = vmul.f32 %v2745, %v2735
      %v2760 = vmul.f32 %v2746, %v2735
      %v2761 = vmul.f32 %v2747, %v2735
      %v2762 = vmul.f32 %v2748, %v2735
      %v2763 = vmul.f32 %v2749, %v2735
      %v2778 = vrot.slane %v2750, 2
      %v2779 = vrot.slane %v2751, 2
      %v2780 = vsel %vm1488, %v2778, %v2779
      %v2781 = vrot.slane %v2752, 2
      %v2782 = vrot.slane %v2753, 2
      %v2783 = vsel %vm1488, %v2781, %v2782
      %v2784 = vrot.slane %v2754, 2
      %v2785 = vrot.slane %v2755, 2
      %v2786 = vsel %vm1488, %v2784, %v2785
      %v2787 = vrot.slane %v2756, 2
      %v2788 = vrot.slane %v2757, 2
      %v2789 = vsel %vm1488, %v2787, %v2788
      %v2790 = vrot.slane %v2758, 2
      %v2791 = vrot.slane %v2759, 2
      %v2792 = vsel %vm1488, %v2790, %v2791
      %v2793 = vrot.slane %v2760, 2
      %v2794 = vrot.slane %v2761, 2
      %v2795 = vsel %vm1488, %v2793, %v2794
      %v2796 = vrot.slane %v2762, 2
      %v2797 = vrot.slane %v2763, 2
      %v2798 = vsel %vm1488, %v2796, %v2797
      %v2806 = vadd.f32 %v2728, %v2780
      %v2807 = vadd.f32 %v2729, %v2783
      %v2808 = vadd.f32 %v2730, %v2786
      %v2809 = vadd.f32 %v2731, %v2789
      %v2810 = vadd.f32 %v2732, %v2792
      %v2811 = vadd.f32 %v2733, %v2795
      %v2812 = vadd.f32 %v2734, %v2798
      %v2813 = vld [vmem:[%s1733 + $0x8] ss:$0 sm:$0xff]
      %v2814 = vld [vmem:[%s1735 + $0x8] sm:$0x7f]
      %v2815 = vld [vmem:[%s1735 + $0x58] sm:$0x7f]
      %v2816 = vld [vmem:[%s1735 + $0xa8] sm:$0x7f]
      %v2817 = vld [vmem:[%s1735 + $0xf8] sm:$0x7f]
      %v2818 = vld [vmem:[%s1735 + $0x148] sm:$0x7f]
      %v2819 = vld [vmem:[%s1735 + $0x198] sm:$0x7f]
      %v2820 = vld [vmem:[%s1735 + $0x1e8] sm:$0x7f]
      %v2821 = vmul.f32 %v2814, %v2813
      %v2822 = vmul.f32 %v2815, %v2813
      %v2823 = vmul.f32 %v2816, %v2813
      %v2824 = vmul.f32 %v2817, %v2813
      %v2825 = vmul.f32 %v2818, %v2813
      %v2826 = vmul.f32 %v2819, %v2813
      %v2827 = vmul.f32 %v2820, %v2813
      %v2828 = vadd.f32 %v2806, %v2821
      %v2829 = vadd.f32 %v2807, %v2822
      %v2830 = vadd.f32 %v2808, %v2823
      %v2831 = vadd.f32 %v2809, %v2824
      %v2832 = vadd.f32 %v2810, %v2825
      %v2833 = vadd.f32 %v2811, %v2826
      %v2834 = vadd.f32 %v2812, %v2827
      %v2835 = vld [vmem:[%s1733 + $0x9] ss:$0 sm:$0xff]
      %v2836 = vld [vmem:[%s1758 + $0x8] sm:$0x7f]
      %v2837 = vld [vmem:[%s1758 + $0x58] sm:$0x7f]
      %v2838 = vld [vmem:[%s1758 + $0xa8] sm:$0x7f]
      %v2839 = vld [vmem:[%s1758 + $0xf8] sm:$0x7f]
      %v2840 = vld [vmem:[%s1758 + $0x148] sm:$0x7f]
      %v2841 = vld [vmem:[%s1758 + $0x198] sm:$0x7f]
      %v2842 = vld [vmem:[%s1758 + $0x1e8] sm:$0x7f]
      %v2843 = vmul.f32 %v2836, %v2835
      %v2844 = vmul.f32 %v2837, %v2835
      %v2845 = vmul.f32 %v2838, %v2835
      %v2846 = vmul.f32 %v2839, %v2835
      %v2847 = vmul.f32 %v2840, %v2835
      %v2848 = vmul.f32 %v2841, %v2835
      %v2849 = vmul.f32 %v2842, %v2835
      %v2850 = vadd.f32 %v2828, %v2843
      %v2851 = vadd.f32 %v2829, %v2844
      %v2852 = vadd.f32 %v2830, %v2845
      %v2853 = vadd.f32 %v2831, %v2846
      %v2854 = vadd.f32 %v2832, %v2847
      %v2855 = vadd.f32 %v2833, %v2848
      %v2856 = vadd.f32 %v2834, %v2849
      %v2857 = vld [vmem:[%s1733 + $0xa] ss:$0 sm:$0xff]
      %v2858 = vld [vmem:[%s1735 + $0x8] sm:$0xfe]
      %v2859 = vld [vmem:[%s1735 + $0x58] sm:$0xfe]
      %v2860 = vld [vmem:[%s1735 + $0xa8] sm:$0xfe]
      %v2861 = vld [vmem:[%s1735 + $0xf8] sm:$0xfe]
      %v2862 = vld [vmem:[%s1735 + $0x148] sm:$0xfe]
      %v2863 = vld [vmem:[%s1735 + $0x198] sm:$0xfe]
      %v2864 = vld [vmem:[%s1735 + $0x1e8] sm:$0xfe]
      %v2865 = vmul.f32 %v2858, %v2857
      %v2866 = vmul.f32 %v2859, %v2857
      %v2867 = vmul.f32 %v2860, %v2857
      %v2868 = vmul.f32 %v2861, %v2857
      %v2869 = vmul.f32 %v2862, %v2857
      %v2870 = vmul.f32 %v2863, %v2857
      %v2871 = vmul.f32 %v2864, %v2857
      %v2879 = vrot.slane %v2865, 1
      %v2880 = vrot.slane %v2866, 1
      %v2881 = vrot.slane %v2867, 1
      %v2882 = vrot.slane %v2868, 1
      %v2883 = vrot.slane %v2869, 1
      %v2884 = vrot.slane %v2870, 1
      %v2885 = vrot.slane %v2871, 1
      %v2893 = vadd.f32 %v2850, %v2879
      %v2894 = vadd.f32 %v2851, %v2880
      %v2895 = vadd.f32 %v2852, %v2881
      %v2896 = vadd.f32 %v2853, %v2882
      %v2897 = vadd.f32 %v2854, %v2883
      %v2898 = vadd.f32 %v2855, %v2884
      %v2899 = vadd.f32 %v2856, %v2885
      %v2900 = vld [vmem:[%s1733 + $0xb] ss:$0 sm:$0xff]
      %v2901 = vld [vmem:[%s1758 + $0x8] sm:$0xfe]
      %v2902 = vld [vmem:[%s1758 + $0x58] sm:$0xfe]
      %v2903 = vld [vmem:[%s1758 + $0xa8] sm:$0xfe]
      %v2904 = vld [vmem:[%s1758 + $0xf8] sm:$0xfe]
      %v2905 = vld [vmem:[%s1758 + $0x148] sm:$0xfe]
      %v2906 = vld [vmem:[%s1758 + $0x198] sm:$0xfe]
      %v2907 = vld [vmem:[%s1758 + $0x1e8] sm:$0xfe]
      %v2908 = vmul.f32 %v2901, %v2900
      %v2909 = vmul.f32 %v2902, %v2900
      %v2910 = vmul.f32 %v2903, %v2900
      %v2911 = vmul.f32 %v2904, %v2900
      %v2912 = vmul.f32 %v2905, %v2900
      %v2913 = vmul.f32 %v2906, %v2900
      %v2914 = vmul.f32 %v2907, %v2900
      %v2922 = vrot.slane %v2908, 1
      %v2923 = vrot.slane %v2909, 1
      %v2924 = vrot.slane %v2910, 1
      %v2925 = vrot.slane %v2911, 1
      %v2926 = vrot.slane %v2912, 1
      %v2927 = vrot.slane %v2913, 1
      %v2928 = vrot.slane %v2914, 1
      %v2936 = vadd.f32 %v2893, %v2922
      %v2937 = vadd.f32 %v2894, %v2923
      %v2938 = vadd.f32 %v2895, %v2924
      %v2939 = vadd.f32 %v2896, %v2925
      %v2940 = vadd.f32 %v2897, %v2926
      %v2941 = vadd.f32 %v2898, %v2927
      %v2942 = vadd.f32 %v2899, %v2928
      %v2943 = vld [vmem:[%s1733 + $0xc] ss:$0 sm:$0xff]
      %v2944 = vld [vmem:[%s1735 + $0x8] sm:$0xfc]
      %v2945 = vld [vmem:[%s1735 + $0x30] sm:$0x1]
      %v2946 = vld [vmem:[%s1735 + $0x58] sm:$0xfc]
      %v2947 = vld [vmem:[%s1735 + $0x80] sm:$0x1]
      %v2948 = vld [vmem:[%s1735 + $0xa8] sm:$0xfc]
      %v2949 = vld [vmem:[%s1735 + $0xd0] sm:$0x1]
      %v2950 = vld [vmem:[%s1735 + $0xf8] sm:$0xfc]
      %v2951 = vld [vmem:[%s1735 + $0x120] sm:$0x1]
      %v2952 = vld [vmem:[%s1735 + $0x148] sm:$0xfc]
      %v2953 = vld [vmem:[%s1735 + $0x170] sm:$0x1]
      %v2954 = vld [vmem:[%s1735 + $0x198] sm:$0xfc]
      %v2955 = vld [vmem:[%s1735 + $0x1c0] sm:$0x1]
      %v2956 = vld [vmem:[%s1735 + $0x1e8] sm:$0xfc]
      %v2957 = vld [vmem:[%s1735 + $0x210] sm:$0x1]
      %v2958 = vmul.f32 %v2944, %v2943
      %v2959 = vmul.f32 %v2945, %v2943
      %v2960 = vmul.f32 %v2946, %v2943
      %v2961 = vmul.f32 %v2947, %v2943
      %v2962 = vmul.f32 %v2948, %v2943
      %v2963 = vmul.f32 %v2949, %v2943
      %v2964 = vmul.f32 %v2950, %v2943
      %v2965 = vmul.f32 %v2951, %v2943
      %v2966 = vmul.f32 %v2952, %v2943
      %v2967 = vmul.f32 %v2953, %v2943
      %v2968 = vmul.f32 %v2954, %v2943
      %v2969 = vmul.f32 %v2955, %v2943
      %v2970 = vmul.f32 %v2956, %v2943
      %v2971 = vmul.f32 %v2957, %v2943
      %v2986 = vrot.slane %v2958, 2
      %v2987 = vrot.slane %v2959, 2
      %v2988 = vsel %vm1488, %v2986, %v2987
      %v2989 = vrot.slane %v2960, 2
      %v2990 = vrot.slane %v2961, 2
      %v2991 = vsel %vm1488, %v2989, %v2990
      %v2992 = vrot.slane %v2962, 2
      %v2993 = vrot.slane %v2963, 2
      %v2994 = vsel %vm1488, %v2992, %v2993
      %v2995 = vrot.slane %v2964, 2
      %v2996 = vrot.slane %v2965, 2
      %v2997 = vsel %vm1488, %v2995, %v2996
      %v2998 = vrot.slane %v2966, 2
      %v2999 = vrot.slane %v2967, 2
      %v3000 = vsel %vm1488, %v2998, %v2999
      %v3001 = vrot.slane %v2968, 2
      %v3002 = vrot.slane %v2969, 2
      %v3003 = vsel %vm1488, %v3001, %v3002
      %v3004 = vrot.slane %v2970, 2
      %v3005 = vrot.slane %v2971, 2
      %v3006 = vsel %vm1488, %v3004, %v3005
      %v3014 = vadd.f32 %v2936, %v2988
      %v3015 = vadd.f32 %v2937, %v2991
      %v3016 = vadd.f32 %v2938, %v2994
      %v3017 = vadd.f32 %v2939, %v2997
      %v3018 = vadd.f32 %v2940, %v3000
      %v3019 = vadd.f32 %v2941, %v3003
      %v3020 = vadd.f32 %v2942, %v3006
      %v3021 = vld [vmem:[%s1944 + $0x8] ss:$0 sm:$0xff]
      %v3022 = vld [vmem:[%s1946 + $0x8] sm:$0x7f]
      %v3023 = vld [vmem:[%s1946 + $0x58] sm:$0x7f]
      %v3024 = vld [vmem:[%s1946 + $0xa8] sm:$0x7f]
      %v3025 = vld [vmem:[%s1946 + $0xf8] sm:$0x7f]
      %v3026 = vld [vmem:[%s1946 + $0x148] sm:$0x7f]
      %v3027 = vld [vmem:[%s1946 + $0x198] sm:$0x7f]
      %v3028 = vld [vmem:[%s1946 + $0x1e8] sm:$0x7f]
      %v3029 = vmul.f32 %v3022, %v3021
      %v3030 = vmul.f32 %v3023, %v3021
      %v3031 = vmul.f32 %v3024, %v3021
      %v3032 = vmul.f32 %v3025, %v3021
      %v3033 = vmul.f32 %v3026, %v3021
      %v3034 = vmul.f32 %v3027, %v3021
      %v3035 = vmul.f32 %v3028, %v3021
      %v3036 = vadd.f32 %v3014, %v3029
      %v3037 = vadd.f32 %v3015, %v3030
      %v3038 = vadd.f32 %v3016, %v3031
      %v3039 = vadd.f32 %v3017, %v3032
      %v3040 = vadd.f32 %v3018, %v3033
      %v3041 = vadd.f32 %v3019, %v3034
      %v3042 = vadd.f32 %v3020, %v3035
      %v3043 = vld [vmem:[%s1944 + $0x9] ss:$0 sm:$0xff]
      %v3044 = vld [vmem:[%s1969 + $0x8] sm:$0x7f]
      %v3045 = vld [vmem:[%s1969 + $0x58] sm:$0x7f]
      %v3046 = vld [vmem:[%s1969 + $0xa8] sm:$0x7f]
      %v3047 = vld [vmem:[%s1969 + $0xf8] sm:$0x7f]
      %v3048 = vld [vmem:[%s1969 + $0x148] sm:$0x7f]
      %v3049 = vld [vmem:[%s1969 + $0x198] sm:$0x7f]
      %v3050 = vld [vmem:[%s1969 + $0x1e8] sm:$0x7f]
      %v3051 = vmul.f32 %v3044, %v3043
      %v3052 = vmul.f32 %v3045, %v3043
      %v3053 = vmul.f32 %v3046, %v3043
      %v3054 = vmul.f32 %v3047, %v3043
      %v3055 = vmul.f32 %v3048, %v3043
      %v3056 = vmul.f32 %v3049, %v3043
      %v3057 = vmul.f32 %v3050, %v3043
      %v3058 = vadd.f32 %v3036, %v3051
      %v3059 = vadd.f32 %v3037, %v3052
      %v3060 = vadd.f32 %v3038, %v3053
      %v3061 = vadd.f32 %v3039, %v3054
      %v3062 = vadd.f32 %v3040, %v3055
      %v3063 = vadd.f32 %v3041, %v3056
      %v3064 = vadd.f32 %v3042, %v3057
      %v3065 = vld [vmem:[%s1944 + $0xa] ss:$0 sm:$0xff]
      %v3066 = vld [vmem:[%s1946 + $0x8] sm:$0xfe]
      %v3067 = vld [vmem:[%s1946 + $0x58] sm:$0xfe]
      %v3068 = vld [vmem:[%s1946 + $0xa8] sm:$0xfe]
      %v3069 = vld [vmem:[%s1946 + $0xf8] sm:$0xfe]
      %v3070 = vld [vmem:[%s1946 + $0x148] sm:$0xfe]
      %v3071 = vld [vmem:[%s1946 + $0x198] sm:$0xfe]
      %v3072 = vld [vmem:[%s1946 + $0x1e8] sm:$0xfe]
      %v3073 = vmul.f32 %v3066, %v3065
      %v3074 = vmul.f32 %v3067, %v3065
      %v3075 = vmul.f32 %v3068, %v3065
      %v3076 = vmul.f32 %v3069, %v3065
      %v3077 = vmul.f32 %v3070, %v3065
      %v3078 = vmul.f32 %v3071, %v3065
      %v3079 = vmul.f32 %v3072, %v3065
      %v3087 = vrot.slane %v3073, 1
      %v3088 = vrot.slane %v3074, 1
      %v3089 = vrot.slane %v3075, 1
      %v3090 = vrot.slane %v3076, 1
      %v3091 = vrot.slane %v3077, 1
      %v3092 = vrot.slane %v3078, 1
      %v3093 = vrot.slane %v3079, 1
      %v3101 = vadd.f32 %v3058, %v3087
      %v3102 = vadd.f32 %v3059, %v3088
      %v3103 = vadd.f32 %v3060, %v3089
      %v3104 = vadd.f32 %v3061, %v3090
      %v3105 = vadd.f32 %v3062, %v3091
      %v3106 = vadd.f32 %v3063, %v3092
      %v3107 = vadd.f32 %v3064, %v3093
      %v3108 = vld [vmem:[%s1944 + $0xb] ss:$0 sm:$0xff]
      %v3109 = vld [vmem:[%s1969 + $0x8] sm:$0xfe]
      %v3110 = vld [vmem:[%s1969 + $0x58] sm:$0xfe]
      %v3111 = vld [vmem:[%s1969 + $0xa8] sm:$0xfe]
      %v3112 = vld [vmem:[%s1969 + $0xf8] sm:$0xfe]
      %v3113 = vld [vmem:[%s1969 + $0x148] sm:$0xfe]
      %v3114 = vld [vmem:[%s1969 + $0x198] sm:$0xfe]
      %v3115 = vld [vmem:[%s1969 + $0x1e8] sm:$0xfe]
      %v3116 = vmul.f32 %v3109, %v3108
      %v3117 = vmul.f32 %v3110, %v3108
      %v3118 = vmul.f32 %v3111, %v3108
      %v3119 = vmul.f32 %v3112, %v3108
      %v3120 = vmul.f32 %v3113, %v3108
      %v3121 = vmul.f32 %v3114, %v3108
      %v3122 = vmul.f32 %v3115, %v3108
      %v3130 = vrot.slane %v3116, 1
      %v3131 = vrot.slane %v3117, 1
      %v3132 = vrot.slane %v3118, 1
      %v3133 = vrot.slane %v3119, 1
      %v3134 = vrot.slane %v3120, 1
      %v3135 = vrot.slane %v3121, 1
      %v3136 = vrot.slane %v3122, 1
      %v3144 = vadd.f32 %v3101, %v3130
      %v3145 = vadd.f32 %v3102, %v3131
      %v3146 = vadd.f32 %v3103, %v3132
      %v3147 = vadd.f32 %v3104, %v3133
      %v3148 = vadd.f32 %v3105, %v3134
      %v3149 = vadd.f32 %v3106, %v3135
      %v3150 = vadd.f32 %v3107, %v3136
      %v3151 = vld [vmem:[%s1944 + $0xc] ss:$0 sm:$0xff]
      %v3152 = vld [vmem:[%s1946 + $0x8] sm:$0xfc]
      %v3153 = vld [vmem:[%s1946 + $0x30] sm:$0x1]
      %v3154 = vld [vmem:[%s1946 + $0x58] sm:$0xfc]
      %v3155 = vld [vmem:[%s1946 + $0x80] sm:$0x1]
      %v3156 = vld [vmem:[%s1946 + $0xa8] sm:$0xfc]
      %v3157 = vld [vmem:[%s1946 + $0xd0] sm:$0x1]
      %v3158 = vld [vmem:[%s1946 + $0xf8] sm:$0xfc]
      %v3159 = vld [vmem:[%s1946 + $0x120] sm:$0x1]
      %v3160 = vld [vmem:[%s1946 + $0x148] sm:$0xfc]
      %v3161 = vld [vmem:[%s1946 + $0x170] sm:$0x1]
      %v3162 = vld [vmem:[%s1946 + $0x198] sm:$0xfc]
      %v3163 = vld [vmem:[%s1946 + $0x1c0] sm:$0x1]
      %v3164 = vld [vmem:[%s1946 + $0x1e8] sm:$0xfc]
      %v3165 = vld [vmem:[%s1946 + $0x210] sm:$0x1]
      %v3166 = vmul.f32 %v3152, %v3151
      %v3167 = vmul.f32 %v3153, %v3151
      %v3168 = vmul.f32 %v3154, %v3151
      %v3169 = vmul.f32 %v3155, %v3151
      %v3170 = vmul.f32 %v3156, %v3151
      %v3171 = vmul.f32 %v3157, %v3151
      %v3172 = vmul.f32 %v3158, %v3151
      %v3173 = vmul.f32 %v3159, %v3151
      %v3174 = vmul.f32 %v3160, %v3151
      %v3175 = vmul.f32 %v3161, %v3151
      %v3176 = vmul.f32 %v3162, %v3151
      %v3177 = vmul.f32 %v3163, %v3151
      %v3178 = vmul.f32 %v3164, %v3151
      %v3179 = vmul.f32 %v3165, %v3151
      %v3194 = vrot.slane %v3166, 2
      %v3195 = vrot.slane %v3167, 2
      %v3196 = vsel %vm1488, %v3194, %v3195
      %v3197 = vrot.slane %v3168, 2
      %v3198 = vrot.slane %v3169, 2
      %v3199 = vsel %vm1488, %v3197, %v3198
      %v3200 = vrot.slane %v3170, 2
      %v3201 = vrot.slane %v3171, 2
      %v3202 = vsel %vm1488, %v3200, %v3201
      %v3203 = vrot.slane %v3172, 2
      %v3204 = vrot.slane %v3173, 2
      %v3205 = vsel %vm1488, %v3203, %v3204
      %v3206 = vrot.slane %v3174, 2
      %v3207 = vrot.slane %v3175, 2
      %v3208 = vsel %vm1488, %v3206, %v3207
      %v3209 = vrot.slane %v3176, 2
      %v3210 = vrot.slane %v3177, 2
      %v3211 = vsel %vm1488, %v3209, %v3210
      %v3212 = vrot.slane %v3178, 2
      %v3213 = vrot.slane %v3179, 2
      %v3214 = vsel %vm1488, %v3212, %v3213
      %v3222 = vadd.f32 %v3144, %v3196
      %v3223 = vadd.f32 %v3145, %v3199
      %v3224 = vadd.f32 %v3146, %v3202
      %v3225 = vadd.f32 %v3147, %v3205
      %v3226 = vadd.f32 %v3148, %v3208
      %v3227 = vadd.f32 %v3149, %v3211
      %v3228 = vadd.f32 %v3150, %v3214
      %v3229 = vld [vmem:[%s2155 + $0x8] ss:$0 sm:$0xff]
      %v3230 = vld [vmem:[%s2157 + $0x8] sm:$0x7f]
      %v3231 = vld [vmem:[%s2157 + $0x58] sm:$0x7f]
      %v3232 = vld [vmem:[%s2157 + $0xa8] sm:$0x7f]
      %v3233 = vld [vmem:[%s2157 + $0xf8] sm:$0x7f]
      %v3234 = vld [vmem:[%s2157 + $0x148] sm:$0x7f]
      %v3235 = vld [vmem:[%s2157 + $0x198] sm:$0x7f]
      %v3236 = vld [vmem:[%s2157 + $0x1e8] sm:$0x7f]
      %v3237 = vmul.f32 %v3230, %v3229
      %v3238 = vmul.f32 %v3231, %v3229
      %v3239 = vmul.f32 %v3232, %v3229
      %v3240 = vmul.f32 %v3233, %v3229
      %v3241 = vmul.f32 %v3234, %v3229
      %v3242 = vmul.f32 %v3235, %v3229
      %v3243 = vmul.f32 %v3236, %v3229
      %v3244 = vadd.f32 %v3222, %v3237
      %v3245 = vadd.f32 %v3223, %v3238
      %v3246 = vadd.f32 %v3224, %v3239
      %v3247 = vadd.f32 %v3225, %v3240
      %v3248 = vadd.f32 %v3226, %v3241
      %v3249 = vadd.f32 %v3227, %v3242
      %v3250 = vadd.f32 %v3228, %v3243
      %v3251 = vld [vmem:[%s2155 + $0x9] ss:$0 sm:$0xff]
      %v3252 = vld [vmem:[%s2180 + $0x8] sm:$0x7f]
      %v3253 = vld [vmem:[%s2180 + $0x58] sm:$0x7f]
      %v3254 = vld [vmem:[%s2180 + $0xa8] sm:$0x7f]
      %v3255 = vld [vmem:[%s2180 + $0xf8] sm:$0x7f]
      %v3256 = vld [vmem:[%s2180 + $0x148] sm:$0x7f]
      %v3257 = vld [vmem:[%s2180 + $0x198] sm:$0x7f]
      %v3258 = vld [vmem:[%s2180 + $0x1e8] sm:$0x7f]
      %v3259 = vmul.f32 %v3252, %v3251
      %v3260 = vmul.f32 %v3253, %v3251
      %v3261 = vmul.f32 %v3254, %v3251
      %v3262 = vmul.f32 %v3255, %v3251
      %v3263 = vmul.f32 %v3256, %v3251
      %v3264 = vmul.f32 %v3257, %v3251
      %v3265 = vmul.f32 %v3258, %v3251
      %v3266 = vadd.f32 %v3244, %v3259
      %v3267 = vadd.f32 %v3245, %v3260
      %v3268 = vadd.f32 %v3246, %v3261
      %v3269 = vadd.f32 %v3247, %v3262
      %v3270 = vadd.f32 %v3248, %v3263
      %v3271 = vadd.f32 %v3249, %v3264
      %v3272 = vadd.f32 %v3250, %v3265
      %v3273 = vld [vmem:[%s2155 + $0xa] ss:$0 sm:$0xff]
      %v3274 = vld [vmem:[%s2157 + $0x8] sm:$0xfe]
      %v3275 = vld [vmem:[%s2157 + $0x58] sm:$0xfe]
      %v3276 = vld [vmem:[%s2157 + $0xa8] sm:$0xfe]
      %v3277 = vld [vmem:[%s2157 + $0xf8] sm:$0xfe]
      %v3278 = vld [vmem:[%s2157 + $0x148] sm:$0xfe]
      %v3279 = vld [vmem:[%s2157 + $0x198] sm:$0xfe]
      %v3280 = vld [vmem:[%s2157 + $0x1e8] sm:$0xfe]
      %v3281 = vmul.f32 %v3274, %v3273
      %v3282 = vmul.f32 %v3275, %v3273
      %v3283 = vmul.f32 %v3276, %v3273
      %v3284 = vmul.f32 %v3277, %v3273
      %v3285 = vmul.f32 %v3278, %v3273
      %v3286 = vmul.f32 %v3279, %v3273
      %v3287 = vmul.f32 %v3280, %v3273
      %v3295 = vrot.slane %v3281, 1
      %v3296 = vrot.slane %v3282, 1
      %v3297 = vrot.slane %v3283, 1
      %v3298 = vrot.slane %v3284, 1
      %v3299 = vrot.slane %v3285, 1
      %v3300 = vrot.slane %v3286, 1
      %v3301 = vrot.slane %v3287, 1
      %v3309 = vadd.f32 %v3266, %v3295
      %v3310 = vadd.f32 %v3267, %v3296
      %v3311 = vadd.f32 %v3268, %v3297
      %v3312 = vadd.f32 %v3269, %v3298
      %v3313 = vadd.f32 %v3270, %v3299
      %v3314 = vadd.f32 %v3271, %v3300
      %v3315 = vadd.f32 %v3272, %v3301
      %v3316 = vld [vmem:[%s2155 + $0xb] ss:$0 sm:$0xff]
      %v3317 = vld [vmem:[%s2180 + $0x8] sm:$0xfe]
      %v3318 = vld [vmem:[%s2180 + $0x58] sm:$0xfe]
      %v3319 = vld [vmem:[%s2180 + $0xa8] sm:$0xfe]
      %v3320 = vld [vmem:[%s2180 + $0xf8] sm:$0xfe]
      %v3321 = vld [vmem:[%s2180 + $0x148] sm:$0xfe]
      %v3322 = vld [vmem:[%s2180 + $0x198] sm:$0xfe]
      %v3323 = vld [vmem:[%s2180 + $0x1e8] sm:$0xfe]
      %v3324 = vmul.f32 %v3317, %v3316
      %v3325 = vmul.f32 %v3318, %v3316
      %v3326 = vmul.f32 %v3319, %v3316
      %v3327 = vmul.f32 %v3320, %v3316
      %v3328 = vmul.f32 %v3321, %v3316
      %v3329 = vmul.f32 %v3322, %v3316
      %v3330 = vmul.f32 %v3323, %v3316
      %v3338 = vrot.slane %v3324, 1
      %v3339 = vrot.slane %v3325, 1
      %v3340 = vrot.slane %v3326, 1
      %v3341 = vrot.slane %v3327, 1
      %v3342 = vrot.slane %v3328, 1
      %v3343 = vrot.slane %v3329, 1
      %v3344 = vrot.slane %v3330, 1
      %v3352 = vadd.f32 %v3309, %v3338
      %v3353 = vadd.f32 %v3310, %v3339
      %v3354 = vadd.f32 %v3311, %v3340
      %v3355 = vadd.f32 %v3312, %v3341
      %v3356 = vadd.f32 %v3313, %v3342
      %v3357 = vadd.f32 %v3314, %v3343
      %v3358 = vadd.f32 %v3315, %v3344
      %v3359 = vld [vmem:[%s2155 + $0xc] ss:$0 sm:$0xff]
      %v3360 = vld [vmem:[%s2157 + $0x8] sm:$0xfc]
      %v3361 = vld [vmem:[%s2157 + $0x30] sm:$0x1]
      %v3362 = vld [vmem:[%s2157 + $0x58] sm:$0xfc]
      %v3363 = vld [vmem:[%s2157 + $0x80] sm:$0x1]
      %v3364 = vld [vmem:[%s2157 + $0xa8] sm:$0xfc]
      %v3365 = vld [vmem:[%s2157 + $0xd0] sm:$0x1]
      %v3366 = vld [vmem:[%s2157 + $0xf8] sm:$0xfc]
      %v3367 = vld [vmem:[%s2157 + $0x120] sm:$0x1]
      %v3368 = vld [vmem:[%s2157 + $0x148] sm:$0xfc]
      %v3369 = vld [vmem:[%s2157 + $0x170] sm:$0x1]
      %v3370 = vld [vmem:[%s2157 + $0x198] sm:$0xfc]
      %v3371 = vld [vmem:[%s2157 + $0x1c0] sm:$0x1]
      %v3372 = vld [vmem:[%s2157 + $0x1e8] sm:$0xfc]
      %v3373 = vld [vmem:[%s2157 + $0x210] sm:$0x1]
      %v3374 = vmul.f32 %v3360, %v3359
      %v3375 = vmul.f32 %v3361, %v3359
      %v3376 = vmul.f32 %v3362, %v3359
      %v3377 = vmul.f32 %v3363, %v3359
      %v3378 = vmul.f32 %v3364, %v3359
      %v3379 = vmul.f32 %v3365, %v3359
      %v3380 = vmul.f32 %v3366, %v3359
      %v3381 = vmul.f32 %v3367, %v3359
      %v3382 = vmul.f32 %v3368, %v3359
      %v3383 = vmul.f32 %v3369, %v3359
      %v3384 = vmul.f32 %v3370, %v3359
      %v3385 = vmul.f32 %v3371, %v3359
      %v3386 = vmul.f32 %v3372, %v3359
      %v3387 = vmul.f32 %v3373, %v3359
      %v3402 = vrot.slane %v3374, 2
      %v3403 = vrot.slane %v3375, 2
      %v3404 = vsel %vm1488, %v3402, %v3403
      %v3405 = vrot.slane %v3376, 2
      %v3406 = vrot.slane %v3377, 2
      %v3407 = vsel %vm1488, %v3405, %v3406
      %v3408 = vrot.slane %v3378, 2
      %v3409 = vrot.slane %v3379, 2
      %v3410 = vsel %vm1488, %v3408, %v3409
      %v3411 = vrot.slane %v3380, 2
      %v3412 = vrot.slane %v3381, 2
      %v3413 = vsel %vm1488, %v3411, %v3412
      %v3414 = vrot.slane %v3382, 2
      %v3415 = vrot.slane %v3383, 2
      %v3416 = vsel %vm1488, %v3414, %v3415
      %v3417 = vrot.slane %v3384, 2
      %v3418 = vrot.slane %v3385, 2
      %v3419 = vsel %vm1488, %v3417, %v3418
      %v3420 = vrot.slane %v3386, 2
      %v3421 = vrot.slane %v3387, 2
      %v3422 = vsel %vm1488, %v3420, %v3421
      %v3430 = vadd.f32 %v3352, %v3404
      %v3431 = vadd.f32 %v3353, %v3407
      %v3432 = vadd.f32 %v3354, %v3410
      %v3433 = vadd.f32 %v3355, %v3413
      %v3434 = vadd.f32 %v3356, %v3416
      %v3435 = vadd.f32 %v3357, %v3419
      %v3436 = vadd.f32 %v3358, %v3422
      %v3437 = vpack.c.bf16 %v3430, %v3430
      %v3438 = vpack.c.bf16 %v3431, %v3431
      %v3439 = vpack.c.bf16 %v3432, %v3432
      %v3440 = vpack.c.bf16 %v3433, %v3433
      %v3441 = vpack.c.bf16 %v3434, %v3434
      %v3442 = vpack.c.bf16 %v3435, %v3435
      %v3443 = vpack.c.bf16 %v3436, %v3436
      %v3444 = vld [vmem:[%s163 + $0x4] sm:$0xf]
      %v3445 = vsel %vm2375, %v3437, %v3444
      %3446 = vst [vmem:[%s163 + $0x4] sm:$0xf] %v3445
      %v3447 = vld [vmem:[%s163 + $0x18] sm:$0xf]
      %v3448 = vsel %vm2375, %v3438, %v3447
      %3449 = vst [vmem:[%s163 + $0x18] sm:$0xf] %v3448
      %v3450 = vld [vmem:[%s163 + $0x2c] sm:$0xf]
      %v3451 = vsel %vm2375, %v3439, %v3450
      %3452 = vst [vmem:[%s163 + $0x2c] sm:$0xf] %v3451
      %v3453 = vld [vmem:[%s163 + $0x40] sm:$0xf]
      %v3454 = vsel %vm2375, %v3440, %v3453
      %3455 = vst [vmem:[%s163 + $0x40] sm:$0xf] %v3454
      %v3456 = vld [vmem:[%s163 + $0x54] sm:$0xf]
      %v3457 = vsel %vm2375, %v3441, %v3456
      %3458 = vst [vmem:[%s163 + $0x54] sm:$0xf] %v3457
      %v3459 = vld [vmem:[%s163 + $0x68] sm:$0xf]
      %v3460 = vsel %vm2375, %v3442, %v3459
      %3461 = vst [vmem:[%s163 + $0x68] sm:$0xf] %v3460
      %v3462 = vld [vmem:[%s163 + $0x7c] sm:$0xf]
      %v3463 = vsel %vm2375, %v3443, %v3462
      %3464 = vst [vmem:[%s163 + $0x7c] sm:$0xf] %v3463
      %v3465 = vld [vmem:[#allocation3 + $0x10] ss:$0 sm:$0xff]
      %v3466 = vld [vmem:[#allocation2 + $0x10] sm:$0x7f]
      %v3467 = vld [vmem:[#allocation2 + $0x60] sm:$0x7f]
      %v3468 = vld [vmem:[#allocation2 + $0xb0] sm:$0x7f]
      %v3469 = vld [vmem:[#allocation2 + $0x100] sm:$0x7f]
      %v3470 = vld [vmem:[#allocation2 + $0x150] sm:$0x7f]
      %v3471 = vld [vmem:[#allocation2 + $0x1a0] sm:$0x7f]
      %v3472 = vld [vmem:[#allocation2 + $0x1f0] sm:$0x7f]
      %v3473 = vmul.f32 %v3466, %v3465
      %v3474 = vmul.f32 %v3467, %v3465
      %v3475 = vmul.f32 %v3468, %v3465
      %v3476 = vmul.f32 %v3469, %v3465
      %v3477 = vmul.f32 %v3470, %v3465
      %v3478 = vmul.f32 %v3471, %v3465
      %v3479 = vmul.f32 %v3472, %v3465
      %v3480 = vadd.f32 %v3473, 0.0
      %v3481 = vadd.f32 %v3474, 0.0
      %v3482 = vadd.f32 %v3475, 0.0
      %v3483 = vadd.f32 %v3476, 0.0
      %v3484 = vadd.f32 %v3477, 0.0
      %v3485 = vadd.f32 %v3478, 0.0
      %v3486 = vadd.f32 %v3479, 0.0
      %v3487 = vld [vmem:[#allocation3 + $0x11] ss:$0 sm:$0xff]
      %v3488 = vld [vmem:[%s471 + $0x10] sm:$0x7f]
      %v3489 = vld [vmem:[%s471 + $0x60] sm:$0x7f]
      %v3490 = vld [vmem:[%s471 + $0xb0] sm:$0x7f]
      %v3491 = vld [vmem:[%s471 + $0x100] sm:$0x7f]
      %v3492 = vld [vmem:[%s471 + $0x150] sm:$0x7f]
      %v3493 = vld [vmem:[%s471 + $0x1a0] sm:$0x7f]
      %v3494 = vld [vmem:[%s471 + $0x1f0] sm:$0x7f]
      %v3495 = vmul.f32 %v3488, %v3487
      %v3496 = vmul.f32 %v3489, %v3487
      %v3497 = vmul.f32 %v3490, %v3487
      %v3498 = vmul.f32 %v3491, %v3487
      %v3499 = vmul.f32 %v3492, %v3487
      %v3500 = vmul.f32 %v3493, %v3487
      %v3501 = vmul.f32 %v3494, %v3487
      %v3502 = vadd.f32 %v3480, %v3495
      %v3503 = vadd.f32 %v3481, %v3496
      %v3504 = vadd.f32 %v3482, %v3497
      %v3505 = vadd.f32 %v3483, %v3498
      %v3506 = vadd.f32 %v3484, %v3499
      %v3507 = vadd.f32 %v3485, %v3500
      %v3508 = vadd.f32 %v3486, %v3501
      %v3509 = vld [vmem:[#allocation3 + $0x12] ss:$0 sm:$0xff]
      %v3510 = vld [vmem:[#allocation2 + $0x10] sm:$0xfe]
      %v3511 = vld [vmem:[#allocation2 + $0x60] sm:$0xfe]
      %v3512 = vld [vmem:[#allocation2 + $0xb0] sm:$0xfe]
      %v3513 = vld [vmem:[#allocation2 + $0x100] sm:$0xfe]
      %v3514 = vld [vmem:[#allocation2 + $0x150] sm:$0xfe]
      %v3515 = vld [vmem:[#allocation2 + $0x1a0] sm:$0xfe]
      %v3516 = vld [vmem:[#allocation2 + $0x1f0] sm:$0xfe]
      %v3517 = vmul.f32 %v3510, %v3509
      %v3518 = vmul.f32 %v3511, %v3509
      %v3519 = vmul.f32 %v3512, %v3509
      %v3520 = vmul.f32 %v3513, %v3509
      %v3521 = vmul.f32 %v3514, %v3509
      %v3522 = vmul.f32 %v3515, %v3509
      %v3523 = vmul.f32 %v3516, %v3509
      %v3531 = vrot.slane %v3517, 1
      %v3532 = vrot.slane %v3518, 1
      %v3533 = vrot.slane %v3519, 1
      %v3534 = vrot.slane %v3520, 1
      %v3535 = vrot.slane %v3521, 1
      %v3536 = vrot.slane %v3522, 1
      %v3537 = vrot.slane %v3523, 1
      %v3545 = vadd.f32 %v3502, %v3531
      %v3546 = vadd.f32 %v3503, %v3532
      %v3547 = vadd.f32 %v3504, %v3533
      %v3548 = vadd.f32 %v3505, %v3534
      %v3549 = vadd.f32 %v3506, %v3535
      %v3550 = vadd.f32 %v3507, %v3536
      %v3551 = vadd.f32 %v3508, %v3537
      %v3552 = vld [vmem:[#allocation3 + $0x13] ss:$0 sm:$0xff]
      %v3553 = vld [vmem:[%s471 + $0x10] sm:$0xfe]
      %v3554 = vld [vmem:[%s471 + $0x60] sm:$0xfe]
      %v3555 = vld [vmem:[%s471 + $0xb0] sm:$0xfe]
      %v3556 = vld [vmem:[%s471 + $0x100] sm:$0xfe]
      %v3557 = vld [vmem:[%s471 + $0x150] sm:$0xfe]
      %v3558 = vld [vmem:[%s471 + $0x1a0] sm:$0xfe]
      %v3559 = vld [vmem:[%s471 + $0x1f0] sm:$0xfe]
      %v3560 = vmul.f32 %v3553, %v3552
      %v3561 = vmul.f32 %v3554, %v3552
      %v3562 = vmul.f32 %v3555, %v3552
      %v3563 = vmul.f32 %v3556, %v3552
      %v3564 = vmul.f32 %v3557, %v3552
      %v3565 = vmul.f32 %v3558, %v3552
      %v3566 = vmul.f32 %v3559, %v3552
      %v3574 = vrot.slane %v3560, 1
      %v3575 = vrot.slane %v3561, 1
      %v3576 = vrot.slane %v3562, 1
      %v3577 = vrot.slane %v3563, 1
      %v3578 = vrot.slane %v3564, 1
      %v3579 = vrot.slane %v3565, 1
      %v3580 = vrot.slane %v3566, 1
      %v3588 = vadd.f32 %v3545, %v3574
      %v3589 = vadd.f32 %v3546, %v3575
      %v3590 = vadd.f32 %v3547, %v3576
      %v3591 = vadd.f32 %v3548, %v3577
      %v3592 = vadd.f32 %v3549, %v3578
      %v3593 = vadd.f32 %v3550, %v3579
      %v3594 = vadd.f32 %v3551, %v3580
      %v3595 = vld [vmem:[#allocation3 + $0x14] ss:$0 sm:$0xff]
      %v3596 = vld [vmem:[#allocation2 + $0x10] sm:$0xfc]
      %v3597 = vld [vmem:[#allocation2 + $0x38] sm:$0x1]
      %v3598 = vld [vmem:[#allocation2 + $0x60] sm:$0xfc]
      %v3599 = vld [vmem:[#allocation2 + $0x88] sm:$0x1]
      %v3600 = vld [vmem:[#allocation2 + $0xb0] sm:$0xfc]
      %v3601 = vld [vmem:[#allocation2 + $0xd8] sm:$0x1]
      %v3602 = vld [vmem:[#allocation2 + $0x100] sm:$0xfc]
      %v3603 = vld [vmem:[#allocation2 + $0x128] sm:$0x1]
      %v3604 = vld [vmem:[#allocation2 + $0x150] sm:$0xfc]
      %v3605 = vld [vmem:[#allocation2 + $0x178] sm:$0x1]
      %v3606 = vld [vmem:[#allocation2 + $0x1a0] sm:$0xfc]
      %v3607 = vld [vmem:[#allocation2 + $0x1c8] sm:$0x1]
      %v3608 = vld [vmem:[#allocation2 + $0x1f0] sm:$0xfc]
      %v3609 = vld [vmem:[#allocation2 + $0x218] sm:$0x1]
      %v3610 = vmul.f32 %v3596, %v3595
      %v3611 = vmul.f32 %v3597, %v3595
      %v3612 = vmul.f32 %v3598, %v3595
      %v3613 = vmul.f32 %v3599, %v3595
      %v3614 = vmul.f32 %v3600, %v3595
      %v3615 = vmul.f32 %v3601, %v3595
      %v3616 = vmul.f32 %v3602, %v3595
      %v3617 = vmul.f32 %v3603, %v3595
      %v3618 = vmul.f32 %v3604, %v3595
      %v3619 = vmul.f32 %v3605, %v3595
      %v3620 = vmul.f32 %v3606, %v3595
      %v3621 = vmul.f32 %v3607, %v3595
      %v3622 = vmul.f32 %v3608, %v3595
      %v3623 = vmul.f32 %v3609, %v3595
      %v3638 = vrot.slane %v3610, 2
      %v3639 = vrot.slane %v3611, 2
      %v3640 = vsel %vm1488, %v3638, %v3639
      %v3641 = vrot.slane %v3612, 2
      %v3642 = vrot.slane %v3613, 2
      %v3643 = vsel %vm1488, %v3641, %v3642
      %v3644 = vrot.slane %v3614, 2
      %v3645 = vrot.slane %v3615, 2
      %v3646 = vsel %vm1488, %v3644, %v3645
      %v3647 = vrot.slane %v3616, 2
      %v3648 = vrot.slane %v3617, 2
      %v3649 = vsel %vm1488, %v3647, %v3648
      %v3650 = vrot.slane %v3618, 2
      %v3651 = vrot.slane %v3619, 2
      %v3652 = vsel %vm1488, %v3650, %v3651
      %v3653 = vrot.slane %v3620, 2
      %v3654 = vrot.slane %v3621, 2
      %v3655 = vsel %vm1488, %v3653, %v3654
      %v3656 = vrot.slane %v3622, 2
      %v3657 = vrot.slane %v3623, 2
      %v3658 = vsel %vm1488, %v3656, %v3657
      %v3666 = vadd.f32 %v3588, %v3640
      %v3667 = vadd.f32 %v3589, %v3643
      %v3668 = vadd.f32 %v3590, %v3646
      %v3669 = vadd.f32 %v3591, %v3649
      %v3670 = vadd.f32 %v3592, %v3652
      %v3671 = vadd.f32 %v3593, %v3655
      %v3672 = vadd.f32 %v3594, %v3658
      %v3673 = vld [vmem:[%s1524 + $0x10] ss:$0 sm:$0xff]
      %v3674 = vld [vmem:[%s743 + $0x10] sm:$0x7f]
      %v3675 = vld [vmem:[%s743 + $0x60] sm:$0x7f]
      %v3676 = vld [vmem:[%s743 + $0xb0] sm:$0x7f]
      %v3677 = vld [vmem:[%s743 + $0x100] sm:$0x7f]
      %v3678 = vld [vmem:[%s743 + $0x150] sm:$0x7f]
      %v3679 = vld [vmem:[%s743 + $0x1a0] sm:$0x7f]
      %v3680 = vld [vmem:[%s743 + $0x1f0] sm:$0x7f]
      %v3681 = vmul.f32 %v3674, %v3673
      %v3682 = vmul.f32 %v3675, %v3673
      %v3683 = vmul.f32 %v3676, %v3673
      %v3684 = vmul.f32 %v3677, %v3673
      %v3685 = vmul.f32 %v3678, %v3673
      %v3686 = vmul.f32 %v3679, %v3673
      %v3687 = vmul.f32 %v3680, %v3673
      %v3688 = vadd.f32 %v3666, %v3681
      %v3689 = vadd.f32 %v3667, %v3682
      %v3690 = vadd.f32 %v3668, %v3683
      %v3691 = vadd.f32 %v3669, %v3684
      %v3692 = vadd.f32 %v3670, %v3685
      %v3693 = vadd.f32 %v3671, %v3686
      %v3694 = vadd.f32 %v3672, %v3687
      %v3695 = vld [vmem:[%s1524 + $0x11] ss:$0 sm:$0xff]
      %v3696 = vld [vmem:[%s1015 + $0x10] sm:$0x7f]
      %v3697 = vld [vmem:[%s1015 + $0x60] sm:$0x7f]
      %v3698 = vld [vmem:[%s1015 + $0xb0] sm:$0x7f]
      %v3699 = vld [vmem:[%s1015 + $0x100] sm:$0x7f]
      %v3700 = vld [vmem:[%s1015 + $0x150] sm:$0x7f]
      %v3701 = vld [vmem:[%s1015 + $0x1a0] sm:$0x7f]
      %v3702 = vld [vmem:[%s1015 + $0x1f0] sm:$0x7f]
      %v3703 = vmul.f32 %v3696, %v3695
      %v3704 = vmul.f32 %v3697, %v3695
      %v3705 = vmul.f32 %v3698, %v3695
      %v3706 = vmul.f32 %v3699, %v3695
      %v3707 = vmul.f32 %v3700, %v3695
      %v3708 = vmul.f32 %v3701, %v3695
      %v3709 = vmul.f32 %v3702, %v3695
      %v3710 = vadd.f32 %v3688, %v3703
      %v3711 = vadd.f32 %v3689, %v3704
      %v3712 = vadd.f32 %v3690, %v3705
      %v3713 = vadd.f32 %v3691, %v3706
      %v3714 = vadd.f32 %v3692, %v3707
      %v3715 = vadd.f32 %v3693, %v3708
      %v3716 = vadd.f32 %v3694, %v3709
      %v3717 = vld [vmem:[%s1524 + $0x12] ss:$0 sm:$0xff]
      %v3718 = vld [vmem:[%s743 + $0x10] sm:$0xfe]
      %v3719 = vld [vmem:[%s743 + $0x60] sm:$0xfe]
      %v3720 = vld [vmem:[%s743 + $0xb0] sm:$0xfe]
      %v3721 = vld [vmem:[%s743 + $0x100] sm:$0xfe]
      %v3722 = vld [vmem:[%s743 + $0x150] sm:$0xfe]
      %v3723 = vld [vmem:[%s743 + $0x1a0] sm:$0xfe]
      %v3724 = vld [vmem:[%s743 + $0x1f0] sm:$0xfe]
      %v3725 = vmul.f32 %v3718, %v3717
      %v3726 = vmul.f32 %v3719, %v3717
      %v3727 = vmul.f32 %v3720, %v3717
      %v3728 = vmul.f32 %v3721, %v3717
      %v3729 = vmul.f32 %v3722, %v3717
      %v3730 = vmul.f32 %v3723, %v3717
      %v3731 = vmul.f32 %v3724, %v3717
      %v3739 = vrot.slane %v3725, 1
      %v3740 = vrot.slane %v3726, 1
      %v3741 = vrot.slane %v3727, 1
      %v3742 = vrot.slane %v3728, 1
      %v3743 = vrot.slane %v3729, 1
      %v3744 = vrot.slane %v3730, 1
      %v3745 = vrot.slane %v3731, 1
      %v3753 = vadd.f32 %v3710, %v3739
      %v3754 = vadd.f32 %v3711, %v3740
      %v3755 = vadd.f32 %v3712, %v3741
      %v3756 = vadd.f32 %v3713, %v3742
      %v3757 = vadd.f32 %v3714, %v3743
      %v3758 = vadd.f32 %v3715, %v3744
      %v3759 = vadd.f32 %v3716, %v3745
      %v3760 = vld [vmem:[%s1524 + $0x13] ss:$0 sm:$0xff]
      %v3761 = vld [vmem:[%s1015 + $0x10] sm:$0xfe]
      %v3762 = vld [vmem:[%s1015 + $0x60] sm:$0xfe]
      %v3763 = vld [vmem:[%s1015 + $0xb0] sm:$0xfe]
      %v3764 = vld [vmem:[%s1015 + $0x100] sm:$0xfe]
      %v3765 = vld [vmem:[%s1015 + $0x150] sm:$0xfe]
      %v3766 = vld [vmem:[%s1015 + $0x1a0] sm:$0xfe]
      %v3767 = vld [vmem:[%s1015 + $0x1f0] sm:$0xfe]
      %v3768 = vmul.f32 %v3761, %v3760
      %v3769 = vmul.f32 %v3762, %v3760
      %v3770 = vmul.f32 %v3763, %v3760
      %v3771 = vmul.f32 %v3764, %v3760
      %v3772 = vmul.f32 %v3765, %v3760
      %v3773 = vmul.f32 %v3766, %v3760
      %v3774 = vmul.f32 %v3767, %v3760
      %v3782 = vrot.slane %v3768, 1
      %v3783 = vrot.slane %v3769, 1
      %v3784 = vrot.slane %v3770, 1
      %v3785 = vrot.slane %v3771, 1
      %v3786 = vrot.slane %v3772, 1
      %v3787 = vrot.slane %v3773, 1
      %v3788 = vrot.slane %v3774, 1
      %v3796 = vadd.f32 %v3753, %v3782
      %v3797 = vadd.f32 %v3754, %v3783
      %v3798 = vadd.f32 %v3755, %v3784
      %v3799 = vadd.f32 %v3756, %v3785
      %v3800 = vadd.f32 %v3757, %v3786
      %v3801 = vadd.f32 %v3758, %v3787
      %v3802 = vadd.f32 %v3759, %v3788
      %v3803 = vld [vmem:[%s1524 + $0x14] ss:$0 sm:$0xff]
      %v3804 = vld [vmem:[%s743 + $0x10] sm:$0xfc]
      %v3805 = vld [vmem:[%s743 + $0x38] sm:$0x1]
      %v3806 = vld [vmem:[%s743 + $0x60] sm:$0xfc]
      %v3807 = vld [vmem:[%s743 + $0x88] sm:$0x1]
      %v3808 = vld [vmem:[%s743 + $0xb0] sm:$0xfc]
      %v3809 = vld [vmem:[%s743 + $0xd8] sm:$0x1]
      %v3810 = vld [vmem:[%s743 + $0x100] sm:$0xfc]
      %v3811 = vld [vmem:[%s743 + $0x128] sm:$0x1]
      %v3812 = vld [vmem:[%s743 + $0x150] sm:$0xfc]
      %v3813 = vld [vmem:[%s743 + $0x178] sm:$0x1]
      %v3814 = vld [vmem:[%s743 + $0x1a0] sm:$0xfc]
      %v3815 = vld [vmem:[%s743 + $0x1c8] sm:$0x1]
      %v3816 = vld [vmem:[%s743 + $0x1f0] sm:$0xfc]
      %v3817 = vld [vmem:[%s743 + $0x218] sm:$0x1]
      %v3818 = vmul.f32 %v3804, %v3803
      %v3819 = vmul.f32 %v3805, %v3803
      %v3820 = vmul.f32 %v3806, %v3803
      %v3821 = vmul.f32 %v3807, %v3803
      %v3822 = vmul.f32 %v3808, %v3803
      %v3823 = vmul.f32 %v3809, %v3803
      %v3824 = vmul.f32 %v3810, %v3803
      %v3825 = vmul.f32 %v3811, %v3803
      %v3826 = vmul.f32 %v3812, %v3803
      %v3827 = vmul.f32 %v3813, %v3803
      %v3828 = vmul.f32 %v3814, %v3803
      %v3829 = vmul.f32 %v3815, %v3803
      %v3830 = vmul.f32 %v3816, %v3803
      %v3831 = vmul.f32 %v3817, %v3803
      %v3846 = vrot.slane %v3818, 2
      %v3847 = vrot.slane %v3819, 2
      %v3848 = vsel %vm1488, %v3846, %v3847
      %v3849 = vrot.slane %v3820, 2
      %v3850 = vrot.slane %v3821, 2
      %v3851 = vsel %vm1488, %v3849, %v3850
      %v3852 = vrot.slane %v3822, 2
      %v3853 = vrot.slane %v3823, 2
      %v3854 = vsel %vm1488, %v3852, %v3853
      %v3855 = vrot.slane %v3824, 2
      %v3856 = vrot.slane %v3825, 2
      %v3857 = vsel %vm1488, %v3855, %v3856
      %v3858 = vrot.slane %v3826, 2
      %v3859 = vrot.slane %v3827, 2
      %v3860 = vsel %vm1488, %v3858, %v3859
      %v3861 = vrot.slane %v3828, 2
      %v3862 = vrot.slane %v3829, 2
      %v3863 = vsel %vm1488, %v3861, %v3862
      %v3864 = vrot.slane %v3830, 2
      %v3865 = vrot.slane %v3831, 2
      %v3866 = vsel %vm1488, %v3864, %v3865
      %v3874 = vadd.f32 %v3796, %v3848
      %v3875 = vadd.f32 %v3797, %v3851
      %v3876 = vadd.f32 %v3798, %v3854
      %v3877 = vadd.f32 %v3799, %v3857
      %v3878 = vadd.f32 %v3800, %v3860
      %v3879 = vadd.f32 %v3801, %v3863
      %v3880 = vadd.f32 %v3802, %v3866
      %v3881 = vld [vmem:[%s1733 + $0x10] ss:$0 sm:$0xff]
      %v3882 = vld [vmem:[%s1735 + $0x10] sm:$0x7f]
      %v3883 = vld [vmem:[%s1735 + $0x60] sm:$0x7f]
      %v3884 = vld [vmem:[%s1735 + $0xb0] sm:$0x7f]
      %v3885 = vld [vmem:[%s1735 + $0x100] sm:$0x7f]
      %v3886 = vld [vmem:[%s1735 + $0x150] sm:$0x7f]
      %v3887 = vld [vmem:[%s1735 + $0x1a0] sm:$0x7f]
      %v3888 = vld [vmem:[%s1735 + $0x1f0] sm:$0x7f]
      %v3889 = vmul.f32 %v3882, %v3881
      %v3890 = vmul.f32 %v3883, %v3881
      %v3891 = vmul.f32 %v3884, %v3881
      %v3892 = vmul.f32 %v3885, %v3881
      %v3893 = vmul.f32 %v3886, %v3881
      %v3894 = vmul.f32 %v3887, %v3881
      %v3895 = vmul.f32 %v3888, %v3881
      %v3896 = vadd.f32 %v3874, %v3889
      %v3897 = vadd.f32 %v3875, %v3890
      %v3898 = vadd.f32 %v3876, %v3891
      %v3899 = vadd.f32 %v3877, %v3892
      %v3900 = vadd.f32 %v3878, %v3893
      %v3901 = vadd.f32 %v3879, %v3894
      %v3902 = vadd.f32 %v3880, %v3895
      %v3903 = vld [vmem:[%s1733 + $0x11] ss:$0 sm:$0xff]
      %v3904 = vld [vmem:[%s1758 + $0x10] sm:$0x7f]
      %v3905 = vld [vmem:[%s1758 + $0x60] sm:$0x7f]
      %v3906 = vld [vmem:[%s1758 + $0xb0] sm:$0x7f]
      %v3907 = vld [vmem:[%s1758 + $0x100] sm:$0x7f]
      %v3908 = vld [vmem:[%s1758 + $0x150] sm:$0x7f]
      %v3909 = vld [vmem:[%s1758 + $0x1a0] sm:$0x7f]
      %v3910 = vld [vmem:[%s1758 + $0x1f0] sm:$0x7f]
      %v3911 = vmul.f32 %v3904, %v3903
      %v3912 = vmul.f32 %v3905, %v3903
      %v3913 = vmul.f32 %v3906, %v3903
      %v3914 = vmul.f32 %v3907, %v3903
      %v3915 = vmul.f32 %v3908, %v3903
      %v3916 = vmul.f32 %v3909, %v3903
      %v3917 = vmul.f32 %v3910, %v3903
      %v3918 = vadd.f32 %v3896, %v3911
      %v3919 = vadd.f32 %v3897, %v3912
      %v3920 = vadd.f32 %v3898, %v3913
      %v3921 = vadd.f32 %v3899, %v3914
      %v3922 = vadd.f32 %v3900, %v3915
      %v3923 = vadd.f32 %v3901, %v3916
      %v3924 = vadd.f32 %v3902, %v3917
      %v3925 = vld [vmem:[%s1733 + $0x12] ss:$0 sm:$0xff]
      %v3926 = vld [vmem:[%s1735 + $0x10] sm:$0xfe]
      %v3927 = vld [vmem:[%s1735 + $0x60] sm:$0xfe]
      %v3928 = vld [vmem:[%s1735 + $0xb0] sm:$0xfe]
      %v3929 = vld [vmem:[%s1735 + $0x100] sm:$0xfe]
      %v3930 = vld [vmem:[%s1735 + $0x150] sm:$0xfe]
      %v3931 = vld [vmem:[%s1735 + $0x1a0] sm:$0xfe]
      %v3932 = vld [vmem:[%s1735 + $0x1f0] sm:$0xfe]
      %v3933 = vmul.f32 %v3926, %v3925
      %v3934 = vmul.f32 %v3927, %v3925
      %v3935 = vmul.f32 %v3928, %v3925
      %v3936 = vmul.f32 %v3929, %v3925
      %v3937 = vmul.f32 %v3930, %v3925
      %v3938 = vmul.f32 %v3931, %v3925
      %v3939 = vmul.f32 %v3932, %v3925
      %v3947 = vrot.slane %v3933, 1
      %v3948 = vrot.slane %v3934, 1
      %v3949 = vrot.slane %v3935, 1
      %v3950 = vrot.slane %v3936, 1
      %v3951 = vrot.slane %v3937, 1
      %v3952 = vrot.slane %v3938, 1
      %v3953 = vrot.slane %v3939, 1
      %v3961 = vadd.f32 %v3918, %v3947
      %v3962 = vadd.f32 %v3919, %v3948
      %v3963 = vadd.f32 %v3920, %v3949
      %v3964 = vadd.f32 %v3921, %v3950
      %v3965 = vadd.f32 %v3922, %v3951
      %v3966 = vadd.f32 %v3923, %v3952
      %v3967 = vadd.f32 %v3924, %v3953
      %v3968 = vld [vmem:[%s1733 + $0x13] ss:$0 sm:$0xff]
      %v3969 = vld [vmem:[%s1758 + $0x10] sm:$0xfe]
      %v3970 = vld [vmem:[%s1758 + $0x60] sm:$0xfe]
      %v3971 = vld [vmem:[%s1758 + $0xb0] sm:$0xfe]
      %v3972 = vld [vmem:[%s1758 + $0x100] sm:$0xfe]
      %v3973 = vld [vmem:[%s1758 + $0x150] sm:$0xfe]
      %v3974 = vld [vmem:[%s1758 + $0x1a0] sm:$0xfe]
      %v3975 = vld [vmem:[%s1758 + $0x1f0] sm:$0xfe]
      %v3976 = vmul.f32 %v3969, %v3968
      %v3977 = vmul.f32 %v3970, %v3968
      %v3978 = vmul.f32 %v3971, %v3968
      %v3979 = vmul.f32 %v3972, %v3968
      %v3980 = vmul.f32 %v3973, %v3968
      %v3981 = vmul.f32 %v3974, %v3968
      %v3982 = vmul.f32 %v3975, %v3968
      %v3990 = vrot.slane %v3976, 1
      %v3991 = vrot.slane %v3977, 1
      %v3992 = vrot.slane %v3978, 1
      %v3993 = vrot.slane %v3979, 1
      %v3994 = vrot.slane %v3980, 1
      %v3995 = vrot.slane %v3981, 1
      %v3996 = vrot.slane %v3982, 1
      %v4004 = vadd.f32 %v3961, %v3990
      %v4005 = vadd.f32 %v3962, %v3991
      %v4006 = vadd.f32 %v3963, %v3992
      %v4007 = vadd.f32 %v3964, %v3993
      %v4008 = vadd.f32 %v3965, %v3994
      %v4009 = vadd.f32 %v3966, %v3995
      %v4010 = vadd.f32 %v3967, %v3996
      %v4011 = vld [vmem:[%s1733 + $0x14] ss:$0 sm:$0xff]
      %v4012 = vld [vmem:[%s1735 + $0x10] sm:$0xfc]
      %v4013 = vld [vmem:[%s1735 + $0x38] sm:$0x1]
      %v4014 = vld [vmem:[%s1735 + $0x60] sm:$0xfc]
      %v4015 = vld [vmem:[%s1735 + $0x88] sm:$0x1]
      %v4016 = vld [vmem:[%s1735 + $0xb0] sm:$0xfc]
      %v4017 = vld [vmem:[%s1735 + $0xd8] sm:$0x1]
      %v4018 = vld [vmem:[%s1735 + $0x100] sm:$0xfc]
      %v4019 = vld [vmem:[%s1735 + $0x128] sm:$0x1]
      %v4020 = vld [vmem:[%s1735 + $0x150] sm:$0xfc]
      %v4021 = vld [vmem:[%s1735 + $0x178] sm:$0x1]
      %v4022 = vld [vmem:[%s1735 + $0x1a0] sm:$0xfc]
      %v4023 = vld [vmem:[%s1735 + $0x1c8] sm:$0x1]
      %v4024 = vld [vmem:[%s1735 + $0x1f0] sm:$0xfc]
      %v4025 = vld [vmem:[%s1735 + $0x218] sm:$0x1]
      %v4026 = vmul.f32 %v4012, %v4011
      %v4027 = vmul.f32 %v4013, %v4011
      %v4028 = vmul.f32 %v4014, %v4011
      %v4029 = vmul.f32 %v4015, %v4011
      %v4030 = vmul.f32 %v4016, %v4011
      %v4031 = vmul.f32 %v4017, %v4011
      %v4032 = vmul.f32 %v4018, %v4011
      %v4033 = vmul.f32 %v4019, %v4011
      %v4034 = vmul.f32 %v4020, %v4011
      %v4035 = vmul.f32 %v4021, %v4011
      %v4036 = vmul.f32 %v4022, %v4011
      %v4037 = vmul.f32 %v4023, %v4011
      %v4038 = vmul.f32 %v4024, %v4011
      %v4039 = vmul.f32 %v4025, %v4011
      %v4054 = vrot.slane %v4026, 2
      %v4055 = vrot.slane %v4027, 2
      %v4056 = vsel %vm1488, %v4054, %v4055
      %v4057 = vrot.slane %v4028, 2
      %v4058 = vrot.slane %v4029, 2
      %v4059 = vsel %vm1488, %v4057, %v4058
      %v4060 = vrot.slane %v4030, 2
      %v4061 = vrot.slane %v4031, 2
      %v4062 = vsel %vm1488, %v4060, %v4061
      %v4063 = vrot.slane %v4032, 2
      %v4064 = vrot.slane %v4033, 2
      %v4065 = vsel %vm1488, %v4063, %v4064
      %v4066 = vrot.slane %v4034, 2
      %v4067 = vrot.slane %v4035, 2
      %v4068 = vsel %vm1488, %v4066, %v4067
      %v4069 = vrot.slane %v4036, 2
      %v4070 = vrot.slane %v4037, 2
      %v4071 = vsel %vm1488, %v4069, %v4070
      %v4072 = vrot.slane %v4038, 2
      %v4073 = vrot.slane %v4039, 2
      %v4074 = vsel %vm1488, %v4072, %v4073
      %v4082 = vadd.f32 %v4004, %v4056
      %v4083 = vadd.f32 %v4005, %v4059
      %v4084 = vadd.f32 %v4006, %v4062
      %v4085 = vadd.f32 %v4007, %v4065
      %v4086 = vadd.f32 %v4008, %v4068
      %v4087 = vadd.f32 %v4009, %v4071
      %v4088 = vadd.f32 %v4010, %v4074
      %v4089 = vld [vmem:[%s1944 + $0x10] ss:$0 sm:$0xff]
      %v4090 = vld [vmem:[%s1946 + $0x10] sm:$0x7f]
      %v4091 = vld [vmem:[%s1946 + $0x60] sm:$0x7f]
      %v4092 = vld [vmem:[%s1946 + $0xb0] sm:$0x7f]
      %v4093 = vld [vmem:[%s1946 + $0x100] sm:$0x7f]
      %v4094 = vld [vmem:[%s1946 + $0x150] sm:$0x7f]
      %v4095 = vld [vmem:[%s1946 + $0x1a0] sm:$0x7f]
      %v4096 = vld [vmem:[%s1946 + $0x1f0] sm:$0x7f]
      %v4097 = vmul.f32 %v4090, %v4089
      %v4098 = vmul.f32 %v4091, %v4089
      %v4099 = vmul.f32 %v4092, %v4089
      %v4100 = vmul.f32 %v4093, %v4089
      %v4101 = vmul.f32 %v4094, %v4089
      %v4102 = vmul.f32 %v4095, %v4089
      %v4103 = vmul.f32 %v4096, %v4089
      %v4104 = vadd.f32 %v4082, %v4097
      %v4105 = vadd.f32 %v4083, %v4098
      %v4106 = vadd.f32 %v4084, %v4099
      %v4107 = vadd.f32 %v4085, %v4100
      %v4108 = vadd.f32 %v4086, %v4101
      %v4109 = vadd.f32 %v4087, %v4102
      %v4110 = vadd.f32 %v4088, %v4103
      %v4111 = vld [vmem:[%s1944 + $0x11] ss:$0 sm:$0xff]
      %v4112 = vld [vmem:[%s1969 + $0x10] sm:$0x7f]
      %v4113 = vld [vmem:[%s1969 + $0x60] sm:$0x7f]
      %v4114 = vld [vmem:[%s1969 + $0xb0] sm:$0x7f]
      %v4115 = vld [vmem:[%s1969 + $0x100] sm:$0x7f]
      %v4116 = vld [vmem:[%s1969 + $0x150] sm:$0x7f]
      %v4117 = vld [vmem:[%s1969 + $0x1a0] sm:$0x7f]
      %v4118 = vld [vmem:[%s1969 + $0x1f0] sm:$0x7f]
      %v4119 = vmul.f32 %v4112, %v4111
      %v4120 = vmul.f32 %v4113, %v4111
      %v4121 = vmul.f32 %v4114, %v4111
      %v4122 = vmul.f32 %v4115, %v4111
      %v4123 = vmul.f32 %v4116, %v4111
      %v4124 = vmul.f32 %v4117, %v4111
      %v4125 = vmul.f32 %v4118, %v4111
      %v4126 = vadd.f32 %v4104, %v4119
      %v4127 = vadd.f32 %v4105, %v4120
      %v4128 = vadd.f32 %v4106, %v4121
      %v4129 = vadd.f32 %v4107, %v4122
      %v4130 = vadd.f32 %v4108, %v4123
      %v4131 = vadd.f32 %v4109, %v4124
      %v4132 = vadd.f32 %v4110, %v4125
      %v4133 = vld [vmem:[%s1944 + $0x12] ss:$0 sm:$0xff]
      %v4134 = vld [vmem:[%s1946 + $0x10] sm:$0xfe]
      %v4135 = vld [vmem:[%s1946 + $0x60] sm:$0xfe]
      %v4136 = vld [vmem:[%s1946 + $0xb0] sm:$0xfe]
      %v4137 = vld [vmem:[%s1946 + $0x100] sm:$0xfe]
      %v4138 = vld [vmem:[%s1946 + $0x150] sm:$0xfe]
      %v4139 = vld [vmem:[%s1946 + $0x1a0] sm:$0xfe]
      %v4140 = vld [vmem:[%s1946 + $0x1f0] sm:$0xfe]
      %v4141 = vmul.f32 %v4134, %v4133
      %v4142 = vmul.f32 %v4135, %v4133
      %v4143 = vmul.f32 %v4136, %v4133
      %v4144 = vmul.f32 %v4137, %v4133
      %v4145 = vmul.f32 %v4138, %v4133
      %v4146 = vmul.f32 %v4139, %v4133
      %v4147 = vmul.f32 %v4140, %v4133
      %v4155 = vrot.slane %v4141, 1
      %v4156 = vrot.slane %v4142, 1
      %v4157 = vrot.slane %v4143, 1
      %v4158 = vrot.slane %v4144, 1
      %v4159 = vrot.slane %v4145, 1
      %v4160 = vrot.slane %v4146, 1
      %v4161 = vrot.slane %v4147, 1
      %v4169 = vadd.f32 %v4126, %v4155
      %v4170 = vadd.f32 %v4127, %v4156
      %v4171 = vadd.f32 %v4128, %v4157
      %v4172 = vadd.f32 %v4129, %v4158
      %v4173 = vadd.f32 %v4130, %v4159
      %v4174 = vadd.f32 %v4131, %v4160
      %v4175 = vadd.f32 %v4132, %v4161
      %v4176 = vld [vmem:[%s1944 + $0x13] ss:$0 sm:$0xff]
      %v4177 = vld [vmem:[%s1969 + $0x10] sm:$0xfe]
      %v4178 = vld [vmem:[%s1969 + $0x60] sm:$0xfe]
      %v4179 = vld [vmem:[%s1969 + $0xb0] sm:$0xfe]
      %v4180 = vld [vmem:[%s1969 + $0x100] sm:$0xfe]
      %v4181 = vld [vmem:[%s1969 + $0x150] sm:$0xfe]
      %v4182 = vld [vmem:[%s1969 + $0x1a0] sm:$0xfe]
      %v4183 = vld [vmem:[%s1969 + $0x1f0] sm:$0xfe]
      %v4184 = vmul.f32 %v4177, %v4176
      %v4185 = vmul.f32 %v4178, %v4176
      %v4186 = vmul.f32 %v4179, %v4176
      %v4187 = vmul.f32 %v4180, %v4176
      %v4188 = vmul.f32 %v4181, %v4176
      %v4189 = vmul.f32 %v4182, %v4176
      %v4190 = vmul.f32 %v4183, %v4176
      %v4198 = vrot.slane %v4184, 1
      %v4199 = vrot.slane %v4185, 1
      %v4200 = vrot.slane %v4186, 1
      %v4201 = vrot.slane %v4187, 1
      %v4202 = vrot.slane %v4188, 1
      %v4203 = vrot.slane %v4189, 1
      %v4204 = vrot.slane %v4190, 1
      %v4212 = vadd.f32 %v4169, %v4198
      %v4213 = vadd.f32 %v4170, %v4199
      %v4214 = vadd.f32 %v4171, %v4200
      %v4215 = vadd.f32 %v4172, %v4201
      %v4216 = vadd.f32 %v4173, %v4202
      %v4217 = vadd.f32 %v4174, %v4203
      %v4218 = vadd.f32 %v4175, %v4204
      %v4219 = vld [vmem:[%s1944 + $0x14] ss:$0 sm:$0xff]
      %v4220 = vld [vmem:[%s1946 + $0x10] sm:$0xfc]
      %v4221 = vld [vmem:[%s1946 + $0x38] sm:$0x1]
      %v4222 = vld [vmem:[%s1946 + $0x60] sm:$0xfc]
      %v4223 = vld [vmem:[%s1946 + $0x88] sm:$0x1]
      %v4224 = vld [vmem:[%s1946 + $0xb0] sm:$0xfc]
      %v4225 = vld [vmem:[%s1946 + $0xd8] sm:$0x1]
      %v4226 = vld [vmem:[%s1946 + $0x100] sm:$0xfc]
      %v4227 = vld [vmem:[%s1946 + $0x128] sm:$0x1]
      %v4228 = vld [vmem:[%s1946 + $0x150] sm:$0xfc]
      %v4229 = vld [vmem:[%s1946 + $0x178] sm:$0x1]
      %v4230 = vld [vmem:[%s1946 + $0x1a0] sm:$0xfc]
      %v4231 = vld [vmem:[%s1946 + $0x1c8] sm:$0x1]
      %v4232 = vld [vmem:[%s1946 + $0x1f0] sm:$0xfc]
      %v4233 = vld [vmem:[%s1946 + $0x218] sm:$0x1]
      %v4234 = vmul.f32 %v4220, %v4219
      %v4235 = vmul.f32 %v4221, %v4219
      %v4236 = vmul.f32 %v4222, %v4219
      %v4237 = vmul.f32 %v4223, %v4219
      %v4238 = vmul.f32 %v4224, %v4219
      %v4239 = vmul.f32 %v4225, %v4219
      %v4240 = vmul.f32 %v4226, %v4219
      %v4241 = vmul.f32 %v4227, %v4219
      %v4242 = vmul.f32 %v4228, %v4219
      %v4243 = vmul.f32 %v4229, %v4219
      %v4244 = vmul.f32 %v4230, %v4219
      %v4245 = vmul.f32 %v4231, %v4219
      %v4246 = vmul.f32 %v4232, %v4219
      %v4247 = vmul.f32 %v4233, %v4219
      %v4262 = vrot.slane %v4234, 2
      %v4263 = vrot.slane %v4235, 2
      %v4264 = vsel %vm1488, %v4262, %v4263
      %v4265 = vrot.slane %v4236, 2
      %v4266 = vrot.slane %v4237, 2
      %v4267 = vsel %vm1488, %v4265, %v4266
      %v4268 = vrot.slane %v4238, 2
      %v4269 = vrot.slane %v4239, 2
      %v4270 = vsel %vm1488, %v4268, %v4269
      %v4271 = vrot.slane %v4240, 2
      %v4272 = vrot.slane %v4241, 2
      %v4273 = vsel %vm1488, %v4271, %v4272
      %v4274 = vrot.slane %v4242, 2
      %v4275 = vrot.slane %v4243, 2
      %v4276 = vsel %vm1488, %v4274, %v4275
      %v4277 = vrot.slane %v4244, 2
      %v4278 = vrot.slane %v4245, 2
      %v4279 = vsel %vm1488, %v4277, %v4278
      %v4280 = vrot.slane %v4246, 2
      %v4281 = vrot.slane %v4247, 2
      %v4282 = vsel %vm1488, %v4280, %v4281
      %v4290 = vadd.f32 %v4212, %v4264
      %v4291 = vadd.f32 %v4213, %v4267
      %v4292 = vadd.f32 %v4214, %v4270
      %v4293 = vadd.f32 %v4215, %v4273
      %v4294 = vadd.f32 %v4216, %v4276
      %v4295 = vadd.f32 %v4217, %v4279
      %v4296 = vadd.f32 %v4218, %v4282
      %v4297 = vld [vmem:[%s2155 + $0x10] ss:$0 sm:$0xff]
      %v4298 = vld [vmem:[%s2157 + $0x10] sm:$0x7f]
      %v4299 = vld [vmem:[%s2157 + $0x60] sm:$0x7f]
      %v4300 = vld [vmem:[%s2157 + $0xb0] sm:$0x7f]
      %v4301 = vld [vmem:[%s2157 + $0x100] sm:$0x7f]
      %v4302 = vld [vmem:[%s2157 + $0x150] sm:$0x7f]
      %v4303 = vld [vmem:[%s2157 + $0x1a0] sm:$0x7f]
      %v4304 = vld [vmem:[%s2157 + $0x1f0] sm:$0x7f]
      %v4305 = vmul.f32 %v4298, %v4297
      %v4306 = vmul.f32 %v4299, %v4297
      %v4307 = vmul.f32 %v4300, %v4297
      %v4308 = vmul.f32 %v4301, %v4297
      %v4309 = vmul.f32 %v4302, %v4297
      %v4310 = vmul.f32 %v4303, %v4297
      %v4311 = vmul.f32 %v4304, %v4297
      %v4312 = vadd.f32 %v4290, %v4305
      %v4313 = vadd.f32 %v4291, %v4306
      %v4314 = vadd.f32 %v4292, %v4307
      %v4315 = vadd.f32 %v4293, %v4308
      %v4316 = vadd.f32 %v4294, %v4309
      %v4317 = vadd.f32 %v4295, %v4310
      %v4318 = vadd.f32 %v4296, %v4311
      %v4319 = vld [vmem:[%s2155 + $0x11] ss:$0 sm:$0xff]
      %v4320 = vld [vmem:[%s2180 + $0x10] sm:$0x7f]
      %v4321 = vld [vmem:[%s2180 + $0x60] sm:$0x7f]
      %v4322 = vld [vmem:[%s2180 + $0xb0] sm:$0x7f]
      %v4323 = vld [vmem:[%s2180 + $0x100] sm:$0x7f]
      %v4324 = vld [vmem:[%s2180 + $0x150] sm:$0x7f]
      %v4325 = vld [vmem:[%s2180 + $0x1a0] sm:$0x7f]
      %v4326 = vld [vmem:[%s2180 + $0x1f0] sm:$0x7f]
      %v4327 = vmul.f32 %v4320, %v4319
      %v4328 = vmul.f32 %v4321, %v4319
      %v4329 = vmul.f32 %v4322, %v4319
      %v4330 = vmul.f32 %v4323, %v4319
      %v4331 = vmul.f32 %v4324, %v4319
      %v4332 = vmul.f32 %v4325, %v4319
      %v4333 = vmul.f32 %v4326, %v4319
      %v4334 = vadd.f32 %v4312, %v4327
      %v4335 = vadd.f32 %v4313, %v4328
      %v4336 = vadd.f32 %v4314, %v4329
      %v4337 = vadd.f32 %v4315, %v4330
      %v4338 = vadd.f32 %v4316, %v4331
      %v4339 = vadd.f32 %v4317, %v4332
      %v4340 = vadd.f32 %v4318, %v4333
      %v4341 = vld [vmem:[%s2155 + $0x12] ss:$0 sm:$0xff]
      %v4342 = vld [vmem:[%s2157 + $0x10] sm:$0xfe]
      %v4343 = vld [vmem:[%s2157 + $0x60] sm:$0xfe]
      %v4344 = vld [vmem:[%s2157 + $0xb0] sm:$0xfe]
      %v4345 = vld [vmem:[%s2157 + $0x100] sm:$0xfe]
      %v4346 = vld [vmem:[%s2157 + $0x150] sm:$0xfe]
      %v4347 = vld [vmem:[%s2157 + $0x1a0] sm:$0xfe]
      %v4348 = vld [vmem:[%s2157 + $0x1f0] sm:$0xfe]
      %v4349 = vmul.f32 %v4342, %v4341
      %v4350 = vmul.f32 %v4343, %v4341
      %v4351 = vmul.f32 %v4344, %v4341
      %v4352 = vmul.f32 %v4345, %v4341
      %v4353 = vmul.f32 %v4346, %v4341
      %v4354 = vmul.f32 %v4347, %v4341
      %v4355 = vmul.f32 %v4348, %v4341
      %v4363 = vrot.slane %v4349, 1
      %v4364 = vrot.slane %v4350, 1
      %v4365 = vrot.slane %v4351, 1
      %v4366 = vrot.slane %v4352, 1
      %v4367 = vrot.slane %v4353, 1
      %v4368 = vrot.slane %v4354, 1
      %v4369 = vrot.slane %v4355, 1
      %v4377 = vadd.f32 %v4334, %v4363
      %v4378 = vadd.f32 %v4335, %v4364
      %v4379 = vadd.f32 %v4336, %v4365
      %v4380 = vadd.f32 %v4337, %v4366
      %v4381 = vadd.f32 %v4338, %v4367
      %v4382 = vadd.f32 %v4339, %v4368
      %v4383 = vadd.f32 %v4340, %v4369
      %v4384 = vld [vmem:[%s2155 + $0x13] ss:$0 sm:$0xff]
      %v4385 = vld [vmem:[%s2180 + $0x10] sm:$0xfe]
      %v4386 = vld [vmem:[%s2180 + $0x60] sm:$0xfe]
      %v4387 = vld [vmem:[%s2180 + $0xb0] sm:$0xfe]
      %v4388 = vld [vmem:[%s2180 + $0x100] sm:$0xfe]
      %v4389 = vld [vmem:[%s2180 + $0x150] sm:$0xfe]
      %v4390 = vld [vmem:[%s2180 + $0x1a0] sm:$0xfe]
      %v4391 = vld [vmem:[%s2180 + $0x1f0] sm:$0xfe]
      %v4392 = vmul.f32 %v4385, %v4384
      %v4393 = vmul.f32 %v4386, %v4384
      %v4394 = vmul.f32 %v4387, %v4384
      %v4395 = vmul.f32 %v4388, %v4384
      %v4396 = vmul.f32 %v4389, %v4384
      %v4397 = vmul.f32 %v4390, %v4384
      %v4398 = vmul.f32 %v4391, %v4384
      %v4406 = vrot.slane %v4392, 1
      %v4407 = vrot.slane %v4393, 1
      %v4408 = vrot.slane %v4394, 1
      %v4409 = vrot.slane %v4395, 1
      %v4410 = vrot.slane %v4396, 1
      %v4411 = vrot.slane %v4397, 1
      %v4412 = vrot.slane %v4398, 1
      %v4420 = vadd.f32 %v4377, %v4406
      %v4421 = vadd.f32 %v4378, %v4407
      %v4422 = vadd.f32 %v4379, %v4408
      %v4423 = vadd.f32 %v4380, %v4409
      %v4424 = vadd.f32 %v4381, %v4410
      %v4425 = vadd.f32 %v4382, %v4411
      %v4426 = vadd.f32 %v4383, %v4412
      %v4427 = vld [vmem:[%s2155 + $0x14] ss:$0 sm:$0xff]
      %v4428 = vld [vmem:[%s2157 + $0x10] sm:$0xfc]
      %v4429 = vld [vmem:[%s2157 + $0x38] sm:$0x1]
      %v4430 = vld [vmem:[%s2157 + $0x60] sm:$0xfc]
      %v4431 = vld [vmem:[%s2157 + $0x88] sm:$0x1]
      %v4432 = vld [vmem:[%s2157 + $0xb0] sm:$0xfc]
      %v4433 = vld [vmem:[%s2157 + $0xd8] sm:$0x1]
      %v4434 = vld [vmem:[%s2157 + $0x100] sm:$0xfc]
      %v4435 = vld [vmem:[%s2157 + $0x128] sm:$0x1]
      %v4436 = vld [vmem:[%s2157 + $0x150] sm:$0xfc]
      %v4437 = vld [vmem:[%s2157 + $0x178] sm:$0x1]
      %v4438 = vld [vmem:[%s2157 + $0x1a0] sm:$0xfc]
      %v4439 = vld [vmem:[%s2157 + $0x1c8] sm:$0x1]
      %v4440 = vld [vmem:[%s2157 + $0x1f0] sm:$0xfc]
      %v4441 = vld [vmem:[%s2157 + $0x218] sm:$0x1]
      %v4442 = vmul.f32 %v4428, %v4427
      %v4443 = vmul.f32 %v4429, %v4427
      %v4444 = vmul.f32 %v4430, %v4427
      %v4445 = vmul.f32 %v4431, %v4427
      %v4446 = vmul.f32 %v4432, %v4427
      %v4447 = vmul.f32 %v4433, %v4427
      %v4448 = vmul.f32 %v4434, %v4427
      %v4449 = vmul.f32 %v4435, %v4427
      %v4450 = vmul.f32 %v4436, %v4427
      %v4451 = vmul.f32 %v4437, %v4427
      %v4452 = vmul.f32 %v4438, %v4427
      %v4453 = vmul.f32 %v4439, %v4427
      %v4454 = vmul.f32 %v4440, %v4427
      %v4455 = vmul.f32 %v4441, %v4427
      %v4470 = vrot.slane %v4442, 2
      %v4471 = vrot.slane %v4443, 2
      %v4472 = vsel %vm1488, %v4470, %v4471
      %v4473 = vrot.slane %v4444, 2
      %v4474 = vrot.slane %v4445, 2
      %v4475 = vsel %vm1488, %v4473, %v4474
      %v4476 = vrot.slane %v4446, 2
      %v4477 = vrot.slane %v4447, 2
      %v4478 = vsel %vm1488, %v4476, %v4477
      %v4479 = vrot.slane %v4448, 2
      %v4480 = vrot.slane %v4449, 2
      %v4481 = vsel %vm1488, %v4479, %v4480
      %v4482 = vrot.slane %v4450, 2
      %v4483 = vrot.slane %v4451, 2
      %v4484 = vsel %vm1488, %v4482, %v4483
      %v4485 = vrot.slane %v4452, 2
      %v4486 = vrot.slane %v4453, 2
      %v4487 = vsel %vm1488, %v4485, %v4486
      %v4488 = vrot.slane %v4454, 2
      %v4489 = vrot.slane %v4455, 2
      %v4490 = vsel %vm1488, %v4488, %v4489
      %v4498 = vadd.f32 %v4420, %v4472
      %v4499 = vadd.f32 %v4421, %v4475
      %v4500 = vadd.f32 %v4422, %v4478
      %v4501 = vadd.f32 %v4423, %v4481
      %v4502 = vadd.f32 %v4424, %v4484
      %v4503 = vadd.f32 %v4425, %v4487
      %v4504 = vadd.f32 %v4426, %v4490
      %v4505 = vpack.c.bf16 %v4498, %v4498
      %v4506 = vpack.c.bf16 %v4499, %v4499
      %v4507 = vpack.c.bf16 %v4500, %v4500
      %v4508 = vpack.c.bf16 %v4501, %v4501
      %v4509 = vpack.c.bf16 %v4502, %v4502
      %v4510 = vpack.c.bf16 %v4503, %v4503
      %v4511 = vpack.c.bf16 %v4504, %v4504
      %v4512 = vld [vmem:[%s163 + $0x8] sm:$0xf]
      %v4513 = vsel %vm2375, %v4505, %v4512
      %4514 = vst [vmem:[%s163 + $0x8] sm:$0xf] %v4513
      %v4515 = vld [vmem:[%s163 + $0x1c] sm:$0xf]
      %v4516 = vsel %vm2375, %v4506, %v4515
      %4517 = vst [vmem:[%s163 + $0x1c] sm:$0xf] %v4516
      %v4518 = vld [vmem:[%s163 + $0x30] sm:$0xf]
      %v4519 = vsel %vm2375, %v4507, %v4518
      %4520 = vst [vmem:[%s163 + $0x30] sm:$0xf] %v4519
      %v4521 = vld [vmem:[%s163 + $0x44] sm:$0xf]
      %v4522 = vsel %vm2375, %v4508, %v4521
      %4523 = vst [vmem:[%s163 + $0x44] sm:$0xf] %v4522
      %v4524 = vld [vmem:[%s163 + $0x58] sm:$0xf]
      %v4525 = vsel %vm2375, %v4509, %v4524
      %4526 = vst [vmem:[%s163 + $0x58] sm:$0xf] %v4525
      %v4527 = vld [vmem:[%s163 + $0x6c] sm:$0xf]
      %v4528 = vsel %vm2375, %v4510, %v4527
      %4529 = vst [vmem:[%s163 + $0x6c] sm:$0xf] %v4528
      %v4530 = vld [vmem:[%s163 + $0x80] sm:$0xf]
      %v4531 = vsel %vm2375, %v4511, %v4530
      %4532 = vst [vmem:[%s163 + $0x80] sm:$0xf] %v4531
      %v4533 = vld [vmem:[#allocation3 + $0x18] ss:$0 sm:$0xff]
      %v4534 = vld [vmem:[#allocation2 + $0x18] sm:$0x7f]
      %v4535 = vld [vmem:[#allocation2 + $0x68] sm:$0x7f]
      %v4536 = vld [vmem:[#allocation2 + $0xb8] sm:$0x7f]
      %v4537 = vld [vmem:[#allocation2 + $0x108] sm:$0x7f]
      %v4538 = vld [vmem:[#allocation2 + $0x158] sm:$0x7f]
      %v4539 = vld [vmem:[#allocation2 + $0x1a8] sm:$0x7f]
      %v4540 = vld [vmem:[#allocation2 + $0x1f8] sm:$0x7f]
      %v4541 = vmul.f32 %v4534, %v4533
      %v4542 = vmul.f32 %v4535, %v4533
      %v4543 = vmul.f32 %v4536, %v4533
      %v4544 = vmul.f32 %v4537, %v4533
      %v4545 = vmul.f32 %v4538, %v4533
      %v4546 = vmul.f32 %v4539, %v4533
      %v4547 = vmul.f32 %v4540, %v4533
      %v4548 = vadd.f32 %v4541, 0.0
      %v4549 = vadd.f32 %v4542, 0.0
      %v4550 = vadd.f32 %v4543, 0.0
      %v4551 = vadd.f32 %v4544, 0.0
      %v4552 = vadd.f32 %v4545, 0.0
      %v4553 = vadd.f32 %v4546, 0.0
      %v4554 = vadd.f32 %v4547, 0.0
      %v4555 = vld [vmem:[#allocation3 + $0x19] ss:$0 sm:$0xff]
      %v4556 = vld [vmem:[%s471 + $0x18] sm:$0x7f]
      %v4557 = vld [vmem:[%s471 + $0x68] sm:$0x7f]
      %v4558 = vld [vmem:[%s471 + $0xb8] sm:$0x7f]
      %v4559 = vld [vmem:[%s471 + $0x108] sm:$0x7f]
      %v4560 = vld [vmem:[%s471 + $0x158] sm:$0x7f]
      %v4561 = vld [vmem:[%s471 + $0x1a8] sm:$0x7f]
      %v4562 = vld [vmem:[%s471 + $0x1f8] sm:$0x7f]
      %v4563 = vmul.f32 %v4556, %v4555
      %v4564 = vmul.f32 %v4557, %v4555
      %v4565 = vmul.f32 %v4558, %v4555
      %v4566 = vmul.f32 %v4559, %v4555
      %v4567 = vmul.f32 %v4560, %v4555
      %v4568 = vmul.f32 %v4561, %v4555
      %v4569 = vmul.f32 %v4562, %v4555
      %v4570 = vadd.f32 %v4548, %v4563
      %v4571 = vadd.f32 %v4549, %v4564
      %v4572 = vadd.f32 %v4550, %v4565
      %v4573 = vadd.f32 %v4551, %v4566
      %v4574 = vadd.f32 %v4552, %v4567
      %v4575 = vadd.f32 %v4553, %v4568
      %v4576 = vadd.f32 %v4554, %v4569
      %v4577 = vld [vmem:[#allocation3 + $0x1a] ss:$0 sm:$0xff]
      %v4578 = vld [vmem:[#allocation2 + $0x18] sm:$0xfe]
      %v4579 = vld [vmem:[#allocation2 + $0x68] sm:$0xfe]
      %v4580 = vld [vmem:[#allocation2 + $0xb8] sm:$0xfe]
      %v4581 = vld [vmem:[#allocation2 + $0x108] sm:$0xfe]
      %v4582 = vld [vmem:[#allocation2 + $0x158] sm:$0xfe]
      %v4583 = vld [vmem:[#allocation2 + $0x1a8] sm:$0xfe]
      %v4584 = vld [vmem:[#allocation2 + $0x1f8] sm:$0xfe]
      %v4585 = vmul.f32 %v4578, %v4577
      %v4586 = vmul.f32 %v4579, %v4577
      %v4587 = vmul.f32 %v4580, %v4577
      %v4588 = vmul.f32 %v4581, %v4577
      %v4589 = vmul.f32 %v4582, %v4577
      %v4590 = vmul.f32 %v4583, %v4577
      %v4591 = vmul.f32 %v4584, %v4577
      %v4599 = vrot.slane %v4585, 1
      %v4600 = vrot.slane %v4586, 1
      %v4601 = vrot.slane %v4587, 1
      %v4602 = vrot.slane %v4588, 1
      %v4603 = vrot.slane %v4589, 1
      %v4604 = vrot.slane %v4590, 1
      %v4605 = vrot.slane %v4591, 1
      %v4613 = vadd.f32 %v4570, %v4599
      %v4614 = vadd.f32 %v4571, %v4600
      %v4615 = vadd.f32 %v4572, %v4601
      %v4616 = vadd.f32 %v4573, %v4602
      %v4617 = vadd.f32 %v4574, %v4603
      %v4618 = vadd.f32 %v4575, %v4604
      %v4619 = vadd.f32 %v4576, %v4605
      %v4620 = vld [vmem:[#allocation3 + $0x1b] ss:$0 sm:$0xff]
      %v4621 = vld [vmem:[%s471 + $0x18] sm:$0xfe]
      %v4622 = vld [vmem:[%s471 + $0x68] sm:$0xfe]
      %v4623 = vld [vmem:[%s471 + $0xb8] sm:$0xfe]
      %v4624 = vld [vmem:[%s471 + $0x108] sm:$0xfe]
      %v4625 = vld [vmem:[%s471 + $0x158] sm:$0xfe]
      %v4626 = vld [vmem:[%s471 + $0x1a8] sm:$0xfe]
      %v4627 = vld [vmem:[%s471 + $0x1f8] sm:$0xfe]
      %v4628 = vmul.f32 %v4621, %v4620
      %v4629 = vmul.f32 %v4622, %v4620
      %v4630 = vmul.f32 %v4623, %v4620
      %v4631 = vmul.f32 %v4624, %v4620
      %v4632 = vmul.f32 %v4625, %v4620
      %v4633 = vmul.f32 %v4626, %v4620
      %v4634 = vmul.f32 %v4627, %v4620
      %v4642 = vrot.slane %v4628, 1
      %v4643 = vrot.slane %v4629, 1
      %v4644 = vrot.slane %v4630, 1
      %v4645 = vrot.slane %v4631, 1
      %v4646 = vrot.slane %v4632, 1
      %v4647 = vrot.slane %v4633, 1
      %v4648 = vrot.slane %v4634, 1
      %v4656 = vadd.f32 %v4613, %v4642
      %v4657 = vadd.f32 %v4614, %v4643
      %v4658 = vadd.f32 %v4615, %v4644
      %v4659 = vadd.f32 %v4616, %v4645
      %v4660 = vadd.f32 %v4617, %v4646
      %v4661 = vadd.f32 %v4618, %v4647
      %v4662 = vadd.f32 %v4619, %v4648
      %v4663 = vld [vmem:[#allocation3 + $0x1c] ss:$0 sm:$0xff]
      %v4664 = vld [vmem:[#allocation2 + $0x18] sm:$0xfc]
      %v4665 = vld [vmem:[#allocation2 + $0x40] sm:$0x1]
      %v4666 = vld [vmem:[#allocation2 + $0x68] sm:$0xfc]
      %v4667 = vld [vmem:[#allocation2 + $0x90] sm:$0x1]
      %v4668 = vld [vmem:[#allocation2 + $0xb8] sm:$0xfc]
      %v4669 = vld [vmem:[#allocation2 + $0xe0] sm:$0x1]
      %v4670 = vld [vmem:[#allocation2 + $0x108] sm:$0xfc]
      %v4671 = vld [vmem:[#allocation2 + $0x130] sm:$0x1]
      %v4672 = vld [vmem:[#allocation2 + $0x158] sm:$0xfc]
      %v4673 = vld [vmem:[#allocation2 + $0x180] sm:$0x1]
      %v4674 = vld [vmem:[#allocation2 + $0x1a8] sm:$0xfc]
      %v4675 = vld [vmem:[#allocation2 + $0x1d0] sm:$0x1]
      %v4676 = vld [vmem:[#allocation2 + $0x1f8] sm:$0xfc]
      %v4677 = vld [vmem:[#allocation2 + $0x220] sm:$0x1]
      %v4678 = vmul.f32 %v4664, %v4663
      %v4679 = vmul.f32 %v4665, %v4663
      %v4680 = vmul.f32 %v4666, %v4663
      %v4681 = vmul.f32 %v4667, %v4663
      %v4682 = vmul.f32 %v4668, %v4663
      %v4683 = vmul.f32 %v4669, %v4663
      %v4684 = vmul.f32 %v4670, %v4663
      %v4685 = vmul.f32 %v4671, %v4663
      %v4686 = vmul.f32 %v4672, %v4663
      %v4687 = vmul.f32 %v4673, %v4663
      %v4688 = vmul.f32 %v4674, %v4663
      %v4689 = vmul.f32 %v4675, %v4663
      %v4690 = vmul.f32 %v4676, %v4663
      %v4691 = vmul.f32 %v4677, %v4663
      %v4706 = vrot.slane %v4678, 2
      %v4707 = vrot.slane %v4679, 2
      %v4708 = vsel %vm1488, %v4706, %v4707
      %v4709 = vrot.slane %v4680, 2
      %v4710 = vrot.slane %v4681, 2
      %v4711 = vsel %vm1488, %v4709, %v4710
      %v4712 = vrot.slane %v4682, 2
      %v4713 = vrot.slane %v4683, 2
      %v4714 = vsel %vm1488, %v4712, %v4713
      %v4715 = vrot.slane %v4684, 2
      %v4716 = vrot.slane %v4685, 2
      %v4717 = vsel %vm1488, %v4715, %v4716
      %v4718 = vrot.slane %v4686, 2
      %v4719 = vrot.slane %v4687, 2
      %v4720 = vsel %vm1488, %v4718, %v4719
      %v4721 = vrot.slane %v4688, 2
      %v4722 = vrot.slane %v4689, 2
      %v4723 = vsel %vm1488, %v4721, %v4722
      %v4724 = vrot.slane %v4690, 2
      %v4725 = vrot.slane %v4691, 2
      %v4726 = vsel %vm1488, %v4724, %v4725
      %v4734 = vadd.f32 %v4656, %v4708
      %v4735 = vadd.f32 %v4657, %v4711
      %v4736 = vadd.f32 %v4658, %v4714
      %v4737 = vadd.f32 %v4659, %v4717
      %v4738 = vadd.f32 %v4660, %v4720
      %v4739 = vadd.f32 %v4661, %v4723
      %v4740 = vadd.f32 %v4662, %v4726
      %v4741 = vld [vmem:[%s1524 + $0x18] ss:$0 sm:$0xff]
      %v4742 = vld [vmem:[%s743 + $0x18] sm:$0x7f]
      %v4743 = vld [vmem:[%s743 + $0x68] sm:$0x7f]
      %v4744 = vld [vmem:[%s743 + $0xb8] sm:$0x7f]
      %v4745 = vld [vmem:[%s743 + $0x108] sm:$0x7f]
      %v4746 = vld [vmem:[%s743 + $0x158] sm:$0x7f]
      %v4747 = vld [vmem:[%s743 + $0x1a8] sm:$0x7f]
      %v4748 = vld [vmem:[%s743 + $0x1f8] sm:$0x7f]
      %v4749 = vmul.f32 %v4742, %v4741
      %v4750 = vmul.f32 %v4743, %v4741
      %v4751 = vmul.f32 %v4744, %v4741
      %v4752 = vmul.f32 %v4745, %v4741
      %v4753 = vmul.f32 %v4746, %v4741
      %v4754 = vmul.f32 %v4747, %v4741
      %v4755 = vmul.f32 %v4748, %v4741
      %v4756 = vadd.f32 %v4734, %v4749
      %v4757 = vadd.f32 %v4735, %v4750
      %v4758 = vadd.f32 %v4736, %v4751
      %v4759 = vadd.f32 %v4737, %v4752
      %v4760 = vadd.f32 %v4738, %v4753
      %v4761 = vadd.f32 %v4739, %v4754
      %v4762 = vadd.f32 %v4740, %v4755
      %v4763 = vld [vmem:[%s1524 + $0x19] ss:$0 sm:$0xff]
      %v4764 = vld [vmem:[%s1015 + $0x18] sm:$0x7f]
      %v4765 = vld [vmem:[%s1015 + $0x68] sm:$0x7f]
      %v4766 = vld [vmem:[%s1015 + $0xb8] sm:$0x7f]
      %v4767 = vld [vmem:[%s1015 + $0x108] sm:$0x7f]
      %v4768 = vld [vmem:[%s1015 + $0x158] sm:$0x7f]
      %v4769 = vld [vmem:[%s1015 + $0x1a8] sm:$0x7f]
      %v4770 = vld [vmem:[%s1015 + $0x1f8] sm:$0x7f]
      %v4771 = vmul.f32 %v4764, %v4763
      %v4772 = vmul.f32 %v4765, %v4763
      %v4773 = vmul.f32 %v4766, %v4763
      %v4774 = vmul.f32 %v4767, %v4763
      %v4775 = vmul.f32 %v4768, %v4763
      %v4776 = vmul.f32 %v4769, %v4763
      %v4777 = vmul.f32 %v4770, %v4763
      %v4778 = vadd.f32 %v4756, %v4771
      %v4779 = vadd.f32 %v4757, %v4772
      %v4780 = vadd.f32 %v4758, %v4773
      %v4781 = vadd.f32 %v4759, %v4774
      %v4782 = vadd.f32 %v4760, %v4775
      %v4783 = vadd.f32 %v4761, %v4776
      %v4784 = vadd.f32 %v4762, %v4777
      %v4785 = vld [vmem:[%s1524 + $0x1a] ss:$0 sm:$0xff]
      %v4786 = vld [vmem:[%s743 + $0x18] sm:$0xfe]
      %v4787 = vld [vmem:[%s743 + $0x68] sm:$0xfe]
      %v4788 = vld [vmem:[%s743 + $0xb8] sm:$0xfe]
      %v4789 = vld [vmem:[%s743 + $0x108] sm:$0xfe]
      %v4790 = vld [vmem:[%s743 + $0x158] sm:$0xfe]
      %v4791 = vld [vmem:[%s743 + $0x1a8] sm:$0xfe]
      %v4792 = vld [vmem:[%s743 + $0x1f8] sm:$0xfe]
      %v4793 = vmul.f32 %v4786, %v4785
      %v4794 = vmul.f32 %v4787, %v4785
      %v4795 = vmul.f32 %v4788, %v4785
      %v4796 = vmul.f32 %v4789, %v4785
      %v4797 = vmul.f32 %v4790, %v4785
      %v4798 = vmul.f32 %v4791, %v4785
      %v4799 = vmul.f32 %v4792, %v4785
      %v4807 = vrot.slane %v4793, 1
      %v4808 = vrot.slane %v4794, 1
      %v4809 = vrot.slane %v4795, 1
      %v4810 = vrot.slane %v4796, 1
      %v4811 = vrot.slane %v4797, 1
      %v4812 = vrot.slane %v4798, 1
      %v4813 = vrot.slane %v4799, 1
      %v4821 = vadd.f32 %v4778, %v4807
      %v4822 = vadd.f32 %v4779, %v4808
      %v4823 = vadd.f32 %v4780, %v4809
      %v4824 = vadd.f32 %v4781, %v4810
      %v4825 = vadd.f32 %v4782, %v4811
      %v4826 = vadd.f32 %v4783, %v4812
      %v4827 = vadd.f32 %v4784, %v4813
      %v4828 = vld [vmem:[%s1524 + $0x1b] ss:$0 sm:$0xff]
      %v4829 = vld [vmem:[%s1015 + $0x18] sm:$0xfe]
      %v4830 = vld [vmem:[%s1015 + $0x68] sm:$0xfe]
      %v4831 = vld [vmem:[%s1015 + $0xb8] sm:$0xfe]
      %v4832 = vld [vmem:[%s1015 + $0x108] sm:$0xfe]
      %v4833 = vld [vmem:[%s1015 + $0x158] sm:$0xfe]
      %v4834 = vld [vmem:[%s1015 + $0x1a8] sm:$0xfe]
      %v4835 = vld [vmem:[%s1015 + $0x1f8] sm:$0xfe]
      %v4836 = vmul.f32 %v4829, %v4828
      %v4837 = vmul.f32 %v4830, %v4828
      %v4838 = vmul.f32 %v4831, %v4828
      %v4839 = vmul.f32 %v4832, %v4828
      %v4840 = vmul.f32 %v4833, %v4828
      %v4841 = vmul.f32 %v4834, %v4828
      %v4842 = vmul.f32 %v4835, %v4828
      %v4850 = vrot.slane %v4836, 1
      %v4851 = vrot.slane %v4837, 1
      %v4852 = vrot.slane %v4838, 1
      %v4853 = vrot.slane %v4839, 1
      %v4854 = vrot.slane %v4840, 1
      %v4855 = vrot.slane %v4841, 1
      %v4856 = vrot.slane %v4842, 1
      %v4864 = vadd.f32 %v4821, %v4850
      %v4865 = vadd.f32 %v4822, %v4851
      %v4866 = vadd.f32 %v4823, %v4852
      %v4867 = vadd.f32 %v4824, %v4853
      %v4868 = vadd.f32 %v4825, %v4854
      %v4869 = vadd.f32 %v4826, %v4855
      %v4870 = vadd.f32 %v4827, %v4856
      %v4871 = vld [vmem:[%s1524 + $0x1c] ss:$0 sm:$0xff]
      %v4872 = vld [vmem:[%s743 + $0x18] sm:$0xfc]
      %v4873 = vld [vmem:[%s743 + $0x40] sm:$0x1]
      %v4874 = vld [vmem:[%s743 + $0x68] sm:$0xfc]
      %v4875 = vld [vmem:[%s743 + $0x90] sm:$0x1]
      %v4876 = vld [vmem:[%s743 + $0xb8] sm:$0xfc]
      %v4877 = vld [vmem:[%s743 + $0xe0] sm:$0x1]
      %v4878 = vld [vmem:[%s743 + $0x108] sm:$0xfc]
      %v4879 = vld [vmem:[%s743 + $0x130] sm:$0x1]
      %v4880 = vld [vmem:[%s743 + $0x158] sm:$0xfc]
      %v4881 = vld [vmem:[%s743 + $0x180] sm:$0x1]
      %v4882 = vld [vmem:[%s743 + $0x1a8] sm:$0xfc]
      %v4883 = vld [vmem:[%s743 + $0x1d0] sm:$0x1]
      %v4884 = vld [vmem:[%s743 + $0x1f8] sm:$0xfc]
      %v4885 = vld [vmem:[%s743 + $0x220] sm:$0x1]
      %v4886 = vmul.f32 %v4872, %v4871
      %v4887 = vmul.f32 %v4873, %v4871
      %v4888 = vmul.f32 %v4874, %v4871
      %v4889 = vmul.f32 %v4875, %v4871
      %v4890 = vmul.f32 %v4876, %v4871
      %v4891 = vmul.f32 %v4877, %v4871
      %v4892 = vmul.f32 %v4878, %v4871
      %v4893 = vmul.f32 %v4879, %v4871
      %v4894 = vmul.f32 %v4880, %v4871
      %v4895 = vmul.f32 %v4881, %v4871
      %v4896 = vmul.f32 %v4882, %v4871
      %v4897 = vmul.f32 %v4883, %v4871
      %v4898 = vmul.f32 %v4884, %v4871
      %v4899 = vmul.f32 %v4885, %v4871
      %v4914 = vrot.slane %v4886, 2
      %v4915 = vrot.slane %v4887, 2
      %v4916 = vsel %vm1488, %v4914, %v4915
      %v4917 = vrot.slane %v4888, 2
      %v4918 = vrot.slane %v4889, 2
      %v4919 = vsel %vm1488, %v4917, %v4918
      %v4920 = vrot.slane %v4890, 2
      %v4921 = vrot.slane %v4891, 2
      %v4922 = vsel %vm1488, %v4920, %v4921
      %v4923 = vrot.slane %v4892, 2
      %v4924 = vrot.slane %v4893, 2
      %v4925 = vsel %vm1488, %v4923, %v4924
      %v4926 = vrot.slane %v4894, 2
      %v4927 = vrot.slane %v4895, 2
      %v4928 = vsel %vm1488, %v4926, %v4927
      %v4929 = vrot.slane %v4896, 2
      %v4930 = vrot.slane %v4897, 2
      %v4931 = vsel %vm1488, %v4929, %v4930
      %v4932 = vrot.slane %v4898, 2
      %v4933 = vrot.slane %v4899, 2
      %v4934 = vsel %vm1488, %v4932, %v4933
      %v4942 = vadd.f32 %v4864, %v4916
      %v4943 = vadd.f32 %v4865, %v4919
      %v4944 = vadd.f32 %v4866, %v4922
      %v4945 = vadd.f32 %v4867, %v4925
      %v4946 = vadd.f32 %v4868, %v4928
      %v4947 = vadd.f32 %v4869, %v4931
      %v4948 = vadd.f32 %v4870, %v4934
      %v4949 = vld [vmem:[%s1733 + $0x18] ss:$0 sm:$0xff]
      %v4950 = vld [vmem:[%s1735 + $0x18] sm:$0x7f]
      %v4951 = vld [vmem:[%s1735 + $0x68] sm:$0x7f]
      %v4952 = vld [vmem:[%s1735 + $0xb8] sm:$0x7f]
      %v4953 = vld [vmem:[%s1735 + $0x108] sm:$0x7f]
      %v4954 = vld [vmem:[%s1735 + $0x158] sm:$0x7f]
      %v4955 = vld [vmem:[%s1735 + $0x1a8] sm:$0x7f]
      %v4956 = vld [vmem:[%s1735 + $0x1f8] sm:$0x7f]
      %v4957 = vmul.f32 %v4950, %v4949
      %v4958 = vmul.f32 %v4951, %v4949
      %v4959 = vmul.f32 %v4952, %v4949
      %v4960 = vmul.f32 %v4953, %v4949
      %v4961 = vmul.f32 %v4954, %v4949
      %v4962 = vmul.f32 %v4955, %v4949
      %v4963 = vmul.f32 %v4956, %v4949
      %v4964 = vadd.f32 %v4942, %v4957
      %v4965 = vadd.f32 %v4943, %v4958
      %v4966 = vadd.f32 %v4944, %v4959
      %v4967 = vadd.f32 %v4945, %v4960
      %v4968 = vadd.f32 %v4946, %v4961
      %v4969 = vadd.f32 %v4947, %v4962
      %v4970 = vadd.f32 %v4948, %v4963
      %v4971 = vld [vmem:[%s1733 + $0x19] ss:$0 sm:$0xff]
      %v4972 = vld [vmem:[%s1758 + $0x18] sm:$0x7f]
      %v4973 = vld [vmem:[%s1758 + $0x68] sm:$0x7f]
      %v4974 = vld [vmem:[%s1758 + $0xb8] sm:$0x7f]
      %v4975 = vld [vmem:[%s1758 + $0x108] sm:$0x7f]
      %v4976 = vld [vmem:[%s1758 + $0x158] sm:$0x7f]
      %v4977 = vld [vmem:[%s1758 + $0x1a8] sm:$0x7f]
      %v4978 = vld [vmem:[%s1758 + $0x1f8] sm:$0x7f]
      %v4979 = vmul.f32 %v4972, %v4971
      %v4980 = vmul.f32 %v4973, %v4971
      %v4981 = vmul.f32 %v4974, %v4971
      %v4982 = vmul.f32 %v4975, %v4971
      %v4983 = vmul.f32 %v4976, %v4971
      %v4984 = vmul.f32 %v4977, %v4971
      %v4985 = vmul.f32 %v4978, %v4971
      %v4986 = vadd.f32 %v4964, %v4979
      %v4987 = vadd.f32 %v4965, %v4980
      %v4988 = vadd.f32 %v4966, %v4981
      %v4989 = vadd.f32 %v4967, %v4982
      %v4990 = vadd.f32 %v4968, %v4983
      %v4991 = vadd.f32 %v4969, %v4984
      %v4992 = vadd.f32 %v4970, %v4985
      %v4993 = vld [vmem:[%s1733 + $0x1a] ss:$0 sm:$0xff]
      %v4994 = vld [vmem:[%s1735 + $0x18] sm:$0xfe]
      %v4995 = vld [vmem:[%s1735 + $0x68] sm:$0xfe]
      %v4996 = vld [vmem:[%s1735 + $0xb8] sm:$0xfe]
      %v4997 = vld [vmem:[%s1735 + $0x108] sm:$0xfe]
      %v4998 = vld [vmem:[%s1735 + $0x158] sm:$0xfe]
      %v4999 = vld [vmem:[%s1735 + $0x1a8] sm:$0xfe]
      %v5000 = vld [vmem:[%s1735 + $0x1f8] sm:$0xfe]
      %v5001 = vmul.f32 %v4994, %v4993
      %v5002 = vmul.f32 %v4995, %v4993
      %v5003 = vmul.f32 %v4996, %v4993
      %v5004 = vmul.f32 %v4997, %v4993
      %v5005 = vmul.f32 %v4998, %v4993
      %v5006 = vmul.f32 %v4999, %v4993
      %v5007 = vmul.f32 %v5000, %v4993
      %v5015 = vrot.slane %v5001, 1
      %v5016 = vrot.slane %v5002, 1
      %v5017 = vrot.slane %v5003, 1
      %v5018 = vrot.slane %v5004, 1
      %v5019 = vrot.slane %v5005, 1
      %v5020 = vrot.slane %v5006, 1
      %v5021 = vrot.slane %v5007, 1
      %v5029 = vadd.f32 %v4986, %v5015
      %v5030 = vadd.f32 %v4987, %v5016
      %v5031 = vadd.f32 %v4988, %v5017
      %v5032 = vadd.f32 %v4989, %v5018
      %v5033 = vadd.f32 %v4990, %v5019
      %v5034 = vadd.f32 %v4991, %v5020
      %v5035 = vadd.f32 %v4992, %v5021
      %v5036 = vld [vmem:[%s1733 + $0x1b] ss:$0 sm:$0xff]
      %v5037 = vld [vmem:[%s1758 + $0x18] sm:$0xfe]
      %v5038 = vld [vmem:[%s1758 + $0x68] sm:$0xfe]
      %v5039 = vld [vmem:[%s1758 + $0xb8] sm:$0xfe]
      %v5040 = vld [vmem:[%s1758 + $0x108] sm:$0xfe]
      %v5041 = vld [vmem:[%s1758 + $0x158] sm:$0xfe]
      %v5042 = vld [vmem:[%s1758 + $0x1a8] sm:$0xfe]
      %v5043 = vld [vmem:[%s1758 + $0x1f8] sm:$0xfe]
      %v5044 = vmul.f32 %v5037, %v5036
      %v5045 = vmul.f32 %v5038, %v5036
      %v5046 = vmul.f32 %v5039, %v5036
      %v5047 = vmul.f32 %v5040, %v5036
      %v5048 = vmul.f32 %v5041, %v5036
      %v5049 = vmul.f32 %v5042, %v5036
      %v5050 = vmul.f32 %v5043, %v5036
      %v5058 = vrot.slane %v5044, 1
      %v5059 = vrot.slane %v5045, 1
      %v5060 = vrot.slane %v5046, 1
      %v5061 = vrot.slane %v5047, 1
      %v5062 = vrot.slane %v5048, 1
      %v5063 = vrot.slane %v5049, 1
      %v5064 = vrot.slane %v5050, 1
      %v5072 = vadd.f32 %v5029, %v5058
      %v5073 = vadd.f32 %v5030, %v5059
      %v5074 = vadd.f32 %v5031, %v5060
      %v5075 = vadd.f32 %v5032, %v5061
      %v5076 = vadd.f32 %v5033, %v5062
      %v5077 = vadd.f32 %v5034, %v5063
      %v5078 = vadd.f32 %v5035, %v5064
      %v5079 = vld [vmem:[%s1733 + $0x1c] ss:$0 sm:$0xff]
      %v5080 = vld [vmem:[%s1735 + $0x18] sm:$0xfc]
      %v5081 = vld [vmem:[%s1735 + $0x40] sm:$0x1]
      %v5082 = vld [vmem:[%s1735 + $0x68] sm:$0xfc]
      %v5083 = vld [vmem:[%s1735 + $0x90] sm:$0x1]
      %v5084 = vld [vmem:[%s1735 + $0xb8] sm:$0xfc]
      %v5085 = vld [vmem:[%s1735 + $0xe0] sm:$0x1]
      %v5086 = vld [vmem:[%s1735 + $0x108] sm:$0xfc]
      %v5087 = vld [vmem:[%s1735 + $0x130] sm:$0x1]
      %v5088 = vld [vmem:[%s1735 + $0x158] sm:$0xfc]
      %v5089 = vld [vmem:[%s1735 + $0x180] sm:$0x1]
      %v5090 = vld [vmem:[%s1735 + $0x1a8] sm:$0xfc]
      %v5091 = vld [vmem:[%s1735 + $0x1d0] sm:$0x1]
      %v5092 = vld [vmem:[%s1735 + $0x1f8] sm:$0xfc]
      %v5093 = vld [vmem:[%s1735 + $0x220] sm:$0x1]
      %v5094 = vmul.f32 %v5080, %v5079
      %v5095 = vmul.f32 %v5081, %v5079
      %v5096 = vmul.f32 %v5082, %v5079
      %v5097 = vmul.f32 %v5083, %v5079
      %v5098 = vmul.f32 %v5084, %v5079
      %v5099 = vmul.f32 %v5085, %v5079
      %v5100 = vmul.f32 %v5086, %v5079
      %v5101 = vmul.f32 %v5087, %v5079
      %v5102 = vmul.f32 %v5088, %v5079
      %v5103 = vmul.f32 %v5089, %v5079
      %v5104 = vmul.f32 %v5090, %v5079
      %v5105 = vmul.f32 %v5091, %v5079
      %v5106 = vmul.f32 %v5092, %v5079
      %v5107 = vmul.f32 %v5093, %v5079
      %v5122 = vrot.slane %v5094, 2
      %v5123 = vrot.slane %v5095, 2
      %v5124 = vsel %vm1488, %v5122, %v5123
      %v5125 = vrot.slane %v5096, 2
      %v5126 = vrot.slane %v5097, 2
      %v5127 = vsel %vm1488, %v5125, %v5126
      %v5128 = vrot.slane %v5098, 2
      %v5129 = vrot.slane %v5099, 2
      %v5130 = vsel %vm1488, %v5128, %v5129
      %v5131 = vrot.slane %v5100, 2
      %v5132 = vrot.slane %v5101, 2
      %v5133 = vsel %vm1488, %v5131, %v5132
      %v5134 = vrot.slane %v5102, 2
      %v5135 = vrot.slane %v5103, 2
      %v5136 = vsel %vm1488, %v5134, %v5135
      %v5137 = vrot.slane %v5104, 2
      %v5138 = vrot.slane %v5105, 2
      %v5139 = vsel %vm1488, %v5137, %v5138
      %v5140 = vrot.slane %v5106, 2
      %v5141 = vrot.slane %v5107, 2
      %v5142 = vsel %vm1488, %v5140, %v5141
      %v5150 = vadd.f32 %v5072, %v5124
      %v5151 = vadd.f32 %v5073, %v5127
      %v5152 = vadd.f32 %v5074, %v5130
      %v5153 = vadd.f32 %v5075, %v5133
      %v5154 = vadd.f32 %v5076, %v5136
      %v5155 = vadd.f32 %v5077, %v5139
      %v5156 = vadd.f32 %v5078, %v5142
      %v5157 = vld [vmem:[%s1944 + $0x18] ss:$0 sm:$0xff]
      %v5158 = vld [vmem:[%s1946 + $0x18] sm:$0x7f]
      %v5159 = vld [vmem:[%s1946 + $0x68] sm:$0x7f]
      %v5160 = vld [vmem:[%s1946 + $0xb8] sm:$0x7f]
      %v5161 = vld [vmem:[%s1946 + $0x108] sm:$0x7f]
      %v5162 = vld [vmem:[%s1946 + $0x158] sm:$0x7f]
      %v5163 = vld [vmem:[%s1946 + $0x1a8] sm:$0x7f]
      %v5164 = vld [vmem:[%s1946 + $0x1f8] sm:$0x7f]
      %v5165 = vmul.f32 %v5158, %v5157
      %v5166 = vmul.f32 %v5159, %v5157
      %v5167 = vmul.f32 %v5160, %v5157
      %v5168 = vmul.f32 %v5161, %v5157
      %v5169 = vmul.f32 %v5162, %v5157
      %v5170 = vmul.f32 %v5163, %v5157
      %v5171 = vmul.f32 %v5164, %v5157
      %v5172 = vadd.f32 %v5150, %v5165
      %v5173 = vadd.f32 %v5151, %v5166
      %v5174 = vadd.f32 %v5152, %v5167
      %v5175 = vadd.f32 %v5153, %v5168
      %v5176 = vadd.f32 %v5154, %v5169
      %v5177 = vadd.f32 %v5155, %v5170
      %v5178 = vadd.f32 %v5156, %v5171
      %v5179 = vld [vmem:[%s1944 + $0x19] ss:$0 sm:$0xff]
      %v5180 = vld [vmem:[%s1969 + $0x18] sm:$0x7f]
      %v5181 = vld [vmem:[%s1969 + $0x68] sm:$0x7f]
      %v5182 = vld [vmem:[%s1969 + $0xb8] sm:$0x7f]
      %v5183 = vld [vmem:[%s1969 + $0x108] sm:$0x7f]
      %v5184 = vld [vmem:[%s1969 + $0x158] sm:$0x7f]
      %v5185 = vld [vmem:[%s1969 + $0x1a8] sm:$0x7f]
      %v5186 = vld [vmem:[%s1969 + $0x1f8] sm:$0x7f]
      %v5187 = vmul.f32 %v5180, %v5179
      %v5188 = vmul.f32 %v5181, %v5179
      %v5189 = vmul.f32 %v5182, %v5179
      %v5190 = vmul.f32 %v5183, %v5179
      %v5191 = vmul.f32 %v5184, %v5179
      %v5192 = vmul.f32 %v5185, %v5179
      %v5193 = vmul.f32 %v5186, %v5179
      %v5194 = vadd.f32 %v5172, %v5187
      %v5195 = vadd.f32 %v5173, %v5188
      %v5196 = vadd.f32 %v5174, %v5189
      %v5197 = vadd.f32 %v5175, %v5190
      %v5198 = vadd.f32 %v5176, %v5191
      %v5199 = vadd.f32 %v5177, %v5192
      %v5200 = vadd.f32 %v5178, %v5193
      %v5201 = vld [vmem:[%s1944 + $0x1a] ss:$0 sm:$0xff]
      %v5202 = vld [vmem:[%s1946 + $0x18] sm:$0xfe]
      %v5203 = vld [vmem:[%s1946 + $0x68] sm:$0xfe]
      %v5204 = vld [vmem:[%s1946 + $0xb8] sm:$0xfe]
      %v5205 = vld [vmem:[%s1946 + $0x108] sm:$0xfe]
      %v5206 = vld [vmem:[%s1946 + $0x158] sm:$0xfe]
      %v5207 = vld [vmem:[%s1946 + $0x1a8] sm:$0xfe]
      %v5208 = vld [vmem:[%s1946 + $0x1f8] sm:$0xfe]
      %v5209 = vmul.f32 %v5202, %v5201
      %v5210 = vmul.f32 %v5203, %v5201
      %v5211 = vmul.f32 %v5204, %v5201
      %v5212 = vmul.f32 %v5205, %v5201
      %v5213 = vmul.f32 %v5206, %v5201
      %v5214 = vmul.f32 %v5207, %v5201
      %v5215 = vmul.f32 %v5208, %v5201
      %v5223 = vrot.slane %v5209, 1
      %v5224 = vrot.slane %v5210, 1
      %v5225 = vrot.slane %v5211, 1
      %v5226 = vrot.slane %v5212, 1
      %v5227 = vrot.slane %v5213, 1
      %v5228 = vrot.slane %v5214, 1
      %v5229 = vrot.slane %v5215, 1
      %v5237 = vadd.f32 %v5194, %v5223
      %v5238 = vadd.f32 %v5195, %v5224
      %v5239 = vadd.f32 %v5196, %v5225
      %v5240 = vadd.f32 %v5197, %v5226
      %v5241 = vadd.f32 %v5198, %v5227
      %v5242 = vadd.f32 %v5199, %v5228
      %v5243 = vadd.f32 %v5200, %v5229
      %v5244 = vld [vmem:[%s1944 + $0x1b] ss:$0 sm:$0xff]
      %v5245 = vld [vmem:[%s1969 + $0x18] sm:$0xfe]
      %v5246 = vld [vmem:[%s1969 + $0x68] sm:$0xfe]
      %v5247 = vld [vmem:[%s1969 + $0xb8] sm:$0xfe]
      %v5248 = vld [vmem:[%s1969 + $0x108] sm:$0xfe]
      %v5249 = vld [vmem:[%s1969 + $0x158] sm:$0xfe]
      %v5250 = vld [vmem:[%s1969 + $0x1a8] sm:$0xfe]
      %v5251 = vld [vmem:[%s1969 + $0x1f8] sm:$0xfe]
      %v5252 = vmul.f32 %v5245, %v5244
      %v5253 = vmul.f32 %v5246, %v5244
      %v5254 = vmul.f32 %v5247, %v5244
      %v5255 = vmul.f32 %v5248, %v5244
      %v5256 = vmul.f32 %v5249, %v5244
      %v5257 = vmul.f32 %v5250, %v5244
      %v5258 = vmul.f32 %v5251, %v5244
      %v5266 = vrot.slane %v5252, 1
      %v5267 = vrot.slane %v5253, 1
      %v5268 = vrot.slane %v5254, 1
      %v5269 = vrot.slane %v5255, 1
      %v5270 = vrot.slane %v5256, 1
      %v5271 = vrot.slane %v5257, 1
      %v5272 = vrot.slane %v5258, 1
      %v5280 = vadd.f32 %v5237, %v5266
      %v5281 = vadd.f32 %v5238, %v5267
      %v5282 = vadd.f32 %v5239, %v5268
      %v5283 = vadd.f32 %v5240, %v5269
      %v5284 = vadd.f32 %v5241, %v5270
      %v5285 = vadd.f32 %v5242, %v5271
      %v5286 = vadd.f32 %v5243, %v5272
      %v5287 = vld [vmem:[%s1944 + $0x1c] ss:$0 sm:$0xff]
      %v5288 = vld [vmem:[%s1946 + $0x18] sm:$0xfc]
      %v5289 = vld [vmem:[%s1946 + $0x40] sm:$0x1]
      %v5290 = vld [vmem:[%s1946 + $0x68] sm:$0xfc]
      %v5291 = vld [vmem:[%s1946 + $0x90] sm:$0x1]
      %v5292 = vld [vmem:[%s1946 + $0xb8] sm:$0xfc]
      %v5293 = vld [vmem:[%s1946 + $0xe0] sm:$0x1]
      %v5294 = vld [vmem:[%s1946 + $0x108] sm:$0xfc]
      %v5295 = vld [vmem:[%s1946 + $0x130] sm:$0x1]
      %v5296 = vld [vmem:[%s1946 + $0x158] sm:$0xfc]
      %v5297 = vld [vmem:[%s1946 + $0x180] sm:$0x1]
      %v5298 = vld [vmem:[%s1946 + $0x1a8] sm:$0xfc]
      %v5299 = vld [vmem:[%s1946 + $0x1d0] sm:$0x1]
      %v5300 = vld [vmem:[%s1946 + $0x1f8] sm:$0xfc]
      %v5301 = vld [vmem:[%s1946 + $0x220] sm:$0x1]
      %v5302 = vmul.f32 %v5288, %v5287
      %v5303 = vmul.f32 %v5289, %v5287
      %v5304 = vmul.f32 %v5290, %v5287
      %v5305 = vmul.f32 %v5291, %v5287
      %v5306 = vmul.f32 %v5292, %v5287
      %v5307 = vmul.f32 %v5293, %v5287
      %v5308 = vmul.f32 %v5294, %v5287
      %v5309 = vmul.f32 %v5295, %v5287
      %v5310 = vmul.f32 %v5296, %v5287
      %v5311 = vmul.f32 %v5297, %v5287
      %v5312 = vmul.f32 %v5298, %v5287
      %v5313 = vmul.f32 %v5299, %v5287
      %v5314 = vmul.f32 %v5300, %v5287
      %v5315 = vmul.f32 %v5301, %v5287
      %v5330 = vrot.slane %v5302, 2
      %v5331 = vrot.slane %v5303, 2
      %v5332 = vsel %vm1488, %v5330, %v5331
      %v5333 = vrot.slane %v5304, 2
      %v5334 = vrot.slane %v5305, 2
      %v5335 = vsel %vm1488, %v5333, %v5334
      %v5336 = vrot.slane %v5306, 2
      %v5337 = vrot.slane %v5307, 2
      %v5338 = vsel %vm1488, %v5336, %v5337
      %v5339 = vrot.slane %v5308, 2
      %v5340 = vrot.slane %v5309, 2
      %v5341 = vsel %vm1488, %v5339, %v5340
      %v5342 = vrot.slane %v5310, 2
      %v5343 = vrot.slane %v5311, 2
      %v5344 = vsel %vm1488, %v5342, %v5343
      %v5345 = vrot.slane %v5312, 2
      %v5346 = vrot.slane %v5313, 2
      %v5347 = vsel %vm1488, %v5345, %v5346
      %v5348 = vrot.slane %v5314, 2
      %v5349 = vrot.slane %v5315, 2
      %v5350 = vsel %vm1488, %v5348, %v5349
      %v5358 = vadd.f32 %v5280, %v5332
      %v5359 = vadd.f32 %v5281, %v5335
      %v5360 = vadd.f32 %v5282, %v5338
      %v5361 = vadd.f32 %v5283, %v5341
      %v5362 = vadd.f32 %v5284, %v5344
      %v5363 = vadd.f32 %v5285, %v5347
      %v5364 = vadd.f32 %v5286, %v5350
      %v5365 = vld [vmem:[%s2155 + $0x18] ss:$0 sm:$0xff]
      %v5366 = vld [vmem:[%s2157 + $0x18] sm:$0x7f]
      %v5367 = vld [vmem:[%s2157 + $0x68] sm:$0x7f]
      %v5368 = vld [vmem:[%s2157 + $0xb8] sm:$0x7f]
      %v5369 = vld [vmem:[%s2157 + $0x108] sm:$0x7f]
      %v5370 = vld [vmem:[%s2157 + $0x158] sm:$0x7f]
      %v5371 = vld [vmem:[%s2157 + $0x1a8] sm:$0x7f]
      %v5372 = vld [vmem:[%s2157 + $0x1f8] sm:$0x7f]
      %v5373 = vmul.f32 %v5366, %v5365
      %v5374 = vmul.f32 %v5367, %v5365
      %v5375 = vmul.f32 %v5368, %v5365
      %v5376 = vmul.f32 %v5369, %v5365
      %v5377 = vmul.f32 %v5370, %v5365
      %v5378 = vmul.f32 %v5371, %v5365
      %v5379 = vmul.f32 %v5372, %v5365
      %v5380 = vadd.f32 %v5358, %v5373
      %v5381 = vadd.f32 %v5359, %v5374
      %v5382 = vadd.f32 %v5360, %v5375
      %v5383 = vadd.f32 %v5361, %v5376
      %v5384 = vadd.f32 %v5362, %v5377
      %v5385 = vadd.f32 %v5363, %v5378
      %v5386 = vadd.f32 %v5364, %v5379
      %v5387 = vld [vmem:[%s2155 + $0x19] ss:$0 sm:$0xff]
      %v5388 = vld [vmem:[%s2180 + $0x18] sm:$0x7f]
      %v5389 = vld [vmem:[%s2180 + $0x68] sm:$0x7f]
      %v5390 = vld [vmem:[%s2180 + $0xb8] sm:$0x7f]
      %v5391 = vld [vmem:[%s2180 + $0x108] sm:$0x7f]
      %v5392 = vld [vmem:[%s2180 + $0x158] sm:$0x7f]
      %v5393 = vld [vmem:[%s2180 + $0x1a8] sm:$0x7f]
      %v5394 = vld [vmem:[%s2180 + $0x1f8] sm:$0x7f]
      %v5395 = vmul.f32 %v5388, %v5387
      %v5396 = vmul.f32 %v5389, %v5387
      %v5397 = vmul.f32 %v5390, %v5387
      %v5398 = vmul.f32 %v5391, %v5387
      %v5399 = vmul.f32 %v5392, %v5387
      %v5400 = vmul.f32 %v5393, %v5387
      %v5401 = vmul.f32 %v5394, %v5387
      %v5402 = vadd.f32 %v5380, %v5395
      %v5403 = vadd.f32 %v5381, %v5396
      %v5404 = vadd.f32 %v5382, %v5397
      %v5405 = vadd.f32 %v5383, %v5398
      %v5406 = vadd.f32 %v5384, %v5399
      %v5407 = vadd.f32 %v5385, %v5400
      %v5408 = vadd.f32 %v5386, %v5401
      %v5409 = vld [vmem:[%s2155 + $0x1a] ss:$0 sm:$0xff]
      %v5410 = vld [vmem:[%s2157 + $0x18] sm:$0xfe]
      %v5411 = vld [vmem:[%s2157 + $0x68] sm:$0xfe]
      %v5412 = vld [vmem:[%s2157 + $0xb8] sm:$0xfe]
      %v5413 = vld [vmem:[%s2157 + $0x108] sm:$0xfe]
      %v5414 = vld [vmem:[%s2157 + $0x158] sm:$0xfe]
      %v5415 = vld [vmem:[%s2157 + $0x1a8] sm:$0xfe]
      %v5416 = vld [vmem:[%s2157 + $0x1f8] sm:$0xfe]
      %v5417 = vmul.f32 %v5410, %v5409
      %v5418 = vmul.f32 %v5411, %v5409
      %v5419 = vmul.f32 %v5412, %v5409
      %v5420 = vmul.f32 %v5413, %v5409
      %v5421 = vmul.f32 %v5414, %v5409
      %v5422 = vmul.f32 %v5415, %v5409
      %v5423 = vmul.f32 %v5416, %v5409
      %v5431 = vrot.slane %v5417, 1
      %v5432 = vrot.slane %v5418, 1
      %v5433 = vrot.slane %v5419, 1
      %v5434 = vrot.slane %v5420, 1
      %v5435 = vrot.slane %v5421, 1
      %v5436 = vrot.slane %v5422, 1
      %v5437 = vrot.slane %v5423, 1
      %v5445 = vadd.f32 %v5402, %v5431
      %v5446 = vadd.f32 %v5403, %v5432
      %v5447 = vadd.f32 %v5404, %v5433
      %v5448 = vadd.f32 %v5405, %v5434
      %v5449 = vadd.f32 %v5406, %v5435
      %v5450 = vadd.f32 %v5407, %v5436
      %v5451 = vadd.f32 %v5408, %v5437
      %v5452 = vld [vmem:[%s2155 + $0x1b] ss:$0 sm:$0xff]
      %v5453 = vld [vmem:[%s2180 + $0x18] sm:$0xfe]
      %v5454 = vld [vmem:[%s2180 + $0x68] sm:$0xfe]
      %v5455 = vld [vmem:[%s2180 + $0xb8] sm:$0xfe]
      %v5456 = vld [vmem:[%s2180 + $0x108] sm:$0xfe]
      %v5457 = vld [vmem:[%s2180 + $0x158] sm:$0xfe]
      %v5458 = vld [vmem:[%s2180 + $0x1a8] sm:$0xfe]
      %v5459 = vld [vmem:[%s2180 + $0x1f8] sm:$0xfe]
      %v5460 = vmul.f32 %v5453, %v5452
      %v5461 = vmul.f32 %v5454, %v5452
      %v5462 = vmul.f32 %v5455, %v5452
      %v5463 = vmul.f32 %v5456, %v5452
      %v5464 = vmul.f32 %v5457, %v5452
      %v5465 = vmul.f32 %v5458, %v5452
      %v5466 = vmul.f32 %v5459, %v5452
      %v5474 = vrot.slane %v5460, 1
      %v5475 = vrot.slane %v5461, 1
      %v5476 = vrot.slane %v5462, 1
      %v5477 = vrot.slane %v5463, 1
      %v5478 = vrot.slane %v5464, 1
      %v5479 = vrot.slane %v5465, 1
      %v5480 = vrot.slane %v5466, 1
      %v5488 = vadd.f32 %v5445, %v5474
      %v5489 = vadd.f32 %v5446, %v5475
      %v5490 = vadd.f32 %v5447, %v5476
      %v5491 = vadd.f32 %v5448, %v5477
      %v5492 = vadd.f32 %v5449, %v5478
      %v5493 = vadd.f32 %v5450, %v5479
      %v5494 = vadd.f32 %v5451, %v5480
      %v5495 = vld [vmem:[%s2155 + $0x1c] ss:$0 sm:$0xff]
      %v5496 = vld [vmem:[%s2157 + $0x18] sm:$0xfc]
      %v5497 = vld [vmem:[%s2157 + $0x40] sm:$0x1]
      %v5498 = vld [vmem:[%s2157 + $0x68] sm:$0xfc]
      %v5499 = vld [vmem:[%s2157 + $0x90] sm:$0x1]
      %v5500 = vld [vmem:[%s2157 + $0xb8] sm:$0xfc]
      %v5501 = vld [vmem:[%s2157 + $0xe0] sm:$0x1]
      %v5502 = vld [vmem:[%s2157 + $0x108] sm:$0xfc]
      %v5503 = vld [vmem:[%s2157 + $0x130] sm:$0x1]
      %v5504 = vld [vmem:[%s2157 + $0x158] sm:$0xfc]
      %v5505 = vld [vmem:[%s2157 + $0x180] sm:$0x1]
      %v5506 = vld [vmem:[%s2157 + $0x1a8] sm:$0xfc]
      %v5507 = vld [vmem:[%s2157 + $0x1d0] sm:$0x1]
      %v5508 = vld [vmem:[%s2157 + $0x1f8] sm:$0xfc]
      %v5509 = vld [vmem:[%s2157 + $0x220] sm:$0x1]
      %v5510 = vmul.f32 %v5496, %v5495
      %v5511 = vmul.f32 %v5497, %v5495
      %v5512 = vmul.f32 %v5498, %v5495
      %v5513 = vmul.f32 %v5499, %v5495
      %v5514 = vmul.f32 %v5500, %v5495
      %v5515 = vmul.f32 %v5501, %v5495
      %v5516 = vmul.f32 %v5502, %v5495
      %v5517 = vmul.f32 %v5503, %v5495
      %v5518 = vmul.f32 %v5504, %v5495
      %v5519 = vmul.f32 %v5505, %v5495
      %v5520 = vmul.f32 %v5506, %v5495
      %v5521 = vmul.f32 %v5507, %v5495
      %v5522 = vmul.f32 %v5508, %v5495
      %v5523 = vmul.f32 %v5509, %v5495
      %v5538 = vrot.slane %v5510, 2
      %v5539 = vrot.slane %v5511, 2
      %v5540 = vsel %vm1488, %v5538, %v5539
      %v5541 = vrot.slane %v5512, 2
      %v5542 = vrot.slane %v5513, 2
      %v5543 = vsel %vm1488, %v5541, %v5542
      %v5544 = vrot.slane %v5514, 2
      %v5545 = vrot.slane %v5515, 2
      %v5546 = vsel %vm1488, %v5544, %v5545
      %v5547 = vrot.slane %v5516, 2
      %v5548 = vrot.slane %v5517, 2
      %v5549 = vsel %vm1488, %v5547, %v5548
      %v5550 = vrot.slane %v5518, 2
      %v5551 = vrot.slane %v5519, 2
      %v5552 = vsel %vm1488, %v5550, %v5551
      %v5553 = vrot.slane %v5520, 2
      %v5554 = vrot.slane %v5521, 2
      %v5555 = vsel %vm1488, %v5553, %v5554
      %v5556 = vrot.slane %v5522, 2
      %v5557 = vrot.slane %v5523, 2
      %v5558 = vsel %vm1488, %v5556, %v5557
      %v5566 = vadd.f32 %v5488, %v5540
      %v5567 = vadd.f32 %v5489, %v5543
      %v5568 = vadd.f32 %v5490, %v5546
      %v5569 = vadd.f32 %v5491, %v5549
      %v5570 = vadd.f32 %v5492, %v5552
      %v5571 = vadd.f32 %v5493, %v5555
      %v5572 = vadd.f32 %v5494, %v5558
      %v5573 = vpack.c.bf16 %v5566, %v5566
      %v5574 = vpack.c.bf16 %v5567, %v5567
      %v5575 = vpack.c.bf16 %v5568, %v5568
      %v5576 = vpack.c.bf16 %v5569, %v5569
      %v5577 = vpack.c.bf16 %v5570, %v5570
      %v5578 = vpack.c.bf16 %v5571, %v5571
      %v5579 = vpack.c.bf16 %v5572, %v5572
      %v5580 = vld [vmem:[%s163 + $0xc] sm:$0xf]
      %v5581 = vsel %vm2375, %v5573, %v5580
      %5582 = vst [vmem:[%s163 + $0xc] sm:$0xf] %v5581
      %v5583 = vld [vmem:[%s163 + $0x20] sm:$0xf]
      %v5584 = vsel %vm2375, %v5574, %v5583
      %5585 = vst [vmem:[%s163 + $0x20] sm:$0xf] %v5584
      %v5586 = vld [vmem:[%s163 + $0x34] sm:$0xf]
      %v5587 = vsel %vm2375, %v5575, %v5586
      %5588 = vst [vmem:[%s163 + $0x34] sm:$0xf] %v5587
      %v5589 = vld [vmem:[%s163 + $0x48] sm:$0xf]
      %v5590 = vsel %vm2375, %v5576, %v5589
      %5591 = vst [vmem:[%s163 + $0x48] sm:$0xf] %v5590
      %v5592 = vld [vmem:[%s163 + $0x5c] sm:$0xf]
      %v5593 = vsel %vm2375, %v5577, %v5592
      %5594 = vst [vmem:[%s163 + $0x5c] sm:$0xf] %v5593
      %v5595 = vld [vmem:[%s163 + $0x70] sm:$0xf]
      %v5596 = vsel %vm2375, %v5578, %v5595
      %5597 = vst [vmem:[%s163 + $0x70] sm:$0xf] %v5596
      %v5598 = vld [vmem:[%s163 + $0x84] sm:$0xf]
      %v5599 = vsel %vm2375, %v5579, %v5598
      %5600 = vst [vmem:[%s163 + $0x84] sm:$0xf] %v5599
      %v5601 = vld [vmem:[#allocation3 + $0x20] ss:$0 sm:$0xff]
      %v5602 = vld [vmem:[#allocation2 + $0x20] sm:$0x7f]
      %v5603 = vld [vmem:[#allocation2 + $0x70] sm:$0x7f]
      %v5604 = vld [vmem:[#allocation2 + $0xc0] sm:$0x7f]
      %v5605 = vld [vmem:[#allocation2 + $0x110] sm:$0x7f]
      %v5606 = vld [vmem:[#allocation2 + $0x160] sm:$0x7f]
      %v5607 = vld [vmem:[#allocation2 + $0x1b0] sm:$0x7f]
      %v5608 = vld [vmem:[#allocation2 + $0x200] sm:$0x7f]
      %v5609 = vmul.f32 %v5602, %v5601
      %v5610 = vmul.f32 %v5603, %v5601
      %v5611 = vmul.f32 %v5604, %v5601
      %v5612 = vmul.f32 %v5605, %v5601
      %v5613 = vmul.f32 %v5606, %v5601
      %v5614 = vmul.f32 %v5607, %v5601
      %v5615 = vmul.f32 %v5608, %v5601
      %v5616 = vadd.f32 %v5609, 0.0
      %v5617 = vadd.f32 %v5610, 0.0
      %v5618 = vadd.f32 %v5611, 0.0
      %v5619 = vadd.f32 %v5612, 0.0
      %v5620 = vadd.f32 %v5613, 0.0
      %v5621 = vadd.f32 %v5614, 0.0
      %v5622 = vadd.f32 %v5615, 0.0
      %v5623 = vld [vmem:[#allocation3 + $0x21] ss:$0 sm:$0xff]
      %v5624 = vld [vmem:[%s471 + $0x20] sm:$0x7f]
      %v5625 = vld [vmem:[%s471 + $0x70] sm:$0x7f]
      %v5626 = vld [vmem:[%s471 + $0xc0] sm:$0x7f]
      %v5627 = vld [vmem:[%s471 + $0x110] sm:$0x7f]
      %v5628 = vld [vmem:[%s471 + $0x160] sm:$0x7f]
      %v5629 = vld [vmem:[%s471 + $0x1b0] sm:$0x7f]
      %v5630 = vld [vmem:[%s471 + $0x200] sm:$0x7f]
      %v5631 = vmul.f32 %v5624, %v5623
      %v5632 = vmul.f32 %v5625, %v5623
      %v5633 = vmul.f32 %v5626, %v5623
      %v5634 = vmul.f32 %v5627, %v5623
      %v5635 = vmul.f32 %v5628, %v5623
      %v5636 = vmul.f32 %v5629, %v5623
      %v5637 = vmul.f32 %v5630, %v5623
      %v5638 = vadd.f32 %v5616, %v5631
      %v5639 = vadd.f32 %v5617, %v5632
      %v5640 = vadd.f32 %v5618, %v5633
      %v5641 = vadd.f32 %v5619, %v5634
      %v5642 = vadd.f32 %v5620, %v5635
      %v5643 = vadd.f32 %v5621, %v5636
      %v5644 = vadd.f32 %v5622, %v5637
      %v5645 = vld [vmem:[#allocation3 + $0x22] ss:$0 sm:$0xff]
      %v5646 = vld [vmem:[#allocation2 + $0x20] sm:$0xfe]
      %v5647 = vld [vmem:[#allocation2 + $0x70] sm:$0xfe]
      %v5648 = vld [vmem:[#allocation2 + $0xc0] sm:$0xfe]
      %v5649 = vld [vmem:[#allocation2 + $0x110] sm:$0xfe]
      %v5650 = vld [vmem:[#allocation2 + $0x160] sm:$0xfe]
      %v5651 = vld [vmem:[#allocation2 + $0x1b0] sm:$0xfe]
      %v5652 = vld [vmem:[#allocation2 + $0x200] sm:$0xfe]
      %v5653 = vmul.f32 %v5646, %v5645
      %v5654 = vmul.f32 %v5647, %v5645
      %v5655 = vmul.f32 %v5648, %v5645
      %v5656 = vmul.f32 %v5649, %v5645
      %v5657 = vmul.f32 %v5650, %v5645
      %v5658 = vmul.f32 %v5651, %v5645
      %v5659 = vmul.f32 %v5652, %v5645
      %v5667 = vrot.slane %v5653, 1
      %v5668 = vrot.slane %v5654, 1
      %v5669 = vrot.slane %v5655, 1
      %v5670 = vrot.slane %v5656, 1
      %v5671 = vrot.slane %v5657, 1
      %v5672 = vrot.slane %v5658, 1
      %v5673 = vrot.slane %v5659, 1
      %v5681 = vadd.f32 %v5638, %v5667
      %v5682 = vadd.f32 %v5639, %v5668
      %v5683 = vadd.f32 %v5640, %v5669
      %v5684 = vadd.f32 %v5641, %v5670
      %v5685 = vadd.f32 %v5642, %v5671
      %v5686 = vadd.f32 %v5643, %v5672
      %v5687 = vadd.f32 %v5644, %v5673
      %v5688 = vld [vmem:[#allocation3 + $0x23] ss:$0 sm:$0xff]
      %v5689 = vld [vmem:[%s471 + $0x20] sm:$0xfe]
      %v5690 = vld [vmem:[%s471 + $0x70] sm:$0xfe]
      %v5691 = vld [vmem:[%s471 + $0xc0] sm:$0xfe]
      %v5692 = vld [vmem:[%s471 + $0x110] sm:$0xfe]
      %v5693 = vld [vmem:[%s471 + $0x160] sm:$0xfe]
      %v5694 = vld [vmem:[%s471 + $0x1b0] sm:$0xfe]
      %v5695 = vld [vmem:[%s471 + $0x200] sm:$0xfe]
      %v5696 = vmul.f32 %v5689, %v5688
      %v5697 = vmul.f32 %v5690, %v5688
      %v5698 = vmul.f32 %v5691, %v5688
      %v5699 = vmul.f32 %v5692, %v5688
      %v5700 = vmul.f32 %v5693, %v5688
      %v5701 = vmul.f32 %v5694, %v5688
      %v5702 = vmul.f32 %v5695, %v5688
      %v5710 = vrot.slane %v5696, 1
      %v5711 = vrot.slane %v5697, 1
      %v5712 = vrot.slane %v5698, 1
      %v5713 = vrot.slane %v5699, 1
      %v5714 = vrot.slane %v5700, 1
      %v5715 = vrot.slane %v5701, 1
      %v5716 = vrot.slane %v5702, 1
      %v5724 = vadd.f32 %v5681, %v5710
      %v5725 = vadd.f32 %v5682, %v5711
      %v5726 = vadd.f32 %v5683, %v5712
      %v5727 = vadd.f32 %v5684, %v5713
      %v5728 = vadd.f32 %v5685, %v5714
      %v5729 = vadd.f32 %v5686, %v5715
      %v5730 = vadd.f32 %v5687, %v5716
      %v5731 = vld [vmem:[#allocation3 + $0x24] ss:$0 sm:$0xff]
      %v5732 = vld [vmem:[#allocation2 + $0x20] sm:$0xfc]
      %v5733 = vld [vmem:[#allocation2 + $0x48] sm:$0x1]
      %v5734 = vld [vmem:[#allocation2 + $0x70] sm:$0xfc]
      %v5735 = vld [vmem:[#allocation2 + $0x98] sm:$0x1]
      %v5736 = vld [vmem:[#allocation2 + $0xc0] sm:$0xfc]
      %v5737 = vld [vmem:[#allocation2 + $0xe8] sm:$0x1]
      %v5738 = vld [vmem:[#allocation2 + $0x110] sm:$0xfc]
      %v5739 = vld [vmem:[#allocation2 + $0x138] sm:$0x1]
      %v5740 = vld [vmem:[#allocation2 + $0x160] sm:$0xfc]
      %v5741 = vld [vmem:[#allocation2 + $0x188] sm:$0x1]
      %v5742 = vld [vmem:[#allocation2 + $0x1b0] sm:$0xfc]
      %v5743 = vld [vmem:[#allocation2 + $0x1d8] sm:$0x1]
      %v5744 = vld [vmem:[#allocation2 + $0x200] sm:$0xfc]
      %v5745 = vld [vmem:[#allocation2 + $0x228] sm:$0x1]
      %v5746 = vmul.f32 %v5732, %v5731
      %v5747 = vmul.f32 %v5733, %v5731
      %v5748 = vmul.f32 %v5734, %v5731
      %v5749 = vmul.f32 %v5735, %v5731
      %v5750 = vmul.f32 %v5736, %v5731
      %v5751 = vmul.f32 %v5737, %v5731
      %v5752 = vmul.f32 %v5738, %v5731
      %v5753 = vmul.f32 %v5739, %v5731
      %v5754 = vmul.f32 %v5740, %v5731
      %v5755 = vmul.f32 %v5741, %v5731
      %v5756 = vmul.f32 %v5742, %v5731
      %v5757 = vmul.f32 %v5743, %v5731
      %v5758 = vmul.f32 %v5744, %v5731
      %v5759 = vmul.f32 %v5745, %v5731
      %v5774 = vrot.slane %v5746, 2
      %v5775 = vrot.slane %v5747, 2
      %v5776 = vsel %vm1488, %v5774, %v5775
      %v5777 = vrot.slane %v5748, 2
      %v5778 = vrot.slane %v5749, 2
      %v5779 = vsel %vm1488, %v5777, %v5778
      %v5780 = vrot.slane %v5750, 2
      %v5781 = vrot.slane %v5751, 2
      %v5782 = vsel %vm1488, %v5780, %v5781
      %v5783 = vrot.slane %v5752, 2
      %v5784 = vrot.slane %v5753, 2
      %v5785 = vsel %vm1488, %v5783, %v5784
      %v5786 = vrot.slane %v5754, 2
      %v5787 = vrot.slane %v5755, 2
      %v5788 = vsel %vm1488, %v5786, %v5787
      %v5789 = vrot.slane %v5756, 2
      %v5790 = vrot.slane %v5757, 2
      %v5791 = vsel %vm1488, %v5789, %v5790
      %v5792 = vrot.slane %v5758, 2
      %v5793 = vrot.slane %v5759, 2
      %v5794 = vsel %vm1488, %v5792, %v5793
      %v5802 = vadd.f32 %v5724, %v5776
      %v5803 = vadd.f32 %v5725, %v5779
      %v5804 = vadd.f32 %v5726, %v5782
      %v5805 = vadd.f32 %v5727, %v5785
      %v5806 = vadd.f32 %v5728, %v5788
      %v5807 = vadd.f32 %v5729, %v5791
      %v5808 = vadd.f32 %v5730, %v5794
      %v5809 = vld [vmem:[%s1524 + $0x20] ss:$0 sm:$0xff]
      %v5810 = vld [vmem:[%s743 + $0x20] sm:$0x7f]
      %v5811 = vld [vmem:[%s743 + $0x70] sm:$0x7f]
      %v5812 = vld [vmem:[%s743 + $0xc0] sm:$0x7f]
      %v5813 = vld [vmem:[%s743 + $0x110] sm:$0x7f]
      %v5814 = vld [vmem:[%s743 + $0x160] sm:$0x7f]
      %v5815 = vld [vmem:[%s743 + $0x1b0] sm:$0x7f]
      %v5816 = vld [vmem:[%s743 + $0x200] sm:$0x7f]
      %v5817 = vmul.f32 %v5810, %v5809
      %v5818 = vmul.f32 %v5811, %v5809
      %v5819 = vmul.f32 %v5812, %v5809
      %v5820 = vmul.f32 %v5813, %v5809
      %v5821 = vmul.f32 %v5814, %v5809
      %v5822 = vmul.f32 %v5815, %v5809
      %v5823 = vmul.f32 %v5816, %v5809
      %v5824 = vadd.f32 %v5802, %v5817
      %v5825 = vadd.f32 %v5803, %v5818
      %v5826 = vadd.f32 %v5804, %v5819
      %v5827 = vadd.f32 %v5805, %v5820
      %v5828 = vadd.f32 %v5806, %v5821
      %v5829 = vadd.f32 %v5807, %v5822
      %v5830 = vadd.f32 %v5808, %v5823
      %v5831 = vld [vmem:[%s1524 + $0x21] ss:$0 sm:$0xff]
      %v5832 = vld [vmem:[%s1015 + $0x20] sm:$0x7f]
      %v5833 = vld [vmem:[%s1015 + $0x70] sm:$0x7f]
      %v5834 = vld [vmem:[%s1015 + $0xc0] sm:$0x7f]
      %v5835 = vld [vmem:[%s1015 + $0x110] sm:$0x7f]
      %v5836 = vld [vmem:[%s1015 + $0x160] sm:$0x7f]
      %v5837 = vld [vmem:[%s1015 + $0x1b0] sm:$0x7f]
      %v5838 = vld [vmem:[%s1015 + $0x200] sm:$0x7f]
      %v5839 = vmul.f32 %v5832, %v5831
      %v5840 = vmul.f32 %v5833, %v5831
      %v5841 = vmul.f32 %v5834, %v5831
      %v5842 = vmul.f32 %v5835, %v5831
      %v5843 = vmul.f32 %v5836, %v5831
      %v5844 = vmul.f32 %v5837, %v5831
      %v5845 = vmul.f32 %v5838, %v5831
      %v5846 = vadd.f32 %v5824, %v5839
      %v5847 = vadd.f32 %v5825, %v5840
      %v5848 = vadd.f32 %v5826, %v5841
      %v5849 = vadd.f32 %v5827, %v5842
      %v5850 = vadd.f32 %v5828, %v5843
      %v5851 = vadd.f32 %v5829, %v5844
      %v5852 = vadd.f32 %v5830, %v5845
      %v5853 = vld [vmem:[%s1524 + $0x22] ss:$0 sm:$0xff]
      %v5854 = vld [vmem:[%s743 + $0x20] sm:$0xfe]
      %v5855 = vld [vmem:[%s743 + $0x70] sm:$0xfe]
      %v5856 = vld [vmem:[%s743 + $0xc0] sm:$0xfe]
      %v5857 = vld [vmem:[%s743 + $0x110] sm:$0xfe]
      %v5858 = vld [vmem:[%s743 + $0x160] sm:$0xfe]
      %v5859 = vld [vmem:[%s743 + $0x1b0] sm:$0xfe]
      %v5860 = vld [vmem:[%s743 + $0x200] sm:$0xfe]
      %v5861 = vmul.f32 %v5854, %v5853
      %v5862 = vmul.f32 %v5855, %v5853
      %v5863 = vmul.f32 %v5856, %v5853
      %v5864 = vmul.f32 %v5857, %v5853
      %v5865 = vmul.f32 %v5858, %v5853
      %v5866 = vmul.f32 %v5859, %v5853
      %v5867 = vmul.f32 %v5860, %v5853
      %v5875 = vrot.slane %v5861, 1
      %v5876 = vrot.slane %v5862, 1
      %v5877 = vrot.slane %v5863, 1
      %v5878 = vrot.slane %v5864, 1
      %v5879 = vrot.slane %v5865, 1
      %v5880 = vrot.slane %v5866, 1
      %v5881 = vrot.slane %v5867, 1
      %v5889 = vadd.f32 %v5846, %v5875
      %v5890 = vadd.f32 %v5847, %v5876
      %v5891 = vadd.f32 %v5848, %v5877
      %v5892 = vadd.f32 %v5849, %v5878
      %v5893 = vadd.f32 %v5850, %v5879
      %v5894 = vadd.f32 %v5851, %v5880
      %v5895 = vadd.f32 %v5852, %v5881
      %v5896 = vld [vmem:[%s1524 + $0x23] ss:$0 sm:$0xff]
      %v5897 = vld [vmem:[%s1015 + $0x20] sm:$0xfe]
      %v5898 = vld [vmem:[%s1015 + $0x70] sm:$0xfe]
      %v5899 = vld [vmem:[%s1015 + $0xc0] sm:$0xfe]
      %v5900 = vld [vmem:[%s1015 + $0x110] sm:$0xfe]
      %v5901 = vld [vmem:[%s1015 + $0x160] sm:$0xfe]
      %v5902 = vld [vmem:[%s1015 + $0x1b0] sm:$0xfe]
      %v5903 = vld [vmem:[%s1015 + $0x200] sm:$0xfe]
      %v5904 = vmul.f32 %v5897, %v5896
      %v5905 = vmul.f32 %v5898, %v5896
      %v5906 = vmul.f32 %v5899, %v5896
      %v5907 = vmul.f32 %v5900, %v5896
      %v5908 = vmul.f32 %v5901, %v5896
      %v5909 = vmul.f32 %v5902, %v5896
      %v5910 = vmul.f32 %v5903, %v5896
      %v5918 = vrot.slane %v5904, 1
      %v5919 = vrot.slane %v5905, 1
      %v5920 = vrot.slane %v5906, 1
      %v5921 = vrot.slane %v5907, 1
      %v5922 = vrot.slane %v5908, 1
      %v5923 = vrot.slane %v5909, 1
      %v5924 = vrot.slane %v5910, 1
      %v5932 = vadd.f32 %v5889, %v5918
      %v5933 = vadd.f32 %v5890, %v5919
      %v5934 = vadd.f32 %v5891, %v5920
      %v5935 = vadd.f32 %v5892, %v5921
      %v5936 = vadd.f32 %v5893, %v5922
      %v5937 = vadd.f32 %v5894, %v5923
      %v5938 = vadd.f32 %v5895, %v5924
      %v5939 = vld [vmem:[%s1524 + $0x24] ss:$0 sm:$0xff]
      %v5940 = vld [vmem:[%s743 + $0x20] sm:$0xfc]
      %v5941 = vld [vmem:[%s743 + $0x48] sm:$0x1]
      %v5942 = vld [vmem:[%s743 + $0x70] sm:$0xfc]
      %v5943 = vld [vmem:[%s743 + $0x98] sm:$0x1]
      %v5944 = vld [vmem:[%s743 + $0xc0] sm:$0xfc]
      %v5945 = vld [vmem:[%s743 + $0xe8] sm:$0x1]
      %v5946 = vld [vmem:[%s743 + $0x110] sm:$0xfc]
      %v5947 = vld [vmem:[%s743 + $0x138] sm:$0x1]
      %v5948 = vld [vmem:[%s743 + $0x160] sm:$0xfc]
      %v5949 = vld [vmem:[%s743 + $0x188] sm:$0x1]
      %v5950 = vld [vmem:[%s743 + $0x1b0] sm:$0xfc]
      %v5951 = vld [vmem:[%s743 + $0x1d8] sm:$0x1]
      %v5952 = vld [vmem:[%s743 + $0x200] sm:$0xfc]
      %v5953 = vld [vmem:[%s743 + $0x228] sm:$0x1]
      %v5954 = vmul.f32 %v5940, %v5939
      %v5955 = vmul.f32 %v5941, %v5939
      %v5956 = vmul.f32 %v5942, %v5939
      %v5957 = vmul.f32 %v5943, %v5939
      %v5958 = vmul.f32 %v5944, %v5939
      %v5959 = vmul.f32 %v5945, %v5939
      %v5960 = vmul.f32 %v5946, %v5939
      %v5961 = vmul.f32 %v5947, %v5939
      %v5962 = vmul.f32 %v5948, %v5939
      %v5963 = vmul.f32 %v5949, %v5939
      %v5964 = vmul.f32 %v5950, %v5939
      %v5965 = vmul.f32 %v5951, %v5939
      %v5966 = vmul.f32 %v5952, %v5939
      %v5967 = vmul.f32 %v5953, %v5939
      %v5982 = vrot.slane %v5954, 2
      %v5983 = vrot.slane %v5955, 2
      %v5984 = vsel %vm1488, %v5982, %v5983
      %v5985 = vrot.slane %v5956, 2
      %v5986 = vrot.slane %v5957, 2
      %v5987 = vsel %vm1488, %v5985, %v5986
      %v5988 = vrot.slane %v5958, 2
      %v5989 = vrot.slane %v5959, 2
      %v5990 = vsel %vm1488, %v5988, %v5989
      %v5991 = vrot.slane %v5960, 2
      %v5992 = vrot.slane %v5961, 2
      %v5993 = vsel %vm1488, %v5991, %v5992
      %v5994 = vrot.slane %v5962, 2
      %v5995 = vrot.slane %v5963, 2
      %v5996 = vsel %vm1488, %v5994, %v5995
      %v5997 = vrot.slane %v5964, 2
      %v5998 = vrot.slane %v5965, 2
      %v5999 = vsel %vm1488, %v5997, %v5998
      %v6000 = vrot.slane %v5966, 2
      %v6001 = vrot.slane %v5967, 2
      %v6002 = vsel %vm1488, %v6000, %v6001
      %v6010 = vadd.f32 %v5932, %v5984
      %v6011 = vadd.f32 %v5933, %v5987
      %v6012 = vadd.f32 %v5934, %v5990
      %v6013 = vadd.f32 %v5935, %v5993
      %v6014 = vadd.f32 %v5936, %v5996
      %v6015 = vadd.f32 %v5937, %v5999
      %v6016 = vadd.f32 %v5938, %v6002
      %v6017 = vld [vmem:[%s1733 + $0x20] ss:$0 sm:$0xff]
      %v6018 = vld [vmem:[%s1735 + $0x20] sm:$0x7f]
      %v6019 = vld [vmem:[%s1735 + $0x70] sm:$0x7f]
      %v6020 = vld [vmem:[%s1735 + $0xc0] sm:$0x7f]
      %v6021 = vld [vmem:[%s1735 + $0x110] sm:$0x7f]
      %v6022 = vld [vmem:[%s1735 + $0x160] sm:$0x7f]
      %v6023 = vld [vmem:[%s1735 + $0x1b0] sm:$0x7f]
      %v6024 = vld [vmem:[%s1735 + $0x200] sm:$0x7f]
      %v6025 = vmul.f32 %v6018, %v6017
      %v6026 = vmul.f32 %v6019, %v6017
      %v6027 = vmul.f32 %v6020, %v6017
      %v6028 = vmul.f32 %v6021, %v6017
      %v6029 = vmul.f32 %v6022, %v6017
      %v6030 = vmul.f32 %v6023, %v6017
      %v6031 = vmul.f32 %v6024, %v6017
      %v6032 = vadd.f32 %v6010, %v6025
      %v6033 = vadd.f32 %v6011, %v6026
      %v6034 = vadd.f32 %v6012, %v6027
      %v6035 = vadd.f32 %v6013, %v6028
      %v6036 = vadd.f32 %v6014, %v6029
      %v6037 = vadd.f32 %v6015, %v6030
      %v6038 = vadd.f32 %v6016, %v6031
      %v6039 = vld [vmem:[%s1733 + $0x21] ss:$0 sm:$0xff]
      %v6040 = vld [vmem:[%s1758 + $0x20] sm:$0x7f]
      %v6041 = vld [vmem:[%s1758 + $0x70] sm:$0x7f]
      %v6042 = vld [vmem:[%s1758 + $0xc0] sm:$0x7f]
      %v6043 = vld [vmem:[%s1758 + $0x110] sm:$0x7f]
      %v6044 = vld [vmem:[%s1758 + $0x160] sm:$0x7f]
      %v6045 = vld [vmem:[%s1758 + $0x1b0] sm:$0x7f]
      %v6046 = vld [vmem:[%s1758 + $0x200] sm:$0x7f]
      %v6047 = vmul.f32 %v6040, %v6039
      %v6048 = vmul.f32 %v6041, %v6039
      %v6049 = vmul.f32 %v6042, %v6039
      %v6050 = vmul.f32 %v6043, %v6039
      %v6051 = vmul.f32 %v6044, %v6039
      %v6052 = vmul.f32 %v6045, %v6039
      %v6053 = vmul.f32 %v6046, %v6039
      %v6054 = vadd.f32 %v6032, %v6047
      %v6055 = vadd.f32 %v6033, %v6048
      %v6056 = vadd.f32 %v6034, %v6049
      %v6057 = vadd.f32 %v6035, %v6050
      %v6058 = vadd.f32 %v6036, %v6051
      %v6059 = vadd.f32 %v6037, %v6052
      %v6060 = vadd.f32 %v6038, %v6053
      %v6061 = vld [vmem:[%s1733 + $0x22] ss:$0 sm:$0xff]
      %v6062 = vld [vmem:[%s1735 + $0x20] sm:$0xfe]
      %v6063 = vld [vmem:[%s1735 + $0x70] sm:$0xfe]
      %v6064 = vld [vmem:[%s1735 + $0xc0] sm:$0xfe]
      %v6065 = vld [vmem:[%s1735 + $0x110] sm:$0xfe]
      %v6066 = vld [vmem:[%s1735 + $0x160] sm:$0xfe]
      %v6067 = vld [vmem:[%s1735 + $0x1b0] sm:$0xfe]
      %v6068 = vld [vmem:[%s1735 + $0x200] sm:$0xfe]
      %v6069 = vmul.f32 %v6062, %v6061
      %v6070 = vmul.f32 %v6063, %v6061
      %v6071 = vmul.f32 %v6064, %v6061
      %v6072 = vmul.f32 %v6065, %v6061
      %v6073 = vmul.f32 %v6066, %v6061
      %v6074 = vmul.f32 %v6067, %v6061
      %v6075 = vmul.f32 %v6068, %v6061
      %v6083 = vrot.slane %v6069, 1
      %v6084 = vrot.slane %v6070, 1
      %v6085 = vrot.slane %v6071, 1
      %v6086 = vrot.slane %v6072, 1
      %v6087 = vrot.slane %v6073, 1
      %v6088 = vrot.slane %v6074, 1
      %v6089 = vrot.slane %v6075, 1
      %v6097 = vadd.f32 %v6054, %v6083
      %v6098 = vadd.f32 %v6055, %v6084
      %v6099 = vadd.f32 %v6056, %v6085
      %v6100 = vadd.f32 %v6057, %v6086
      %v6101 = vadd.f32 %v6058, %v6087
      %v6102 = vadd.f32 %v6059, %v6088
      %v6103 = vadd.f32 %v6060, %v6089
      %v6104 = vld [vmem:[%s1733 + $0x23] ss:$0 sm:$0xff]
      %v6105 = vld [vmem:[%s1758 + $0x20] sm:$0xfe]
      %v6106 = vld [vmem:[%s1758 + $0x70] sm:$0xfe]
      %v6107 = vld [vmem:[%s1758 + $0xc0] sm:$0xfe]
      %v6108 = vld [vmem:[%s1758 + $0x110] sm:$0xfe]
      %v6109 = vld [vmem:[%s1758 + $0x160] sm:$0xfe]
      %v6110 = vld [vmem:[%s1758 + $0x1b0] sm:$0xfe]
      %v6111 = vld [vmem:[%s1758 + $0x200] sm:$0xfe]
      %v6112 = vmul.f32 %v6105, %v6104
      %v6113 = vmul.f32 %v6106, %v6104
      %v6114 = vmul.f32 %v6107, %v6104
      %v6115 = vmul.f32 %v6108, %v6104
      %v6116 = vmul.f32 %v6109, %v6104
      %v6117 = vmul.f32 %v6110, %v6104
      %v6118 = vmul.f32 %v6111, %v6104
      %v6126 = vrot.slane %v6112, 1
      %v6127 = vrot.slane %v6113, 1
      %v6128 = vrot.slane %v6114, 1
      %v6129 = vrot.slane %v6115, 1
      %v6130 = vrot.slane %v6116, 1
      %v6131 = vrot.slane %v6117, 1
      %v6132 = vrot.slane %v6118, 1
      %v6140 = vadd.f32 %v6097, %v6126
      %v6141 = vadd.f32 %v6098, %v6127
      %v6142 = vadd.f32 %v6099, %v6128
      %v6143 = vadd.f32 %v6100, %v6129
      %v6144 = vadd.f32 %v6101, %v6130
      %v6145 = vadd.f32 %v6102, %v6131
      %v6146 = vadd.f32 %v6103, %v6132
      %v6147 = vld [vmem:[%s1733 + $0x24] ss:$0 sm:$0xff]
      %v6148 = vld [vmem:[%s1735 + $0x20] sm:$0xfc]
      %v6149 = vld [vmem:[%s1735 + $0x48] sm:$0x1]
      %v6150 = vld [vmem:[%s1735 + $0x70] sm:$0xfc]
      %v6151 = vld [vmem:[%s1735 + $0x98] sm:$0x1]
      %v6152 = vld [vmem:[%s1735 + $0xc0] sm:$0xfc]
      %v6153 = vld [vmem:[%s1735 + $0xe8] sm:$0x1]
      %v6154 = vld [vmem:[%s1735 + $0x110] sm:$0xfc]
      %v6155 = vld [vmem:[%s1735 + $0x138] sm:$0x1]
      %v6156 = vld [vmem:[%s1735 + $0x160] sm:$0xfc]
      %v6157 = vld [vmem:[%s1735 + $0x188] sm:$0x1]
      %v6158 = vld [vmem:[%s1735 + $0x1b0] sm:$0xfc]
      %v6159 = vld [vmem:[%s1735 + $0x1d8] sm:$0x1]
      %v6160 = vld [vmem:[%s1735 + $0x200] sm:$0xfc]
      %v6161 = vld [vmem:[%s1735 + $0x228] sm:$0x1]
      %v6162 = vmul.f32 %v6148, %v6147
      %v6163 = vmul.f32 %v6149, %v6147
      %v6164 = vmul.f32 %v6150, %v6147
      %v6165 = vmul.f32 %v6151, %v6147
      %v6166 = vmul.f32 %v6152, %v6147
      %v6167 = vmul.f32 %v6153, %v6147
      %v6168 = vmul.f32 %v6154, %v6147
      %v6169 = vmul.f32 %v6155, %v6147
      %v6170 = vmul.f32 %v6156, %v6147
      %v6171 = vmul.f32 %v6157, %v6147
      %v6172 = vmul.f32 %v6158, %v6147
      %v6173 = vmul.f32 %v6159, %v6147
      %v6174 = vmul.f32 %v6160, %v6147
      %v6175 = vmul.f32 %v6161, %v6147
      %v6190 = vrot.slane %v6162, 2
      %v6191 = vrot.slane %v6163, 2
      %v6192 = vsel %vm1488, %v6190, %v6191
      %v6193 = vrot.slane %v6164, 2
      %v6194 = vrot.slane %v6165, 2
      %v6195 = vsel %vm1488, %v6193, %v6194
      %v6196 = vrot.slane %v6166, 2
      %v6197 = vrot.slane %v6167, 2
      %v6198 = vsel %vm1488, %v6196, %v6197
      %v6199 = vrot.slane %v6168, 2
      %v6200 = vrot.slane %v6169, 2
      %v6201 = vsel %vm1488, %v6199, %v6200
      %v6202 = vrot.slane %v6170, 2
      %v6203 = vrot.slane %v6171, 2
      %v6204 = vsel %vm1488, %v6202, %v6203
      %v6205 = vrot.slane %v6172, 2
      %v6206 = vrot.slane %v6173, 2
      %v6207 = vsel %vm1488, %v6205, %v6206
      %v6208 = vrot.slane %v6174, 2
      %v6209 = vrot.slane %v6175, 2
      %v6210 = vsel %vm1488, %v6208, %v6209
      %v6218 = vadd.f32 %v6140, %v6192
      %v6219 = vadd.f32 %v6141, %v6195
      %v6220 = vadd.f32 %v6142, %v6198
      %v6221 = vadd.f32 %v6143, %v6201
      %v6222 = vadd.f32 %v6144, %v6204
      %v6223 = vadd.f32 %v6145, %v6207
      %v6224 = vadd.f32 %v6146, %v6210
      %v6225 = vld [vmem:[%s1944 + $0x20] ss:$0 sm:$0xff]
      %v6226 = vld [vmem:[%s1946 + $0x20] sm:$0x7f]
      %v6227 = vld [vmem:[%s1946 + $0x70] sm:$0x7f]
      %v6228 = vld [vmem:[%s1946 + $0xc0] sm:$0x7f]
      %v6229 = vld [vmem:[%s1946 + $0x110] sm:$0x7f]
      %v6230 = vld [vmem:[%s1946 + $0x160] sm:$0x7f]
      %v6231 = vld [vmem:[%s1946 + $0x1b0] sm:$0x7f]
      %v6232 = vld [vmem:[%s1946 + $0x200] sm:$0x7f]
      %v6233 = vmul.f32 %v6226, %v6225
      %v6234 = vmul.f32 %v6227, %v6225
      %v6235 = vmul.f32 %v6228, %v6225
      %v6236 = vmul.f32 %v6229, %v6225
      %v6237 = vmul.f32 %v6230, %v6225
      %v6238 = vmul.f32 %v6231, %v6225
      %v6239 = vmul.f32 %v6232, %v6225
      %v6240 = vadd.f32 %v6218, %v6233
      %v6241 = vadd.f32 %v6219, %v6234
      %v6242 = vadd.f32 %v6220, %v6235
      %v6243 = vadd.f32 %v6221, %v6236
      %v6244 = vadd.f32 %v6222, %v6237
      %v6245 = vadd.f32 %v6223, %v6238
      %v6246 = vadd.f32 %v6224, %v6239
      %v6247 = vld [vmem:[%s1944 + $0x21] ss:$0 sm:$0xff]
      %v6248 = vld [vmem:[%s1969 + $0x20] sm:$0x7f]
      %v6249 = vld [vmem:[%s1969 + $0x70] sm:$0x7f]
      %v6250 = vld [vmem:[%s1969 + $0xc0] sm:$0x7f]
      %v6251 = vld [vmem:[%s1969 + $0x110] sm:$0x7f]
      %v6252 = vld [vmem:[%s1969 + $0x160] sm:$0x7f]
      %v6253 = vld [vmem:[%s1969 + $0x1b0] sm:$0x7f]
      %v6254 = vld [vmem:[%s1969 + $0x200] sm:$0x7f]
      %v6255 = vmul.f32 %v6248, %v6247
      %v6256 = vmul.f32 %v6249, %v6247
      %v6257 = vmul.f32 %v6250, %v6247
      %v6258 = vmul.f32 %v6251, %v6247
      %v6259 = vmul.f32 %v6252, %v6247
      %v6260 = vmul.f32 %v6253, %v6247
      %v6261 = vmul.f32 %v6254, %v6247
      %v6262 = vadd.f32 %v6240, %v6255
      %v6263 = vadd.f32 %v6241, %v6256
      %v6264 = vadd.f32 %v6242, %v6257
      %v6265 = vadd.f32 %v6243, %v6258
      %v6266 = vadd.f32 %v6244, %v6259
      %v6267 = vadd.f32 %v6245, %v6260
      %v6268 = vadd.f32 %v6246, %v6261
      %v6269 = vld [vmem:[%s1944 + $0x22] ss:$0 sm:$0xff]
      %v6270 = vld [vmem:[%s1946 + $0x20] sm:$0xfe]
      %v6271 = vld [vmem:[%s1946 + $0x70] sm:$0xfe]
      %v6272 = vld [vmem:[%s1946 + $0xc0] sm:$0xfe]
      %v6273 = vld [vmem:[%s1946 + $0x110] sm:$0xfe]
      %v6274 = vld [vmem:[%s1946 + $0x160] sm:$0xfe]
      %v6275 = vld [vmem:[%s1946 + $0x1b0] sm:$0xfe]
      %v6276 = vld [vmem:[%s1946 + $0x200] sm:$0xfe]
      %v6277 = vmul.f32 %v6270, %v6269
      %v6278 = vmul.f32 %v6271, %v6269
      %v6279 = vmul.f32 %v6272, %v6269
      %v6280 = vmul.f32 %v6273, %v6269
      %v6281 = vmul.f32 %v6274, %v6269
      %v6282 = vmul.f32 %v6275, %v6269
      %v6283 = vmul.f32 %v6276, %v6269
      %v6291 = vrot.slane %v6277, 1
      %v6292 = vrot.slane %v6278, 1
      %v6293 = vrot.slane %v6279, 1
      %v6294 = vrot.slane %v6280, 1
      %v6295 = vrot.slane %v6281, 1
      %v6296 = vrot.slane %v6282, 1
      %v6297 = vrot.slane %v6283, 1
      %v6305 = vadd.f32 %v6262, %v6291
      %v6306 = vadd.f32 %v6263, %v6292
      %v6307 = vadd.f32 %v6264, %v6293
      %v6308 = vadd.f32 %v6265, %v6294
      %v6309 = vadd.f32 %v6266, %v6295
      %v6310 = vadd.f32 %v6267, %v6296
      %v6311 = vadd.f32 %v6268, %v6297
      %v6312 = vld [vmem:[%s1944 + $0x23] ss:$0 sm:$0xff]
      %v6313 = vld [vmem:[%s1969 + $0x20] sm:$0xfe]
      %v6314 = vld [vmem:[%s1969 + $0x70] sm:$0xfe]
      %v6315 = vld [vmem:[%s1969 + $0xc0] sm:$0xfe]
      %v6316 = vld [vmem:[%s1969 + $0x110] sm:$0xfe]
      %v6317 = vld [vmem:[%s1969 + $0x160] sm:$0xfe]
      %v6318 = vld [vmem:[%s1969 + $0x1b0] sm:$0xfe]
      %v6319 = vld [vmem:[%s1969 + $0x200] sm:$0xfe]
      %v6320 = vmul.f32 %v6313, %v6312
      %v6321 = vmul.f32 %v6314, %v6312
      %v6322 = vmul.f32 %v6315, %v6312
      %v6323 = vmul.f32 %v6316, %v6312
      %v6324 = vmul.f32 %v6317, %v6312
      %v6325 = vmul.f32 %v6318, %v6312
      %v6326 = vmul.f32 %v6319, %v6312
      %v6334 = vrot.slane %v6320, 1
      %v6335 = vrot.slane %v6321, 1
      %v6336 = vrot.slane %v6322, 1
      %v6337 = vrot.slane %v6323, 1
      %v6338 = vrot.slane %v6324, 1
      %v6339 = vrot.slane %v6325, 1
      %v6340 = vrot.slane %v6326, 1
      %v6348 = vadd.f32 %v6305, %v6334
      %v6349 = vadd.f32 %v6306, %v6335
      %v6350 = vadd.f32 %v6307, %v6336
      %v6351 = vadd.f32 %v6308, %v6337
      %v6352 = vadd.f32 %v6309, %v6338
      %v6353 = vadd.f32 %v6310, %v6339
      %v6354 = vadd.f32 %v6311, %v6340
      %v6355 = vld [vmem:[%s1944 + $0x24] ss:$0 sm:$0xff]
      %v6356 = vld [vmem:[%s1946 + $0x20] sm:$0xfc]
      %v6357 = vld [vmem:[%s1946 + $0x48] sm:$0x1]
      %v6358 = vld [vmem:[%s1946 + $0x70] sm:$0xfc]
      %v6359 = vld [vmem:[%s1946 + $0x98] sm:$0x1]
      %v6360 = vld [vmem:[%s1946 + $0xc0] sm:$0xfc]
      %v6361 = vld [vmem:[%s1946 + $0xe8] sm:$0x1]
      %v6362 = vld [vmem:[%s1946 + $0x110] sm:$0xfc]
      %v6363 = vld [vmem:[%s1946 + $0x138] sm:$0x1]
      %v6364 = vld [vmem:[%s1946 + $0x160] sm:$0xfc]
      %v6365 = vld [vmem:[%s1946 + $0x188] sm:$0x1]
      %v6366 = vld [vmem:[%s1946 + $0x1b0] sm:$0xfc]
      %v6367 = vld [vmem:[%s1946 + $0x1d8] sm:$0x1]
      %v6368 = vld [vmem:[%s1946 + $0x200] sm:$0xfc]
      %v6369 = vld [vmem:[%s1946 + $0x228] sm:$0x1]
      %v6370 = vmul.f32 %v6356, %v6355
      %v6371 = vmul.f32 %v6357, %v6355
      %v6372 = vmul.f32 %v6358, %v6355
      %v6373 = vmul.f32 %v6359, %v6355
      %v6374 = vmul.f32 %v6360, %v6355
      %v6375 = vmul.f32 %v6361, %v6355
      %v6376 = vmul.f32 %v6362, %v6355
      %v6377 = vmul.f32 %v6363, %v6355
      %v6378 = vmul.f32 %v6364, %v6355
      %v6379 = vmul.f32 %v6365, %v6355
      %v6380 = vmul.f32 %v6366, %v6355
      %v6381 = vmul.f32 %v6367, %v6355
      %v6382 = vmul.f32 %v6368, %v6355
      %v6383 = vmul.f32 %v6369, %v6355
      %v6398 = vrot.slane %v6370, 2
      %v6399 = vrot.slane %v6371, 2
      %v6400 = vsel %vm1488, %v6398, %v6399
      %v6401 = vrot.slane %v6372, 2
      %v6402 = vrot.slane %v6373, 2
      %v6403 = vsel %vm1488, %v6401, %v6402
      %v6404 = vrot.slane %v6374, 2
      %v6405 = vrot.slane %v6375, 2
      %v6406 = vsel %vm1488, %v6404, %v6405
      %v6407 = vrot.slane %v6376, 2
      %v6408 = vrot.slane %v6377, 2
      %v6409 = vsel %vm1488, %v6407, %v6408
      %v6410 = vrot.slane %v6378, 2
      %v6411 = vrot.slane %v6379, 2
      %v6412 = vsel %vm1488, %v6410, %v6411
      %v6413 = vrot.slane %v6380, 2
      %v6414 = vrot.slane %v6381, 2
      %v6415 = vsel %vm1488, %v6413, %v6414
      %v6416 = vrot.slane %v6382, 2
      %v6417 = vrot.slane %v6383, 2
      %v6418 = vsel %vm1488, %v6416, %v6417
      %v6426 = vadd.f32 %v6348, %v6400
      %v6427 = vadd.f32 %v6349, %v6403
      %v6428 = vadd.f32 %v6350, %v6406
      %v6429 = vadd.f32 %v6351, %v6409
      %v6430 = vadd.f32 %v6352, %v6412
      %v6431 = vadd.f32 %v6353, %v6415
      %v6432 = vadd.f32 %v6354, %v6418
      %v6433 = vld [vmem:[%s2155 + $0x20] ss:$0 sm:$0xff]
      %v6434 = vld [vmem:[%s2157 + $0x20] sm:$0x7f]
      %v6435 = vld [vmem:[%s2157 + $0x70] sm:$0x7f]
      %v6436 = vld [vmem:[%s2157 + $0xc0] sm:$0x7f]
      %v6437 = vld [vmem:[%s2157 + $0x110] sm:$0x7f]
      %v6438 = vld [vmem:[%s2157 + $0x160] sm:$0x7f]
      %v6439 = vld [vmem:[%s2157 + $0x1b0] sm:$0x7f]
      %v6440 = vld [vmem:[%s2157 + $0x200] sm:$0x7f]
      %v6441 = vmul.f32 %v6434, %v6433
      %v6442 = vmul.f32 %v6435, %v6433
      %v6443 = vmul.f32 %v6436, %v6433
      %v6444 = vmul.f32 %v6437, %v6433
      %v6445 = vmul.f32 %v6438, %v6433
      %v6446 = vmul.f32 %v6439, %v6433
      %v6447 = vmul.f32 %v6440, %v6433
      %v6448 = vadd.f32 %v6426, %v6441
      %v6449 = vadd.f32 %v6427, %v6442
      %v6450 = vadd.f32 %v6428, %v6443
      %v6451 = vadd.f32 %v6429, %v6444
      %v6452 = vadd.f32 %v6430, %v6445
      %v6453 = vadd.f32 %v6431, %v6446
      %v6454 = vadd.f32 %v6432, %v6447
      %v6455 = vld [vmem:[%s2155 + $0x21] ss:$0 sm:$0xff]
      %v6456 = vld [vmem:[%s2180 + $0x20] sm:$0x7f]
      %v6457 = vld [vmem:[%s2180 + $0x70] sm:$0x7f]
      %v6458 = vld [vmem:[%s2180 + $0xc0] sm:$0x7f]
      %v6459 = vld [vmem:[%s2180 + $0x110] sm:$0x7f]
      %v6460 = vld [vmem:[%s2180 + $0x160] sm:$0x7f]
      %v6461 = vld [vmem:[%s2180 + $0x1b0] sm:$0x7f]
      %v6462 = vld [vmem:[%s2180 + $0x200] sm:$0x7f]
      %v6463 = vmul.f32 %v6456, %v6455
      %v6464 = vmul.f32 %v6457, %v6455
      %v6465 = vmul.f32 %v6458, %v6455
      %v6466 = vmul.f32 %v6459, %v6455
      %v6467 = vmul.f32 %v6460, %v6455
      %v6468 = vmul.f32 %v6461, %v6455
      %v6469 = vmul.f32 %v6462, %v6455
      %v6470 = vadd.f32 %v6448, %v6463
      %v6471 = vadd.f32 %v6449, %v6464
      %v6472 = vadd.f32 %v6450, %v6465
      %v6473 = vadd.f32 %v6451, %v6466
      %v6474 = vadd.f32 %v6452, %v6467
      %v6475 = vadd.f32 %v6453, %v6468
      %v6476 = vadd.f32 %v6454, %v6469
      %v6477 = vld [vmem:[%s2155 + $0x22] ss:$0 sm:$0xff]
      %v6478 = vld [vmem:[%s2157 + $0x20] sm:$0xfe]
      %v6479 = vld [vmem:[%s2157 + $0x70] sm:$0xfe]
      %v6480 = vld [vmem:[%s2157 + $0xc0] sm:$0xfe]
      %v6481 = vld [vmem:[%s2157 + $0x110] sm:$0xfe]
      %v6482 = vld [vmem:[%s2157 + $0x160] sm:$0xfe]
      %v6483 = vld [vmem:[%s2157 + $0x1b0] sm:$0xfe]
      %v6484 = vld [vmem:[%s2157 + $0x200] sm:$0xfe]
      %v6485 = vmul.f32 %v6478, %v6477
      %v6486 = vmul.f32 %v6479, %v6477
      %v6487 = vmul.f32 %v6480, %v6477
      %v6488 = vmul.f32 %v6481, %v6477
      %v6489 = vmul.f32 %v6482, %v6477
      %v6490 = vmul.f32 %v6483, %v6477
      %v6491 = vmul.f32 %v6484, %v6477
      %v6499 = vrot.slane %v6485, 1
      %v6500 = vrot.slane %v6486, 1
      %v6501 = vrot.slane %v6487, 1
      %v6502 = vrot.slane %v6488, 1
      %v6503 = vrot.slane %v6489, 1
      %v6504 = vrot.slane %v6490, 1
      %v6505 = vrot.slane %v6491, 1
      %v6513 = vadd.f32 %v6470, %v6499
      %v6514 = vadd.f32 %v6471, %v6500
      %v6515 = vadd.f32 %v6472, %v6501
      %v6516 = vadd.f32 %v6473, %v6502
      %v6517 = vadd.f32 %v6474, %v6503
      %v6518 = vadd.f32 %v6475, %v6504
      %v6519 = vadd.f32 %v6476, %v6505
      %v6520 = vld [vmem:[%s2155 + $0x23] ss:$0 sm:$0xff]
      %v6521 = vld [vmem:[%s2180 + $0x20] sm:$0xfe]
      %v6522 = vld [vmem:[%s2180 + $0x70] sm:$0xfe]
      %v6523 = vld [vmem:[%s2180 + $0xc0] sm:$0xfe]
      %v6524 = vld [vmem:[%s2180 + $0x110] sm:$0xfe]
      %v6525 = vld [vmem:[%s2180 + $0x160] sm:$0xfe]
      %v6526 = vld [vmem:[%s2180 + $0x1b0] sm:$0xfe]
      %v6527 = vld [vmem:[%s2180 + $0x200] sm:$0xfe]
      %v6528 = vmul.f32 %v6521, %v6520
      %v6529 = vmul.f32 %v6522, %v6520
      %v6530 = vmul.f32 %v6523, %v6520
      %v6531 = vmul.f32 %v6524, %v6520
      %v6532 = vmul.f32 %v6525, %v6520
      %v6533 = vmul.f32 %v6526, %v6520
      %v6534 = vmul.f32 %v6527, %v6520
      %v6542 = vrot.slane %v6528, 1
      %v6543 = vrot.slane %v6529, 1
      %v6544 = vrot.slane %v6530, 1
      %v6545 = vrot.slane %v6531, 1
      %v6546 = vrot.slane %v6532, 1
      %v6547 = vrot.slane %v6533, 1
      %v6548 = vrot.slane %v6534, 1
      %v6556 = vadd.f32 %v6513, %v6542
      %v6557 = vadd.f32 %v6514, %v6543
      %v6558 = vadd.f32 %v6515, %v6544
      %v6559 = vadd.f32 %v6516, %v6545
      %v6560 = vadd.f32 %v6517, %v6546
      %v6561 = vadd.f32 %v6518, %v6547
      %v6562 = vadd.f32 %v6519, %v6548
      %v6563 = vld [vmem:[%s2155 + $0x24] ss:$0 sm:$0xff]
      %v6564 = vld [vmem:[%s2157 + $0x20] sm:$0xfc]
      %v6565 = vld [vmem:[%s2157 + $0x48] sm:$0x1]
      %v6566 = vld [vmem:[%s2157 + $0x70] sm:$0xfc]
      %v6567 = vld [vmem:[%s2157 + $0x98] sm:$0x1]
      %v6568 = vld [vmem:[%s2157 + $0xc0] sm:$0xfc]
      %v6569 = vld [vmem:[%s2157 + $0xe8] sm:$0x1]
      %v6570 = vld [vmem:[%s2157 + $0x110] sm:$0xfc]
      %v6571 = vld [vmem:[%s2157 + $0x138] sm:$0x1]
      %v6572 = vld [vmem:[%s2157 + $0x160] sm:$0xfc]
      %v6573 = vld [vmem:[%s2157 + $0x188] sm:$0x1]
      %v6574 = vld [vmem:[%s2157 + $0x1b0] sm:$0xfc]
      %v6575 = vld [vmem:[%s2157 + $0x1d8] sm:$0x1]
      %v6576 = vld [vmem:[%s2157 + $0x200] sm:$0xfc]
      %v6577 = vld [vmem:[%s2157 + $0x228] sm:$0x1]
      %v6578 = vmul.f32 %v6564, %v6563
      %v6579 = vmul.f32 %v6565, %v6563
      %v6580 = vmul.f32 %v6566, %v6563
      %v6581 = vmul.f32 %v6567, %v6563
      %v6582 = vmul.f32 %v6568, %v6563
      %v6583 = vmul.f32 %v6569, %v6563
      %v6584 = vmul.f32 %v6570, %v6563
      %v6585 = vmul.f32 %v6571, %v6563
      %v6586 = vmul.f32 %v6572, %v6563
      %v6587 = vmul.f32 %v6573, %v6563
      %v6588 = vmul.f32 %v6574, %v6563
      %v6589 = vmul.f32 %v6575, %v6563
      %v6590 = vmul.f32 %v6576, %v6563
      %v6591 = vmul.f32 %v6577, %v6563
      %v6606 = vrot.slane %v6578, 2
      %v6607 = vrot.slane %v6579, 2
      %v6608 = vsel %vm1488, %v6606, %v6607
      %v6609 = vrot.slane %v6580, 2
      %v6610 = vrot.slane %v6581, 2
      %v6611 = vsel %vm1488, %v6609, %v6610
      %v6612 = vrot.slane %v6582, 2
      %v6613 = vrot.slane %v6583, 2
      %v6614 = vsel %vm1488, %v6612, %v6613
      %v6615 = vrot.slane %v6584, 2
      %v6616 = vrot.slane %v6585, 2
      %v6617 = vsel %vm1488, %v6615, %v6616
      %v6618 = vrot.slane %v6586, 2
      %v6619 = vrot.slane %v6587, 2
      %v6620 = vsel %vm1488, %v6618, %v6619
      %v6621 = vrot.slane %v6588, 2
      %v6622 = vrot.slane %v6589, 2
      %v6623 = vsel %vm1488, %v6621, %v6622
      %v6624 = vrot.slane %v6590, 2
      %v6625 = vrot.slane %v6591, 2
      %v6626 = vsel %vm1488, %v6624, %v6625
      %v6634 = vadd.f32 %v6556, %v6608
      %v6635 = vadd.f32 %v6557, %v6611
      %v6636 = vadd.f32 %v6558, %v6614
      %v6637 = vadd.f32 %v6559, %v6617
      %v6638 = vadd.f32 %v6560, %v6620
      %v6639 = vadd.f32 %v6561, %v6623
      %v6640 = vadd.f32 %v6562, %v6626
      %v6641 = vpack.c.bf16 %v6634, %v6634
      %v6642 = vpack.c.bf16 %v6635, %v6635
      %v6643 = vpack.c.bf16 %v6636, %v6636
      %v6644 = vpack.c.bf16 %v6637, %v6637
      %v6645 = vpack.c.bf16 %v6638, %v6638
      %v6646 = vpack.c.bf16 %v6639, %v6639
      %v6647 = vpack.c.bf16 %v6640, %v6640
      %v6648 = vld [vmem:[%s163 + $0x10] sm:$0xf]
      %v6649 = vsel %vm2375, %v6641, %v6648
      %6650 = vst [vmem:[%s163 + $0x10] sm:$0xf] %v6649
      %v6651 = vld [vmem:[%s163 + $0x24] sm:$0xf]
      %v6652 = vsel %vm2375, %v6642, %v6651
      %6653 = vst [vmem:[%s163 + $0x24] sm:$0xf] %v6652
      %v6654 = vld [vmem:[%s163 + $0x38] sm:$0xf]
      %v6655 = vsel %vm2375, %v6643, %v6654
      %6656 = vst [vmem:[%s163 + $0x38] sm:$0xf] %v6655
      %v6657 = vld [vmem:[%s163 + $0x4c] sm:$0xf]
      %v6658 = vsel %vm2375, %v6644, %v6657
      %6659 = vst [vmem:[%s163 + $0x4c] sm:$0xf] %v6658
      %v6660 = vld [vmem:[%s163 + $0x60] sm:$0xf]
      %v6661 = vsel %vm2375, %v6645, %v6660
      %6662 = vst [vmem:[%s163 + $0x60] sm:$0xf] %v6661
      %v6663 = vld [vmem:[%s163 + $0x74] sm:$0xf]
      %v6664 = vsel %vm2375, %v6646, %v6663
      %6665 = vst [vmem:[%s163 + $0x74] sm:$0xf] %v6664
      %v6666 = vld [vmem:[%s163 + $0x88] sm:$0xf]
      %v6667 = vsel %vm2375, %v6647, %v6666
      %6668 = vst [vmem:[%s163 + $0x88] sm:$0xf] %v6667
      %p6669 = scmp.lt.s32.totalorder %s13, 1
      %s6670 = scalar_select %p6669, %s13, 1
      %s6671 = smul.addr %s6670, 35
      %s6672 = smul.addr %s6671, 4
      %s6673 = scalar_lea.vmem %s2, %s6672
      // Predicated region
      $region29: #{depthwise_conv5x5_s2.1} parent=27 // pred_check
        %p6674 = pneg %p83
      $region30: #{depthwise_conv5x5_s2.1} parent=27 // pred_check_branch
        %6676 = sbr.rel (%p6674) target = $region32
      $region31: #{depthwise_conv5x5_s2.1} parent=27 // pred_region
        _
      $region32: #{depthwise_conv5x5_s2.1} parent=27 // pred_fallthru
        _
    $region28: #{depthwise_conv5x5_s2.1} parent=5 // pred_fallthru
      _
    %p6677 = scmp.le.s32.totalorder 2, %s8
    // Predicated region
    $region33: #{depthwise_conv5x5_s2.1} parent=5 // pred_check
      %p6678 = pneg %p6677
    $region34: #{depthwise_conv5x5_s2.1} parent=5 // pred_check_branch
      %6680 = sbr.rel (%p6678) target = $region36
    $region35: #{depthwise_conv5x5_s2.1} parent=5 // pred_region
      %s6681 = ssub.s32 %s8, 2
      // Predicated region
      $region37: #{depthwise_conv5x5_s2.1} parent=35 // pred_check
        %p6682 = pneg %p89
      $region38: #{depthwise_conv5x5_s2.1} parent=35 // pred_check_branch
        %6684 = sbr.rel (%p6682) target = $region40
      $region39: #{depthwise_conv5x5_s2.1} parent=35 // pred_region
        %p6685 = scmp.lt.s32.totalorder %s14, 1
        %s6686 = scalar_select %p6685, %s14, 1
        %s6687 = smul.addr %s6686, 35
        %s6688 = smul.addr %s6687, 4
        %s6689 = scalar_lea.vmem %s2, %s6688
      $region40: #{depthwise_conv5x5_s2.1} parent=35 // pred_fallthru
        _
    $region36: #{depthwise_conv5x5_s2.1} parent=5 // pred_fallthru
      _
  $region6: #{depthwise_conv5x5_s2.1} parent=0 // loop_footer
    %s12 = sadd.s32 1, %s8
  $region7: #{depthwise_conv5x5_s2.1} parent=0 // loop_footer_branch
    %7 = sbr.rel target = $region3
  $region8: #{depthwise_conv5x5_s2.1} parent=0 // loop_exit
    _

</llo_original>
